<compile_context>
chip_gen: v5e
topology: v5e:2x2
jax: 0.10.0
libtpu: 0.0.40
codegen_flags: <defaults>
</compile_context>

<pallas_src>
import math
from functools import partial

import jax
import jax.numpy as jnp
from jax.experimental import pallas as pl
from jax.experimental.pallas import tpu as pltpu

LN_EPS = 1e-5  # PyTorch LayerNorm default


def _layernorm(y, w, b):
    # Fused one-pass stats: var = E[y^2] - mu^2; (y - mu) computed once.
    mu = jnp.mean(y, axis=-1, keepdims=True)
    ms = jnp.mean(y * y, axis=-1, keepdims=True)
    inv = jax.lax.rsqrt(ms - mu * mu + LN_EPS)
    return (y - mu) * inv * w + b


def _transformer_kernel(B, S,
                        x_ref, ew_ref, eb_ref,
                        qw_ref, kw_ref, vw_ref,
                        qb_ref, kb_ref, vb_ref,
                        ow_ref, ob_ref,
                        n1w_ref, n1b_ref, n2w_ref, n2b_ref,
                        f1w_ref, f1b_ref, f2w_ref, f2b_ref,
                        fcw_ref, fcb_ref, o_ref):
    BS = B * S
    L, H, E, DH = qw_ref.shape
    scale = 1.0 / math.sqrt(DH)
    f32 = jnp.float32
    bf16 = jnp.bfloat16

    # ---- embedding Linear(1, E), fused over batch*seq (x already (BS,1) from host) ----
    h = x_ref[...] * ew_ref[...] + eb_ref[...]                    # (BS,1)*(1,E) -> (BS,E)

    # Layer loop is tiny and static -> unrolled at trace time.
    for l in range(L):
        n1w = n1w_ref[l]; n1b = n1b_ref[l]
        n2w = n2w_ref[l]; n2b = n2b_ref[l]
        ob = ob_ref[l]
        f1b = f1b_ref[l]; f2b = f2b_ref[l]

        # ---- multi-head self-attention (eval-mode dropout = identity) ----
        h16 = h.astype(bf16)                      # one cast, reused by all q/k/v dots
        attn = jnp.zeros((BS, E), f32)
        for hd in range(H):
            # Per-head weights are static ref slices (free) -> no activation lane slicing.
            qh = jnp.dot(h16, qw_ref[l, hd], preferred_element_type=f32) + qb_ref[l, hd]
            kh = jnp.dot(h16, kw_ref[l, hd], preferred_element_type=f32) + kb_ref[l, hd]
            vh = jnp.dot(h16, vw_ref[l, hd], preferred_element_type=f32) + vb_ref[l, hd]
            q3 = qh.reshape(B, S, DH)             # leading-dim split: free
            k3 = kh.reshape(B, S, DH)
            v3 = vh.reshape(B, S, DH)
            s = jnp.einsum('bqd,bkd->bqk', q3, k3,
                           preferred_element_type=f32) * scale    # (B,S,S)
            s = s - jnp.max(s, axis=-1, keepdims=True)
            p = jnp.exp(s)
            p = p * pl.reciprocal(jnp.sum(p, axis=-1, keepdims=True), approx=True)
            ctx = jnp.einsum('bqk,bkd->bqd', p, v3,
                             preferred_element_type=f32)          # (B,S,DH)
            # Out-projection distributes over heads -> no concat of head outputs.
            attn += jnp.dot(ctx.reshape(BS, DH).astype(bf16), ow_ref[l, hd],
                            preferred_element_type=f32)
        h = _layernorm(h + attn + ob, n1w, n1b)

        # ---- feed-forward (ReLU); FF=2048 stays lane-major ----
        ff = jnp.dot(h.astype(bf16), f1w_ref[l], preferred_element_type=f32) + f1b
        ff = jnp.maximum(ff, 0.0)
        ff = jnp.dot(ff.astype(bf16), f2w_ref[l], preferred_element_type=f32) + f2b
        h = _layernorm(h + ff, n2w, n2b)

    # ---- mean over seq + final FC, single full-block output store ----
    pooled = jnp.mean(h.reshape(B, S, E), axis=1)                 # (B,E)
    o_ref[...] = jnp.dot(pooled.astype(bf16), fcw_ref[...],
                         preferred_element_type=f32) + fcb_ref[...]   # (B,C)


def prepare_kernel_params(p, nhead):
    """Host-side: split in_proj into per-head q/k/v stacks, reshape out_proj into
    per-head (DH,E) blocks, and cast every MXU weight operand to bf16 (biases and
    LayerNorm params stay f32)."""
    L, E, _ = p["in_w"].shape
    H = nhead
    DH = E // H
    bf = lambda a: a.astype(jnp.bfloat16)

    def split_heads(w):                       # (L,E,E) -> (L,H,E,DH)
        return w.reshape(L, E, H, DH).transpose(0, 2, 1, 3)

    in_w = p["in_w"]                          # (L, E, 3E) in (in, out) layout
    in_b = p["in_b"].reshape(L, 3 * E)
    qw = split_heads(in_w[:, :, 0 * E:1 * E])
    kw = split_heads(in_w[:, :, 1 * E:2 * E])
    vw = split_heads(in_w[:, :, 2 * E:3 * E])
    qb = in_b[:, 0 * E:1 * E].reshape(L, H, 1, DH)
    kb = in_b[:, 1 * E:2 * E].reshape(L, H, 1, DH)
    vb = in_b[:, 2 * E:3 * E].reshape(L, H, 1, DH)
    ow = p["out_w"].reshape(L, H, DH, E)      # concat-head input axis split per head

    return dict(
        emb_w=p["emb_w"], emb_b=p["emb_b"],
        qw=bf(qw), kw=bf(kw), vw=bf(vw), qb=qb, kb=kb, vb=vb,
        ow=bf(ow), ob=p["out_b"],
        ln1_w=p["ln1_w"], ln1_b=p["ln1_b"], ln2_w=p["ln2_w"], ln2_b=p["ln2_b"],
        ff1_w=bf(p["ff1_w"]), ff1_b=p["ff1_b"],
        ff2_w=bf(p["ff2_w"]), ff2_b=p["ff2_b"],
        fc_w=bf(p["fc_w"]), fc_b=p["fc_b"])


def transformer_forward_pallas(x, kp):
    B, S = x.shape
    C = kp["fc_w"].shape[1]
    xcol = x.reshape(B * S, 1)                # host-side reshape (free, lane-major embed)
    args = [xcol,
            kp["emb_w"], kp["emb_b"],
            kp["qw"], kp["kw"], kp["vw"], kp["qb"], kp["kb"], kp["vb"],
            kp["ow"], kp["ob"],
            kp["ln1_w"], kp["ln1_b"], kp["ln2_w"], kp["ln2_b"],
            kp["ff1_w"], kp["ff1_b"], kp["ff2_w"], kp["ff2_b"],
            kp["fc_w"], kp["fc_b"]]
    vmem = pl.BlockSpec(memory_space=pltpu.MemorySpace.VMEM)
    return pl.pallas_call(
        partial(_transformer_kernel, B, S),
        out_shape=jax.ShapeDtypeStruct((B, C), jnp.float32),
        in_specs=[vmem] * len(args),
        out_specs=vmem,
    )(*args)


def init_params(key, E, FF, L, C):
    ks = jax.random.split(key, 12)
    w = lambda k, shape: jax.random.normal(k, shape, jnp.float32) * 0.05
    return dict(
        emb_w=w(ks[0], (1, E)),            # Linear(1, E).weight stored as (in, out)
        emb_b=w(ks[1], (1, E)),
        in_w=w(ks[2], (L, E, 3 * E)),      # MHA in_proj_weight.T
        in_b=w(ks[3], (L, 1, 3 * E)),
        out_w=w(ks[4], (L, E, E)),         # MHA out_proj.weight.T
        out_b=w(ks[5], (L, 1, E)),
        ln1_w=jnp.ones((L, 1, E), jnp.float32),
        ln1_b=jnp.zeros((L, 1, E), jnp.float32),
        ln2_w=jnp.ones((L, 1, E), jnp.float32),
        ln2_b=jnp.zeros((L, 1, E), jnp.float32),
        ff1_w=w(ks[6], (L, E, FF)),        # linear1.weight.T
        ff1_b=w(ks[7], (L, 1, FF)),
        ff2_w=w(ks[8], (L, FF, E)),        # linear2.weight.T
        ff2_b=w(ks[9], (L, 1, E)),
        fc_w=w(ks[10], (E, C)),            # fc.weight.T
        fc_b=w(ks[11], (1, C)),
    )


def reference_forward(x, p, nhead):
    """Pure-JAX reference of the PyTorch forward (eval mode), for self-check."""
    B, S = x.shape
    L, E, _ = p["in_w"].shape
    DH = E // nhead

    def ln(y, w, b):
        mu = y.mean(-1, keepdims=True)
        var = ((y - mu) ** 2).mean(-1, keepdims=True)
        return (y - mu) / jnp.sqrt(var + LN_EPS) * w + b

    h = x[:, :, None] * p["emb_w"].reshape(E) + p["emb_b"].reshape(E)   # (B, S, E)
    for l in range(L):
        qkv = h @ p["in_w"][l] + p["in_b"][l]
        q, k, v = jnp.split(qkv, 3, axis=-1)
        q = q.reshape(B, S, nhead, DH).transpose(0, 2, 1, 3)
        k = k.reshape(B, S, nhead, DH).transpose(0, 2, 1, 3)
        v = v.reshape(B, S, nhead, DH).transpose(0, 2, 1, 3)
        s = jnp.einsum("bhqd,bhkd->bhqk", q, k) / jnp.sqrt(DH)
        a = jnp.einsum("bhqk,bhkd->bhqd", jax.nn.softmax(s, axis=-1), v)
        a = a.transpose(0, 2, 1, 3).reshape(B, S, E)
        a = a @ p["out_w"][l] + p["out_b"][l]
        h = ln(h + a, p["ln1_w"][l], p["ln1_b"][l])
        ff = jax.nn.relu(h @ p["ff1_w"][l] + p["ff1_b"][l])
        ff = ff @ p["ff2_w"][l] + p["ff2_b"][l]
        h = ln(h + ff, p["ln2_w"][l], p["ln2_b"][l])
    pooled = h.mean(axis=1)                    # mean over seq (dim=0 in seq-major torch)
    return pooled @ p["fc_w"] + p["fc_b"]


if __name__ == "__main__":
    # Small shapes consistent with the module: batch=2, features(seq)=16,
    # embedding_dim=32, nhead=4, num_layers=2, num_classes=2, dim_feedforward=2048.
    B, S = 2, 16
    E, H, L, FF, C = 32, 4, 2, 2048, 2

    key = jax.random.PRNGKey(0)
    kx, kw = jax.random.split(key)

    # Positive data + clr_transform glue (matches the reference preprocessing).
    raw = jax.random.uniform(kx, (B, S), jnp.float32, minval=0.1, maxval=1.0)
    raw = jnp.where(raw <= 0, 1e-8, raw)
    logx = jnp.log(raw)
    x = logx - jnp.mean(logx, axis=1, keepdims=True)

    params = init_params(kw, E, FF, L, C)
    kparams = prepare_kernel_params(params, H)

    out = transformer_forward_pallas(x, kparams)
    out = jax.block_until_ready(out)

    # Self-check against an f32 reference evaluated with the same bf16-rounded weights
    # the kernel actually uses; remaining differences come from bf16 activation casts
    # at the dots, fused LayerNorm stats and the approx-reciprocal softmax denominator.
    rb = lambda a: a.astype(jnp.bfloat16).astype(jnp.float32)
    ref_params = dict(params)
    for name in ("in_w", "out_w", "ff1_w", "ff2_w", "fc_w"):
        ref_params[name] = rb(params[name])
    ref = reference_forward(x, ref_params, H)

    assert out.shape == (B, C), out.shape
    assert jnp.allclose(out, ref, rtol=2e-2, atol=2e-2), (out, ref)
    print("KERNEL_OK")
</pallas_src>

<mosaic_0001>
module attributes {stable_mosaic.version = 11 : i64} {
  func.func @_transformer_kernel(%arg0: memref<32x1xf32, #tpu.memory_space<vmem>>, %arg1: memref<1x32xf32, #tpu.memory_space<vmem>>, %arg2: memref<1x32xf32, #tpu.memory_space<vmem>>, %arg3: memref<2x4x32x8xbf16, #tpu.memory_space<vmem>>, %arg4: memref<2x4x32x8xbf16, #tpu.memory_space<vmem>>, %arg5: memref<2x4x32x8xbf16, #tpu.memory_space<vmem>>, %arg6: memref<2x4x1x8xf32, #tpu.memory_space<vmem>>, %arg7: memref<2x4x1x8xf32, #tpu.memory_space<vmem>>, %arg8: memref<2x4x1x8xf32, #tpu.memory_space<vmem>>, %arg9: memref<2x4x8x32xbf16, #tpu.memory_space<vmem>>, %arg10: memref<2x1x32xf32, #tpu.memory_space<vmem>>, %arg11: memref<2x1x32xf32, #tpu.memory_space<vmem>>, %arg12: memref<2x1x32xf32, #tpu.memory_space<vmem>>, %arg13: memref<2x1x32xf32, #tpu.memory_space<vmem>>, %arg14: memref<2x1x32xf32, #tpu.memory_space<vmem>>, %arg15: memref<2x32x2048xbf16, #tpu.memory_space<vmem>>, %arg16: memref<2x1x2048xf32, #tpu.memory_space<vmem>>, %arg17: memref<2x2048x32xbf16, #tpu.memory_space<vmem>>, %arg18: memref<2x1x32xf32, #tpu.memory_space<vmem>>, %arg19: memref<32x2xbf16, #tpu.memory_space<vmem>>, %arg20: memref<1x2xf32, #tpu.memory_space<vmem>>, %arg21: memref<2x2xf32, #tpu.memory_space<vmem>>) attributes {dimension_semantics = [], scalar_prefetch = 0 : i64, scratch_operands = 0 : i64, tpu.core_type = #tpu.core_type<tc>} {
    %c0 = arith.constant 0 : index
    %c0_0 = arith.constant 0 : index
    %0 = vector.load %arg0[%c0, %c0_0] : memref<32x1xf32, #tpu.memory_space<vmem>>, vector<32x1xf32>
    %c0_1 = arith.constant 0 : index
    %c0_2 = arith.constant 0 : index
    %1 = vector.load %arg1[%c0_1, %c0_2] : memref<1x32xf32, #tpu.memory_space<vmem>>, vector<1x32xf32>
    %2 = vector.broadcast %0 : vector<32x1xf32> to vector<32x32xf32>
    %3 = vector.broadcast %1 : vector<1x32xf32> to vector<32x32xf32>
    %4 = arith.mulf %2, %3 : vector<32x32xf32>
    %c0_3 = arith.constant 0 : index
    %c0_4 = arith.constant 0 : index
    %5 = vector.load %arg2[%c0_3, %c0_4] : memref<1x32xf32, #tpu.memory_space<vmem>>, vector<1x32xf32>
    %6 = vector.broadcast %5 : vector<1x32xf32> to vector<32x32xf32>
    %7 = arith.addf %4, %6 : vector<32x32xf32>
    %c0_5 = arith.constant 0 : index
    %c0_6 = arith.constant 0 : index
    %c0_7 = arith.constant 0 : index
    %8 = vector.load %arg11[%c0_5, %c0_6, %c0_7] : memref<2x1x32xf32, #tpu.memory_space<vmem>>, vector<1x1x32xf32>
    %9 = vector.shape_cast %8 : vector<1x1x32xf32> to vector<1x32xf32>
    %c0_8 = arith.constant 0 : index
    %c0_9 = arith.constant 0 : index
    %c0_10 = arith.constant 0 : index
    %10 = vector.load %arg12[%c0_8, %c0_9, %c0_10] : memref<2x1x32xf32, #tpu.memory_space<vmem>>, vector<1x1x32xf32>
    %11 = vector.shape_cast %10 : vector<1x1x32xf32> to vector<1x32xf32>
    %c0_11 = arith.constant 0 : index
    %c0_12 = arith.constant 0 : index
    %c0_13 = arith.constant 0 : index
    %12 = vector.load %arg13[%c0_11, %c0_12, %c0_13] : memref<2x1x32xf32, #tpu.memory_space<vmem>>, vector<1x1x32xf32>
    %13 = vector.shape_cast %12 : vector<1x1x32xf32> to vector<1x32xf32>
    %c0_14 = arith.constant 0 : index
    %c0_15 = arith.constant 0 : index
    %c0_16 = arith.constant 0 : index
    %14 = vector.load %arg14[%c0_14, %c0_15, %c0_16] : memref<2x1x32xf32, #tpu.memory_space<vmem>>, vector<1x1x32xf32>
    %15 = vector.shape_cast %14 : vector<1x1x32xf32> to vector<1x32xf32>
    %c0_17 = arith.constant 0 : index
    %c0_18 = arith.constant 0 : index
    %c0_19 = arith.constant 0 : index
    %16 = vector.load %arg10[%c0_17, %c0_18, %c0_19] : memref<2x1x32xf32, #tpu.memory_space<vmem>>, vector<1x1x32xf32>
    %17 = vector.shape_cast %16 : vector<1x1x32xf32> to vector<1x32xf32>
    %c0_20 = arith.constant 0 : index
    %c0_21 = arith.constant 0 : index
    %c0_22 = arith.constant 0 : index
    %18 = vector.load %arg16[%c0_20, %c0_21, %c0_22] : memref<2x1x2048xf32, #tpu.memory_space<vmem>>, vector<1x1x2048xf32>
    %19 = vector.shape_cast %18 : vector<1x1x2048xf32> to vector<1x2048xf32>
    %c0_23 = arith.constant 0 : index
    %c0_24 = arith.constant 0 : index
    %c0_25 = arith.constant 0 : index
    %20 = vector.load %arg18[%c0_23, %c0_24, %c0_25] : memref<2x1x32xf32, #tpu.memory_space<vmem>>, vector<1x1x32xf32>
    %21 = vector.shape_cast %20 : vector<1x1x32xf32> to vector<1x32xf32>
    %22 = arith.truncf %7 : vector<32x32xf32> to vector<32x32xbf16>
    %cst = arith.constant 0.000000e+00 : f32
    %23 = vector.broadcast %cst : f32 to vector<32x32xf32>
    %c0_26 = arith.constant 0 : index
    %c0_27 = arith.constant 0 : index
    %c0_28 = arith.constant 0 : index
    %c0_29 = arith.constant 0 : index
    %24 = vector.load %arg3[%c0_26, %c0_27, %c0_28, %c0_29] : memref<2x4x32x8xbf16, #tpu.memory_space<vmem>>, vector<1x1x32x8xbf16>
    %25 = vector.shape_cast %24 : vector<1x1x32x8xbf16> to vector<32x8xbf16>
    %cst_30 = arith.constant dense<0.000000e+00> : vector<32x8xf32>
    %26 = tpu.matmul %22, %25, %cst_30 {dimension_numbers = #tpu.dot_dimension_numbers<[1], [0], [0], [1], [0, 0, 1, 1], [], []>} : vector<32x32xbf16>, vector<32x8xbf16>, vector<32x8xf32> -> vector<32x8xf32>
    %c0_31 = arith.constant 0 : index
    %c0_32 = arith.constant 0 : index
    %c0_33 = arith.constant 0 : index
    %c0_34 = arith.constant 0 : index
    %27 = vector.load %arg6[%c0_31, %c0_32, %c0_33, %c0_34] : memref<2x4x1x8xf32, #tpu.memory_space<vmem>>, vector<1x1x1x8xf32>
    %28 = vector.shape_cast %27 : vector<1x1x1x8xf32> to vector<1x8xf32>
    %29 = vector.broadcast %28 : vector<1x8xf32> to vector<32x8xf32>
    %30 = arith.addf %26, %29 : vector<32x8xf32>
    %c0_35 = arith.constant 0 : index
    %c0_36 = arith.constant 0 : index
    %c0_37 = arith.constant 0 : index
    %c0_38 = arith.constant 0 : index
    %31 = vector.load %arg4[%c0_35, %c0_36, %c0_37, %c0_38] : memref<2x4x32x8xbf16, #tpu.memory_space<vmem>>, vector<1x1x32x8xbf16>
    %32 = vector.shape_cast %31 : vector<1x1x32x8xbf16> to vector<32x8xbf16>
    %cst_39 = arith.constant dense<0.000000e+00> : vector<32x8xf32>
    %33 = tpu.matmul %22, %32, %cst_39 {dimension_numbers = #tpu.dot_dimension_numbers<[1], [0], [0], [1], [0, 0, 1, 1], [], []>} : vector<32x32xbf16>, vector<32x8xbf16>, vector<32x8xf32> -> vector<32x8xf32>
    %c0_40 = arith.constant 0 : index
    %c0_41 = arith.constant 0 : index
    %c0_42 = arith.constant 0 : index
    %c0_43 = arith.constant 0 : index
    %34 = vector.load %arg7[%c0_40, %c0_41, %c0_42, %c0_43] : memref<2x4x1x8xf32, #tpu.memory_space<vmem>>, vector<1x1x1x8xf32>
    %35 = vector.shape_cast %34 : vector<1x1x1x8xf32> to vector<1x8xf32>
    %36 = vector.broadcast %35 : vector<1x8xf32> to vector<32x8xf32>
    %37 = arith.addf %33, %36 : vector<32x8xf32>
    %c0_44 = arith.constant 0 : index
    %c0_45 = arith.constant 0 : index
    %c0_46 = arith.constant 0 : index
    %c0_47 = arith.constant 0 : index
    %38 = vector.load %arg5[%c0_44, %c0_45, %c0_46, %c0_47] : memref<2x4x32x8xbf16, #tpu.memory_space<vmem>>, vector<1x1x32x8xbf16>
    %39 = vector.shape_cast %38 : vector<1x1x32x8xbf16> to vector<32x8xbf16>
    %cst_48 = arith.constant dense<0.000000e+00> : vector<32x8xf32>
    %40 = tpu.matmul %22, %39, %cst_48 {dimension_numbers = #tpu.dot_dimension_numbers<[1], [0], [0], [1], [0, 0, 1, 1], [], []>} : vector<32x32xbf16>, vector<32x8xbf16>, vector<32x8xf32> -> vector<32x8xf32>
    %c0_49 = arith.constant 0 : index
    %c0_50 = arith.constant 0 : index
    %c0_51 = arith.constant 0 : index
    %c0_52 = arith.constant 0 : index
    %41 = vector.load %arg8[%c0_49, %c0_50, %c0_51, %c0_52] : memref<2x4x1x8xf32, #tpu.memory_space<vmem>>, vector<1x1x1x8xf32>
    %42 = vector.shape_cast %41 : vector<1x1x1x8xf32> to vector<1x8xf32>
    %43 = vector.broadcast %42 : vector<1x8xf32> to vector<32x8xf32>
    %44 = arith.addf %40, %43 : vector<32x8xf32>
    %45 = vector.shape_cast %30 : vector<32x8xf32> to vector<2x16x8xf32>
    %46 = vector.shape_cast %37 : vector<32x8xf32> to vector<2x16x8xf32>
    %47 = vector.shape_cast %44 : vector<32x8xf32> to vector<2x16x8xf32>
    "tpu.trace_start"() <{level = 10 : i32, message = "bqd,bkd->bqk"}> : () -> ()
    %cst_53 = arith.constant dense<0.000000e+00> : vector<2x16x16xf32>
    %48 = tpu.matmul %45, %46, %cst_53 {dimension_numbers = #tpu.dot_dimension_numbers<[2], [2], [1], [1], [0, 0, 0, 1, 1, 1], [0], [0]>} : vector<2x16x8xf32>, vector<2x16x8xf32>, vector<2x16x16xf32> -> vector<2x16x16xf32>
    "tpu.trace_stop"() : () -> ()
    %cst_54 = arith.constant 0.353553385 : f32
    %49 = vector.broadcast %cst_54 : f32 to vector<2x16x16xf32>
    %50 = arith.mulf %48, %49 : vector<2x16x16xf32>
    %cst_55 = arith.constant dense<0xFF800000> : vector<2x16xf32>
    %51 = vector.multi_reduction <maximumf>, %50, %cst_55 [2] : vector<2x16x16xf32> to vector<2x16xf32>
    %52 = vector.shape_cast %51 : vector<2x16xf32> to vector<2x16x1xf32>
    %53 = vector.broadcast %52 : vector<2x16x1xf32> to vector<2x16x16xf32>
    %54 = arith.subf %50, %53 : vector<2x16x16xf32>
    %55 = math.exp %54 : vector<2x16x16xf32>
    %cst_56 = arith.constant dense<0.000000e+00> : vector<2x16xf32>
    %56 = vector.multi_reduction <add>, %55, %cst_56 [2] : vector<2x16x16xf32> to vector<2x16xf32>
    %57 = vector.shape_cast %56 : vector<2x16xf32> to vector<2x16x1xf32>
    %58 = tpu.reciprocal %57 {approx = true} : vector<2x16x1xf32> -> vector<2x16x1xf32>
    %59 = vector.broadcast %58 : vector<2x16x1xf32> to vector<2x16x16xf32>
    %60 = arith.mulf %55, %59 : vector<2x16x16xf32>
    "tpu.trace_start"() <{level = 10 : i32, message = "bqk,bkd->bqd"}> : () -> ()
    %cst_57 = arith.constant dense<0.000000e+00> : vector<2x16x8xf32>
    %61 = tpu.matmul %60, %47, %cst_57 {dimension_numbers = #tpu.dot_dimension_numbers<[2], [1], [1], [2], [0, 0, 0, 1, 1, 2], [0], [0]>} : vector<2x16x16xf32>, vector<2x16x8xf32>, vector<2x16x8xf32> -> vector<2x16x8xf32>
    "tpu.trace_stop"() : () -> ()
    %62 = vector.shape_cast %61 : vector<2x16x8xf32> to vector<32x8xf32>
    %63 = arith.truncf %62 : vector<32x8xf32> to vector<32x8xbf16>
    %c0_58 = arith.constant 0 : index
    %c0_59 = arith.constant 0 : index
    %c0_60 = arith.constant 0 : index
    %c0_61 = arith.constant 0 : index
    %64 = vector.load %arg9[%c0_58, %c0_59, %c0_60, %c0_61] : memref<2x4x8x32xbf16, #tpu.memory_space<vmem>>, vector<1x1x8x32xbf16>
    %65 = vector.shape_cast %64 : vector<1x1x8x32xbf16> to vector<8x32xbf16>
    %cst_62 = arith.constant dense<0.000000e+00> : vector<32x32xf32>
    %66 = tpu.matmul %63, %65, %cst_62 {dimension_numbers = #tpu.dot_dimension_numbers<[1], [0], [0], [1], [0, 0, 1, 1], [], []>} : vector<32x8xbf16>, vector<8x32xbf16>, vector<32x32xf32> -> vector<32x32xf32>
    %67 = arith.addf %23, %66 : vector<32x32xf32>
    %c0_63 = arith.constant 0 : index
    %c1 = arith.constant 1 : index
    %c0_64 = arith.constant 0 : index
    %c0_65 = arith.constant 0 : index
    %68 = vector.load %arg3[%c0_63, %c1, %c0_64, %c0_65] : memref<2x4x32x8xbf16, #tpu.memory_space<vmem>>, vector<1x1x32x8xbf16>
    %69 = vector.shape_cast %68 : vector<1x1x32x8xbf16> to vector<32x8xbf16>
    %cst_66 = arith.constant dense<0.000000e+00> : vector<32x8xf32>
    %70 = tpu.matmul %22, %69, %cst_66 {dimension_numbers = #tpu.dot_dimension_numbers<[1], [0], [0], [1], [0, 0, 1, 1], [], []>} : vector<32x32xbf16>, vector<32x8xbf16>, vector<32x8xf32> -> vector<32x8xf32>
    %c0_67 = arith.constant 0 : index
    %c1_68 = arith.constant 1 : index
    %c0_69 = arith.constant 0 : index
    %c0_70 = arith.constant 0 : index
    %71 = vector.load %arg6[%c0_67, %c1_68, %c0_69, %c0_70] : memref<2x4x1x8xf32, #tpu.memory_space<vmem>>, vector<1x1x1x8xf32>
    %72 = vector.shape_cast %71 : vector<1x1x1x8xf32> to vector<1x8xf32>
    %73 = vector.broadcast %72 : vector<1x8xf32> to vector<32x8xf32>
    %74 = arith.addf %70, %73 : vector<32x8xf32>
    %c0_71 = arith.constant 0 : index
    %c1_72 = arith.constant 1 : index
    %c0_73 = arith.constant 0 : index
    %c0_74 = arith.constant 0 : index
    %75 = vector.load %arg4[%c0_71, %c1_72, %c0_73, %c0_74] : memref<2x4x32x8xbf16, #tpu.memory_space<vmem>>, vector<1x1x32x8xbf16>
    %76 = vector.shape_cast %75 : vector<1x1x32x8xbf16> to vector<32x8xbf16>
    %cst_75 = arith.constant dense<0.000000e+00> : vector<32x8xf32>
    %77 = tpu.matmul %22, %76, %cst_75 {dimension_numbers = #tpu.dot_dimension_numbers<[1], [0], [0], [1], [0, 0, 1, 1], [], []>} : vector<32x32xbf16>, vector<32x8xbf16>, vector<32x8xf32> -> vector<32x8xf32>
    %c0_76 = arith.constant 0 : index
    %c1_77 = arith.constant 1 : index
    %c0_78 = arith.constant 0 : index
    %c0_79 = arith.constant 0 : index
    %78 = vector.load %arg7[%c0_76, %c1_77, %c0_78, %c0_79] : memref<2x4x1x8xf32, #tpu.memory_space<vmem>>, vector<1x1x1x8xf32>
    %79 = vector.shape_cast %78 : vector<1x1x1x8xf32> to vector<1x8xf32>
    %80 = vector.broadcast %79 : vector<1x8xf32> to vector<32x8xf32>
    %81 = arith.addf %77, %80 : vector<32x8xf32>
    %c0_80 = arith.constant 0 : index
    %c1_81 = arith.constant 1 : index
    %c0_82 = arith.constant 0 : index
    %c0_83 = arith.constant 0 : index
    %82 = vector.load %arg5[%c0_80, %c1_81, %c0_82, %c0_83] : memref<2x4x32x8xbf16, #tpu.memory_space<vmem>>, vector<1x1x32x8xbf16>
    %83 = vector.shape_cast %82 : vector<1x1x32x8xbf16> to vector<32x8xbf16>
    %cst_84 = arith.constant dense<0.000000e+00> : vector<32x8xf32>
    %84 = tpu.matmul %22, %83, %cst_84 {dimension_numbers = #tpu.dot_dimension_numbers<[1], [0], [0], [1], [0, 0, 1, 1], [], []>} : vector<32x32xbf16>, vector<32x8xbf16>, vector<32x8xf32> -> vector<32x8xf32>
    %c0_85 = arith.constant 0 : index
    %c1_86 = arith.constant 1 : index
    %c0_87 = arith.constant 0 : index
    %c0_88 = arith.constant 0 : index
    %85 = vector.load %arg8[%c0_85, %c1_86, %c0_87, %c0_88] : memref<2x4x1x8xf32, #tpu.memory_space<vmem>>, vector<1x1x1x8xf32>
    %86 = vector.shape_cast %85 : vector<1x1x1x8xf32> to vector<1x8xf32>
    %87 = vector.broadcast %86 : vector<1x8xf32> to vector<32x8xf32>
    %88 = arith.addf %84, %87 : vector<32x8xf32>
    %89 = vector.shape_cast %74 : vector<32x8xf32> to vector<2x16x8xf32>
    %90 = vector.shape_cast %81 : vector<32x8xf32> to vector<2x16x8xf32>
    %91 = vector.shape_cast %88 : vector<32x8xf32> to vector<2x16x8xf32>
    "tpu.trace_start"() <{level = 10 : i32, message = "bqd,bkd->bqk"}> : () -> ()
    %cst_89 = arith.constant dense<0.000000e+00> : vector<2x16x16xf32>
    %92 = tpu.matmul %89, %90, %cst_89 {dimension_numbers = #tpu.dot_dimension_numbers<[2], [2], [1], [1], [0, 0, 0, 1, 1, 1], [0], [0]>} : vector<2x16x8xf32>, vector<2x16x8xf32>, vector<2x16x16xf32> -> vector<2x16x16xf32>
    "tpu.trace_stop"() : () -> ()
    %cst_90 = arith.constant 0.353553385 : f32
    %93 = vector.broadcast %cst_90 : f32 to vector<2x16x16xf32>
    %94 = arith.mulf %92, %93 : vector<2x16x16xf32>
    %cst_91 = arith.constant dense<0xFF800000> : vector<2x16xf32>
    %95 = vector.multi_reduction <maximumf>, %94, %cst_91 [2] : vector<2x16x16xf32> to vector<2x16xf32>
    %96 = vector.shape_cast %95 : vector<2x16xf32> to vector<2x16x1xf32>
    %97 = vector.broadcast %96 : vector<2x16x1xf32> to vector<2x16x16xf32>
    %98 = arith.subf %94, %97 : vector<2x16x16xf32>
    %99 = math.exp %98 : vector<2x16x16xf32>
    %cst_92 = arith.constant dense<0.000000e+00> : vector<2x16xf32>
    %100 = vector.multi_reduction <add>, %99, %cst_92 [2] : vector<2x16x16xf32> to vector<2x16xf32>
    %101 = vector.shape_cast %100 : vector<2x16xf32> to vector<2x16x1xf32>
    %102 = tpu.reciprocal %101 {approx = true} : vector<2x16x1xf32> -> vector<2x16x1xf32>
    %103 = vector.broadcast %102 : vector<2x16x1xf32> to vector<2x16x16xf32>
    %104 = arith.mulf %99, %103 : vector<2x16x16xf32>
    "tpu.trace_start"() <{level = 10 : i32, message = "bqk,bkd->bqd"}> : () -> ()
    %cst_93 = arith.constant dense<0.000000e+00> : vector<2x16x8xf32>
    %105 = tpu.matmul %104, %91, %cst_93 {dimension_numbers = #tpu.dot_dimension_numbers<[2], [1], [1], [2], [0, 0, 0, 1, 1, 2], [0], [0]>} : vector<2x16x16xf32>, vector<2x16x8xf32>, vector<2x16x8xf32> -> vector<2x16x8xf32>
    "tpu.trace_stop"() : () -> ()
    %106 = vector.shape_cast %105 : vector<2x16x8xf32> to vector<32x8xf32>
    %107 = arith.truncf %106 : vector<32x8xf32> to vector<32x8xbf16>
    %c0_94 = arith.constant 0 : index
    %c1_95 = arith.constant 1 : index
    %c0_96 = arith.constant 0 : index
    %c0_97 = arith.constant 0 : index
    %108 = vector.load %arg9[%c0_94, %c1_95, %c0_96, %c0_97] : memref<2x4x8x32xbf16, #tpu.memory_space<vmem>>, vector<1x1x8x32xbf16>
    %109 = vector.shape_cast %108 : vector<1x1x8x32xbf16> to vector<8x32xbf16>
    %cst_98 = arith.constant dense<0.000000e+00> : vector<32x32xf32>
    %110 = tpu.matmul %107, %109, %cst_98 {dimension_numbers = #tpu.dot_dimension_numbers<[1], [0], [0], [1], [0, 0, 1, 1], [], []>} : vector<32x8xbf16>, vector<8x32xbf16>, vector<32x32xf32> -> vector<32x32xf32>
    %111 = arith.addf %67, %110 : vector<32x32xf32>
    %c0_99 = arith.constant 0 : index
    %c2 = arith.constant 2 : index
    %c0_100 = arith.constant 0 : index
    %c0_101 = arith.constant 0 : index
    %112 = vector.load %arg3[%c0_99, %c2, %c0_100, %c0_101] : memref<2x4x32x8xbf16, #tpu.memory_space<vmem>>, vector<1x1x32x8xbf16>
    %113 = vector.shape_cast %112 : vector<1x1x32x8xbf16> to vector<32x8xbf16>
    %cst_102 = arith.constant dense<0.000000e+00> : vector<32x8xf32>
    %114 = tpu.matmul %22, %113, %cst_102 {dimension_numbers = #tpu.dot_dimension_numbers<[1], [0], [0], [1], [0, 0, 1, 1], [], []>} : vector<32x32xbf16>, vector<32x8xbf16>, vector<32x8xf32> -> vector<32x8xf32>
    %c0_103 = arith.constant 0 : index
    %c2_104 = arith.constant 2 : index
    %c0_105 = arith.constant 0 : index
    %c0_106 = arith.constant 0 : index
    %115 = vector.load %arg6[%c0_103, %c2_104, %c0_105, %c0_106] : memref<2x4x1x8xf32, #tpu.memory_space<vmem>>, vector<1x1x1x8xf32>
    %116 = vector.shape_cast %115 : vector<1x1x1x8xf32> to vector<1x8xf32>
    %117 = vector.broadcast %116 : vector<1x8xf32> to vector<32x8xf32>
    %118 = arith.addf %114, %117 : vector<32x8xf32>
    %c0_107 = arith.constant 0 : index
    %c2_108 = arith.constant 2 : index
    %c0_109 = arith.constant 0 : index
    %c0_110 = arith.constant 0 : index
    %119 = vector.load %arg4[%c0_107, %c2_108, %c0_109, %c0_110] : memref<2x4x32x8xbf16, #tpu.memory_space<vmem>>, vector<1x1x32x8xbf16>
    %120 = vector.shape_cast %119 : vector<1x1x32x8xbf16> to vector<32x8xbf16>
    %cst_111 = arith.constant dense<0.000000e+00> : vector<32x8xf32>
    %121 = tpu.matmul %22, %120, %cst_111 {dimension_numbers = #tpu.dot_dimension_numbers<[1], [0], [0], [1], [0, 0, 1, 1], [], []>} : vector<32x32xbf16>, vector<32x8xbf16>, vector<32x8xf32> -> vector<32x8xf32>
    %c0_112 = arith.constant 0 : index
    %c2_113 = arith.constant 2 : index
    %c0_114 = arith.constant 0 : index
    %c0_115 = arith.constant 0 : index
    %122 = vector.load %arg7[%c0_112, %c2_113, %c0_114, %c0_115] : memref<2x4x1x8xf32, #tpu.memory_space<vmem>>, vector<1x1x1x8xf32>
    %123 = vector.shape_cast %122 : vector<1x1x1x8xf32> to vector<1x8xf32>
    %124 = vector.broadcast %123 : vector<1x8xf32> to vector<32x8xf32>
    %125 = arith.addf %121, %124 : vector<32x8xf32>
    %c0_116 = arith.constant 0 : index
    %c2_117 = arith.constant 2 : index
    %c0_118 = arith.constant 0 : index
    %c0_119 = arith.constant 0 : index
    %126 = vector.load %arg5[%c0_116, %c2_117, %c0_118, %c0_119] : memref<2x4x32x8xbf16, #tpu.memory_space<vmem>>, vector<1x1x32x8xbf16>
    %127 = vector.shape_cast %126 : vector<1x1x32x8xbf16> to vector<32x8xbf16>
    %cst_120 = arith.constant dense<0.000000e+00> : vector<32x8xf32>
    %128 = tpu.matmul %22, %127, %cst_120 {dimension_numbers = #tpu.dot_dimension_numbers<[1], [0], [0], [1], [0, 0, 1, 1], [], []>} : vector<32x32xbf16>, vector<32x8xbf16>, vector<32x8xf32> -> vector<32x8xf32>
    %c0_121 = arith.constant 0 : index
    %c2_122 = arith.constant 2 : index
    %c0_123 = arith.constant 0 : index
    %c0_124 = arith.constant 0 : index
    %129 = vector.load %arg8[%c0_121, %c2_122, %c0_123, %c0_124] : memref<2x4x1x8xf32, #tpu.memory_space<vmem>>, vector<1x1x1x8xf32>
    %130 = vector.shape_cast %129 : vector<1x1x1x8xf32> to vector<1x8xf32>
    %131 = vector.broadcast %130 : vector<1x8xf32> to vector<32x8xf32>
    %132 = arith.addf %128, %131 : vector<32x8xf32>
    %133 = vector.shape_cast %118 : vector<32x8xf32> to vector<2x16x8xf32>
    %134 = vector.shape_cast %125 : vector<32x8xf32> to vector<2x16x8xf32>
    %135 = vector.shape_cast %132 : vector<32x8xf32> to vector<2x16x8xf32>
    "tpu.trace_start"() <{level = 10 : i32, message = "bqd,bkd->bqk"}> : () -> ()
    %cst_125 = arith.constant dense<0.000000e+00> : vector<2x16x16xf32>
    %136 = tpu.matmul %133, %134, %cst_125 {dimension_numbers = #tpu.dot_dimension_numbers<[2], [2], [1], [1], [0, 0, 0, 1, 1, 1], [0], [0]>} : vector<2x16x8xf32>, vector<2x16x8xf32>, vector<2x16x16xf32> -> vector<2x16x16xf32>
    "tpu.trace_stop"() : () -> ()
    %cst_126 = arith.constant 0.353553385 : f32
    %137 = vector.broadcast %cst_126 : f32 to vector<2x16x16xf32>
    %138 = arith.mulf %136, %137 : vector<2x16x16xf32>
    %cst_127 = arith.constant dense<0xFF800000> : vector<2x16xf32>
    %139 = vector.multi_reduction <maximumf>, %138, %cst_127 [2] : vector<2x16x16xf32> to vector<2x16xf32>
    %140 = vector.shape_cast %139 : vector<2x16xf32> to vector<2x16x1xf32>
    %141 = vector.broadcast %140 : vector<2x16x1xf32> to vector<2x16x16xf32>
    %142 = arith.subf %138, %141 : vector<2x16x16xf32>
    %143 = math.exp %142 : vector<2x16x16xf32>
    %cst_128 = arith.constant dense<0.000000e+00> : vector<2x16xf32>
    %144 = vector.multi_reduction <add>, %143, %cst_128 [2] : vector<2x16x16xf32> to vector<2x16xf32>
    %145 = vector.shape_cast %144 : vector<2x16xf32> to vector<2x16x1xf32>
    %146 = tpu.reciprocal %145 {approx = true} : vector<2x16x1xf32> -> vector<2x16x1xf32>
    %147 = vector.broadcast %146 : vector<2x16x1xf32> to vector<2x16x16xf32>
    %148 = arith.mulf %143, %147 : vector<2x16x16xf32>
    "tpu.trace_start"() <{level = 10 : i32, message = "bqk,bkd->bqd"}> : () -> ()
    %cst_129 = arith.constant dense<0.000000e+00> : vector<2x16x8xf32>
    %149 = tpu.matmul %148, %135, %cst_129 {dimension_numbers = #tpu.dot_dimension_numbers<[2], [1], [1], [2], [0, 0, 0, 1, 1, 2], [0], [0]>} : vector<2x16x16xf32>, vector<2x16x8xf32>, vector<2x16x8xf32> -> vector<2x16x8xf32>
    "tpu.trace_stop"() : () -> ()
    %150 = vector.shape_cast %149 : vector<2x16x8xf32> to vector<32x8xf32>
    %151 = arith.truncf %150 : vector<32x8xf32> to vector<32x8xbf16>
    %c0_130 = arith.constant 0 : index
    %c2_131 = arith.constant 2 : index
    %c0_132 = arith.constant 0 : index
    %c0_133 = arith.constant 0 : index
    %152 = vector.load %arg9[%c0_130, %c2_131, %c0_132, %c0_133] : memref<2x4x8x32xbf16, #tpu.memory_space<vmem>>, vector<1x1x8x32xbf16>
    %153 = vector.shape_cast %152 : vector<1x1x8x32xbf16> to vector<8x32xbf16>
    %cst_134 = arith.constant dense<0.000000e+00> : vector<32x32xf32>
    %154 = tpu.matmul %151, %153, %cst_134 {dimension_numbers = #tpu.dot_dimension_numbers<[1], [0], [0], [1], [0, 0, 1, 1], [], []>} : vector<32x8xbf16>, vector<8x32xbf16>, vector<32x32xf32> -> vector<32x32xf32>
    %155 = arith.addf %111, %154 : vector<32x32xf32>
    %c0_135 = arith.constant 0 : index
    %c3 = arith.constant 3 : index
    %c0_136 = arith.constant 0 : index
    %c0_137 = arith.constant 0 : index
    %156 = vector.load %arg3[%c0_135, %c3, %c0_136, %c0_137] : memref<2x4x32x8xbf16, #tpu.memory_space<vmem>>, vector<1x1x32x8xbf16>
    %157 = vector.shape_cast %156 : vector<1x1x32x8xbf16> to vector<32x8xbf16>
    %cst_138 = arith.constant dense<0.000000e+00> : vector<32x8xf32>
    %158 = tpu.matmul %22, %157, %cst_138 {dimension_numbers = #tpu.dot_dimension_numbers<[1], [0], [0], [1], [0, 0, 1, 1], [], []>} : vector<32x32xbf16>, vector<32x8xbf16>, vector<32x8xf32> -> vector<32x8xf32>
    %c0_139 = arith.constant 0 : index
    %c3_140 = arith.constant 3 : index
    %c0_141 = arith.constant 0 : index
    %c0_142 = arith.constant 0 : index
    %159 = vector.load %arg6[%c0_139, %c3_140, %c0_141, %c0_142] : memref<2x4x1x8xf32, #tpu.memory_space<vmem>>, vector<1x1x1x8xf32>
    %160 = vector.shape_cast %159 : vector<1x1x1x8xf32> to vector<1x8xf32>
    %161 = vector.broadcast %160 : vector<1x8xf32> to vector<32x8xf32>
    %162 = arith.addf %158, %161 : vector<32x8xf32>
    %c0_143 = arith.constant 0 : index
    %c3_144 = arith.constant 3 : index
    %c0_145 = arith.constant 0 : index
    %c0_146 = arith.constant 0 : index
    %163 = vector.load %arg4[%c0_143, %c3_144, %c0_145, %c0_146] : memref<2x4x32x8xbf16, #tpu.memory_space<vmem>>, vector<1x1x32x8xbf16>
    %164 = vector.shape_cast %163 : vector<1x1x32x8xbf16> to vector<32x8xbf16>
    %cst_147 = arith.constant dense<0.000000e+00> : vector<32x8xf32>
    %165 = tpu.matmul %22, %164, %cst_147 {dimension_numbers = #tpu.dot_dimension_numbers<[1], [0], [0], [1], [0, 0, 1, 1], [], []>} : vector<32x32xbf16>, vector<32x8xbf16>, vector<32x8xf32> -> vector<32x8xf32>
    %c0_148 = arith.constant 0 : index
    %c3_149 = arith.constant 3 : index
    %c0_150 = arith.constant 0 : index
    %c0_151 = arith.constant 0 : index
    %166 = vector.load %arg7[%c0_148, %c3_149, %c0_150, %c0_151] : memref<2x4x1x8xf32, #tpu.memory_space<vmem>>, vector<1x1x1x8xf32>
    %167 = vector.shape_cast %166 : vector<1x1x1x8xf32> to vector<1x8xf32>
    %168 = vector.broadcast %167 : vector<1x8xf32> to vector<32x8xf32>
    %169 = arith.addf %165, %168 : vector<32x8xf32>
    %c0_152 = arith.constant 0 : index
    %c3_153 = arith.constant 3 : index
    %c0_154 = arith.constant 0 : index
    %c0_155 = arith.constant 0 : index
    %170 = vector.load %arg5[%c0_152, %c3_153, %c0_154, %c0_155] : memref<2x4x32x8xbf16, #tpu.memory_space<vmem>>, vector<1x1x32x8xbf16>
    %171 = vector.shape_cast %170 : vector<1x1x32x8xbf16> to vector<32x8xbf16>
    %cst_156 = arith.constant dense<0.000000e+00> : vector<32x8xf32>
    %172 = tpu.matmul %22, %171, %cst_156 {dimension_numbers = #tpu.dot_dimension_numbers<[1], [0], [0], [1], [0, 0, 1, 1], [], []>} : vector<32x32xbf16>, vector<32x8xbf16>, vector<32x8xf32> -> vector<32x8xf32>
    %c0_157 = arith.constant 0 : index
    %c3_158 = arith.constant 3 : index
    %c0_159 = arith.constant 0 : index
    %c0_160 = arith.constant 0 : index
    %173 = vector.load %arg8[%c0_157, %c3_158, %c0_159, %c0_160] : memref<2x4x1x8xf32, #tpu.memory_space<vmem>>, vector<1x1x1x8xf32>
    %174 = vector.shape_cast %173 : vector<1x1x1x8xf32> to vector<1x8xf32>
    %175 = vector.broadcast %174 : vector<1x8xf32> to vector<32x8xf32>
    %176 = arith.addf %172, %175 : vector<32x8xf32>
    %177 = vector.shape_cast %162 : vector<32x8xf32> to vector<2x16x8xf32>
    %178 = vector.shape_cast %169 : vector<32x8xf32> to vector<2x16x8xf32>
    %179 = vector.shape_cast %176 : vector<32x8xf32> to vector<2x16x8xf32>
    "tpu.trace_start"() <{level = 10 : i32, message = "bqd,bkd->bqk"}> : () -> ()
    %cst_161 = arith.constant dense<0.000000e+00> : vector<2x16x16xf32>
    %180 = tpu.matmul %177, %178, %cst_161 {dimension_numbers = #tpu.dot_dimension_numbers<[2], [2], [1], [1], [0, 0, 0, 1, 1, 1], [0], [0]>} : vector<2x16x8xf32>, vector<2x16x8xf32>, vector<2x16x16xf32> -> vector<2x16x16xf32>
    "tpu.trace_stop"() : () -> ()
    %cst_162 = arith.constant 0.353553385 : f32
    %181 = vector.broadcast %cst_162 : f32 to vector<2x16x16xf32>
    %182 = arith.mulf %180, %181 : vector<2x16x16xf32>
    %cst_163 = arith.constant dense<0xFF800000> : vector<2x16xf32>
    %183 = vector.multi_reduction <maximumf>, %182, %cst_163 [2] : vector<2x16x16xf32> to vector<2x16xf32>
    %184 = vector.shape_cast %183 : vector<2x16xf32> to vector<2x16x1xf32>
    %185 = vector.broadcast %184 : vector<2x16x1xf32> to vector<2x16x16xf32>
    %186 = arith.subf %182, %185 : vector<2x16x16xf32>
    %187 = math.exp %186 : vector<2x16x16xf32>
    %cst_164 = arith.constant dense<0.000000e+00> : vector<2x16xf32>
    %188 = vector.multi_reduction <add>, %187, %cst_164 [2] : vector<2x16x16xf32> to vector<2x16xf32>
    %189 = vector.shape_cast %188 : vector<2x16xf32> to vector<2x16x1xf32>
    %190 = tpu.reciprocal %189 {approx = true} : vector<2x16x1xf32> -> vector<2x16x1xf32>
    %191 = vector.broadcast %190 : vector<2x16x1xf32> to vector<2x16x16xf32>
    %192 = arith.mulf %187, %191 : vector<2x16x16xf32>
    "tpu.trace_start"() <{level = 10 : i32, message = "bqk,bkd->bqd"}> : () -> ()
    %cst_165 = arith.constant dense<0.000000e+00> : vector<2x16x8xf32>
    %193 = tpu.matmul %192, %179, %cst_165 {dimension_numbers = #tpu.dot_dimension_numbers<[2], [1], [1], [2], [0, 0, 0, 1, 1, 2], [0], [0]>} : vector<2x16x16xf32>, vector<2x16x8xf32>, vector<2x16x8xf32> -> vector<2x16x8xf32>
    "tpu.trace_stop"() : () -> ()
    %194 = vector.shape_cast %193 : vector<2x16x8xf32> to vector<32x8xf32>
    %195 = arith.truncf %194 : vector<32x8xf32> to vector<32x8xbf16>
    %c0_166 = arith.constant 0 : index
    %c3_167 = arith.constant 3 : index
    %c0_168 = arith.constant 0 : index
    %c0_169 = arith.constant 0 : index
    %196 = vector.load %arg9[%c0_166, %c3_167, %c0_168, %c0_169] : memref<2x4x8x32xbf16, #tpu.memory_space<vmem>>, vector<1x1x8x32xbf16>
    %197 = vector.shape_cast %196 : vector<1x1x8x32xbf16> to vector<8x32xbf16>
    %cst_170 = arith.constant dense<0.000000e+00> : vector<32x32xf32>
    %198 = tpu.matmul %195, %197, %cst_170 {dimension_numbers = #tpu.dot_dimension_numbers<[1], [0], [0], [1], [0, 0, 1, 1], [], []>} : vector<32x8xbf16>, vector<8x32xbf16>, vector<32x32xf32> -> vector<32x32xf32>
    %199 = arith.addf %155, %198 : vector<32x32xf32>
    %200 = arith.addf %7, %199 : vector<32x32xf32>
    %201 = vector.broadcast %17 : vector<1x32xf32> to vector<32x32xf32>
    %202 = arith.addf %200, %201 : vector<32x32xf32>
    %cst_171 = arith.constant dense<0.000000e+00> : vector<32xf32>
    %203 = vector.multi_reduction <add>, %202, %cst_171 [1] : vector<32x32xf32> to vector<32xf32>
    %204 = vector.shape_cast %203 : vector<32xf32> to vector<32x1xf32>
    %cst_172 = arith.constant 3.200000e+01 : f32
    %205 = vector.broadcast %cst_172 : f32 to vector<32x1xf32>
    %206 = arith.divf %204, %205 : vector<32x1xf32>
    %207 = arith.mulf %202, %202 : vector<32x32xf32>
    %cst_173 = arith.constant dense<0.000000e+00> : vector<32xf32>
    %208 = vector.multi_reduction <add>, %207, %cst_173 [1] : vector<32x32xf32> to vector<32xf32>
    %209 = vector.shape_cast %208 : vector<32xf32> to vector<32x1xf32>
    %cst_174 = arith.constant 3.200000e+01 : f32
    %210 = vector.broadcast %cst_174 : f32 to vector<32x1xf32>
    %211 = arith.divf %209, %210 : vector<32x1xf32>
    %212 = arith.mulf %206, %206 : vector<32x1xf32>
    %213 = arith.subf %211, %212 : vector<32x1xf32>
    %cst_175 = arith.constant 9.99999974E-6 : f32
    %214 = vector.broadcast %cst_175 : f32 to vector<32x1xf32>
    %215 = arith.addf %213, %214 : vector<32x1xf32>
    %216 = math.rsqrt %215 : vector<32x1xf32>
    %217 = vector.broadcast %206 : vector<32x1xf32> to vector<32x32xf32>
    %218 = arith.subf %202, %217 : vector<32x32xf32>
    %219 = vector.broadcast %216 : vector<32x1xf32> to vector<32x32xf32>
    %220 = arith.mulf %218, %219 : vector<32x32xf32>
    %221 = vector.broadcast %9 : vector<1x32xf32> to vector<32x32xf32>
    %222 = arith.mulf %220, %221 : vector<32x32xf32>
    %223 = vector.broadcast %11 : vector<1x32xf32> to vector<32x32xf32>
    %224 = arith.addf %222, %223 : vector<32x32xf32>
    %225 = arith.truncf %224 : vector<32x32xf32> to vector<32x32xbf16>
    %c0_176 = arith.constant 0 : index
    %c0_177 = arith.constant 0 : index
    %c0_178 = arith.constant 0 : index
    %226 = vector.load %arg15[%c0_176, %c0_177, %c0_178] : memref<2x32x2048xbf16, #tpu.memory_space<vmem>>, vector<1x32x2048xbf16>
    %227 = vector.shape_cast %226 : vector<1x32x2048xbf16> to vector<32x2048xbf16>
    %cst_179 = arith.constant dense<0.000000e+00> : vector<32x2048xf32>
    %228 = tpu.matmul %225, %227, %cst_179 {dimension_numbers = #tpu.dot_dimension_numbers<[1], [0], [0], [1], [0, 0, 1, 1], [], []>} : vector<32x32xbf16>, vector<32x2048xbf16>, vector<32x2048xf32> -> vector<32x2048xf32>
    %229 = vector.broadcast %19 : vector<1x2048xf32> to vector<32x2048xf32>
    %230 = arith.addf %228, %229 : vector<32x2048xf32>
    %cst_180 = arith.constant 0.000000e+00 : f32
    %231 = vector.broadcast %cst_180 : f32 to vector<32x2048xf32>
    %232 = arith.maximumf %230, %231 : vector<32x2048xf32>
    %233 = arith.truncf %232 : vector<32x2048xf32> to vector<32x2048xbf16>
    %c0_181 = arith.constant 0 : index
    %c0_182 = arith.constant 0 : index
    %c0_183 = arith.constant 0 : index
    %234 = vector.load %arg17[%c0_181, %c0_182, %c0_183] : memref<2x2048x32xbf16, #tpu.memory_space<vmem>>, vector<1x2048x32xbf16>
    %235 = vector.shape_cast %234 : vector<1x2048x32xbf16> to vector<2048x32xbf16>
    %cst_184 = arith.constant dense<0.000000e+00> : vector<32x32xf32>
    %236 = tpu.matmul %233, %235, %cst_184 {dimension_numbers = #tpu.dot_dimension_numbers<[1], [0], [0], [1], [0, 0, 1, 1], [], []>} : vector<32x2048xbf16>, vector<2048x32xbf16>, vector<32x32xf32> -> vector<32x32xf32>
    %237 = vector.broadcast %21 : vector<1x32xf32> to vector<32x32xf32>
    %238 = arith.addf %236, %237 : vector<32x32xf32>
    %239 = arith.addf %224, %238 : vector<32x32xf32>
    %cst_185 = arith.constant dense<0.000000e+00> : vector<32xf32>
    %240 = vector.multi_reduction <add>, %239, %cst_185 [1] : vector<32x32xf32> to vector<32xf32>
    %241 = vector.shape_cast %240 : vector<32xf32> to vector<32x1xf32>
    %cst_186 = arith.constant 3.200000e+01 : f32
    %242 = vector.broadcast %cst_186 : f32 to vector<32x1xf32>
    %243 = arith.divf %241, %242 : vector<32x1xf32>
    %244 = arith.mulf %239, %239 : vector<32x32xf32>
    %cst_187 = arith.constant dense<0.000000e+00> : vector<32xf32>
    %245 = vector.multi_reduction <add>, %244, %cst_187 [1] : vector<32x32xf32> to vector<32xf32>
    %246 = vector.shape_cast %245 : vector<32xf32> to vector<32x1xf32>
    %cst_188 = arith.constant 3.200000e+01 : f32
    %247 = vector.broadcast %cst_188 : f32 to vector<32x1xf32>
    %248 = arith.divf %246, %247 : vector<32x1xf32>
    %249 = arith.mulf %243, %243 : vector<32x1xf32>
    %250 = arith.subf %248, %249 : vector<32x1xf32>
    %cst_189 = arith.constant 9.99999974E-6 : f32
    %251 = vector.broadcast %cst_189 : f32 to vector<32x1xf32>
    %252 = arith.addf %250, %251 : vector<32x1xf32>
    %253 = math.rsqrt %252 : vector<32x1xf32>
    %254 = vector.broadcast %243 : vector<32x1xf32> to vector<32x32xf32>
    %255 = arith.subf %239, %254 : vector<32x32xf32>
    %256 = vector.broadcast %253 : vector<32x1xf32> to vector<32x32xf32>
    %257 = arith.mulf %255, %256 : vector<32x32xf32>
    %258 = vector.broadcast %13 : vector<1x32xf32> to vector<32x32xf32>
    %259 = arith.mulf %257, %258 : vector<32x32xf32>
    %260 = vector.broadcast %15 : vector<1x32xf32> to vector<32x32xf32>
    %261 = arith.addf %259, %260 : vector<32x32xf32>
    %c1_190 = arith.constant 1 : index
    %c0_191 = arith.constant 0 : index
    %c0_192 = arith.constant 0 : index
    %262 = vector.load %arg11[%c1_190, %c0_191, %c0_192] : memref<2x1x32xf32, #tpu.memory_space<vmem>>, vector<1x1x32xf32>
    %263 = vector.shape_cast %262 : vector<1x1x32xf32> to vector<1x32xf32>
    %c1_193 = arith.constant 1 : index
    %c0_194 = arith.constant 0 : index
    %c0_195 = arith.constant 0 : index
    %264 = vector.load %arg12[%c1_193, %c0_194, %c0_195] : memref<2x1x32xf32, #tpu.memory_space<vmem>>, vector<1x1x32xf32>
    %265 = vector.shape_cast %264 : vector<1x1x32xf32> to vector<1x32xf32>
    %c1_196 = arith.constant 1 : index
    %c0_197 = arith.constant 0 : index
    %c0_198 = arith.constant 0 : index
    %266 = vector.load %arg13[%c1_196, %c0_197, %c0_198] : memref<2x1x32xf32, #tpu.memory_space<vmem>>, vector<1x1x32xf32>
    %267 = vector.shape_cast %266 : vector<1x1x32xf32> to vector<1x32xf32>
    %c1_199 = arith.constant 1 : index
    %c0_200 = arith.constant 0 : index
    %c0_201 = arith.constant 0 : index
    %268 = vector.load %arg14[%c1_199, %c0_200, %c0_201] : memref<2x1x32xf32, #tpu.memory_space<vmem>>, vector<1x1x32xf32>
    %269 = vector.shape_cast %268 : vector<1x1x32xf32> to vector<1x32xf32>
    %c1_202 = arith.constant 1 : index
    %c0_203 = arith.constant 0 : index
    %c0_204 = arith.constant 0 : index
    %270 = vector.load %arg10[%c1_202, %c0_203, %c0_204] : memref<2x1x32xf32, #tpu.memory_space<vmem>>, vector<1x1x32xf32>
    %271 = vector.shape_cast %270 : vector<1x1x32xf32> to vector<1x32xf32>
    %c1_205 = arith.constant 1 : index
    %c0_206 = arith.constant 0 : index
    %c0_207 = arith.constant 0 : index
    %272 = vector.load %arg16[%c1_205, %c0_206, %c0_207] : memref<2x1x2048xf32, #tpu.memory_space<vmem>>, vector<1x1x2048xf32>
    %273 = vector.shape_cast %272 : vector<1x1x2048xf32> to vector<1x2048xf32>
    %c1_208 = arith.constant 1 : index
    %c0_209 = arith.constant 0 : index
    %c0_210 = arith.constant 0 : index
    %274 = vector.load %arg18[%c1_208, %c0_209, %c0_210] : memref<2x1x32xf32, #tpu.memory_space<vmem>>, vector<1x1x32xf32>
    %275 = vector.shape_cast %274 : vector<1x1x32xf32> to vector<1x32xf32>
    %276 = arith.truncf %261 : vector<32x32xf32> to vector<32x32xbf16>
    %cst_211 = arith.constant 0.000000e+00 : f32
    %277 = vector.broadcast %cst_211 : f32 to vector<32x32xf32>
    %c1_212 = arith.constant 1 : index
    %c0_213 = arith.constant 0 : index
    %c0_214 = arith.constant 0 : index
    %c0_215 = arith.constant 0 : index
    %278 = vector.load %arg3[%c1_212, %c0_213, %c0_214, %c0_215] : memref<2x4x32x8xbf16, #tpu.memory_space<vmem>>, vector<1x1x32x8xbf16>
    %279 = vector.shape_cast %278 : vector<1x1x32x8xbf16> to vector<32x8xbf16>
    %cst_216 = arith.constant dense<0.000000e+00> : vector<32x8xf32>
    %280 = tpu.matmul %276, %279, %cst_216 {dimension_numbers = #tpu.dot_dimension_numbers<[1], [0], [0], [1], [0, 0, 1, 1], [], []>} : vector<32x32xbf16>, vector<32x8xbf16>, vector<32x8xf32> -> vector<32x8xf32>
    %c1_217 = arith.constant 1 : index
    %c0_218 = arith.constant 0 : index
    %c0_219 = arith.constant 0 : index
    %c0_220 = arith.constant 0 : index
    %281 = vector.load %arg6[%c1_217, %c0_218, %c0_219, %c0_220] : memref<2x4x1x8xf32, #tpu.memory_space<vmem>>, vector<1x1x1x8xf32>
    %282 = vector.shape_cast %281 : vector<1x1x1x8xf32> to vector<1x8xf32>
    %283 = vector.broadcast %282 : vector<1x8xf32> to vector<32x8xf32>
    %284 = arith.addf %280, %283 : vector<32x8xf32>
    %c1_221 = arith.constant 1 : index
    %c0_222 = arith.constant 0 : index
    %c0_223 = arith.constant 0 : index
    %c0_224 = arith.constant 0 : index
    %285 = vector.load %arg4[%c1_221, %c0_222, %c0_223, %c0_224] : memref<2x4x32x8xbf16, #tpu.memory_space<vmem>>, vector<1x1x32x8xbf16>
    %286 = vector.shape_cast %285 : vector<1x1x32x8xbf16> to vector<32x8xbf16>
    %cst_225 = arith.constant dense<0.000000e+00> : vector<32x8xf32>
    %287 = tpu.matmul %276, %286, %cst_225 {dimension_numbers = #tpu.dot_dimension_numbers<[1], [0], [0], [1], [0, 0, 1, 1], [], []>} : vector<32x32xbf16>, vector<32x8xbf16>, vector<32x8xf32> -> vector<32x8xf32>
    %c1_226 = arith.constant 1 : index
    %c0_227 = arith.constant 0 : index
    %c0_228 = arith.constant 0 : index
    %c0_229 = arith.constant 0 : index
    %288 = vector.load %arg7[%c1_226, %c0_227, %c0_228, %c0_229] : memref<2x4x1x8xf32, #tpu.memory_space<vmem>>, vector<1x1x1x8xf32>
    %289 = vector.shape_cast %288 : vector<1x1x1x8xf32> to vector<1x8xf32>
    %290 = vector.broadcast %289 : vector<1x8xf32> to vector<32x8xf32>
    %291 = arith.addf %287, %290 : vector<32x8xf32>
    %c1_230 = arith.constant 1 : index
    %c0_231 = arith.constant 0 : index
    %c0_232 = arith.constant 0 : index
    %c0_233 = arith.constant 0 : index
    %292 = vector.load %arg5[%c1_230, %c0_231, %c0_232, %c0_233] : memref<2x4x32x8xbf16, #tpu.memory_space<vmem>>, vector<1x1x32x8xbf16>
    %293 = vector.shape_cast %292 : vector<1x1x32x8xbf16> to vector<32x8xbf16>
    %cst_234 = arith.constant dense<0.000000e+00> : vector<32x8xf32>
    %294 = tpu.matmul %276, %293, %cst_234 {dimension_numbers = #tpu.dot_dimension_numbers<[1], [0], [0], [1], [0, 0, 1, 1], [], []>} : vector<32x32xbf16>, vector<32x8xbf16>, vector<32x8xf32> -> vector<32x8xf32>
    %c1_235 = arith.constant 1 : index
    %c0_236 = arith.constant 0 : index
    %c0_237 = arith.constant 0 : index
    %c0_238 = arith.constant 0 : index
    %295 = vector.load %arg8[%c1_235, %c0_236, %c0_237, %c0_238] : memref<2x4x1x8xf32, #tpu.memory_space<vmem>>, vector<1x1x1x8xf32>
    %296 = vector.shape_cast %295 : vector<1x1x1x8xf32> to vector<1x8xf32>
    %297 = vector.broadcast %296 : vector<1x8xf32> to vector<32x8xf32>
    %298 = arith.addf %294, %297 : vector<32x8xf32>
    %299 = vector.shape_cast %284 : vector<32x8xf32> to vector<2x16x8xf32>
    %300 = vector.shape_cast %291 : vector<32x8xf32> to vector<2x16x8xf32>
    %301 = vector.shape_cast %298 : vector<32x8xf32> to vector<2x16x8xf32>
    "tpu.trace_start"() <{level = 10 : i32, message = "bqd,bkd->bqk"}> : () -> ()
    %cst_239 = arith.constant dense<0.000000e+00> : vector<2x16x16xf32>
    %302 = tpu.matmul %299, %300, %cst_239 {dimension_numbers = #tpu.dot_dimension_numbers<[2], [2], [1], [1], [0, 0, 0, 1, 1, 1], [0], [0]>} : vector<2x16x8xf32>, vector<2x16x8xf32>, vector<2x16x16xf32> -> vector<2x16x16xf32>
    "tpu.trace_stop"() : () -> ()
    %cst_240 = arith.constant 0.353553385 : f32
    %303 = vector.broadcast %cst_240 : f32 to vector<2x16x16xf32>
    %304 = arith.mulf %302, %303 : vector<2x16x16xf32>
    %cst_241 = arith.constant dense<0xFF800000> : vector<2x16xf32>
    %305 = vector.multi_reduction <maximumf>, %304, %cst_241 [2] : vector<2x16x16xf32> to vector<2x16xf32>
    %306 = vector.shape_cast %305 : vector<2x16xf32> to vector<2x16x1xf32>
    %307 = vector.broadcast %306 : vector<2x16x1xf32> to vector<2x16x16xf32>
    %308 = arith.subf %304, %307 : vector<2x16x16xf32>
    %309 = math.exp %308 : vector<2x16x16xf32>
    %cst_242 = arith.constant dense<0.000000e+00> : vector<2x16xf32>
    %310 = vector.multi_reduction <add>, %309, %cst_242 [2] : vector<2x16x16xf32> to vector<2x16xf32>
    %311 = vector.shape_cast %310 : vector<2x16xf32> to vector<2x16x1xf32>
    %312 = tpu.reciprocal %311 {approx = true} : vector<2x16x1xf32> -> vector<2x16x1xf32>
    %313 = vector.broadcast %312 : vector<2x16x1xf32> to vector<2x16x16xf32>
    %314 = arith.mulf %309, %313 : vector<2x16x16xf32>
    "tpu.trace_start"() <{level = 10 : i32, message = "bqk,bkd->bqd"}> : () -> ()
    %cst_243 = arith.constant dense<0.000000e+00> : vector<2x16x8xf32>
    %315 = tpu.matmul %314, %301, %cst_243 {dimension_numbers = #tpu.dot_dimension_numbers<[2], [1], [1], [2], [0, 0, 0, 1, 1, 2], [0], [0]>} : vector<2x16x16xf32>, vector<2x16x8xf32>, vector<2x16x8xf32> -> vector<2x16x8xf32>
    "tpu.trace_stop"() : () -> ()
    %316 = vector.shape_cast %315 : vector<2x16x8xf32> to vector<32x8xf32>
    %317 = arith.truncf %316 : vector<32x8xf32> to vector<32x8xbf16>
    %c1_244 = arith.constant 1 : index
    %c0_245 = arith.constant 0 : index
    %c0_246 = arith.constant 0 : index
    %c0_247 = arith.constant 0 : index
    %318 = vector.load %arg9[%c1_244, %c0_245, %c0_246, %c0_247] : memref<2x4x8x32xbf16, #tpu.memory_space<vmem>>, vector<1x1x8x32xbf16>
    %319 = vector.shape_cast %318 : vector<1x1x8x32xbf16> to vector<8x32xbf16>
    %cst_248 = arith.constant dense<0.000000e+00> : vector<32x32xf32>
    %320 = tpu.matmul %317, %319, %cst_248 {dimension_numbers = #tpu.dot_dimension_numbers<[1], [0], [0], [1], [0, 0, 1, 1], [], []>} : vector<32x8xbf16>, vector<8x32xbf16>, vector<32x32xf32> -> vector<32x32xf32>
    %321 = arith.addf %277, %320 : vector<32x32xf32>
    %c1_249 = arith.constant 1 : index
    %c1_250 = arith.constant 1 : index
    %c0_251 = arith.constant 0 : index
    %c0_252 = arith.constant 0 : index
    %322 = vector.load %arg3[%c1_249, %c1_250, %c0_251, %c0_252] : memref<2x4x32x8xbf16, #tpu.memory_space<vmem>>, vector<1x1x32x8xbf16>
    %323 = vector.shape_cast %322 : vector<1x1x32x8xbf16> to vector<32x8xbf16>
    %cst_253 = arith.constant dense<0.000000e+00> : vector<32x8xf32>
    %324 = tpu.matmul %276, %323, %cst_253 {dimension_numbers = #tpu.dot_dimension_numbers<[1], [0], [0], [1], [0, 0, 1, 1], [], []>} : vector<32x32xbf16>, vector<32x8xbf16>, vector<32x8xf32> -> vector<32x8xf32>
    %c1_254 = arith.constant 1 : index
    %c1_255 = arith.constant 1 : index
    %c0_256 = arith.constant 0 : index
    %c0_257 = arith.constant 0 : index
    %325 = vector.load %arg6[%c1_254, %c1_255, %c0_256, %c0_257] : memref<2x4x1x8xf32, #tpu.memory_space<vmem>>, vector<1x1x1x8xf32>
    %326 = vector.shape_cast %325 : vector<1x1x1x8xf32> to vector<1x8xf32>
    %327 = vector.broadcast %326 : vector<1x8xf32> to vector<32x8xf32>
    %328 = arith.addf %324, %327 : vector<32x8xf32>
    %c1_258 = arith.constant 1 : index
    %c1_259 = arith.constant 1 : index
    %c0_260 = arith.constant 0 : index
    %c0_261 = arith.constant 0 : index
    %329 = vector.load %arg4[%c1_258, %c1_259, %c0_260, %c0_261] : memref<2x4x32x8xbf16, #tpu.memory_space<vmem>>, vector<1x1x32x8xbf16>
    %330 = vector.shape_cast %329 : vector<1x1x32x8xbf16> to vector<32x8xbf16>
    %cst_262 = arith.constant dense<0.000000e+00> : vector<32x8xf32>
    %331 = tpu.matmul %276, %330, %cst_262 {dimension_numbers = #tpu.dot_dimension_numbers<[1], [0], [0], [1], [0, 0, 1, 1], [], []>} : vector<32x32xbf16>, vector<32x8xbf16>, vector<32x8xf32> -> vector<32x8xf32>
    %c1_263 = arith.constant 1 : index
    %c1_264 = arith.constant 1 : index
    %c0_265 = arith.constant 0 : index
    %c0_266 = arith.constant 0 : index
    %332 = vector.load %arg7[%c1_263, %c1_264, %c0_265, %c0_266] : memref<2x4x1x8xf32, #tpu.memory_space<vmem>>, vector<1x1x1x8xf32>
    %333 = vector.shape_cast %332 : vector<1x1x1x8xf32> to vector<1x8xf32>
    %334 = vector.broadcast %333 : vector<1x8xf32> to vector<32x8xf32>
    %335 = arith.addf %331, %334 : vector<32x8xf32>
    %c1_267 = arith.constant 1 : index
    %c1_268 = arith.constant 1 : index
    %c0_269 = arith.constant 0 : index
    %c0_270 = arith.constant 0 : index
    %336 = vector.load %arg5[%c1_267, %c1_268, %c0_269, %c0_270] : memref<2x4x32x8xbf16, #tpu.memory_space<vmem>>, vector<1x1x32x8xbf16>
    %337 = vector.shape_cast %336 : vector<1x1x32x8xbf16> to vector<32x8xbf16>
    %cst_271 = arith.constant dense<0.000000e+00> : vector<32x8xf32>
    %338 = tpu.matmul %276, %337, %cst_271 {dimension_numbers = #tpu.dot_dimension_numbers<[1], [0], [0], [1], [0, 0, 1, 1], [], []>} : vector<32x32xbf16>, vector<32x8xbf16>, vector<32x8xf32> -> vector<32x8xf32>
    %c1_272 = arith.constant 1 : index
    %c1_273 = arith.constant 1 : index
    %c0_274 = arith.constant 0 : index
    %c0_275 = arith.constant 0 : index
    %339 = vector.load %arg8[%c1_272, %c1_273, %c0_274, %c0_275] : memref<2x4x1x8xf32, #tpu.memory_space<vmem>>, vector<1x1x1x8xf32>
    %340 = vector.shape_cast %339 : vector<1x1x1x8xf32> to vector<1x8xf32>
    %341 = vector.broadcast %340 : vector<1x8xf32> to vector<32x8xf32>
    %342 = arith.addf %338, %341 : vector<32x8xf32>
    %343 = vector.shape_cast %328 : vector<32x8xf32> to vector<2x16x8xf32>
    %344 = vector.shape_cast %335 : vector<32x8xf32> to vector<2x16x8xf32>
    %345 = vector.shape_cast %342 : vector<32x8xf32> to vector<2x16x8xf32>
    "tpu.trace_start"() <{level = 10 : i32, message = "bqd,bkd->bqk"}> : () -> ()
    %cst_276 = arith.constant dense<0.000000e+00> : vector<2x16x16xf32>
    %346 = tpu.matmul %343, %344, %cst_276 {dimension_numbers = #tpu.dot_dimension_numbers<[2], [2], [1], [1], [0, 0, 0, 1, 1, 1], [0], [0]>} : vector<2x16x8xf32>, vector<2x16x8xf32>, vector<2x16x16xf32> -> vector<2x16x16xf32>
    "tpu.trace_stop"() : () -> ()
    %cst_277 = arith.constant 0.353553385 : f32
    %347 = vector.broadcast %cst_277 : f32 to vector<2x16x16xf32>
    %348 = arith.mulf %346, %347 : vector<2x16x16xf32>
    %cst_278 = arith.constant dense<0xFF800000> : vector<2x16xf32>
    %349 = vector.multi_reduction <maximumf>, %348, %cst_278 [2] : vector<2x16x16xf32> to vector<2x16xf32>
    %350 = vector.shape_cast %349 : vector<2x16xf32> to vector<2x16x1xf32>
    %351 = vector.broadcast %350 : vector<2x16x1xf32> to vector<2x16x16xf32>
    %352 = arith.subf %348, %351 : vector<2x16x16xf32>
    %353 = math.exp %352 : vector<2x16x16xf32>
    %cst_279 = arith.constant dense<0.000000e+00> : vector<2x16xf32>
    %354 = vector.multi_reduction <add>, %353, %cst_279 [2] : vector<2x16x16xf32> to vector<2x16xf32>
    %355 = vector.shape_cast %354 : vector<2x16xf32> to vector<2x16x1xf32>
    %356 = tpu.reciprocal %355 {approx = true} : vector<2x16x1xf32> -> vector<2x16x1xf32>
    %357 = vector.broadcast %356 : vector<2x16x1xf32> to vector<2x16x16xf32>
    %358 = arith.mulf %353, %357 : vector<2x16x16xf32>
    "tpu.trace_start"() <{level = 10 : i32, message = "bqk,bkd->bqd"}> : () -> ()
    %cst_280 = arith.constant dense<0.000000e+00> : vector<2x16x8xf32>
    %359 = tpu.matmul %358, %345, %cst_280 {dimension_numbers = #tpu.dot_dimension_numbers<[2], [1], [1], [2], [0, 0, 0, 1, 1, 2], [0], [0]>} : vector<2x16x16xf32>, vector<2x16x8xf32>, vector<2x16x8xf32> -> vector<2x16x8xf32>
    "tpu.trace_stop"() : () -> ()
    %360 = vector.shape_cast %359 : vector<2x16x8xf32> to vector<32x8xf32>
    %361 = arith.truncf %360 : vector<32x8xf32> to vector<32x8xbf16>
    %c1_281 = arith.constant 1 : index
    %c1_282 = arith.constant 1 : index
    %c0_283 = arith.constant 0 : index
    %c0_284 = arith.constant 0 : index
    %362 = vector.load %arg9[%c1_281, %c1_282, %c0_283, %c0_284] : memref<2x4x8x32xbf16, #tpu.memory_space<vmem>>, vector<1x1x8x32xbf16>
    %363 = vector.shape_cast %362 : vector<1x1x8x32xbf16> to vector<8x32xbf16>
    %cst_285 = arith.constant dense<0.000000e+00> : vector<32x32xf32>
    %364 = tpu.matmul %361, %363, %cst_285 {dimension_numbers = #tpu.dot_dimension_numbers<[1], [0], [0], [1], [0, 0, 1, 1], [], []>} : vector<32x8xbf16>, vector<8x32xbf16>, vector<32x32xf32> -> vector<32x32xf32>
    %365 = arith.addf %321, %364 : vector<32x32xf32>
    %c1_286 = arith.constant 1 : index
    %c2_287 = arith.constant 2 : index
    %c0_288 = arith.constant 0 : index
    %c0_289 = arith.constant 0 : index
    %366 = vector.load %arg3[%c1_286, %c2_287, %c0_288, %c0_289] : memref<2x4x32x8xbf16, #tpu.memory_space<vmem>>, vector<1x1x32x8xbf16>
    %367 = vector.shape_cast %366 : vector<1x1x32x8xbf16> to vector<32x8xbf16>
    %cst_290 = arith.constant dense<0.000000e+00> : vector<32x8xf32>
    %368 = tpu.matmul %276, %367, %cst_290 {dimension_numbers = #tpu.dot_dimension_numbers<[1], [0], [0], [1], [0, 0, 1, 1], [], []>} : vector<32x32xbf16>, vector<32x8xbf16>, vector<32x8xf32> -> vector<32x8xf32>
    %c1_291 = arith.constant 1 : index
    %c2_292 = arith.constant 2 : index
    %c0_293 = arith.constant 0 : index
    %c0_294 = arith.constant 0 : index
    %369 = vector.load %arg6[%c1_291, %c2_292, %c0_293, %c0_294] : memref<2x4x1x8xf32, #tpu.memory_space<vmem>>, vector<1x1x1x8xf32>
    %370 = vector.shape_cast %369 : vector<1x1x1x8xf32> to vector<1x8xf32>
    %371 = vector.broadcast %370 : vector<1x8xf32> to vector<32x8xf32>
    %372 = arith.addf %368, %371 : vector<32x8xf32>
    %c1_295 = arith.constant 1 : index
    %c2_296 = arith.constant 2 : index
    %c0_297 = arith.constant 0 : index
    %c0_298 = arith.constant 0 : index
    %373 = vector.load %arg4[%c1_295, %c2_296, %c0_297, %c0_298] : memref<2x4x32x8xbf16, #tpu.memory_space<vmem>>, vector<1x1x32x8xbf16>
    %374 = vector.shape_cast %373 : vector<1x1x32x8xbf16> to vector<32x8xbf16>
    %cst_299 = arith.constant dense<0.000000e+00> : vector<32x8xf32>
    %375 = tpu.matmul %276, %374, %cst_299 {dimension_numbers = #tpu.dot_dimension_numbers<[1], [0], [0], [1], [0, 0, 1, 1], [], []>} : vector<32x32xbf16>, vector<32x8xbf16>, vector<32x8xf32> -> vector<32x8xf32>
    %c1_300 = arith.constant 1 : index
    %c2_301 = arith.constant 2 : index
    %c0_302 = arith.constant 0 : index
    %c0_303 = arith.constant 0 : index
    %376 = vector.load %arg7[%c1_300, %c2_301, %c0_302, %c0_303] : memref<2x4x1x8xf32, #tpu.memory_space<vmem>>, vector<1x1x1x8xf32>
    %377 = vector.shape_cast %376 : vector<1x1x1x8xf32> to vector<1x8xf32>
    %378 = vector.broadcast %377 : vector<1x8xf32> to vector<32x8xf32>
    %379 = arith.addf %375, %378 : vector<32x8xf32>
    %c1_304 = arith.constant 1 : index
    %c2_305 = arith.constant 2 : index
    %c0_306 = arith.constant 0 : index
    %c0_307 = arith.constant 0 : index
    %380 = vector.load %arg5[%c1_304, %c2_305, %c0_306, %c0_307] : memref<2x4x32x8xbf16, #tpu.memory_space<vmem>>, vector<1x1x32x8xbf16>
    %381 = vector.shape_cast %380 : vector<1x1x32x8xbf16> to vector<32x8xbf16>
    %cst_308 = arith.constant dense<0.000000e+00> : vector<32x8xf32>
    %382 = tpu.matmul %276, %381, %cst_308 {dimension_numbers = #tpu.dot_dimension_numbers<[1], [0], [0], [1], [0, 0, 1, 1], [], []>} : vector<32x32xbf16>, vector<32x8xbf16>, vector<32x8xf32> -> vector<32x8xf32>
    %c1_309 = arith.constant 1 : index
    %c2_310 = arith.constant 2 : index
    %c0_311 = arith.constant 0 : index
    %c0_312 = arith.constant 0 : index
    %383 = vector.load %arg8[%c1_309, %c2_310, %c0_311, %c0_312] : memref<2x4x1x8xf32, #tpu.memory_space<vmem>>, vector<1x1x1x8xf32>
    %384 = vector.shape_cast %383 : vector<1x1x1x8xf32> to vector<1x8xf32>
    %385 = vector.broadcast %384 : vector<1x8xf32> to vector<32x8xf32>
    %386 = arith.addf %382, %385 : vector<32x8xf32>
    %387 = vector.shape_cast %372 : vector<32x8xf32> to vector<2x16x8xf32>
    %388 = vector.shape_cast %379 : vector<32x8xf32> to vector<2x16x8xf32>
    %389 = vector.shape_cast %386 : vector<32x8xf32> to vector<2x16x8xf32>
    "tpu.trace_start"() <{level = 10 : i32, message = "bqd,bkd->bqk"}> : () -> ()
    %cst_313 = arith.constant dense<0.000000e+00> : vector<2x16x16xf32>
    %390 = tpu.matmul %387, %388, %cst_313 {dimension_numbers = #tpu.dot_dimension_numbers<[2], [2], [1], [1], [0, 0, 0, 1, 1, 1], [0], [0]>} : vector<2x16x8xf32>, vector<2x16x8xf32>, vector<2x16x16xf32> -> vector<2x16x16xf32>
    "tpu.trace_stop"() : () -> ()
    %cst_314 = arith.constant 0.353553385 : f32
    %391 = vector.broadcast %cst_314 : f32 to vector<2x16x16xf32>
    %392 = arith.mulf %390, %391 : vector<2x16x16xf32>
    %cst_315 = arith.constant dense<0xFF800000> : vector<2x16xf32>
    %393 = vector.multi_reduction <maximumf>, %392, %cst_315 [2] : vector<2x16x16xf32> to vector<2x16xf32>
    %394 = vector.shape_cast %393 : vector<2x16xf32> to vector<2x16x1xf32>
    %395 = vector.broadcast %394 : vector<2x16x1xf32> to vector<2x16x16xf32>
    %396 = arith.subf %392, %395 : vector<2x16x16xf32>
    %397 = math.exp %396 : vector<2x16x16xf32>
    %cst_316 = arith.constant dense<0.000000e+00> : vector<2x16xf32>
    %398 = vector.multi_reduction <add>, %397, %cst_316 [2] : vector<2x16x16xf32> to vector<2x16xf32>
    %399 = vector.shape_cast %398 : vector<2x16xf32> to vector<2x16x1xf32>
    %400 = tpu.reciprocal %399 {approx = true} : vector<2x16x1xf32> -> vector<2x16x1xf32>
    %401 = vector.broadcast %400 : vector<2x16x1xf32> to vector<2x16x16xf32>
    %402 = arith.mulf %397, %401 : vector<2x16x16xf32>
    "tpu.trace_start"() <{level = 10 : i32, message = "bqk,bkd->bqd"}> : () -> ()
    %cst_317 = arith.constant dense<0.000000e+00> : vector<2x16x8xf32>
    %403 = tpu.matmul %402, %389, %cst_317 {dimension_numbers = #tpu.dot_dimension_numbers<[2], [1], [1], [2], [0, 0, 0, 1, 1, 2], [0], [0]>} : vector<2x16x16xf32>, vector<2x16x8xf32>, vector<2x16x8xf32> -> vector<2x16x8xf32>
    "tpu.trace_stop"() : () -> ()
    %404 = vector.shape_cast %403 : vector<2x16x8xf32> to vector<32x8xf32>
    %405 = arith.truncf %404 : vector<32x8xf32> to vector<32x8xbf16>
    %c1_318 = arith.constant 1 : index
    %c2_319 = arith.constant 2 : index
    %c0_320 = arith.constant 0 : index
    %c0_321 = arith.constant 0 : index
    %406 = vector.load %arg9[%c1_318, %c2_319, %c0_320, %c0_321] : memref<2x4x8x32xbf16, #tpu.memory_space<vmem>>, vector<1x1x8x32xbf16>
    %407 = vector.shape_cast %406 : vector<1x1x8x32xbf16> to vector<8x32xbf16>
    %cst_322 = arith.constant dense<0.000000e+00> : vector<32x32xf32>
    %408 = tpu.matmul %405, %407, %cst_322 {dimension_numbers = #tpu.dot_dimension_numbers<[1], [0], [0], [1], [0, 0, 1, 1], [], []>} : vector<32x8xbf16>, vector<8x32xbf16>, vector<32x32xf32> -> vector<32x32xf32>
    %409 = arith.addf %365, %408 : vector<32x32xf32>
    %c1_323 = arith.constant 1 : index
    %c3_324 = arith.constant 3 : index
    %c0_325 = arith.constant 0 : index
    %c0_326 = arith.constant 0 : index
    %410 = vector.load %arg3[%c1_323, %c3_324, %c0_325, %c0_326] : memref<2x4x32x8xbf16, #tpu.memory_space<vmem>>, vector<1x1x32x8xbf16>
    %411 = vector.shape_cast %410 : vector<1x1x32x8xbf16> to vector<32x8xbf16>
    %cst_327 = arith.constant dense<0.000000e+00> : vector<32x8xf32>
    %412 = tpu.matmul %276, %411, %cst_327 {dimension_numbers = #tpu.dot_dimension_numbers<[1], [0], [0], [1], [0, 0, 1, 1], [], []>} : vector<32x32xbf16>, vector<32x8xbf16>, vector<32x8xf32> -> vector<32x8xf32>
    %c1_328 = arith.constant 1 : index
    %c3_329 = arith.constant 3 : index
    %c0_330 = arith.constant 0 : index
    %c0_331 = arith.constant 0 : index
    %413 = vector.load %arg6[%c1_328, %c3_329, %c0_330, %c0_331] : memref<2x4x1x8xf32, #tpu.memory_space<vmem>>, vector<1x1x1x8xf32>
    %414 = vector.shape_cast %413 : vector<1x1x1x8xf32> to vector<1x8xf32>
    %415 = vector.broadcast %414 : vector<1x8xf32> to vector<32x8xf32>
    %416 = arith.addf %412, %415 : vector<32x8xf32>
    %c1_332 = arith.constant 1 : index
    %c3_333 = arith.constant 3 : index
    %c0_334 = arith.constant 0 : index
    %c0_335 = arith.constant 0 : index
    %417 = vector.load %arg4[%c1_332, %c3_333, %c0_334, %c0_335] : memref<2x4x32x8xbf16, #tpu.memory_space<vmem>>, vector<1x1x32x8xbf16>
    %418 = vector.shape_cast %417 : vector<1x1x32x8xbf16> to vector<32x8xbf16>
    %cst_336 = arith.constant dense<0.000000e+00> : vector<32x8xf32>
    %419 = tpu.matmul %276, %418, %cst_336 {dimension_numbers = #tpu.dot_dimension_numbers<[1], [0], [0], [1], [0, 0, 1, 1], [], []>} : vector<32x32xbf16>, vector<32x8xbf16>, vector<32x8xf32> -> vector<32x8xf32>
    %c1_337 = arith.constant 1 : index
    %c3_338 = arith.constant 3 : index
    %c0_339 = arith.constant 0 : index
    %c0_340 = arith.constant 0 : index
    %420 = vector.load %arg7[%c1_337, %c3_338, %c0_339, %c0_340] : memref<2x4x1x8xf32, #tpu.memory_space<vmem>>, vector<1x1x1x8xf32>
    %421 = vector.shape_cast %420 : vector<1x1x1x8xf32> to vector<1x8xf32>
    %422 = vector.broadcast %421 : vector<1x8xf32> to vector<32x8xf32>
    %423 = arith.addf %419, %422 : vector<32x8xf32>
    %c1_341 = arith.constant 1 : index
    %c3_342 = arith.constant 3 : index
    %c0_343 = arith.constant 0 : index
    %c0_344 = arith.constant 0 : index
    %424 = vector.load %arg5[%c1_341, %c3_342, %c0_343, %c0_344] : memref<2x4x32x8xbf16, #tpu.memory_space<vmem>>, vector<1x1x32x8xbf16>
    %425 = vector.shape_cast %424 : vector<1x1x32x8xbf16> to vector<32x8xbf16>
    %cst_345 = arith.constant dense<0.000000e+00> : vector<32x8xf32>
    %426 = tpu.matmul %276, %425, %cst_345 {dimension_numbers = #tpu.dot_dimension_numbers<[1], [0], [0], [1], [0, 0, 1, 1], [], []>} : vector<32x32xbf16>, vector<32x8xbf16>, vector<32x8xf32> -> vector<32x8xf32>
    %c1_346 = arith.constant 1 : index
    %c3_347 = arith.constant 3 : index
    %c0_348 = arith.constant 0 : index
    %c0_349 = arith.constant 0 : index
    %427 = vector.load %arg8[%c1_346, %c3_347, %c0_348, %c0_349] : memref<2x4x1x8xf32, #tpu.memory_space<vmem>>, vector<1x1x1x8xf32>
    %428 = vector.shape_cast %427 : vector<1x1x1x8xf32> to vector<1x8xf32>
    %429 = vector.broadcast %428 : vector<1x8xf32> to vector<32x8xf32>
    %430 = arith.addf %426, %429 : vector<32x8xf32>
    %431 = vector.shape_cast %416 : vector<32x8xf32> to vector<2x16x8xf32>
    %432 = vector.shape_cast %423 : vector<32x8xf32> to vector<2x16x8xf32>
    %433 = vector.shape_cast %430 : vector<32x8xf32> to vector<2x16x8xf32>
    "tpu.trace_start"() <{level = 10 : i32, message = "bqd,bkd->bqk"}> : () -> ()
    %cst_350 = arith.constant dense<0.000000e+00> : vector<2x16x16xf32>
    %434 = tpu.matmul %431, %432, %cst_350 {dimension_numbers = #tpu.dot_dimension_numbers<[2], [2], [1], [1], [0, 0, 0, 1, 1, 1], [0], [0]>} : vector<2x16x8xf32>, vector<2x16x8xf32>, vector<2x16x16xf32> -> vector<2x16x16xf32>
    "tpu.trace_stop"() : () -> ()
    %cst_351 = arith.constant 0.353553385 : f32
    %435 = vector.broadcast %cst_351 : f32 to vector<2x16x16xf32>
    %436 = arith.mulf %434, %435 : vector<2x16x16xf32>
    %cst_352 = arith.constant dense<0xFF800000> : vector<2x16xf32>
    %437 = vector.multi_reduction <maximumf>, %436, %cst_352 [2] : vector<2x16x16xf32> to vector<2x16xf32>
    %438 = vector.shape_cast %437 : vector<2x16xf32> to vector<2x16x1xf32>
    %439 = vector.broadcast %438 : vector<2x16x1xf32> to vector<2x16x16xf32>
    %440 = arith.subf %436, %439 : vector<2x16x16xf32>
    %441 = math.exp %440 : vector<2x16x16xf32>
    %cst_353 = arith.constant dense<0.000000e+00> : vector<2x16xf32>
    %442 = vector.multi_reduction <add>, %441, %cst_353 [2] : vector<2x16x16xf32> to vector<2x16xf32>
    %443 = vector.shape_cast %442 : vector<2x16xf32> to vector<2x16x1xf32>
    %444 = tpu.reciprocal %443 {approx = true} : vector<2x16x1xf32> -> vector<2x16x1xf32>
    %445 = vector.broadcast %444 : vector<2x16x1xf32> to vector<2x16x16xf32>
    %446 = arith.mulf %441, %445 : vector<2x16x16xf32>
    "tpu.trace_start"() <{level = 10 : i32, message = "bqk,bkd->bqd"}> : () -> ()
    %cst_354 = arith.constant dense<0.000000e+00> : vector<2x16x8xf32>
    %447 = tpu.matmul %446, %433, %cst_354 {dimension_numbers = #tpu.dot_dimension_numbers<[2], [1], [1], [2], [0, 0, 0, 1, 1, 2], [0], [0]>} : vector<2x16x16xf32>, vector<2x16x8xf32>, vector<2x16x8xf32> -> vector<2x16x8xf32>
    "tpu.trace_stop"() : () -> ()
    %448 = vector.shape_cast %447 : vector<2x16x8xf32> to vector<32x8xf32>
    %449 = arith.truncf %448 : vector<32x8xf32> to vector<32x8xbf16>
    %c1_355 = arith.constant 1 : index
    %c3_356 = arith.constant 3 : index
    %c0_357 = arith.constant 0 : index
    %c0_358 = arith.constant 0 : index
    %450 = vector.load %arg9[%c1_355, %c3_356, %c0_357, %c0_358] : memref<2x4x8x32xbf16, #tpu.memory_space<vmem>>, vector<1x1x8x32xbf16>
    %451 = vector.shape_cast %450 : vector<1x1x8x32xbf16> to vector<8x32xbf16>
    %cst_359 = arith.constant dense<0.000000e+00> : vector<32x32xf32>
    %452 = tpu.matmul %449, %451, %cst_359 {dimension_numbers = #tpu.dot_dimension_numbers<[1], [0], [0], [1], [0, 0, 1, 1], [], []>} : vector<32x8xbf16>, vector<8x32xbf16>, vector<32x32xf32> -> vector<32x32xf32>
    %453 = arith.addf %409, %452 : vector<32x32xf32>
    %454 = arith.addf %261, %453 : vector<32x32xf32>
    %455 = vector.broadcast %271 : vector<1x32xf32> to vector<32x32xf32>
    %456 = arith.addf %454, %455 : vector<32x32xf32>
    %cst_360 = arith.constant dense<0.000000e+00> : vector<32xf32>
    %457 = vector.multi_reduction <add>, %456, %cst_360 [1] : vector<32x32xf32> to vector<32xf32>
    %458 = vector.shape_cast %457 : vector<32xf32> to vector<32x1xf32>
    %cst_361 = arith.constant 3.200000e+01 : f32
    %459 = vector.broadcast %cst_361 : f32 to vector<32x1xf32>
    %460 = arith.divf %458, %459 : vector<32x1xf32>
    %461 = arith.mulf %456, %456 : vector<32x32xf32>
    %cst_362 = arith.constant dense<0.000000e+00> : vector<32xf32>
    %462 = vector.multi_reduction <add>, %461, %cst_362 [1] : vector<32x32xf32> to vector<32xf32>
    %463 = vector.shape_cast %462 : vector<32xf32> to vector<32x1xf32>
    %cst_363 = arith.constant 3.200000e+01 : f32
    %464 = vector.broadcast %cst_363 : f32 to vector<32x1xf32>
    %465 = arith.divf %463, %464 : vector<32x1xf32>
    %466 = arith.mulf %460, %460 : vector<32x1xf32>
    %467 = arith.subf %465, %466 : vector<32x1xf32>
    %cst_364 = arith.constant 9.99999974E-6 : f32
    %468 = vector.broadcast %cst_364 : f32 to vector<32x1xf32>
    %469 = arith.addf %467, %468 : vector<32x1xf32>
    %470 = math.rsqrt %469 : vector<32x1xf32>
    %471 = vector.broadcast %460 : vector<32x1xf32> to vector<32x32xf32>
    %472 = arith.subf %456, %471 : vector<32x32xf32>
    %473 = vector.broadcast %470 : vector<32x1xf32> to vector<32x32xf32>
    %474 = arith.mulf %472, %473 : vector<32x32xf32>
    %475 = vector.broadcast %263 : vector<1x32xf32> to vector<32x32xf32>
    %476 = arith.mulf %474, %475 : vector<32x32xf32>
    %477 = vector.broadcast %265 : vector<1x32xf32> to vector<32x32xf32>
    %478 = arith.addf %476, %477 : vector<32x32xf32>
    %479 = arith.truncf %478 : vector<32x32xf32> to vector<32x32xbf16>
    %c1_365 = arith.constant 1 : index
    %c0_366 = arith.constant 0 : index
    %c0_367 = arith.constant 0 : index
    %480 = vector.load %arg15[%c1_365, %c0_366, %c0_367] : memref<2x32x2048xbf16, #tpu.memory_space<vmem>>, vector<1x32x2048xbf16>
    %481 = vector.shape_cast %480 : vector<1x32x2048xbf16> to vector<32x2048xbf16>
    %cst_368 = arith.constant dense<0.000000e+00> : vector<32x2048xf32>
    %482 = tpu.matmul %479, %481, %cst_368 {dimension_numbers = #tpu.dot_dimension_numbers<[1], [0], [0], [1], [0, 0, 1, 1], [], []>} : vector<32x32xbf16>, vector<32x2048xbf16>, vector<32x2048xf32> -> vector<32x2048xf32>
    %483 = vector.broadcast %273 : vector<1x2048xf32> to vector<32x2048xf32>
    %484 = arith.addf %482, %483 : vector<32x2048xf32>
    %cst_369 = arith.constant 0.000000e+00 : f32
    %485 = vector.broadcast %cst_369 : f32 to vector<32x2048xf32>
    %486 = arith.maximumf %484, %485 : vector<32x2048xf32>
    %487 = arith.truncf %486 : vector<32x2048xf32> to vector<32x2048xbf16>
    %c1_370 = arith.constant 1 : index
    %c0_371 = arith.constant 0 : index
    %c0_372 = arith.constant 0 : index
    %488 = vector.load %arg17[%c1_370, %c0_371, %c0_372] : memref<2x2048x32xbf16, #tpu.memory_space<vmem>>, vector<1x2048x32xbf16>
    %489 = vector.shape_cast %488 : vector<1x2048x32xbf16> to vector<2048x32xbf16>
    %cst_373 = arith.constant dense<0.000000e+00> : vector<32x32xf32>
    %490 = tpu.matmul %487, %489, %cst_373 {dimension_numbers = #tpu.dot_dimension_numbers<[1], [0], [0], [1], [0, 0, 1, 1], [], []>} : vector<32x2048xbf16>, vector<2048x32xbf16>, vector<32x32xf32> -> vector<32x32xf32>
    %491 = vector.broadcast %275 : vector<1x32xf32> to vector<32x32xf32>
    %492 = arith.addf %490, %491 : vector<32x32xf32>
    %493 = arith.addf %478, %492 : vector<32x32xf32>
    %cst_374 = arith.constant dense<0.000000e+00> : vector<32xf32>
    %494 = vector.multi_reduction <add>, %493, %cst_374 [1] : vector<32x32xf32> to vector<32xf32>
    %495 = vector.shape_cast %494 : vector<32xf32> to vector<32x1xf32>
    %cst_375 = arith.constant 3.200000e+01 : f32
    %496 = vector.broadcast %cst_375 : f32 to vector<32x1xf32>
    %497 = arith.divf %495, %496 : vector<32x1xf32>
    %498 = arith.mulf %493, %493 : vector<32x32xf32>
    %cst_376 = arith.constant dense<0.000000e+00> : vector<32xf32>
    %499 = vector.multi_reduction <add>, %498, %cst_376 [1] : vector<32x32xf32> to vector<32xf32>
    %500 = vector.shape_cast %499 : vector<32xf32> to vector<32x1xf32>
    %cst_377 = arith.constant 3.200000e+01 : f32
    %501 = vector.broadcast %cst_377 : f32 to vector<32x1xf32>
    %502 = arith.divf %500, %501 : vector<32x1xf32>
    %503 = arith.mulf %497, %497 : vector<32x1xf32>
    %504 = arith.subf %502, %503 : vector<32x1xf32>
    %cst_378 = arith.constant 9.99999974E-6 : f32
    %505 = vector.broadcast %cst_378 : f32 to vector<32x1xf32>
    %506 = arith.addf %504, %505 : vector<32x1xf32>
    %507 = math.rsqrt %506 : vector<32x1xf32>
    %508 = vector.broadcast %497 : vector<32x1xf32> to vector<32x32xf32>
    %509 = arith.subf %493, %508 : vector<32x32xf32>
    %510 = vector.broadcast %507 : vector<32x1xf32> to vector<32x32xf32>
    %511 = arith.mulf %509, %510 : vector<32x32xf32>
    %512 = vector.broadcast %267 : vector<1x32xf32> to vector<32x32xf32>
    %513 = arith.mulf %511, %512 : vector<32x32xf32>
    %514 = vector.broadcast %269 : vector<1x32xf32> to vector<32x32xf32>
    %515 = arith.addf %513, %514 : vector<32x32xf32>
    %516 = vector.shape_cast %515 : vector<32x32xf32> to vector<2x16x32xf32>
    %cst_379 = arith.constant dense<0.000000e+00> : vector<2x32xf32>
    %517 = vector.multi_reduction <add>, %516, %cst_379 [1] : vector<2x16x32xf32> to vector<2x32xf32>
    %cst_380 = arith.constant 1.600000e+01 : f32
    %518 = vector.broadcast %cst_380 : f32 to vector<2x32xf32>
    %519 = arith.divf %517, %518 : vector<2x32xf32>
    %520 = arith.truncf %519 : vector<2x32xf32> to vector<2x32xbf16>
    %c0_381 = arith.constant 0 : index
    %c0_382 = arith.constant 0 : index
    %521 = vector.load %arg19[%c0_381, %c0_382] : memref<32x2xbf16, #tpu.memory_space<vmem>>, vector<32x2xbf16>
    %cst_383 = arith.constant dense<0.000000e+00> : vector<2x2xf32>
    %522 = tpu.matmul %520, %521, %cst_383 {dimension_numbers = #tpu.dot_dimension_numbers<[1], [0], [0], [1], [0, 0, 1, 1], [], []>} : vector<2x32xbf16>, vector<32x2xbf16>, vector<2x2xf32> -> vector<2x2xf32>
    %c0_384 = arith.constant 0 : index
    %c0_385 = arith.constant 0 : index
    %523 = vector.load %arg20[%c0_384, %c0_385] : memref<1x2xf32, #tpu.memory_space<vmem>>, vector<1x2xf32>
    %524 = vector.broadcast %523 : vector<1x2xf32> to vector<2x2xf32>
    %525 = arith.addf %522, %524 : vector<2x2xf32>
    %c0_386 = arith.constant 0 : index
    %c0_387 = arith.constant 0 : index
    %526 = vector.load %arg21[%c0_386, %c0_387] : memref<2x2xf32, #tpu.memory_space<vmem>>, vector<2x2xf32>
    tpu.vector_store %arg21[%c0_386, %c0_387], %525 {strides = array<i32>} : memref<2x2xf32, #tpu.memory_space<vmem>>, vector<2x2xf32>,
    return
  }
}

</mosaic_0001>

<llo_original>
// kernel: tpu_custom_call.1
$region0: #{tpu_custom_call.1}
  #allocation0 [shape = 'u32[]', space=smem, size = 0x4, offset = 0x4, fixed_abs, tag = 'smem constant byte address 0x4 - core index']
  #allocation1 [shape = 'u32[72,128]{1,0:T(1,128)}', space=vmem, size = 0x9000, scoped, tag = 'internal scratch']
  %s0 = inlined_call_operand.vmem [shape: f32[32,1], index: 0, kind: input, shape index: {}]
  %s1 = inlined_call_operand.vmem [shape: f32[1,32], index: 1, kind: input, shape index: {}]
  %s2 = inlined_call_operand.vmem [shape: f32[1,32], index: 2, kind: input, shape index: {}]
  %s3 = inlined_call_operand.vmem [shape: bf16[2,4,32,8], index: 3, kind: input, shape index: {}]
  %s4 = inlined_call_operand.vmem [shape: bf16[2,4,32,8], index: 4, kind: input, shape index: {}]
  %s5 = inlined_call_operand.vmem [shape: bf16[2,4,32,8], index: 5, kind: input, shape index: {}]
  %s6 = inlined_call_operand.vmem [shape: f32[2,4,1,8], index: 6, kind: input, shape index: {}]
  %s7 = inlined_call_operand.vmem [shape: f32[2,4,1,8], index: 7, kind: input, shape index: {}]
  %s8 = inlined_call_operand.vmem [shape: f32[2,4,1,8], index: 8, kind: input, shape index: {}]
  %s9 = inlined_call_operand.vmem [shape: bf16[2,4,8,32], index: 9, kind: input, shape index: {}]
  %s10 = inlined_call_operand.vmem [shape: f32[2,1,32], index: 10, kind: input, shape index: {}]
  %s11 = inlined_call_operand.vmem [shape: f32[2,1,32], index: 11, kind: input, shape index: {}]
  %s12 = inlined_call_operand.vmem [shape: f32[2,1,32], index: 12, kind: input, shape index: {}]
  %s13 = inlined_call_operand.vmem [shape: f32[2,1,32], index: 13, kind: input, shape index: {}]
  %s14 = inlined_call_operand.vmem [shape: f32[2,1,32], index: 14, kind: input, shape index: {}]
  %s15 = inlined_call_operand.vmem [shape: bf16[2,32,2048], index: 15, kind: input, shape index: {}]
  %s16 = inlined_call_operand.vmem [shape: f32[2,1,2048], index: 16, kind: input, shape index: {}]
  %s17 = inlined_call_operand.vmem [shape: bf16[2,2048,32], index: 17, kind: input, shape index: {}]
  %s18 = inlined_call_operand.vmem [shape: f32[2,1,32], index: 18, kind: input, shape index: {}]
  %s19 = inlined_call_operand.vmem [shape: bf16[32,2], index: 19, kind: input, shape index: {}]
  %s20 = inlined_call_operand.vmem [shape: f32[1,2], index: 20, kind: input, shape index: {}]
  %s21 = inlined_call_operand.hbm [shape: f32[2,2], index: 21, kind: output, shape index: {}]
  %s22 = sld [smem:[#allocation0]]
  $region94: #{tpu_custom_call.1} parent=0
    _
  %s24 = ssub.s32 1, %s22
  %s25 = scalar_select 0, %s24, %s22
  $region1: #{tpu_custom_call.1} parent=0
    #allocation2 [shape = 'u8[1024]{0}', space=vmem, size = 0x400, scoped, tag = 'output window, operand 0, single buffered']
    #allocation3 [shape = 's32[1]{0}', space=sflag, size = 0x4, scoped, tag = 'scoped memory for tpu_custom_call.1']
    %26 = vsyncpa [#allocation3], 0
    // Predicated region
    $region2: #{tpu_custom_call.1} parent=1 // pred_check
      _
    $region3: #{tpu_custom_call.1} parent=1 // pred_check_branch
      %28 = sbr.rel (0) target = $region5
    $region4: #{tpu_custom_call.1} parent=1 // pred_region
      _
    $region5: #{tpu_custom_call.1} parent=1 // pred_fallthru
      _
    // Predicated region
    $region6: #{tpu_custom_call.1} parent=1 // pred_check
      _
    $region7: #{tpu_custom_call.1} parent=1 // pred_check_branch
      %30 = sbr.rel (0) target = $region9
    $region8: #{tpu_custom_call.1} parent=1 // pred_region
      _
    $region9: #{tpu_custom_call.1} parent=1 // pred_fallthru
      _
    // Predicated region
    $region10: #{tpu_custom_call.1} parent=1 // pred_check
      _
    $region11: #{tpu_custom_call.1} parent=1 // pred_check_branch
      %32 = sbr.rel (0) target = $region13
    $region12: #{tpu_custom_call.1} parent=1 // pred_region
      _
    $region13: #{tpu_custom_call.1} parent=1 // pred_fallthru
      _
    // Predicated region
    $region14: #{tpu_custom_call.1} parent=1 // pred_check
      _
    $region15: #{tpu_custom_call.1} parent=1 // pred_check_branch
      %34 = sbr.rel (0) target = $region17
    $region16: #{tpu_custom_call.1} parent=1 // pred_region
      _
    $region17: #{tpu_custom_call.1} parent=1 // pred_fallthru
      _
    // Predicated region
    $region18: #{tpu_custom_call.1} parent=1 // pred_check
      _
    $region19: #{tpu_custom_call.1} parent=1 // pred_check_branch
      %36 = sbr.rel (0) target = $region21
    $region20: #{tpu_custom_call.1} parent=1 // pred_region
      _
    $region21: #{tpu_custom_call.1} parent=1 // pred_fallthru
      _
    // Predicated region
    $region22: #{tpu_custom_call.1} parent=1 // pred_check
      _
    $region23: #{tpu_custom_call.1} parent=1 // pred_check_branch
      %38 = sbr.rel (0) target = $region25
    $region24: #{tpu_custom_call.1} parent=1 // pred_region
      _
    $region25: #{tpu_custom_call.1} parent=1 // pred_fallthru
      _
    // Predicated region
    $region26: #{tpu_custom_call.1} parent=1 // pred_check
      _
    $region27: #{tpu_custom_call.1} parent=1 // pred_check_branch
      %40 = sbr.rel (0) target = $region29
    $region28: #{tpu_custom_call.1} parent=1 // pred_region
      _
    $region29: #{tpu_custom_call.1} parent=1 // pred_fallthru
      _
    // Predicated region
    $region30: #{tpu_custom_call.1} parent=1 // pred_check
      _
    $region31: #{tpu_custom_call.1} parent=1 // pred_check_branch
      %42 = sbr.rel (0) target = $region33
    $region32: #{tpu_custom_call.1} parent=1 // pred_region
      _
    $region33: #{tpu_custom_call.1} parent=1 // pred_fallthru
      _
    // Predicated region
    $region34: #{tpu_custom_call.1} parent=1 // pred_check
      _
    $region35: #{tpu_custom_call.1} parent=1 // pred_check_branch
      %44 = sbr.rel (0) target = $region37
    $region36: #{tpu_custom_call.1} parent=1 // pred_region
      _
    $region37: #{tpu_custom_call.1} parent=1 // pred_fallthru
      _
    // Predicated region
    $region38: #{tpu_custom_call.1} parent=1 // pred_check
      _
    $region39: #{tpu_custom_call.1} parent=1 // pred_check_branch
      %46 = sbr.rel (0) target = $region41
    $region40: #{tpu_custom_call.1} parent=1 // pred_region
      _
    $region41: #{tpu_custom_call.1} parent=1 // pred_fallthru
      _
    // Predicated region
    $region42: #{tpu_custom_call.1} parent=1 // pred_check
      _
    $region43: #{tpu_custom_call.1} parent=1 // pred_check_branch
      %48 = sbr.rel (0) target = $region45
    $region44: #{tpu_custom_call.1} parent=1 // pred_region
      _
    $region45: #{tpu_custom_call.1} parent=1 // pred_fallthru
      _
    // Predicated region
    $region46: #{tpu_custom_call.1} parent=1 // pred_check
      _
    $region47: #{tpu_custom_call.1} parent=1 // pred_check_branch
      %50 = sbr.rel (0) target = $region49
    $region48: #{tpu_custom_call.1} parent=1 // pred_region
      _
    $region49: #{tpu_custom_call.1} parent=1 // pred_fallthru
      _
    // Predicated region
    $region50: #{tpu_custom_call.1} parent=1 // pred_check
      _
    $region51: #{tpu_custom_call.1} parent=1 // pred_check_branch
      %52 = sbr.rel (0) target = $region53
    $region52: #{tpu_custom_call.1} parent=1 // pred_region
      _
    $region53: #{tpu_custom_call.1} parent=1 // pred_fallthru
      _
    // Predicated region
    $region54: #{tpu_custom_call.1} parent=1 // pred_check
      _
    $region55: #{tpu_custom_call.1} parent=1 // pred_check_branch
      %54 = sbr.rel (0) target = $region57
    $region56: #{tpu_custom_call.1} parent=1 // pred_region
      _
    $region57: #{tpu_custom_call.1} parent=1 // pred_fallthru
      _
    // Predicated region
    $region58: #{tpu_custom_call.1} parent=1 // pred_check
      _
    $region59: #{tpu_custom_call.1} parent=1 // pred_check_branch
      %56 = sbr.rel (0) target = $region61
    $region60: #{tpu_custom_call.1} parent=1 // pred_region
      _
    $region61: #{tpu_custom_call.1} parent=1 // pred_fallthru
      _
    // Predicated region
    $region62: #{tpu_custom_call.1} parent=1 // pred_check
      _
    $region63: #{tpu_custom_call.1} parent=1 // pred_check_branch
      %58 = sbr.rel (0) target = $region65
    $region64: #{tpu_custom_call.1} parent=1 // pred_region
      _
    $region65: #{tpu_custom_call.1} parent=1 // pred_fallthru
      _
    // Predicated region
    $region66: #{tpu_custom_call.1} parent=1 // pred_check
      _
    $region67: #{tpu_custom_call.1} parent=1 // pred_check_branch
      %60 = sbr.rel (0) target = $region69
    $region68: #{tpu_custom_call.1} parent=1 // pred_region
      _
    $region69: #{tpu_custom_call.1} parent=1 // pred_fallthru
      _
    // Predicated region
    $region70: #{tpu_custom_call.1} parent=1 // pred_check
      _
    $region71: #{tpu_custom_call.1} parent=1 // pred_check_branch
      %62 = sbr.rel (0) target = $region73
    $region72: #{tpu_custom_call.1} parent=1 // pred_region
      _
    $region73: #{tpu_custom_call.1} parent=1 // pred_fallthru
      _
    // Predicated region
    $region74: #{tpu_custom_call.1} parent=1 // pred_check
      _
    $region75: #{tpu_custom_call.1} parent=1 // pred_check_branch
      %64 = sbr.rel (0) target = $region77
    $region76: #{tpu_custom_call.1} parent=1 // pred_region
      _
    $region77: #{tpu_custom_call.1} parent=1 // pred_fallthru
      _
    // Predicated region
    $region78: #{tpu_custom_call.1} parent=1 // pred_check
      _
    $region79: #{tpu_custom_call.1} parent=1 // pred_check_branch
      %66 = sbr.rel (0) target = $region81
    $region80: #{tpu_custom_call.1} parent=1 // pred_region
      _
    $region81: #{tpu_custom_call.1} parent=1 // pred_fallthru
      _
    // Predicated region
    $region82: #{tpu_custom_call.1} parent=1 // pred_check
      _
    $region83: #{tpu_custom_call.1} parent=1 // pred_check_branch
      %68 = sbr.rel (0) target = $region85
    $region84: #{tpu_custom_call.1} parent=1 // pred_region
      _
    $region85: #{tpu_custom_call.1} parent=1 // pred_fallthru
      _
    %v70 = vld [vmem:[%s0] sm:$0xff]
    %v71 = vld [vmem:[%s0 + $0x8] sm:$0xff]
    %v72 = vld [vmem:[%s0 + $0x10] sm:$0xff]
    %v73 = vld [vmem:[%s0 + $0x18] sm:$0xff]
    %v74 = vld [vmem:[%s1] sm:$0x1]
    %76 = vset.pattern.permute.xlu0 0
    %77 = vperm.xlu0 %76, %v70
    %v78 = vpop.permute.xlu0 %77
    %81 = vset.pattern.permute.xlu0 0
    %82 = vperm.xlu0 %81, %v71
    %v83 = vpop.permute.xlu0 %82
    %86 = vset.pattern.permute.xlu0 0
    %87 = vperm.xlu0 %86, %v72
    %v88 = vpop.permute.xlu0 %87
    %91 = vset.pattern.permute.xlu0 0
    %92 = vperm.xlu0 %91, %v73
    %v93 = vpop.permute.xlu0 %92
    %v96 = vperm.slane %v74, 0
    %v98 = vmul.f32 %v78, %v96
    %v99 = vmul.f32 %v83, %v96
    %v100 = vmul.f32 %v88, %v96
    %v101 = vmul.f32 %v93, %v96
    %v102 = vld [vmem:[%s2] sm:$0x1]
    %v104 = vperm.slane %v102, 0
    %v106 = vadd.f32 %v98, %v104
    %v107 = vadd.f32 %v99, %v104
    %v108 = vadd.f32 %v100, %v104
    %v109 = vadd.f32 %v101, %v104
    %v110 = vld [vmem:[%s11] sm:$0x1]
    %v111 = vld [vmem:[%s12] sm:$0x1]
    %v112 = vld [vmem:[%s13] sm:$0x1]
    %v113 = vld [vmem:[%s14] sm:$0x1]
    %v114 = vld [vmem:[%s10] sm:$0x1]
    %v115 = vld [vmem:[%s16] sm:$0xff]
    %v116 = vld [vmem:[%s16 + $0x8] sm:$0xff]
    %v117 = vld [vmem:[%s18] sm:$0x1]
    %v118 = vpack.c.bf16 %v107, %v106
    %v119 = vpack.c.bf16 %v109, %v108
    %v120 = vld [vmem:[%s3] sm:$0xf]
    %v121 = vld [vmem:[%s3 + $0x4] sm:$0xf]
    %v122 = vld [vmem:[%s3 + $0x8] sm:$0xf]
    %v123 = vld [vmem:[%s3 + $0xc] sm:$0xf]
    %v124 = vld [vmem:[%s6] sm:$0x1]
    %v126 = vperm.slane %v124, 0
    %v132 = vunpack.c.l.b16 %v120
    %v133 = vunpack.c.l.b16 %v121
    %v134 = vunpack.c.l.b16 %v122
    %v135 = vunpack.c.l.b16 %v123
    %v136 = vpack.c.b16 %v133, %v132
    %v137 = vpack.c.b16 %v135, %v134
    %vm140 = vcmask 261120
    %v142 = vsel %vm140, %v118, 0
    %v145 = vsel %vm140, %v119, 0
    %147 = vmatpush.bf16.msra.mxu0 0
    %148 = vmatpush.bf16.msra.mxu0 0
    %149 = vmatpush.bf16.msra.mxu0 0
    %150 = vmatpush.bf16.msra.mxu0 0
    %151 = vmatpush.bf16.msra.mxu0 0
    %152 = vmatpush.bf16.msra.mxu0 0
    %153 = vmatpush.bf16.msra.mxu0 %v137
    %154 = vmatpush.bf16.msra.mxu0 %v136
    %155 = vmatmul.bf16.gmra.mxu0 %v142
    %v156 = vpop.f32.mrf.mxu0
    %v157 = vadd.f32 %v126, %v156
    %v158 = vpop.f32.mrf.mxu0
    %v159 = vadd.f32 %v126, %v158
    %160 = vmatmul.bf16.gmra.mxu0 %v145
    %v161 = vpop.f32.mrf.mxu0
    %v162 = vadd.f32 %v126, %v161
    %v163 = vpop.f32.mrf.mxu0
    %v164 = vadd.f32 %v126, %v163
    %165 = vdwg.mxu0
    %v166 = vld [vmem:[%s4] sm:$0xf]
    %v167 = vld [vmem:[%s4 + $0x4] sm:$0xf]
    %v168 = vld [vmem:[%s4 + $0x8] sm:$0xf]
    %v169 = vld [vmem:[%s4 + $0xc] sm:$0xf]
    %v170 = vld [vmem:[%s7] sm:$0x1]
    %v172 = vperm.slane %v170, 0
    %v178 = vunpack.c.l.b16 %v166
    %v179 = vunpack.c.l.b16 %v167
    %v180 = vunpack.c.l.b16 %v168
    %v181 = vunpack.c.l.b16 %v169
    %v182 = vpack.c.b16 %v179, %v178
    %v183 = vpack.c.b16 %v181, %v180
    %186 = vmatpush.bf16.msra.mxu0 0
    %187 = vmatpush.bf16.msra.mxu0 0
    %188 = vmatpush.bf16.msra.mxu0 0
    %189 = vmatpush.bf16.msra.mxu0 0
    %190 = vmatpush.bf16.msra.mxu0 0
    %191 = vmatpush.bf16.msra.mxu0 0
    %192 = vmatpush.bf16.msra.mxu0 %v183
    %193 = vmatpush.bf16.msra.mxu0 %v182
    %194 = vmatmul.bf16.gmra.mxu0 %v142
    %v195 = vpop.f32.mrf.mxu0
    %v196 = vadd.f32 %v172, %v195
    %v197 = vpop.f32.mrf.mxu0
    %v198 = vadd.f32 %v172, %v197
    %199 = vmatmul.bf16.gmra.mxu0 %v145
    %v200 = vpop.f32.mrf.mxu0
    %v201 = vadd.f32 %v172, %v200
    %v202 = vpop.f32.mrf.mxu0
    %v203 = vadd.f32 %v172, %v202
    %204 = vdwg.mxu0
    %v205 = vld [vmem:[%s5] sm:$0xf]
    %v206 = vld [vmem:[%s5 + $0x4] sm:$0xf]
    %v207 = vld [vmem:[%s5 + $0x8] sm:$0xf]
    %v208 = vld [vmem:[%s5 + $0xc] sm:$0xf]
    %v209 = vld [vmem:[%s8] sm:$0x1]
    %v211 = vperm.slane %v209, 0
    %v217 = vunpack.c.l.b16 %v205
    %v218 = vunpack.c.l.b16 %v206
    %v219 = vunpack.c.l.b16 %v207
    %v220 = vunpack.c.l.b16 %v208
    %v221 = vpack.c.b16 %v218, %v217
    %v222 = vpack.c.b16 %v220, %v219
    %225 = vmatpush.bf16.msra.mxu0 0
    %226 = vmatpush.bf16.msra.mxu0 0
    %227 = vmatpush.bf16.msra.mxu0 0
    %228 = vmatpush.bf16.msra.mxu0 0
    %229 = vmatpush.bf16.msra.mxu0 0
    %230 = vmatpush.bf16.msra.mxu0 0
    %231 = vmatpush.bf16.msra.mxu0 %v222
    %232 = vmatpush.bf16.msra.mxu0 %v221
    %233 = vmatmul.bf16.gmra.mxu0 %v142
    %v234 = vpop.f32.mrf.mxu0
    %v235 = vadd.f32 %v211, %v234
    %v236 = vpop.f32.mrf.mxu0
    %v237 = vadd.f32 %v211, %v236
    %238 = vmatmul.bf16.gmra.mxu0 %v145
    %v239 = vpop.f32.mrf.mxu0
    %v240 = vadd.f32 %v211, %v239
    %v241 = vpop.f32.mrf.mxu0
    %v242 = vadd.f32 %v211, %v241
    %243 = vdwg.mxu0
    %vm244 = vcmask 64512
    %v246 = vsel %vm244, %v157, 0
    %v249 = vsel %vm244, %v159, 0
    %v252 = vsel %vm244, %v196, 0
    %v255 = vsel %vm244, %v198, 0
    %257 = vmatpush.xpose.msra.mxu0 0.0
    %258 = vmatpush.xpose.msra.mxu0 0.0
    %259 = vmatpush.xpose.msra.mxu0 0.0
    %260 = vmatpush.xpose.msra.mxu0 0.0
    %261 = vmatpush.xpose.msra.mxu0 0.0
    %262 = vmatpush.xpose.msra.mxu0 0.0
    %263 = vmatpush.xpose.msra.mxu0 0.0
    %264 = vmatpush.xpose.msra.mxu0 0.0
    %265 = vmatpush.xpose.msra.mxu0 0.0
    %266 = vmatpush.xpose.msra.mxu0 0.0
    %267 = vmatpush.xpose.msra.mxu0 0.0
    %268 = vmatpush.xpose.msra.mxu0 0.0
    %269 = vmatpush.xpose.msra.mxu0 0.0
    %270 = vmatpush.xpose.msra.mxu0 0.0
    %271 = vmatpush.xpose.msra.mxu0 %v255
    %272 = vmatpush.xpose.msra.mxu0 %v252
    %273 = vmatmul.f32.gmra.mxu0 %v246
    %v274 = vpop.f32.mrf.mxu0
    %v275 = vadd.f32 0.0, %v274
    %276 = vmatmul.f32.gmra.mxu0 %v249
    %v277 = vpop.f32.mrf.mxu0
    %v278 = vadd.f32 0.0, %v277
    %279 = vdwg.mxu0
    %v281 = vsel %vm244, %v162, 0
    %v284 = vsel %vm244, %v164, 0
    %v287 = vsel %vm244, %v201, 0
    %v290 = vsel %vm244, %v203, 0
    %292 = vmatpush.xpose.msra.mxu0 0.0
    %293 = vmatpush.xpose.msra.mxu0 0.0
    %294 = vmatpush.xpose.msra.mxu0 0.0
    %295 = vmatpush.xpose.msra.mxu0 0.0
    %296 = vmatpush.xpose.msra.mxu0 0.0
    %297 = vmatpush.xpose.msra.mxu0 0.0
    %298 = vmatpush.xpose.msra.mxu0 0.0
    %299 = vmatpush.xpose.msra.mxu0 0.0
    %300 = vmatpush.xpose.msra.mxu0 0.0
    %301 = vmatpush.xpose.msra.mxu0 0.0
    %302 = vmatpush.xpose.msra.mxu0 0.0
    %303 = vmatpush.xpose.msra.mxu0 0.0
    %304 = vmatpush.xpose.msra.mxu0 0.0
    %305 = vmatpush.xpose.msra.mxu0 0.0
    %306 = vmatpush.xpose.msra.mxu0 %v290
    %307 = vmatpush.xpose.msra.mxu0 %v287
    %308 = vmatmul.f32.gmra.mxu0 %v281
    %v309 = vpop.f32.mrf.mxu0
    %v310 = vadd.f32 0.0, %v309
    %311 = vmatmul.f32.gmra.mxu0 %v284
    %v312 = vpop.f32.mrf.mxu0
    %v313 = vadd.f32 0.0, %v312
    %314 = vdwg.mxu0
    %v315 = vmul.f32 %v275, 0.35355338
    %v316 = vmul.f32 %v278, 0.35355338
    %v317 = vmul.f32 %v310, 0.35355338
    %v318 = vmul.f32 %v313, 0.35355338
    %vm319 = vcmask 130048
    %v320 = vsel %vm319, %v315, -inf
    %321 = vmax.xlane.f32.xlu0 %v320
    %v322 = vpop.xlane.xlu0 %321
    %v323 = vsel %vm319, %v316, -inf
    %324 = vmax.xlane.f32.xlu0 %v323
    %v325 = vpop.xlane.xlu0 %324
    %v326 = vsel %vm319, %v317, -inf
    %327 = vmax.xlane.f32.xlu0 %v326
    %v328 = vpop.xlane.xlu0 %327
    %v329 = vsel %vm319, %v318, -inf
    %330 = vmax.xlane.f32.xlu0 %v329
    %v331 = vpop.xlane.xlu0 %330
    %v332 = vsub.f32 %v315, %v322
    %v333 = vsub.f32 %v316, %v325
    %v334 = vsub.f32 %v317, %v328
    %v335 = vsub.f32 %v318, %v331
    %v336 = vmul.f32 %v332, 1.442695
    %v337 = vpow.pop %v336
    %v338 = vmul.f32 %v333, 1.442695
    %v339 = vpow.pop %v338
    %v340 = vmul.f32 %v334, 1.442695
    %v341 = vpow.pop %v340
    %v342 = vmul.f32 %v335, 1.442695
    %v343 = vpow.pop %v342
    %v344 = vsel %vm319, %v337, 0.0
    %345 = vadd.xlane.f32.xlu0 %v344
    %v346 = vpop.xlane.xlu0 %345
    %v347 = vsel %vm319, %v339, 0.0
    %348 = vadd.xlane.f32.xlu0 %v347
    %v349 = vpop.xlane.xlu0 %348
    %v350 = vsel %vm319, %v341, 0.0
    %351 = vadd.xlane.f32.xlu0 %v350
    %v352 = vpop.xlane.xlu0 %351
    %v353 = vsel %vm319, %v343, 0.0
    %354 = vadd.xlane.f32.xlu0 %v353
    %v355 = vpop.xlane.xlu0 %354
    %v356 = vrcp.pop %v346
    %v357 = vrcp.pop %v349
    %v358 = vrcp.pop %v352
    %v359 = vrcp.pop %v355
    %v360 = vmul.f32 %v337, %v356
    %v361 = vmul.f32 %v339, %v357
    %v362 = vmul.f32 %v341, %v358
    %v363 = vmul.f32 %v343, %v359
    %v365 = vsel %vm319, %v360, 0
    %v368 = vsel %vm319, %v361, 0
    %370 = vmatpush.msra.mxu0 0.0
    %371 = vmatpush.msra.mxu0 0.0
    %372 = vmatpush.msra.mxu0 0.0
    %373 = vmatpush.msra.mxu0 0.0
    %374 = vmatpush.msra.mxu0 0.0
    %375 = vmatpush.msra.mxu0 0.0
    %376 = vmatpush.msra.mxu0 0.0
    %377 = vmatpush.msra.mxu0 0.0
    %378 = vmatpush.msra.mxu0 0.0
    %379 = vmatpush.msra.mxu0 0.0
    %380 = vmatpush.msra.mxu0 0.0
    %381 = vmatpush.msra.mxu0 0.0
    %382 = vmatpush.msra.mxu0 0.0
    %383 = vmatpush.msra.mxu0 0.0
    %384 = vmatpush.msra.mxu0 %v237
    %385 = vmatpush.msra.mxu0 %v235
    %386 = vmatmul.f32.gmra.mxu0 %v365
    %v387 = vpop.f32.mrf.mxu0
    %v388 = vadd.f32 0.0, %v387
    %389 = vmatmul.f32.gmra.mxu0 %v368
    %v390 = vpop.f32.mrf.mxu0
    %v391 = vadd.f32 0.0, %v390
    %392 = vdwg.mxu0
    %v394 = vsel %vm319, %v362, 0
    %v397 = vsel %vm319, %v363, 0
    %399 = vmatpush.msra.mxu0 0.0
    %400 = vmatpush.msra.mxu0 0.0
    %401 = vmatpush.msra.mxu0 0.0
    %402 = vmatpush.msra.mxu0 0.0
    %403 = vmatpush.msra.mxu0 0.0
    %404 = vmatpush.msra.mxu0 0.0
    %405 = vmatpush.msra.mxu0 0.0
    %406 = vmatpush.msra.mxu0 0.0
    %407 = vmatpush.msra.mxu0 0.0
    %408 = vmatpush.msra.mxu0 0.0
    %409 = vmatpush.msra.mxu0 0.0
    %410 = vmatpush.msra.mxu0 0.0
    %411 = vmatpush.msra.mxu0 0.0
    %412 = vmatpush.msra.mxu0 0.0
    %413 = vmatpush.msra.mxu0 %v242
    %414 = vmatpush.msra.mxu0 %v240
    %415 = vmatmul.f32.gmra.mxu0 %v394
    %v416 = vpop.f32.mrf.mxu0
    %v417 = vadd.f32 0.0, %v416
    %418 = vmatmul.f32.gmra.mxu0 %v397
    %v419 = vpop.f32.mrf.mxu0
    %v420 = vadd.f32 0.0, %v419
    %421 = vdwg.mxu0
    %v422 = vpack.c.bf16 %v391, %v388
    %v423 = vpack.c.bf16 %v420, %v417
    %v424 = vld [vmem:[%s9] sm:$0xf]
    %s425 = scalar_lea.vmem %s3, 16
    %v426 = vld [vmem:[%s425] sm:$0xf]
    %v427 = vld [vmem:[%s425 + $0x4] sm:$0xf]
    %v428 = vld [vmem:[%s425 + $0x8] sm:$0xf]
    %v429 = vld [vmem:[%s425 + $0xc] sm:$0xf]
    %s430 = scalar_lea.vmem %s6, 1
    %v431 = vld [vmem:[%s430] sm:$0x1]
    %v433 = vperm.slane %v431, 0
    %v439 = vunpack.c.l.b16 %v426
    %v440 = vunpack.c.l.b16 %v427
    %v441 = vunpack.c.l.b16 %v428
    %v442 = vunpack.c.l.b16 %v429
    %v443 = vpack.c.b16 %v440, %v439
    %v444 = vpack.c.b16 %v442, %v441
    %447 = vmatpush.bf16.msra.mxu0 0
    %448 = vmatpush.bf16.msra.mxu0 0
    %449 = vmatpush.bf16.msra.mxu0 0
    %450 = vmatpush.bf16.msra.mxu0 0
    %451 = vmatpush.bf16.msra.mxu0 0
    %452 = vmatpush.bf16.msra.mxu0 0
    %453 = vmatpush.bf16.msra.mxu0 %v444
    %454 = vmatpush.bf16.msra.mxu0 %v443
    %455 = vmatmul.bf16.gmra.mxu0 %v142
    %v456 = vpop.f32.mrf.mxu0
    %v457 = vadd.f32 %v433, %v456
    %v458 = vpop.f32.mrf.mxu0
    %v459 = vadd.f32 %v433, %v458
    %460 = vmatmul.bf16.gmra.mxu0 %v145
    %v461 = vpop.f32.mrf.mxu0
    %v462 = vadd.f32 %v433, %v461
    %v463 = vpop.f32.mrf.mxu0
    %v464 = vadd.f32 %v433, %v463
    %465 = vdwg.mxu0
    %s466 = scalar_lea.vmem %s4, 16
    %v467 = vld [vmem:[%s466] sm:$0xf]
    %v468 = vld [vmem:[%s466 + $0x4] sm:$0xf]
    %v469 = vld [vmem:[%s466 + $0x8] sm:$0xf]
    %v470 = vld [vmem:[%s466 + $0xc] sm:$0xf]
    %s471 = scalar_lea.vmem %s7, 1
    %v472 = vld [vmem:[%s471] sm:$0x1]
    %v474 = vperm.slane %v472, 0
    %v480 = vunpack.c.l.b16 %v467
    %v481 = vunpack.c.l.b16 %v468
    %v482 = vunpack.c.l.b16 %v469
    %v483 = vunpack.c.l.b16 %v470
    %v484 = vpack.c.b16 %v481, %v480
    %v485 = vpack.c.b16 %v483, %v482
    %488 = vmatpush.bf16.msra.mxu0 0
    %489 = vmatpush.bf16.msra.mxu0 0
    %490 = vmatpush.bf16.msra.mxu0 0
    %491 = vmatpush.bf16.msra.mxu0 0
    %492 = vmatpush.bf16.msra.mxu0 0
    %493 = vmatpush.bf16.msra.mxu0 0
    %494 = vmatpush.bf16.msra.mxu0 %v485
    %495 = vmatpush.bf16.msra.mxu0 %v484
    %496 = vmatmul.bf16.gmra.mxu0 %v142
    %v497 = vpop.f32.mrf.mxu0
    %v498 = vadd.f32 %v474, %v497
    %v499 = vpop.f32.mrf.mxu0
    %v500 = vadd.f32 %v474, %v499
    %501 = vmatmul.bf16.gmra.mxu0 %v145
    %v502 = vpop.f32.mrf.mxu0
    %v503 = vadd.f32 %v474, %v502
    %v504 = vpop.f32.mrf.mxu0
    %v505 = vadd.f32 %v474, %v504
    %506 = vdwg.mxu0
    %s507 = scalar_lea.vmem %s5, 16
    %v508 = vld [vmem:[%s507] sm:$0xf]
    %v509 = vld [vmem:[%s507 + $0x4] sm:$0xf]
    %v510 = vld [vmem:[%s507 + $0x8] sm:$0xf]
    %v511 = vld [vmem:[%s507 + $0xc] sm:$0xf]
    %s512 = scalar_lea.vmem %s8, 1
    %v513 = vld [vmem:[%s512] sm:$0x1]
    %v515 = vperm.slane %v513, 0
    %v521 = vunpack.c.l.b16 %v508
    %v522 = vunpack.c.l.b16 %v509
    %v523 = vunpack.c.l.b16 %v510
    %v524 = vunpack.c.l.b16 %v511
    %v525 = vpack.c.b16 %v522, %v521
    %v526 = vpack.c.b16 %v524, %v523
    %529 = vmatpush.bf16.msra.mxu0 0
    %530 = vmatpush.bf16.msra.mxu0 0
    %531 = vmatpush.bf16.msra.mxu0 0
    %532 = vmatpush.bf16.msra.mxu0 0
    %533 = vmatpush.bf16.msra.mxu0 0
    %534 = vmatpush.bf16.msra.mxu0 0
    %535 = vmatpush.bf16.msra.mxu0 %v526
    %536 = vmatpush.bf16.msra.mxu0 %v525
    %537 = vmatmul.bf16.gmra.mxu0 %v142
    %v538 = vpop.f32.mrf.mxu0
    %v539 = vadd.f32 %v515, %v538
    %v540 = vpop.f32.mrf.mxu0
    %v541 = vadd.f32 %v515, %v540
    %542 = vmatmul.bf16.gmra.mxu0 %v145
    %v543 = vpop.f32.mrf.mxu0
    %v544 = vadd.f32 %v515, %v543
    %v545 = vpop.f32.mrf.mxu0
    %v546 = vadd.f32 %v515, %v545
    %547 = vdwg.mxu0
    %v549 = vsel %vm244, %v457, 0
    %v552 = vsel %vm244, %v459, 0
    %v555 = vsel %vm244, %v498, 0
    %v558 = vsel %vm244, %v500, 0
    %560 = vmatpush.xpose.msra.mxu0 0.0
    %561 = vmatpush.xpose.msra.mxu0 0.0
    %562 = vmatpush.xpose.msra.mxu0 0.0
    %563 = vmatpush.xpose.msra.mxu0 0.0
    %564 = vmatpush.xpose.msra.mxu0 0.0
    %565 = vmatpush.xpose.msra.mxu0 0.0
    %566 = vmatpush.xpose.msra.mxu0 0.0
    %567 = vmatpush.xpose.msra.mxu0 0.0
    %568 = vmatpush.xpose.msra.mxu0 0.0
    %569 = vmatpush.xpose.msra.mxu0 0.0
    %570 = vmatpush.xpose.msra.mxu0 0.0
    %571 = vmatpush.xpose.msra.mxu0 0.0
    %572 = vmatpush.xpose.msra.mxu0 0.0
    %573 = vmatpush.xpose.msra.mxu0 0.0
    %574 = vmatpush.xpose.msra.mxu0 %v558
    %575 = vmatpush.xpose.msra.mxu0 %v555
    %576 = vmatmul.f32.gmra.mxu0 %v549
    %v577 = vpop.f32.mrf.mxu0
    %v578 = vadd.f32 0.0, %v577
    %579 = vmatmul.f32.gmra.mxu0 %v552
    %v580 = vpop.f32.mrf.mxu0
    %v581 = vadd.f32 0.0, %v580
    %582 = vdwg.mxu0
    %v584 = vsel %vm244, %v462, 0
    %v587 = vsel %vm244, %v464, 0
    %v590 = vsel %vm244, %v503, 0
    %v593 = vsel %vm244, %v505, 0
    %595 = vmatpush.xpose.msra.mxu0 0.0
    %596 = vmatpush.xpose.msra.mxu0 0.0
    %597 = vmatpush.xpose.msra.mxu0 0.0
    %598 = vmatpush.xpose.msra.mxu0 0.0
    %599 = vmatpush.xpose.msra.mxu0 0.0
    %600 = vmatpush.xpose.msra.mxu0 0.0
    %601 = vmatpush.xpose.msra.mxu0 0.0
    %602 = vmatpush.xpose.msra.mxu0 0.0
    %603 = vmatpush.xpose.msra.mxu0 0.0
    %604 = vmatpush.xpose.msra.mxu0 0.0
    %605 = vmatpush.xpose.msra.mxu0 0.0
    %606 = vmatpush.xpose.msra.mxu0 0.0
    %607 = vmatpush.xpose.msra.mxu0 0.0
    %608 = vmatpush.xpose.msra.mxu0 0.0
    %609 = vmatpush.xpose.msra.mxu0 %v593
    %610 = vmatpush.xpose.msra.mxu0 %v590
    %611 = vmatmul.f32.gmra.mxu0 %v584
    %v612 = vpop.f32.mrf.mxu0
    %v613 = vadd.f32 0.0, %v612
    %614 = vmatmul.f32.gmra.mxu0 %v587
    %v615 = vpop.f32.mrf.mxu0
    %v616 = vadd.f32 0.0, %v615
    %617 = vdwg.mxu0
    %v618 = vmul.f32 %v578, 0.35355338
    %v619 = vmul.f32 %v581, 0.35355338
    %v620 = vmul.f32 %v613, 0.35355338
    %v621 = vmul.f32 %v616, 0.35355338
    %v622 = vsel %vm319, %v618, -inf
    %623 = vmax.xlane.f32.xlu0 %v622
    %v624 = vpop.xlane.xlu0 %623
    %v625 = vsel %vm319, %v619, -inf
    %626 = vmax.xlane.f32.xlu0 %v625
    %v627 = vpop.xlane.xlu0 %626
    %v628 = vsel %vm319, %v620, -inf
    %629 = vmax.xlane.f32.xlu0 %v628
    %v630 = vpop.xlane.xlu0 %629
    %v631 = vsel %vm319, %v621, -inf
    %632 = vmax.xlane.f32.xlu0 %v631
    %v633 = vpop.xlane.xlu0 %632
    %v634 = vsub.f32 %v618, %v624
    %v635 = vsub.f32 %v619, %v627
    %v636 = vsub.f32 %v620, %v630
    %v637 = vsub.f32 %v621, %v633
    %v638 = vmul.f32 %v634, 1.442695
    %v639 = vpow.pop %v638
    %v640 = vmul.f32 %v635, 1.442695
    %v641 = vpow.pop %v640
    %v642 = vmul.f32 %v636, 1.442695
    %v643 = vpow.pop %v642
    %v644 = vmul.f32 %v637, 1.442695
    %v645 = vpow.pop %v644
    %v646 = vsel %vm319, %v639, 0.0
    %647 = vadd.xlane.f32.xlu0 %v646
    %v648 = vpop.xlane.xlu0 %647
    %v649 = vsel %vm319, %v641, 0.0
    %650 = vadd.xlane.f32.xlu0 %v649
    %v651 = vpop.xlane.xlu0 %650
    %v652 = vsel %vm319, %v643, 0.0
    %653 = vadd.xlane.f32.xlu0 %v652
    %v654 = vpop.xlane.xlu0 %653
    %v655 = vsel %vm319, %v645, 0.0
    %656 = vadd.xlane.f32.xlu0 %v655
    %v657 = vpop.xlane.xlu0 %656
    %v658 = vrcp.pop %v648
    %v659 = vrcp.pop %v651
    %v660 = vrcp.pop %v654
    %v661 = vrcp.pop %v657
    %v662 = vmul.f32 %v639, %v658
    %v663 = vmul.f32 %v641, %v659
    %v664 = vmul.f32 %v643, %v660
    %v665 = vmul.f32 %v645, %v661
    %v667 = vsel %vm319, %v662, 0
    %v670 = vsel %vm319, %v663, 0
    %672 = vmatpush.msra.mxu0 0.0
    %673 = vmatpush.msra.mxu0 0.0
    %674 = vmatpush.msra.mxu0 0.0
    %675 = vmatpush.msra.mxu0 0.0
    %676 = vmatpush.msra.mxu0 0.0
    %677 = vmatpush.msra.mxu0 0.0
    %678 = vmatpush.msra.mxu0 0.0
    %679 = vmatpush.msra.mxu0 0.0
    %680 = vmatpush.msra.mxu0 0.0
    %681 = vmatpush.msra.mxu0 0.0
    %682 = vmatpush.msra.mxu0 0.0
    %683 = vmatpush.msra.mxu0 0.0
    %684 = vmatpush.msra.mxu0 0.0
    %685 = vmatpush.msra.mxu0 0.0
    %686 = vmatpush.msra.mxu0 %v541
    %687 = vmatpush.msra.mxu0 %v539
    %688 = vmatmul.f32.gmra.mxu0 %v667
    %v689 = vpop.f32.mrf.mxu0
    %v690 = vadd.f32 0.0, %v689
    %691 = vmatmul.f32.gmra.mxu0 %v670
    %v692 = vpop.f32.mrf.mxu0
    %v693 = vadd.f32 0.0, %v692
    %694 = vdwg.mxu0
    %v696 = vsel %vm319, %v664, 0
    %v699 = vsel %vm319, %v665, 0
    %701 = vmatpush.msra.mxu0 0.0
    %702 = vmatpush.msra.mxu0 0.0
    %703 = vmatpush.msra.mxu0 0.0
    %704 = vmatpush.msra.mxu0 0.0
    %705 = vmatpush.msra.mxu0 0.0
    %706 = vmatpush.msra.mxu0 0.0
    %707 = vmatpush.msra.mxu0 0.0
    %708 = vmatpush.msra.mxu0 0.0
    %709 = vmatpush.msra.mxu0 0.0
    %710 = vmatpush.msra.mxu0 0.0
    %711 = vmatpush.msra.mxu0 0.0
    %712 = vmatpush.msra.mxu0 0.0
    %713 = vmatpush.msra.mxu0 0.0
    %714 = vmatpush.msra.mxu0 0.0
    %715 = vmatpush.msra.mxu0 %v546
    %716 = vmatpush.msra.mxu0 %v544
    %717 = vmatmul.f32.gmra.mxu0 %v696
    %v718 = vpop.f32.mrf.mxu0
    %v719 = vadd.f32 0.0, %v718
    %720 = vmatmul.f32.gmra.mxu0 %v699
    %v721 = vpop.f32.mrf.mxu0
    %v722 = vadd.f32 0.0, %v721
    %723 = vdwg.mxu0
    %v724 = vpack.c.bf16 %v693, %v690
    %v725 = vpack.c.bf16 %v722, %v719
    %s726 = scalar_lea.vmem %s9, 4
    %v727 = vld [vmem:[%s726] sm:$0xf]
    %v729 = vsel %vm244, %v724, 0
    %v732 = vsel %vm244, %v725, 0
    %vm734 = vcmask 1043456
    %v736 = vsel %vm734, %v727, 0
    %738 = vmatpush.bf16.msra.mxu0 0
    %739 = vmatpush.bf16.msra.mxu0 0
    %740 = vmatpush.bf16.msra.mxu0 0
    %741 = vmatpush.bf16.msra.mxu0 0
    %742 = vmatpush.bf16.msra.mxu0 0
    %743 = vmatpush.bf16.msra.mxu0 0
    %744 = vmatpush.bf16.msra.mxu0 0
    %745 = vmatpush.bf16.msra.mxu0 %v736
    %746 = vmatmul.bf16.gmra.mxu0 %v729
    %v747 = vpop.f32.mrf.mxu0
    %v748 = vadd.f32 0.0, %v747
    %v749 = vpop.f32.mrf.mxu0
    %v750 = vadd.f32 0.0, %v749
    %751 = vmatmul.bf16.gmra.mxu0 %v732
    %v752 = vpop.f32.mrf.mxu0
    %v753 = vadd.f32 0.0, %v752
    %v754 = vpop.f32.mrf.mxu0
    %v755 = vadd.f32 0.0, %v754
    %756 = vdwg.mxu0
    %v758 = vsel %vm244, %v422, 0
    %v761 = vsel %vm244, %v423, 0
    %v764 = vsel %vm734, %v424, 0
    %766 = vmatpush.bf16.msra.mxu0 0
    %767 = vmatpush.bf16.msra.mxu0 0
    %768 = vmatpush.bf16.msra.mxu0 0
    %769 = vmatpush.bf16.msra.mxu0 0
    %770 = vmatpush.bf16.msra.mxu0 0
    %771 = vmatpush.bf16.msra.mxu0 0
    %772 = vmatpush.bf16.msra.mxu0 0
    %773 = vmatpush.bf16.msra.mxu0 %v764
    %774 = vmatmul.bf16.gmra.mxu0 %v758
    %v775 = vpop.f32.mrf.mxu0
    %v776 = vadd.f32 %v748, %v775
    %v777 = vpop.f32.mrf.mxu0
    %v778 = vadd.f32 %v750, %v777
    %779 = vmatmul.bf16.gmra.mxu0 %v761
    %v780 = vpop.f32.mrf.mxu0
    %v781 = vadd.f32 %v753, %v780
    %v782 = vpop.f32.mrf.mxu0
    %v783 = vadd.f32 %v755, %v782
    %784 = vdwg.mxu0
    %s785 = scalar_lea.vmem %s3, 32
    %v786 = vld [vmem:[%s785] sm:$0xf]
    %v787 = vld [vmem:[%s785 + $0x4] sm:$0xf]
    %v788 = vld [vmem:[%s785 + $0x8] sm:$0xf]
    %v789 = vld [vmem:[%s785 + $0xc] sm:$0xf]
    %s790 = scalar_lea.vmem %s6, 2
    %v791 = vld [vmem:[%s790] sm:$0x1]
    %v793 = vperm.slane %v791, 0
    %v799 = vunpack.c.l.b16 %v786
    %v800 = vunpack.c.l.b16 %v787
    %v801 = vunpack.c.l.b16 %v788
    %v802 = vunpack.c.l.b16 %v789
    %v803 = vpack.c.b16 %v800, %v799
    %v804 = vpack.c.b16 %v802, %v801
    %807 = vmatpush.bf16.msra.mxu0 0
    %808 = vmatpush.bf16.msra.mxu0 0
    %809 = vmatpush.bf16.msra.mxu0 0
    %810 = vmatpush.bf16.msra.mxu0 0
    %811 = vmatpush.bf16.msra.mxu0 0
    %812 = vmatpush.bf16.msra.mxu0 0
    %813 = vmatpush.bf16.msra.mxu0 %v804
    %814 = vmatpush.bf16.msra.mxu0 %v803
    %815 = vmatmul.bf16.gmra.mxu0 %v142
    %v816 = vpop.f32.mrf.mxu0
    %v817 = vadd.f32 %v793, %v816
    %v818 = vpop.f32.mrf.mxu0
    %v819 = vadd.f32 %v793, %v818
    %820 = vmatmul.bf16.gmra.mxu0 %v145
    %v821 = vpop.f32.mrf.mxu0
    %v822 = vadd.f32 %v793, %v821
    %v823 = vpop.f32.mrf.mxu0
    %v824 = vadd.f32 %v793, %v823
    %825 = vdwg.mxu0
    %s826 = scalar_lea.vmem %s4, 32
    %v827 = vld [vmem:[%s826] sm:$0xf]
    %v828 = vld [vmem:[%s826 + $0x4] sm:$0xf]
    %v829 = vld [vmem:[%s826 + $0x8] sm:$0xf]
    %v830 = vld [vmem:[%s826 + $0xc] sm:$0xf]
    %s831 = scalar_lea.vmem %s7, 2
    %v832 = vld [vmem:[%s831] sm:$0x1]
    %v834 = vperm.slane %v832, 0
    %v840 = vunpack.c.l.b16 %v827
    %v841 = vunpack.c.l.b16 %v828
    %v842 = vunpack.c.l.b16 %v829
    %v843 = vunpack.c.l.b16 %v830
    %v844 = vpack.c.b16 %v841, %v840
    %v845 = vpack.c.b16 %v843, %v842
    %848 = vmatpush.bf16.msra.mxu0 0
    %849 = vmatpush.bf16.msra.mxu0 0
    %850 = vmatpush.bf16.msra.mxu0 0
    %851 = vmatpush.bf16.msra.mxu0 0
    %852 = vmatpush.bf16.msra.mxu0 0
    %853 = vmatpush.bf16.msra.mxu0 0
    %854 = vmatpush.bf16.msra.mxu0 %v845
    %855 = vmatpush.bf16.msra.mxu0 %v844
    %856 = vmatmul.bf16.gmra.mxu0 %v142
    %v857 = vpop.f32.mrf.mxu0
    %v858 = vadd.f32 %v834, %v857
    %v859 = vpop.f32.mrf.mxu0
    %v860 = vadd.f32 %v834, %v859
    %861 = vmatmul.bf16.gmra.mxu0 %v145
    %v862 = vpop.f32.mrf.mxu0
    %v863 = vadd.f32 %v834, %v862
    %v864 = vpop.f32.mrf.mxu0
    %v865 = vadd.f32 %v834, %v864
    %866 = vdwg.mxu0
    %s867 = scalar_lea.vmem %s5, 32
    %v868 = vld [vmem:[%s867] sm:$0xf]
    %v869 = vld [vmem:[%s867 + $0x4] sm:$0xf]
    %v870 = vld [vmem:[%s867 + $0x8] sm:$0xf]
    %v871 = vld [vmem:[%s867 + $0xc] sm:$0xf]
    %s872 = scalar_lea.vmem %s8, 2
    %v873 = vld [vmem:[%s872] sm:$0x1]
    %v875 = vperm.slane %v873, 0
    %v881 = vunpack.c.l.b16 %v868
    %v882 = vunpack.c.l.b16 %v869
    %v883 = vunpack.c.l.b16 %v870
    %v884 = vunpack.c.l.b16 %v871
    %v885 = vpack.c.b16 %v882, %v881
    %v886 = vpack.c.b16 %v884, %v883
    %889 = vmatpush.bf16.msra.mxu0 0
    %890 = vmatpush.bf16.msra.mxu0 0
    %891 = vmatpush.bf16.msra.mxu0 0
    %892 = vmatpush.bf16.msra.mxu0 0
    %893 = vmatpush.bf16.msra.mxu0 0
    %894 = vmatpush.bf16.msra.mxu0 0
    %895 = vmatpush.bf16.msra.mxu0 %v886
    %896 = vmatpush.bf16.msra.mxu0 %v885
    %897 = vmatmul.bf16.gmra.mxu0 %v142
    %v898 = vpop.f32.mrf.mxu0
    %v899 = vadd.f32 %v875, %v898
    %v900 = vpop.f32.mrf.mxu0
    %v901 = vadd.f32 %v875, %v900
    %902 = vmatmul.bf16.gmra.mxu0 %v145
    %v903 = vpop.f32.mrf.mxu0
    %v904 = vadd.f32 %v875, %v903
    %v905 = vpop.f32.mrf.mxu0
    %v906 = vadd.f32 %v875, %v905
    %907 = vdwg.mxu0
    %v909 = vsel %vm244, %v817, 0
    %v912 = vsel %vm244, %v819, 0
    %v915 = vsel %vm244, %v858, 0
    %v918 = vsel %vm244, %v860, 0
    %920 = vmatpush.xpose.msra.mxu0 0.0
    %921 = vmatpush.xpose.msra.mxu0 0.0
    %922 = vmatpush.xpose.msra.mxu0 0.0
    %923 = vmatpush.xpose.msra.mxu0 0.0
    %924 = vmatpush.xpose.msra.mxu0 0.0
    %925 = vmatpush.xpose.msra.mxu0 0.0
    %926 = vmatpush.xpose.msra.mxu0 0.0
    %927 = vmatpush.xpose.msra.mxu0 0.0
    %928 = vmatpush.xpose.msra.mxu0 0.0
    %929 = vmatpush.xpose.msra.mxu0 0.0
    %930 = vmatpush.xpose.msra.mxu0 0.0
    %931 = vmatpush.xpose.msra.mxu0 0.0
    %932 = vmatpush.xpose.msra.mxu0 0.0
    %933 = vmatpush.xpose.msra.mxu0 0.0
    %934 = vmatpush.xpose.msra.mxu0 %v918
    %935 = vmatpush.xpose.msra.mxu0 %v915
    %936 = vmatmul.f32.gmra.mxu0 %v909
    %v937 = vpop.f32.mrf.mxu0
    %v938 = vadd.f32 0.0, %v937
    %939 = vmatmul.f32.gmra.mxu0 %v912
    %v940 = vpop.f32.mrf.mxu0
    %v941 = vadd.f32 0.0, %v940
    %942 = vdwg.mxu0
    %v944 = vsel %vm244, %v822, 0
    %v947 = vsel %vm244, %v824, 0
    %v950 = vsel %vm244, %v863, 0
    %v953 = vsel %vm244, %v865, 0
    %955 = vmatpush.xpose.msra.mxu0 0.0
    %956 = vmatpush.xpose.msra.mxu0 0.0
    %957 = vmatpush.xpose.msra.mxu0 0.0
    %958 = vmatpush.xpose.msra.mxu0 0.0
    %959 = vmatpush.xpose.msra.mxu0 0.0
    %960 = vmatpush.xpose.msra.mxu0 0.0
    %961 = vmatpush.xpose.msra.mxu0 0.0
    %962 = vmatpush.xpose.msra.mxu0 0.0
    %963 = vmatpush.xpose.msra.mxu0 0.0
    %964 = vmatpush.xpose.msra.mxu0 0.0
    %965 = vmatpush.xpose.msra.mxu0 0.0
    %966 = vmatpush.xpose.msra.mxu0 0.0
    %967 = vmatpush.xpose.msra.mxu0 0.0
    %968 = vmatpush.xpose.msra.mxu0 0.0
    %969 = vmatpush.xpose.msra.mxu0 %v953
    %970 = vmatpush.xpose.msra.mxu0 %v950
    %971 = vmatmul.f32.gmra.mxu0 %v944
    %v972 = vpop.f32.mrf.mxu0
    %v973 = vadd.f32 0.0, %v972
    %974 = vmatmul.f32.gmra.mxu0 %v947
    %v975 = vpop.f32.mrf.mxu0
    %v976 = vadd.f32 0.0, %v975
    %977 = vdwg.mxu0
    %v978 = vmul.f32 %v938, 0.35355338
    %v979 = vmul.f32 %v941, 0.35355338
    %v980 = vmul.f32 %v973, 0.35355338
    %v981 = vmul.f32 %v976, 0.35355338
    %v982 = vsel %vm319, %v978, -inf
    %983 = vmax.xlane.f32.xlu0 %v982
    %v984 = vpop.xlane.xlu0 %983
    %v985 = vsel %vm319, %v979, -inf
    %986 = vmax.xlane.f32.xlu0 %v985
    %v987 = vpop.xlane.xlu0 %986
    %v988 = vsel %vm319, %v980, -inf
    %989 = vmax.xlane.f32.xlu0 %v988
    %v990 = vpop.xlane.xlu0 %989
    %v991 = vsel %vm319, %v981, -inf
    %992 = vmax.xlane.f32.xlu0 %v991
    %v993 = vpop.xlane.xlu0 %992
    %v994 = vsub.f32 %v978, %v984
    %v995 = vsub.f32 %v979, %v987
    %v996 = vsub.f32 %v980, %v990
    %v997 = vsub.f32 %v981, %v993
    %v998 = vmul.f32 %v994, 1.442695
    %v999 = vpow.pop %v998
    %v1000 = vmul.f32 %v995, 1.442695
    %v1001 = vpow.pop %v1000
    %v1002 = vmul.f32 %v996, 1.442695
    %v1003 = vpow.pop %v1002
    %v1004 = vmul.f32 %v997, 1.442695
    %v1005 = vpow.pop %v1004
    %v1006 = vsel %vm319, %v999, 0.0
    %1007 = vadd.xlane.f32.xlu0 %v1006
    %v1008 = vpop.xlane.xlu0 %1007
    %v1009 = vsel %vm319, %v1001, 0.0
    %1010 = vadd.xlane.f32.xlu0 %v1009
    %v1011 = vpop.xlane.xlu0 %1010
    %v1012 = vsel %vm319, %v1003, 0.0
    %1013 = vadd.xlane.f32.xlu0 %v1012
    %v1014 = vpop.xlane.xlu0 %1013
    %v1015 = vsel %vm319, %v1005, 0.0
    %1016 = vadd.xlane.f32.xlu0 %v1015
    %v1017 = vpop.xlane.xlu0 %1016
    %v1018 = vrcp.pop %v1008
    %v1019 = vrcp.pop %v1011
    %v1020 = vrcp.pop %v1014
    %v1021 = vrcp.pop %v1017
    %v1022 = vmul.f32 %v999, %v1018
    %v1023 = vmul.f32 %v1001, %v1019
    %v1024 = vmul.f32 %v1003, %v1020
    %v1025 = vmul.f32 %v1005, %v1021
    %v1027 = vsel %vm319, %v1022, 0
    %v1030 = vsel %vm319, %v1023, 0
    %1032 = vmatpush.msra.mxu0 0.0
    %1033 = vmatpush.msra.mxu0 0.0
    %1034 = vmatpush.msra.mxu0 0.0
    %1035 = vmatpush.msra.mxu0 0.0
    %1036 = vmatpush.msra.mxu0 0.0
    %1037 = vmatpush.msra.mxu0 0.0
    %1038 = vmatpush.msra.mxu0 0.0
    %1039 = vmatpush.msra.mxu0 0.0
    %1040 = vmatpush.msra.mxu0 0.0
    %1041 = vmatpush.msra.mxu0 0.0
    %1042 = vmatpush.msra.mxu0 0.0
    %1043 = vmatpush.msra.mxu0 0.0
    %1044 = vmatpush.msra.mxu0 0.0
    %1045 = vmatpush.msra.mxu0 0.0
    %1046 = vmatpush.msra.mxu0 %v901
    %1047 = vmatpush.msra.mxu0 %v899
    %1048 = vmatmul.f32.gmra.mxu0 %v1027
    %v1049 = vpop.f32.mrf.mxu0
    %v1050 = vadd.f32 0.0, %v1049
    %1051 = vmatmul.f32.gmra.mxu0 %v1030
    %v1052 = vpop.f32.mrf.mxu0
    %v1053 = vadd.f32 0.0, %v1052
    %1054 = vdwg.mxu0
    %v1056 = vsel %vm319, %v1024, 0
    %v1059 = vsel %vm319, %v1025, 0
    %1061 = vmatpush.msra.mxu0 0.0
    %1062 = vmatpush.msra.mxu0 0.0
    %1063 = vmatpush.msra.mxu0 0.0
    %1064 = vmatpush.msra.mxu0 0.0
    %1065 = vmatpush.msra.mxu0 0.0
    %1066 = vmatpush.msra.mxu0 0.0
    %1067 = vmatpush.msra.mxu0 0.0
    %1068 = vmatpush.msra.mxu0 0.0
    %1069 = vmatpush.msra.mxu0 0.0
    %1070 = vmatpush.msra.mxu0 0.0
    %1071 = vmatpush.msra.mxu0 0.0
    %1072 = vmatpush.msra.mxu0 0.0
    %1073 = vmatpush.msra.mxu0 0.0
    %1074 = vmatpush.msra.mxu0 0.0
    %1075 = vmatpush.msra.mxu0 %v906
    %1076 = vmatpush.msra.mxu0 %v904
    %1077 = vmatmul.f32.gmra.mxu0 %v1056
    %v1078 = vpop.f32.mrf.mxu0
    %v1079 = vadd.f32 0.0, %v1078
    %1080 = vmatmul.f32.gmra.mxu0 %v1059
    %v1081 = vpop.f32.mrf.mxu0
    %v1082 = vadd.f32 0.0, %v1081
    %1083 = vdwg.mxu0
    %v1084 = vpack.c.bf16 %v1053, %v1050
    %v1085 = vpack.c.bf16 %v1082, %v1079
    %s1086 = scalar_lea.vmem %s9, 8
    %v1087 = vld [vmem:[%s1086] sm:$0xf]
    %v1089 = vsel %vm244, %v1084, 0
    %v1092 = vsel %vm244, %v1085, 0
    %v1095 = vsel %vm734, %v1087, 0
    %1097 = vmatpush.bf16.msra.mxu0 0
    %1098 = vmatpush.bf16.msra.mxu0 0
    %1099 = vmatpush.bf16.msra.mxu0 0
    %1100 = vmatpush.bf16.msra.mxu0 0
    %1101 = vmatpush.bf16.msra.mxu0 0
    %1102 = vmatpush.bf16.msra.mxu0 0
    %1103 = vmatpush.bf16.msra.mxu0 0
    %1104 = vmatpush.bf16.msra.mxu0 %v1095
    %1105 = vmatmul.bf16.gmra.mxu0 %v1089
    %v1106 = vpop.f32.mrf.mxu0
    %v1107 = vadd.f32 0.0, %v1106
    %v1108 = vpop.f32.mrf.mxu0
    %v1109 = vadd.f32 0.0, %v1108
    %1110 = vmatmul.bf16.gmra.mxu0 %v1092
    %v1111 = vpop.f32.mrf.mxu0
    %v1112 = vadd.f32 0.0, %v1111
    %v1113 = vpop.f32.mrf.mxu0
    %v1114 = vadd.f32 0.0, %v1113
    %1115 = vdwg.mxu0
    %v1116 = vadd.f32 %v776, %v1107
    %v1117 = vadd.f32 %v778, %v1109
    %v1118 = vadd.f32 %v781, %v1112
    %v1119 = vadd.f32 %v783, %v1114
    %s1120 = scalar_lea.vmem %s3, 48
    %v1121 = vld [vmem:[%s1120] sm:$0xf]
    %v1122 = vld [vmem:[%s1120 + $0x4] sm:$0xf]
    %v1123 = vld [vmem:[%s1120 + $0x8] sm:$0xf]
    %v1124 = vld [vmem:[%s1120 + $0xc] sm:$0xf]
    %s1125 = scalar_lea.vmem %s6, 3
    %v1126 = vld [vmem:[%s1125] sm:$0x1]
    %v1128 = vperm.slane %v1126, 0
    %v1134 = vunpack.c.l.b16 %v1121
    %v1135 = vunpack.c.l.b16 %v1122
    %v1136 = vunpack.c.l.b16 %v1123
    %v1137 = vunpack.c.l.b16 %v1124
    %v1138 = vpack.c.b16 %v1135, %v1134
    %v1139 = vpack.c.b16 %v1137, %v1136
    %1142 = vmatpush.bf16.msra.mxu0 0
    %1143 = vmatpush.bf16.msra.mxu0 0
    %1144 = vmatpush.bf16.msra.mxu0 0
    %1145 = vmatpush.bf16.msra.mxu0 0
    %1146 = vmatpush.bf16.msra.mxu0 0
    %1147 = vmatpush.bf16.msra.mxu0 0
    %1148 = vmatpush.bf16.msra.mxu0 %v1139
    %1149 = vmatpush.bf16.msra.mxu0 %v1138
    %1150 = vmatmul.bf16.gmra.mxu0 %v142
    %v1151 = vpop.f32.mrf.mxu0
    %v1152 = vadd.f32 %v1128, %v1151
    %v1153 = vpop.f32.mrf.mxu0
    %v1154 = vadd.f32 %v1128, %v1153
    %1155 = vmatmul.bf16.gmra.mxu0 %v145
    %v1156 = vpop.f32.mrf.mxu0
    %v1157 = vadd.f32 %v1128, %v1156
    %v1158 = vpop.f32.mrf.mxu0
    %v1159 = vadd.f32 %v1128, %v1158
    %1160 = vdwg.mxu0
    %s1161 = scalar_lea.vmem %s4, 48
    %v1162 = vld [vmem:[%s1161] sm:$0xf]
    %v1163 = vld [vmem:[%s1161 + $0x4] sm:$0xf]
    %v1164 = vld [vmem:[%s1161 + $0x8] sm:$0xf]
    %v1165 = vld [vmem:[%s1161 + $0xc] sm:$0xf]
    %s1166 = scalar_lea.vmem %s7, 3
    %v1167 = vld [vmem:[%s1166] sm:$0x1]
    %v1169 = vperm.slane %v1167, 0
    %v1175 = vunpack.c.l.b16 %v1162
    %v1176 = vunpack.c.l.b16 %v1163
    %v1177 = vunpack.c.l.b16 %v1164
    %v1178 = vunpack.c.l.b16 %v1165
    %v1179 = vpack.c.b16 %v1176, %v1175
    %v1180 = vpack.c.b16 %v1178, %v1177
    %1183 = vmatpush.bf16.msra.mxu0 0
    %1184 = vmatpush.bf16.msra.mxu0 0
    %1185 = vmatpush.bf16.msra.mxu0 0
    %1186 = vmatpush.bf16.msra.mxu0 0
    %1187 = vmatpush.bf16.msra.mxu0 0
    %1188 = vmatpush.bf16.msra.mxu0 0
    %1189 = vmatpush.bf16.msra.mxu0 %v1180
    %1190 = vmatpush.bf16.msra.mxu0 %v1179
    %1191 = vmatmul.bf16.gmra.mxu0 %v142
    %v1192 = vpop.f32.mrf.mxu0
    %v1193 = vadd.f32 %v1169, %v1192
    %v1194 = vpop.f32.mrf.mxu0
    %v1195 = vadd.f32 %v1169, %v1194
    %1196 = vmatmul.bf16.gmra.mxu0 %v145
    %v1197 = vpop.f32.mrf.mxu0
    %v1198 = vadd.f32 %v1169, %v1197
    %v1199 = vpop.f32.mrf.mxu0
    %v1200 = vadd.f32 %v1169, %v1199
    %1201 = vdwg.mxu0
    %s1202 = scalar_lea.vmem %s5, 48
    %v1203 = vld [vmem:[%s1202] sm:$0xf]
    %v1204 = vld [vmem:[%s1202 + $0x4] sm:$0xf]
    %v1205 = vld [vmem:[%s1202 + $0x8] sm:$0xf]
    %v1206 = vld [vmem:[%s1202 + $0xc] sm:$0xf]
    %s1207 = scalar_lea.vmem %s8, 3
    %v1208 = vld [vmem:[%s1207] sm:$0x1]
    %v1210 = vperm.slane %v1208, 0
    %v1216 = vunpack.c.l.b16 %v1203
    %v1217 = vunpack.c.l.b16 %v1204
    %v1218 = vunpack.c.l.b16 %v1205
    %v1219 = vunpack.c.l.b16 %v1206
    %v1220 = vpack.c.b16 %v1217, %v1216
    %v1221 = vpack.c.b16 %v1219, %v1218
    %1224 = vmatpush.bf16.msra.mxu0 0
    %1225 = vmatpush.bf16.msra.mxu0 0
    %1226 = vmatpush.bf16.msra.mxu0 0
    %1227 = vmatpush.bf16.msra.mxu0 0
    %1228 = vmatpush.bf16.msra.mxu0 0
    %1229 = vmatpush.bf16.msra.mxu0 0
    %1230 = vmatpush.bf16.msra.mxu0 %v1221
    %1231 = vmatpush.bf16.msra.mxu0 %v1220
    %1232 = vmatmul.bf16.gmra.mxu0 %v142
    %v1233 = vpop.f32.mrf.mxu0
    %v1234 = vadd.f32 %v1210, %v1233
    %v1235 = vpop.f32.mrf.mxu0
    %v1236 = vadd.f32 %v1210, %v1235
    %1237 = vmatmul.bf16.gmra.mxu0 %v145
    %v1238 = vpop.f32.mrf.mxu0
    %v1239 = vadd.f32 %v1210, %v1238
    %v1240 = vpop.f32.mrf.mxu0
    %v1241 = vadd.f32 %v1210, %v1240
    %1242 = vdwg.mxu0
    %v1244 = vsel %vm244, %v1152, 0
    %v1247 = vsel %vm244, %v1154, 0
    %v1250 = vsel %vm244, %v1193, 0
    %v1253 = vsel %vm244, %v1195, 0
    %1255 = vmatpush.xpose.msra.mxu0 0.0
    %1256 = vmatpush.xpose.msra.mxu0 0.0
    %1257 = vmatpush.xpose.msra.mxu0 0.0
    %1258 = vmatpush.xpose.msra.mxu0 0.0
    %1259 = vmatpush.xpose.msra.mxu0 0.0
    %1260 = vmatpush.xpose.msra.mxu0 0.0
    %1261 = vmatpush.xpose.msra.mxu0 0.0
    %1262 = vmatpush.xpose.msra.mxu0 0.0
    %1263 = vmatpush.xpose.msra.mxu0 0.0
    %1264 = vmatpush.xpose.msra.mxu0 0.0
    %1265 = vmatpush.xpose.msra.mxu0 0.0
    %1266 = vmatpush.xpose.msra.mxu0 0.0
    %1267 = vmatpush.xpose.msra.mxu0 0.0
    %1268 = vmatpush.xpose.msra.mxu0 0.0
    %1269 = vmatpush.xpose.msra.mxu0 %v1253
    %1270 = vmatpush.xpose.msra.mxu0 %v1250
    %1271 = vmatmul.f32.gmra.mxu0 %v1244
    %v1272 = vpop.f32.mrf.mxu0
    %v1273 = vadd.f32 0.0, %v1272
    %1274 = vmatmul.f32.gmra.mxu0 %v1247
    %v1275 = vpop.f32.mrf.mxu0
    %v1276 = vadd.f32 0.0, %v1275
    %1277 = vdwg.mxu0
    %v1279 = vsel %vm244, %v1157, 0
    %v1282 = vsel %vm244, %v1159, 0
    %v1285 = vsel %vm244, %v1198, 0
    %v1288 = vsel %vm244, %v1200, 0
    %1290 = vmatpush.xpose.msra.mxu0 0.0
    %1291 = vmatpush.xpose.msra.mxu0 0.0
    %1292 = vmatpush.xpose.msra.mxu0 0.0
    %1293 = vmatpush.xpose.msra.mxu0 0.0
    %1294 = vmatpush.xpose.msra.mxu0 0.0
    %1295 = vmatpush.xpose.msra.mxu0 0.0
    %1296 = vmatpush.xpose.msra.mxu0 0.0
    %1297 = vmatpush.xpose.msra.mxu0 0.0
    %1298 = vmatpush.xpose.msra.mxu0 0.0
    %1299 = vmatpush.xpose.msra.mxu0 0.0
    %1300 = vmatpush.xpose.msra.mxu0 0.0
    %1301 = vmatpush.xpose.msra.mxu0 0.0
    %1302 = vmatpush.xpose.msra.mxu0 0.0
    %1303 = vmatpush.xpose.msra.mxu0 0.0
    %1304 = vmatpush.xpose.msra.mxu0 %v1288
    %1305 = vmatpush.xpose.msra.mxu0 %v1285
    %1306 = vmatmul.f32.gmra.mxu0 %v1279
    %v1307 = vpop.f32.mrf.mxu0
    %v1308 = vadd.f32 0.0, %v1307
    %1309 = vmatmul.f32.gmra.mxu0 %v1282
    %v1310 = vpop.f32.mrf.mxu0
    %v1311 = vadd.f32 0.0, %v1310
    %1312 = vdwg.mxu0
    %v1313 = vmul.f32 %v1273, 0.35355338
    %v1314 = vmul.f32 %v1276, 0.35355338
    %v1315 = vmul.f32 %v1308, 0.35355338
    %v1316 = vmul.f32 %v1311, 0.35355338
    %v1317 = vsel %vm319, %v1313, -inf
    %1318 = vmax.xlane.f32.xlu0 %v1317
    %v1319 = vpop.xlane.xlu0 %1318
    %v1320 = vsel %vm319, %v1314, -inf
    %1321 = vmax.xlane.f32.xlu0 %v1320
    %v1322 = vpop.xlane.xlu0 %1321
    %v1323 = vsel %vm319, %v1315, -inf
    %1324 = vmax.xlane.f32.xlu0 %v1323
    %v1325 = vpop.xlane.xlu0 %1324
    %v1326 = vsel %vm319, %v1316, -inf
    %1327 = vmax.xlane.f32.xlu0 %v1326
    %v1328 = vpop.xlane.xlu0 %1327
    %v1329 = vsub.f32 %v1313, %v1319
    %v1330 = vsub.f32 %v1314, %v1322
    %v1331 = vsub.f32 %v1315, %v1325
    %v1332 = vsub.f32 %v1316, %v1328
    %v1333 = vmul.f32 %v1329, 1.442695
    %v1334 = vpow.pop %v1333
    %v1335 = vmul.f32 %v1330, 1.442695
    %v1336 = vpow.pop %v1335
    %v1337 = vmul.f32 %v1331, 1.442695
    %v1338 = vpow.pop %v1337
    %v1339 = vmul.f32 %v1332, 1.442695
    %v1340 = vpow.pop %v1339
    %v1341 = vsel %vm319, %v1334, 0.0
    %1342 = vadd.xlane.f32.xlu0 %v1341
    %v1343 = vpop.xlane.xlu0 %1342
    %v1344 = vsel %vm319, %v1336, 0.0
    %1345 = vadd.xlane.f32.xlu0 %v1344
    %v1346 = vpop.xlane.xlu0 %1345
    %v1347 = vsel %vm319, %v1338, 0.0
    %1348 = vadd.xlane.f32.xlu0 %v1347
    %v1349 = vpop.xlane.xlu0 %1348
    %v1350 = vsel %vm319, %v1340, 0.0
    %1351 = vadd.xlane.f32.xlu0 %v1350
    %v1352 = vpop.xlane.xlu0 %1351
    %v1353 = vrcp.pop %v1343
    %v1354 = vrcp.pop %v1346
    %v1355 = vrcp.pop %v1349
    %v1356 = vrcp.pop %v1352
    %v1357 = vmul.f32 %v1334, %v1353
    %v1358 = vmul.f32 %v1336, %v1354
    %v1359 = vmul.f32 %v1338, %v1355
    %v1360 = vmul.f32 %v1340, %v1356
    %v1362 = vsel %vm319, %v1357, 0
    %v1365 = vsel %vm319, %v1358, 0
    %1367 = vmatpush.msra.mxu0 0.0
    %1368 = vmatpush.msra.mxu0 0.0
    %1369 = vmatpush.msra.mxu0 0.0
    %1370 = vmatpush.msra.mxu0 0.0
    %1371 = vmatpush.msra.mxu0 0.0
    %1372 = vmatpush.msra.mxu0 0.0
    %1373 = vmatpush.msra.mxu0 0.0
    %1374 = vmatpush.msra.mxu0 0.0
    %1375 = vmatpush.msra.mxu0 0.0
    %1376 = vmatpush.msra.mxu0 0.0
    %1377 = vmatpush.msra.mxu0 0.0
    %1378 = vmatpush.msra.mxu0 0.0
    %1379 = vmatpush.msra.mxu0 0.0
    %1380 = vmatpush.msra.mxu0 0.0
    %1381 = vmatpush.msra.mxu0 %v1236
    %1382 = vmatpush.msra.mxu0 %v1234
    %1383 = vmatmul.f32.gmra.mxu0 %v1362
    %v1384 = vpop.f32.mrf.mxu0
    %v1385 = vadd.f32 0.0, %v1384
    %1386 = vmatmul.f32.gmra.mxu0 %v1365
    %v1387 = vpop.f32.mrf.mxu0
    %v1388 = vadd.f32 0.0, %v1387
    %1389 = vdwg.mxu0
    %v1391 = vsel %vm319, %v1359, 0
    %v1394 = vsel %vm319, %v1360, 0
    %1396 = vmatpush.msra.mxu0 0.0
    %1397 = vmatpush.msra.mxu0 0.0
    %1398 = vmatpush.msra.mxu0 0.0
    %1399 = vmatpush.msra.mxu0 0.0
    %1400 = vmatpush.msra.mxu0 0.0
    %1401 = vmatpush.msra.mxu0 0.0
    %1402 = vmatpush.msra.mxu0 0.0
    %1403 = vmatpush.msra.mxu0 0.0
    %1404 = vmatpush.msra.mxu0 0.0
    %1405 = vmatpush.msra.mxu0 0.0
    %1406 = vmatpush.msra.mxu0 0.0
    %1407 = vmatpush.msra.mxu0 0.0
    %1408 = vmatpush.msra.mxu0 0.0
    %1409 = vmatpush.msra.mxu0 0.0
    %1410 = vmatpush.msra.mxu0 %v1241
    %1411 = vmatpush.msra.mxu0 %v1239
    %1412 = vmatmul.f32.gmra.mxu0 %v1391
    %v1413 = vpop.f32.mrf.mxu0
    %v1414 = vadd.f32 0.0, %v1413
    %1415 = vmatmul.f32.gmra.mxu0 %v1394
    %v1416 = vpop.f32.mrf.mxu0
    %v1417 = vadd.f32 0.0, %v1416
    %1418 = vdwg.mxu0
    %v1419 = vpack.c.bf16 %v1388, %v1385
    %v1420 = vpack.c.bf16 %v1417, %v1414
    %s1421 = scalar_lea.vmem %s9, 12
    %v1422 = vld [vmem:[%s1421] sm:$0xf]
    %v1424 = vsel %vm244, %v1419, 0
    %v1427 = vsel %vm244, %v1420, 0
    %v1430 = vsel %vm734, %v1422, 0
    %1432 = vmatpush.bf16.msra.mxu0 0
    %1433 = vmatpush.bf16.msra.mxu0 0
    %1434 = vmatpush.bf16.msra.mxu0 0
    %1435 = vmatpush.bf16.msra.mxu0 0
    %1436 = vmatpush.bf16.msra.mxu0 0
    %1437 = vmatpush.bf16.msra.mxu0 0
    %1438 = vmatpush.bf16.msra.mxu0 0
    %1439 = vmatpush.bf16.msra.mxu0 %v1430
    %1440 = vmatmul.bf16.gmra.mxu0 %v1424
    %v1441 = vpop.f32.mrf.mxu0
    %v1442 = vadd.f32 0.0, %v1441
    %v1443 = vpop.f32.mrf.mxu0
    %v1444 = vadd.f32 0.0, %v1443
    %1445 = vmatmul.bf16.gmra.mxu0 %v1427
    %v1446 = vpop.f32.mrf.mxu0
    %v1447 = vadd.f32 0.0, %v1446
    %v1448 = vpop.f32.mrf.mxu0
    %v1449 = vadd.f32 0.0, %v1448
    %1450 = vdwg.mxu0
    %v1451 = vadd.f32 %v1116, %v1442
    %v1452 = vadd.f32 %v1117, %v1444
    %v1453 = vadd.f32 %v1118, %v1447
    %v1454 = vadd.f32 %v1119, %v1449
    %v1455 = vadd.f32 %v106, %v1451
    %v1456 = vadd.f32 %v107, %v1452
    %v1457 = vadd.f32 %v108, %v1453
    %v1458 = vadd.f32 %v109, %v1454
    %v1460 = vperm.slane %v114, 0
    %v1462 = vadd.f32 %v1455, %v1460
    %v1463 = vadd.f32 %v1456, %v1460
    %v1464 = vadd.f32 %v1457, %v1460
    %v1465 = vadd.f32 %v1458, %v1460
    %v1466 = vsel %vm140, %v1462, 0.0
    %1467 = vadd.xlane.f32.xlu0 %v1466
    %v1468 = vpop.xlane.xlu0 %1467
    %v1469 = vsel %vm140, %v1463, 0.0
    %1470 = vadd.xlane.f32.xlu0 %v1469
    %v1471 = vpop.xlane.xlu0 %1470
    %v1472 = vsel %vm140, %v1464, 0.0
    %1473 = vadd.xlane.f32.xlu0 %v1472
    %v1474 = vpop.xlane.xlu0 %1473
    %v1475 = vsel %vm140, %v1465, 0.0
    %1476 = vadd.xlane.f32.xlu0 %v1475
    %v1477 = vpop.xlane.xlu0 %1476
    %v1478 = vrcp.pop 32.0
    %v1479 = vmul.f32 32.0, %v1478
    %v1480 = vsub.f32 1.0, %v1479
    %v1481 = vmul.f32 %v1478, %v1480
    %v1482 = vadd.f32 %v1478, %v1481
    %vm1483 = vweird.f32 %v1478
    %v1484 = vsel %vm1483, %v1478, %v1482
    %v1485 = vmul.f32 %v1468, %v1484
    %v1486 = vmul.f32 %v1471, %v1484
    %v1487 = vmul.f32 %v1474, %v1484
    %v1488 = vmul.f32 %v1477, %v1484
    %v1489 = vmul.f32 %v1462, %v1462
    %v1490 = vmul.f32 %v1463, %v1463
    %v1491 = vmul.f32 %v1464, %v1464
    %v1492 = vmul.f32 %v1465, %v1465
    %v1493 = vsel %vm140, %v1489, 0.0
    %1494 = vadd.xlane.f32.xlu0 %v1493
    %v1495 = vpop.xlane.xlu0 %1494
    %v1496 = vsel %vm140, %v1490, 0.0
    %1497 = vadd.xlane.f32.xlu0 %v1496
    %v1498 = vpop.xlane.xlu0 %1497
    %v1499 = vsel %vm140, %v1491, 0.0
    %1500 = vadd.xlane.f32.xlu0 %v1499
    %v1501 = vpop.xlane.xlu0 %1500
    %v1502 = vsel %vm140, %v1492, 0.0
    %1503 = vadd.xlane.f32.xlu0 %v1502
    %v1504 = vpop.xlane.xlu0 %1503
    %v1505 = vmul.f32 %v1495, %v1484
    %v1506 = vmul.f32 %v1498, %v1484
    %v1507 = vmul.f32 %v1501, %v1484
    %v1508 = vmul.f32 %v1504, %v1484
    %v1509 = vmul.f32 %v1485, %v1485
    %v1510 = vmul.f32 %v1486, %v1486
    %v1511 = vmul.f32 %v1487, %v1487
    %v1512 = vmul.f32 %v1488, %v1488
    %v1513 = vsub.f32 %v1505, %v1509
    %v1514 = vsub.f32 %v1506, %v1510
    %v1515 = vsub.f32 %v1507, %v1511
    %v1516 = vsub.f32 %v1508, %v1512
    %v1517 = vadd.f32 %v1513, 1e-05
    %v1518 = vadd.f32 %v1514, 1e-05
    %v1519 = vadd.f32 %v1515, 1e-05
    %v1520 = vadd.f32 %v1516, 1e-05
    %v1521 = vrsqrt.pop %v1517
    %v1522 = vmul.f32 %v1521, %v1517
    %v1523 = vmul.f32 %v1522, %v1521
    %v1524 = vmul.f32 0.5, %v1523
    %v1525 = vsub.f32 1.5, %v1524
    %v1526 = vmul.f32 %v1521, %v1525
    %vm1527 = vweird.f32 %v1517
    %vm1528 = vweird.f32 %v1521
    %vm1529 = vmor %vm1527, %vm1528
    %v1530 = vsel %vm1529, %v1521, %v1526
    %v1531 = vrsqrt.pop %v1518
    %v1532 = vmul.f32 %v1531, %v1518
    %v1533 = vmul.f32 %v1532, %v1531
    %v1534 = vmul.f32 0.5, %v1533
    %v1535 = vsub.f32 1.5, %v1534
    %v1536 = vmul.f32 %v1531, %v1535
    %vm1537 = vweird.f32 %v1518
    %vm1538 = vweird.f32 %v1531
    %vm1539 = vmor %vm1537, %vm1538
    %v1540 = vsel %vm1539, %v1531, %v1536
    %v1541 = vrsqrt.pop %v1519
    %v1542 = vmul.f32 %v1541, %v1519
    %v1543 = vmul.f32 %v1542, %v1541
    %v1544 = vmul.f32 0.5, %v1543
    %v1545 = vsub.f32 1.5, %v1544
    %v1546 = vmul.f32 %v1541, %v1545
    %vm1547 = vweird.f32 %v1519
    %vm1548 = vweird.f32 %v1541
    %vm1549 = vmor %vm1547, %vm1548
    %v1550 = vsel %vm1549, %v1541, %v1546
    %v1551 = vrsqrt.pop %v1520
    %v1552 = vmul.f32 %v1551, %v1520
    %v1553 = vmul.f32 %v1552, %v1551
    %v1554 = vmul.f32 0.5, %v1553
    %v1555 = vsub.f32 1.5, %v1554
    %v1556 = vmul.f32 %v1551, %v1555
    %vm1557 = vweird.f32 %v1520
    %vm1558 = vweird.f32 %v1551
    %vm1559 = vmor %vm1557, %vm1558
    %v1560 = vsel %vm1559, %v1551, %v1556
    %v1561 = vsub.f32 %v1462, %v1485
    %v1562 = vsub.f32 %v1463, %v1486
    %v1563 = vsub.f32 %v1464, %v1487
    %v1564 = vsub.f32 %v1465, %v1488
    %v1565 = vmul.f32 %v1561, %v1530
    %v1566 = vmul.f32 %v1562, %v1540
    %v1567 = vmul.f32 %v1563, %v1550
    %v1568 = vmul.f32 %v1564, %v1560
    %v1570 = vperm.slane %v110, 0
    %v1572 = vmul.f32 %v1565, %v1570
    %v1573 = vmul.f32 %v1566, %v1570
    %v1574 = vmul.f32 %v1567, %v1570
    %v1575 = vmul.f32 %v1568, %v1570
    %v1577 = vperm.slane %v111, 0
    %v1579 = vadd.f32 %v1572, %v1577
    %v1580 = vadd.f32 %v1573, %v1577
    %v1581 = vadd.f32 %v1574, %v1577
    %v1582 = vadd.f32 %v1575, %v1577
    %v1583 = vpack.c.bf16 %v1580, %v1579
    %v1584 = vpack.c.bf16 %v1582, %v1581
    %v1585 = vld [vmem:[%s15] sm:$0xff]
    %v1586 = vld [vmem:[%s15 + $0x8] sm:$0xff]
    %v1587 = vld [vmem:[%s15 + $0x10] sm:$0xff]
    %v1588 = vld [vmem:[%s15 + $0x18] sm:$0xff]
    %v1589 = vld [vmem:[%s15 + $0x20] sm:$0xff]
    %v1590 = vld [vmem:[%s15 + $0x28] sm:$0xff]
    %v1591 = vld [vmem:[%s15 + $0x30] sm:$0xff]
    %v1592 = vld [vmem:[%s15 + $0x38] sm:$0xff]
    %v1593 = vld [vmem:[%s15 + $0x40] sm:$0xff]
    %v1594 = vld [vmem:[%s15 + $0x48] sm:$0xff]
    %v1595 = vld [vmem:[%s15 + $0x50] sm:$0xff]
    %v1596 = vld [vmem:[%s15 + $0x58] sm:$0xff]
    %v1597 = vld [vmem:[%s15 + $0x60] sm:$0xff]
    %v1598 = vld [vmem:[%s15 + $0x68] sm:$0xff]
    %v1599 = vld [vmem:[%s15 + $0x70] sm:$0xff]
    %v1600 = vld [vmem:[%s15 + $0x78] sm:$0xff]
    %v1601 = vld [vmem:[%s15 + $0x80] sm:$0xff]
    %v1602 = vld [vmem:[%s15 + $0x88] sm:$0xff]
    %v1603 = vld [vmem:[%s15 + $0x90] sm:$0xff]
    %v1604 = vld [vmem:[%s15 + $0x98] sm:$0xff]
    %v1605 = vld [vmem:[%s15 + $0xa0] sm:$0xff]
    %v1606 = vld [vmem:[%s15 + $0xa8] sm:$0xff]
    %v1607 = vld [vmem:[%s15 + $0xb0] sm:$0xff]
    %v1608 = vld [vmem:[%s15 + $0xb8] sm:$0xff]
    %v1609 = vld [vmem:[%s15 + $0xc0] sm:$0xff]
    %v1610 = vld [vmem:[%s15 + $0xc8] sm:$0xff]
    %v1611 = vld [vmem:[%s15 + $0xd0] sm:$0xff]
    %v1612 = vld [vmem:[%s15 + $0xd8] sm:$0xff]
    %v1613 = vld [vmem:[%s15 + $0xe0] sm:$0xff]
    %v1614 = vld [vmem:[%s15 + $0xe8] sm:$0xff]
    %v1615 = vld [vmem:[%s15 + $0xf0] sm:$0xff]
    %v1616 = vld [vmem:[%s15 + $0xf8] sm:$0xff]
    %v1619 = vperm.slane %v115, 0
    %v1620 = vperm.slane %v115, 1
    %v1621 = vperm.slane %v115, 2
    %v1622 = vperm.slane %v115, 3
    %v1623 = vperm.slane %v115, 4
    %v1624 = vperm.slane %v115, 5
    %v1625 = vperm.slane %v115, 6
    %v1626 = vperm.slane %v115, 7
    %v1627 = vperm.slane %v116, 0
    %v1628 = vperm.slane %v116, 1
    %v1629 = vperm.slane %v116, 2
    %v1630 = vperm.slane %v116, 3
    %v1631 = vperm.slane %v116, 4
    %v1632 = vperm.slane %v116, 5
    %v1633 = vperm.slane %v116, 6
    %v1634 = vperm.slane %v116, 7
    %v1683 = vunpack.c.l.b16 %v1585
    %v1684 = vunpack.c.h.b16 %v1585
    %v1685 = vunpack.c.l.b16 %v1586
    %v1686 = vunpack.c.h.b16 %v1586
    %v1687 = vunpack.c.l.b16 %v1587
    %v1688 = vunpack.c.h.b16 %v1587
    %v1689 = vunpack.c.l.b16 %v1588
    %v1690 = vunpack.c.h.b16 %v1588
    %v1691 = vunpack.c.l.b16 %v1589
    %v1692 = vunpack.c.h.b16 %v1589
    %v1693 = vunpack.c.l.b16 %v1590
    %v1694 = vunpack.c.h.b16 %v1590
    %v1695 = vunpack.c.l.b16 %v1591
    %v1696 = vunpack.c.h.b16 %v1591
    %v1697 = vunpack.c.l.b16 %v1592
    %v1698 = vunpack.c.h.b16 %v1592
    %v1699 = vunpack.c.l.b16 %v1593
    %v1700 = vunpack.c.h.b16 %v1593
    %v1701 = vunpack.c.l.b16 %v1594
    %v1702 = vunpack.c.h.b16 %v1594
    %v1703 = vunpack.c.l.b16 %v1595
    %v1704 = vunpack.c.h.b16 %v1595
    %v1705 = vunpack.c.l.b16 %v1596
    %v1706 = vunpack.c.h.b16 %v1596
    %v1707 = vunpack.c.l.b16 %v1597
    %v1708 = vunpack.c.h.b16 %v1597
    %v1709 = vunpack.c.l.b16 %v1598
    %v1710 = vunpack.c.h.b16 %v1598
    %v1711 = vunpack.c.l.b16 %v1599
    %v1712 = vunpack.c.h.b16 %v1599
    %v1713 = vunpack.c.l.b16 %v1600
    %v1714 = vunpack.c.h.b16 %v1600
    %v1715 = vunpack.c.l.b16 %v1601
    %v1716 = vunpack.c.h.b16 %v1601
    %v1717 = vunpack.c.l.b16 %v1602
    %v1718 = vunpack.c.h.b16 %v1602
    %v1719 = vunpack.c.l.b16 %v1603
    %v1720 = vunpack.c.h.b16 %v1603
    %v1721 = vunpack.c.l.b16 %v1604
    %v1722 = vunpack.c.h.b16 %v1604
    %v1723 = vunpack.c.l.b16 %v1605
    %v1724 = vunpack.c.h.b16 %v1605
    %v1725 = vunpack.c.l.b16 %v1606
    %v1726 = vunpack.c.h.b16 %v1606
    %v1727 = vunpack.c.l.b16 %v1607
    %v1728 = vunpack.c.h.b16 %v1607
    %v1729 = vunpack.c.l.b16 %v1608
    %v1730 = vunpack.c.h.b16 %v1608
    %v1731 = vunpack.c.l.b16 %v1609
    %v1732 = vunpack.c.h.b16 %v1609
    %v1733 = vunpack.c.l.b16 %v1610
    %v1734 = vunpack.c.h.b16 %v1610
    %v1735 = vunpack.c.l.b16 %v1611
    %v1736 = vunpack.c.h.b16 %v1611
    %v1737 = vunpack.c.l.b16 %v1612
    %v1738 = vunpack.c.h.b16 %v1612
    %v1739 = vunpack.c.l.b16 %v1613
    %v1740 = vunpack.c.h.b16 %v1613
    %v1741 = vunpack.c.l.b16 %v1614
    %v1742 = vunpack.c.h.b16 %v1614
    %v1743 = vunpack.c.l.b16 %v1615
    %v1744 = vunpack.c.h.b16 %v1615
    %v1745 = vunpack.c.l.b16 %v1616
    %v1746 = vunpack.c.h.b16 %v1616
    %v1747 = vpack.c.b16 %v1699, %v1683
    %v1748 = vpack.c.b16 %v1700, %v1684
    %v1749 = vpack.c.b16 %v1701, %v1685
    %v1750 = vpack.c.b16 %v1702, %v1686
    %v1751 = vpack.c.b16 %v1703, %v1687
    %v1752 = vpack.c.b16 %v1704, %v1688
    %v1753 = vpack.c.b16 %v1705, %v1689
    %v1754 = vpack.c.b16 %v1706, %v1690
    %v1755 = vpack.c.b16 %v1707, %v1691
    %v1756 = vpack.c.b16 %v1708, %v1692
    %v1757 = vpack.c.b16 %v1709, %v1693
    %v1758 = vpack.c.b16 %v1710, %v1694
    %v1759 = vpack.c.b16 %v1711, %v1695
    %v1760 = vpack.c.b16 %v1712, %v1696
    %v1761 = vpack.c.b16 %v1713, %v1697
    %v1762 = vpack.c.b16 %v1714, %v1698
    %v1763 = vpack.c.b16 %v1731, %v1715
    %v1764 = vpack.c.b16 %v1732, %v1716
    %v1765 = vpack.c.b16 %v1733, %v1717
    %v1766 = vpack.c.b16 %v1734, %v1718
    %v1767 = vpack.c.b16 %v1735, %v1719
    %v1768 = vpack.c.b16 %v1736, %v1720
    %v1769 = vpack.c.b16 %v1737, %v1721
    %v1770 = vpack.c.b16 %v1738, %v1722
    %v1771 = vpack.c.b16 %v1739, %v1723
    %v1772 = vpack.c.b16 %v1740, %v1724
    %v1773 = vpack.c.b16 %v1741, %v1725
    %v1774 = vpack.c.b16 %v1742, %v1726
    %v1775 = vpack.c.b16 %v1743, %v1727
    %v1776 = vpack.c.b16 %v1744, %v1728
    %v1777 = vpack.c.b16 %v1745, %v1729
    %v1778 = vpack.c.b16 %v1746, %v1730
    %v1812 = vsel %vm140, %v1583, 0
    %v1815 = vsel %vm140, %v1584, 0
    %1817 = vmatpush.bf16.msra.mxu0 0
    %1818 = vmatpush.bf16.msra.mxu0 0
    %1819 = vmatpush.bf16.msra.mxu0 0
    %1820 = vmatpush.bf16.msra.mxu0 0
    %1821 = vmatpush.bf16.msra.mxu0 0
    %1822 = vmatpush.bf16.msra.mxu0 0
    %1823 = vmatpush.bf16.msra.mxu0 %v1763
    %1824 = vmatpush.bf16.msra.mxu0 %v1747
    %1825 = vmatmul.bf16.gmra.mxu0 %v1812
    %v1826 = vpop.f32.mrf.mxu0
    %v1827 = vadd.f32 %v1619, %v1826
    %v1828 = vpop.f32.mrf.mxu0
    %v1829 = vadd.f32 %v1619, %v1828
    %1830 = vmatmul.bf16.gmra.mxu0 %v1815
    %v1831 = vpop.f32.mrf.mxu0
    %v1832 = vadd.f32 %v1619, %v1831
    %v1833 = vpop.f32.mrf.mxu0
    %v1834 = vadd.f32 %v1619, %v1833
    %1835 = vdwg.mxu0
    %1836 = vmatpush.bf16.msra.mxu0 0
    %1837 = vmatpush.bf16.msra.mxu0 0
    %1838 = vmatpush.bf16.msra.mxu0 0
    %1839 = vmatpush.bf16.msra.mxu0 0
    %1840 = vmatpush.bf16.msra.mxu0 0
    %1841 = vmatpush.bf16.msra.mxu0 0
    %1842 = vmatpush.bf16.msra.mxu0 %v1764
    %1843 = vmatpush.bf16.msra.mxu0 %v1748
    %1844 = vmatmul.bf16.gmra.mxu0 %v1812
    %v1845 = vpop.f32.mrf.mxu0
    %v1846 = vadd.f32 %v1620, %v1845
    %v1847 = vpop.f32.mrf.mxu0
    %v1848 = vadd.f32 %v1620, %v1847
    %1849 = vmatmul.bf16.gmra.mxu0 %v1815
    %v1850 = vpop.f32.mrf.mxu0
    %v1851 = vadd.f32 %v1620, %v1850
    %v1852 = vpop.f32.mrf.mxu0
    %v1853 = vadd.f32 %v1620, %v1852
    %1854 = vdwg.mxu0
    %1855 = vmatpush.bf16.msra.mxu0 0
    %1856 = vmatpush.bf16.msra.mxu0 0
    %1857 = vmatpush.bf16.msra.mxu0 0
    %1858 = vmatpush.bf16.msra.mxu0 0
    %1859 = vmatpush.bf16.msra.mxu0 0
    %1860 = vmatpush.bf16.msra.mxu0 0
    %1861 = vmatpush.bf16.msra.mxu0 %v1765
    %1862 = vmatpush.bf16.msra.mxu0 %v1749
    %1863 = vmatmul.bf16.gmra.mxu0 %v1812
    %v1864 = vpop.f32.mrf.mxu0
    %v1865 = vadd.f32 %v1621, %v1864
    %v1866 = vpop.f32.mrf.mxu0
    %v1867 = vadd.f32 %v1621, %v1866
    %1868 = vmatmul.bf16.gmra.mxu0 %v1815
    %v1869 = vpop.f32.mrf.mxu0
    %v1870 = vadd.f32 %v1621, %v1869
    %v1871 = vpop.f32.mrf.mxu0
    %v1872 = vadd.f32 %v1621, %v1871
    %1873 = vdwg.mxu0
    %1874 = vmatpush.bf16.msra.mxu0 0
    %1875 = vmatpush.bf16.msra.mxu0 0
    %1876 = vmatpush.bf16.msra.mxu0 0
    %1877 = vmatpush.bf16.msra.mxu0 0
    %1878 = vmatpush.bf16.msra.mxu0 0
    %1879 = vmatpush.bf16.msra.mxu0 0
    %1880 = vmatpush.bf16.msra.mxu0 %v1766
    %1881 = vmatpush.bf16.msra.mxu0 %v1750
    %1882 = vmatmul.bf16.gmra.mxu0 %v1812
    %v1883 = vpop.f32.mrf.mxu0
    %v1884 = vadd.f32 %v1622, %v1883
    %v1885 = vpop.f32.mrf.mxu0
    %v1886 = vadd.f32 %v1622, %v1885
    %1887 = vmatmul.bf16.gmra.mxu0 %v1815
    %v1888 = vpop.f32.mrf.mxu0
    %v1889 = vadd.f32 %v1622, %v1888
    %v1890 = vpop.f32.mrf.mxu0
    %v1891 = vadd.f32 %v1622, %v1890
    %1892 = vdwg.mxu0
    %1893 = vmatpush.bf16.msra.mxu0 0
    %1894 = vmatpush.bf16.msra.mxu0 0
    %1895 = vmatpush.bf16.msra.mxu0 0
    %1896 = vmatpush.bf16.msra.mxu0 0
    %1897 = vmatpush.bf16.msra.mxu0 0
    %1898 = vmatpush.bf16.msra.mxu0 0
    %1899 = vmatpush.bf16.msra.mxu0 %v1767
    %1900 = vmatpush.bf16.msra.mxu0 %v1751
    %1901 = vmatmul.bf16.gmra.mxu0 %v1812
    %v1902 = vpop.f32.mrf.mxu0
    %v1903 = vadd.f32 %v1623, %v1902
    %v1904 = vpop.f32.mrf.mxu0
    %v1905 = vadd.f32 %v1623, %v1904
    %1906 = vmatmul.bf16.gmra.mxu0 %v1815
    %v1907 = vpop.f32.mrf.mxu0
    %v1908 = vadd.f32 %v1623, %v1907
    %v1909 = vpop.f32.mrf.mxu0
    %v1910 = vadd.f32 %v1623, %v1909
    %1911 = vdwg.mxu0
    %1912 = vmatpush.bf16.msra.mxu0 0
    %1913 = vmatpush.bf16.msra.mxu0 0
    %1914 = vmatpush.bf16.msra.mxu0 0
    %1915 = vmatpush.bf16.msra.mxu0 0
    %1916 = vmatpush.bf16.msra.mxu0 0
    %1917 = vmatpush.bf16.msra.mxu0 0
    %1918 = vmatpush.bf16.msra.mxu0 %v1768
    %1919 = vmatpush.bf16.msra.mxu0 %v1752
    %1920 = vmatmul.bf16.gmra.mxu0 %v1812
    %v1921 = vpop.f32.mrf.mxu0
    %v1922 = vadd.f32 %v1624, %v1921
    %v1923 = vpop.f32.mrf.mxu0
    %v1924 = vadd.f32 %v1624, %v1923
    %1925 = vmatmul.bf16.gmra.mxu0 %v1815
    %v1926 = vpop.f32.mrf.mxu0
    %v1927 = vadd.f32 %v1624, %v1926
    %v1928 = vpop.f32.mrf.mxu0
    %v1929 = vadd.f32 %v1624, %v1928
    %1930 = vdwg.mxu0
    %1931 = vmatpush.bf16.msra.mxu0 0
    %1932 = vmatpush.bf16.msra.mxu0 0
    %1933 = vmatpush.bf16.msra.mxu0 0
    %1934 = vmatpush.bf16.msra.mxu0 0
    %1935 = vmatpush.bf16.msra.mxu0 0
    %1936 = vmatpush.bf16.msra.mxu0 0
    %1937 = vmatpush.bf16.msra.mxu0 %v1769
    %1938 = vmatpush.bf16.msra.mxu0 %v1753
    %1939 = vmatmul.bf16.gmra.mxu0 %v1812
    %v1940 = vpop.f32.mrf.mxu0
    %v1941 = vadd.f32 %v1625, %v1940
    %v1942 = vpop.f32.mrf.mxu0
    %v1943 = vadd.f32 %v1625, %v1942
    %1944 = vmatmul.bf16.gmra.mxu0 %v1815
    %v1945 = vpop.f32.mrf.mxu0
    %v1946 = vadd.f32 %v1625, %v1945
    %v1947 = vpop.f32.mrf.mxu0
    %v1948 = vadd.f32 %v1625, %v1947
    %1949 = vdwg.mxu0
    %1950 = vmatpush.bf16.msra.mxu0 0
    %1951 = vmatpush.bf16.msra.mxu0 0
    %1952 = vmatpush.bf16.msra.mxu0 0
    %1953 = vmatpush.bf16.msra.mxu0 0
    %1954 = vmatpush.bf16.msra.mxu0 0
    %1955 = vmatpush.bf16.msra.mxu0 0
    %1956 = vmatpush.bf16.msra.mxu0 %v1770
    %1957 = vmatpush.bf16.msra.mxu0 %v1754
    %1958 = vmatmul.bf16.gmra.mxu0 %v1812
    %v1959 = vpop.f32.mrf.mxu0
    %v1960 = vadd.f32 %v1626, %v1959
    %v1961 = vpop.f32.mrf.mxu0
    %v1962 = vadd.f32 %v1626, %v1961
    %1963 = vmatmul.bf16.gmra.mxu0 %v1815
    %v1964 = vpop.f32.mrf.mxu0
    %v1965 = vadd.f32 %v1626, %v1964
    %v1966 = vpop.f32.mrf.mxu0
    %v1967 = vadd.f32 %v1626, %v1966
    %1968 = vdwg.mxu0
    %1969 = vmatpush.bf16.msra.mxu0 0
    %1970 = vmatpush.bf16.msra.mxu0 0
    %1971 = vmatpush.bf16.msra.mxu0 0
    %1972 = vmatpush.bf16.msra.mxu0 0
    %1973 = vmatpush.bf16.msra.mxu0 0
    %1974 = vmatpush.bf16.msra.mxu0 0
    %1975 = vmatpush.bf16.msra.mxu0 %v1771
    %1976 = vmatpush.bf16.msra.mxu0 %v1755
    %1977 = vmatmul.bf16.gmra.mxu0 %v1812
    %v1978 = vpop.f32.mrf.mxu0
    %v1979 = vadd.f32 %v1627, %v1978
    %v1980 = vpop.f32.mrf.mxu0
    %v1981 = vadd.f32 %v1627, %v1980
    %1982 = vmatmul.bf16.gmra.mxu0 %v1815
    %v1983 = vpop.f32.mrf.mxu0
    %v1984 = vadd.f32 %v1627, %v1983
    %v1985 = vpop.f32.mrf.mxu0
    %v1986 = vadd.f32 %v1627, %v1985
    %1987 = vdwg.mxu0
    %1988 = vmatpush.bf16.msra.mxu0 0
    %1989 = vmatpush.bf16.msra.mxu0 0
    %1990 = vmatpush.bf16.msra.mxu0 0
    %1991 = vmatpush.bf16.msra.mxu0 0
    %1992 = vmatpush.bf16.msra.mxu0 0
    %1993 = vmatpush.bf16.msra.mxu0 0
    %1994 = vmatpush.bf16.msra.mxu0 %v1772
    %1995 = vmatpush.bf16.msra.mxu0 %v1756
    %1996 = vmatmul.bf16.gmra.mxu0 %v1812
    %v1997 = vpop.f32.mrf.mxu0
    %v1998 = vadd.f32 %v1628, %v1997
    %v1999 = vpop.f32.mrf.mxu0
    %v2000 = vadd.f32 %v1628, %v1999
    %2001 = vmatmul.bf16.gmra.mxu0 %v1815
    %v2002 = vpop.f32.mrf.mxu0
    %v2003 = vadd.f32 %v1628, %v2002
    %v2004 = vpop.f32.mrf.mxu0
    %v2005 = vadd.f32 %v1628, %v2004
    %2006 = vdwg.mxu0
    %2007 = vmatpush.bf16.msra.mxu0 0
    %2008 = vmatpush.bf16.msra.mxu0 0
    %2009 = vmatpush.bf16.msra.mxu0 0
    %2010 = vmatpush.bf16.msra.mxu0 0
    %2011 = vmatpush.bf16.msra.mxu0 0
    %2012 = vmatpush.bf16.msra.mxu0 0
    %2013 = vmatpush.bf16.msra.mxu0 %v1773
    %2014 = vmatpush.bf16.msra.mxu0 %v1757
    %2015 = vmatmul.bf16.gmra.mxu0 %v1812
    %v2016 = vpop.f32.mrf.mxu0
    %v2017 = vadd.f32 %v1629, %v2016
    %v2018 = vpop.f32.mrf.mxu0
    %v2019 = vadd.f32 %v1629, %v2018
    %2020 = vmatmul.bf16.gmra.mxu0 %v1815
    %v2021 = vpop.f32.mrf.mxu0
    %v2022 = vadd.f32 %v1629, %v2021
    %v2023 = vpop.f32.mrf.mxu0
    %v2024 = vadd.f32 %v1629, %v2023
    %2025 = vdwg.mxu0
    %2026 = vmatpush.bf16.msra.mxu0 0
    %2027 = vmatpush.bf16.msra.mxu0 0
    %2028 = vmatpush.bf16.msra.mxu0 0
    %2029 = vmatpush.bf16.msra.mxu0 0
    %2030 = vmatpush.bf16.msra.mxu0 0
    %2031 = vmatpush.bf16.msra.mxu0 0
    %2032 = vmatpush.bf16.msra.mxu0 %v1774
    %2033 = vmatpush.bf16.msra.mxu0 %v1758
    %2034 = vmatmul.bf16.gmra.mxu0 %v1812
    %v2035 = vpop.f32.mrf.mxu0
    %v2036 = vadd.f32 %v1630, %v2035
    %v2037 = vpop.f32.mrf.mxu0
    %v2038 = vadd.f32 %v1630, %v2037
    %2039 = vmatmul.bf16.gmra.mxu0 %v1815
    %v2040 = vpop.f32.mrf.mxu0
    %v2041 = vadd.f32 %v1630, %v2040
    %v2042 = vpop.f32.mrf.mxu0
    %v2043 = vadd.f32 %v1630, %v2042
    %2044 = vdwg.mxu0
    %2045 = vmatpush.bf16.msra.mxu0 0
    %2046 = vmatpush.bf16.msra.mxu0 0
    %2047 = vmatpush.bf16.msra.mxu0 0
    %2048 = vmatpush.bf16.msra.mxu0 0
    %2049 = vmatpush.bf16.msra.mxu0 0
    %2050 = vmatpush.bf16.msra.mxu0 0
    %2051 = vmatpush.bf16.msra.mxu0 %v1775
    %2052 = vmatpush.bf16.msra.mxu0 %v1759
    %2053 = vmatmul.bf16.gmra.mxu0 %v1812
    %v2054 = vpop.f32.mrf.mxu0
    %v2055 = vadd.f32 %v1631, %v2054
    %v2056 = vpop.f32.mrf.mxu0
    %v2057 = vadd.f32 %v1631, %v2056
    %2058 = vmatmul.bf16.gmra.mxu0 %v1815
    %v2059 = vpop.f32.mrf.mxu0
    %v2060 = vadd.f32 %v1631, %v2059
    %v2061 = vpop.f32.mrf.mxu0
    %v2062 = vadd.f32 %v1631, %v2061
    %2063 = vdwg.mxu0
    %2064 = vmatpush.bf16.msra.mxu0 0
    %2065 = vmatpush.bf16.msra.mxu0 0
    %2066 = vmatpush.bf16.msra.mxu0 0
    %2067 = vmatpush.bf16.msra.mxu0 0
    %2068 = vmatpush.bf16.msra.mxu0 0
    %2069 = vmatpush.bf16.msra.mxu0 0
    %2070 = vmatpush.bf16.msra.mxu0 %v1776
    %2071 = vmatpush.bf16.msra.mxu0 %v1760
    %2072 = vmatmul.bf16.gmra.mxu0 %v1812
    %v2073 = vpop.f32.mrf.mxu0
    %v2074 = vadd.f32 %v1632, %v2073
    %v2075 = vpop.f32.mrf.mxu0
    %v2076 = vadd.f32 %v1632, %v2075
    %2077 = vmatmul.bf16.gmra.mxu0 %v1815
    %v2078 = vpop.f32.mrf.mxu0
    %v2079 = vadd.f32 %v1632, %v2078
    %v2080 = vpop.f32.mrf.mxu0
    %v2081 = vadd.f32 %v1632, %v2080
    %2082 = vdwg.mxu0
    %2083 = vmatpush.bf16.msra.mxu0 0
    %2084 = vmatpush.bf16.msra.mxu0 0
    %2085 = vmatpush.bf16.msra.mxu0 0
    %2086 = vmatpush.bf16.msra.mxu0 0
    %2087 = vmatpush.bf16.msra.mxu0 0
    %2088 = vmatpush.bf16.msra.mxu0 0
    %2089 = vmatpush.bf16.msra.mxu0 %v1777
    %2090 = vmatpush.bf16.msra.mxu0 %v1761
    %2091 = vmatmul.bf16.gmra.mxu0 %v1812
    %v2092 = vpop.f32.mrf.mxu0
    %v2093 = vadd.f32 %v1633, %v2092
    %v2094 = vpop.f32.mrf.mxu0
    %v2095 = vadd.f32 %v1633, %v2094
    %2096 = vmatmul.bf16.gmra.mxu0 %v1815
    %v2097 = vpop.f32.mrf.mxu0
    %v2098 = vadd.f32 %v1633, %v2097
    %v2099 = vpop.f32.mrf.mxu0
    %v2100 = vadd.f32 %v1633, %v2099
    %2101 = vdwg.mxu0
    %2102 = vmatpush.bf16.msra.mxu0 0
    %2103 = vmatpush.bf16.msra.mxu0 0
    %2104 = vmatpush.bf16.msra.mxu0 0
    %2105 = vmatpush.bf16.msra.mxu0 0
    %2106 = vmatpush.bf16.msra.mxu0 0
    %2107 = vmatpush.bf16.msra.mxu0 0
    %2108 = vmatpush.bf16.msra.mxu0 %v1778
    %2109 = vmatpush.bf16.msra.mxu0 %v1762
    %2110 = vmatmul.bf16.gmra.mxu0 %v1812
    %v2111 = vpop.f32.mrf.mxu0
    %v2112 = vadd.f32 %v1634, %v2111
    %v2113 = vpop.f32.mrf.mxu0
    %v2114 = vadd.f32 %v1634, %v2113
    %2115 = vmatmul.bf16.gmra.mxu0 %v1815
    %v2116 = vpop.f32.mrf.mxu0
    %v2117 = vadd.f32 %v1634, %v2116
    %v2118 = vpop.f32.mrf.mxu0
    %v2119 = vadd.f32 %v1634, %v2118
    %2120 = vdwg.mxu0
    %v2121 = vmax.f32 %v1827, 0.0
    %v2122 = vmax.f32 %v1846, 0.0
    %v2123 = vmax.f32 %v1865, 0.0
    %v2124 = vmax.f32 %v1884, 0.0
    %v2125 = vmax.f32 %v1903, 0.0
    %v2126 = vmax.f32 %v1922, 0.0
    %v2127 = vmax.f32 %v1941, 0.0
    %v2128 = vmax.f32 %v1960, 0.0
    %v2129 = vmax.f32 %v1979, 0.0
    %v2130 = vmax.f32 %v1998, 0.0
    %v2131 = vmax.f32 %v2017, 0.0
    %v2132 = vmax.f32 %v2036, 0.0
    %v2133 = vmax.f32 %v2055, 0.0
    %v2134 = vmax.f32 %v2074, 0.0
    %v2135 = vmax.f32 %v2093, 0.0
    %v2136 = vmax.f32 %v2112, 0.0
    %v2137 = vmax.f32 %v1829, 0.0
    %v2138 = vmax.f32 %v1848, 0.0
    %v2139 = vmax.f32 %v1867, 0.0
    %v2140 = vmax.f32 %v1886, 0.0
    %v2141 = vmax.f32 %v1905, 0.0
    %v2142 = vmax.f32 %v1924, 0.0
    %v2143 = vmax.f32 %v1943, 0.0
    %v2144 = vmax.f32 %v1962, 0.0
    %v2145 = vmax.f32 %v1981, 0.0
    %v2146 = vmax.f32 %v2000, 0.0
    %v2147 = vmax.f32 %v2019, 0.0
    %v2148 = vmax.f32 %v2038, 0.0
    %v2149 = vmax.f32 %v2057, 0.0
    %v2150 = vmax.f32 %v2076, 0.0
    %v2151 = vmax.f32 %v2095, 0.0
    %v2152 = vmax.f32 %v2114, 0.0
    %v2153 = vmax.f32 %v1832, 0.0
    %v2154 = vmax.f32 %v1851, 0.0
    %v2155 = vmax.f32 %v1870, 0.0
    %v2156 = vmax.f32 %v1889, 0.0
    %v2157 = vmax.f32 %v1908, 0.0
    %v2158 = vmax.f32 %v1927, 0.0
    %v2159 = vmax.f32 %v1946, 0.0
    %v2160 = vmax.f32 %v1965, 0.0
    %v2161 = vmax.f32 %v1984, 0.0
    %v2162 = vmax.f32 %v2003, 0.0
    %v2163 = vmax.f32 %v2022, 0.0
    %v2164 = vmax.f32 %v2041, 0.0
    %v2165 = vmax.f32 %v2060, 0.0
    %v2166 = vmax.f32 %v2079, 0.0
    %v2167 = vmax.f32 %v2098, 0.0
    %v2168 = vmax.f32 %v2117, 0.0
    %v2169 = vmax.f32 %v1834, 0.0
    %v2170 = vmax.f32 %v1853, 0.0
    %v2171 = vmax.f32 %v1872, 0.0
    %v2172 = vmax.f32 %v1891, 0.0
    %v2173 = vmax.f32 %v1910, 0.0
    %v2174 = vmax.f32 %v1929, 0.0
    %v2175 = vmax.f32 %v1948, 0.0
    %v2176 = vmax.f32 %v1967, 0.0
    %v2177 = vmax.f32 %v1986, 0.0
    %v2178 = vmax.f32 %v2005, 0.0
    %v2179 = vmax.f32 %v2024, 0.0
    %v2180 = vmax.f32 %v2043, 0.0
    %v2181 = vmax.f32 %v2062, 0.0
    %v2182 = vmax.f32 %v2081, 0.0
    %v2183 = vmax.f32 %v2100, 0.0
    %v2184 = vmax.f32 %v2119, 0.0
    %v2185 = vpack.c.bf16 %v2137, %v2121
    %v2186 = vpack.c.bf16 %v2138, %v2122
    %v2187 = vpack.c.bf16 %v2139, %v2123
    %v2188 = vpack.c.bf16 %v2140, %v2124
    %v2189 = vpack.c.bf16 %v2141, %v2125
    %v2190 = vpack.c.bf16 %v2142, %v2126
    %v2191 = vpack.c.bf16 %v2143, %v2127
    %v2192 = vpack.c.bf16 %v2144, %v2128
    %v2193 = vpack.c.bf16 %v2145, %v2129
    %v2194 = vpack.c.bf16 %v2146, %v2130
    %v2195 = vpack.c.bf16 %v2147, %v2131
    %v2196 = vpack.c.bf16 %v2148, %v2132
    %v2197 = vpack.c.bf16 %v2149, %v2133
    %v2198 = vpack.c.bf16 %v2150, %v2134
    %v2199 = vpack.c.bf16 %v2151, %v2135
    %v2200 = vpack.c.bf16 %v2152, %v2136
    %v2201 = vpack.c.bf16 %v2169, %v2153
    %v2202 = vpack.c.bf16 %v2170, %v2154
    %v2203 = vpack.c.bf16 %v2171, %v2155
    %v2204 = vpack.c.bf16 %v2172, %v2156
    %v2205 = vpack.c.bf16 %v2173, %v2157
    %v2206 = vpack.c.bf16 %v2174, %v2158
    %v2207 = vpack.c.bf16 %v2175, %v2159
    %v2208 = vpack.c.bf16 %v2176, %v2160
    %v2209 = vpack.c.bf16 %v2177, %v2161
    %v2210 = vpack.c.bf16 %v2178, %v2162
    %v2211 = vpack.c.bf16 %v2179, %v2163
    %v2212 = vpack.c.bf16 %v2180, %v2164
    %v2213 = vpack.c.bf16 %v2181, %v2165
    %v2214 = vpack.c.bf16 %v2182, %v2166
    %v2215 = vpack.c.bf16 %v2183, %v2167
    %v2216 = vpack.c.bf16 %v2184, %v2168
    %v2217 = vld [vmem:[%s17] sm:$0xf]
    %v2218 = vld [vmem:[%s17 + $0x4] sm:$0xf]
    %v2219 = vld [vmem:[%s17 + $0x8] sm:$0xf]
    %v2220 = vld [vmem:[%s17 + $0xc] sm:$0xf]
    %v2221 = vld [vmem:[%s17 + $0x10] sm:$0xf]
    %v2222 = vld [vmem:[%s17 + $0x14] sm:$0xf]
    %v2223 = vld [vmem:[%s17 + $0x18] sm:$0xf]
    %v2224 = vld [vmem:[%s17 + $0x1c] sm:$0xf]
    %v2225 = vld [vmem:[%s17 + $0x20] sm:$0xf]
    %v2226 = vld [vmem:[%s17 + $0x24] sm:$0xf]
    %v2227 = vld [vmem:[%s17 + $0x28] sm:$0xf]
    %v2228 = vld [vmem:[%s17 + $0x2c] sm:$0xf]
    %v2229 = vld [vmem:[%s17 + $0x30] sm:$0xf]
    %v2230 = vld [vmem:[%s17 + $0x34] sm:$0xf]
    %v2231 = vld [vmem:[%s17 + $0x38] sm:$0xf]
    %v2232 = vld [vmem:[%s17 + $0x3c] sm:$0xf]
    %v2233 = vld [vmem:[%s17 + $0x40] sm:$0xf]
    %v2234 = vld [vmem:[%s17 + $0x44] sm:$0xf]
    %v2235 = vld [vmem:[%s17 + $0x48] sm:$0xf]
    %v2236 = vld [vmem:[%s17 + $0x4c] sm:$0xf]
    %v2237 = vld [vmem:[%s17 + $0x50] sm:$0xf]
    %v2238 = vld [vmem:[%s17 + $0x54] sm:$0xf]
    %v2239 = vld [vmem:[%s17 + $0x58] sm:$0xf]
    %v2240 = vld [vmem:[%s17 + $0x5c] sm:$0xf]
    %v2241 = vld [vmem:[%s17 + $0x60] sm:$0xf]
    %v2242 = vld [vmem:[%s17 + $0x64] sm:$0xf]
    %v2243 = vld [vmem:[%s17 + $0x68] sm:$0xf]
    %v2244 = vld [vmem:[%s17 + $0x6c] sm:$0xf]
    %v2245 = vld [vmem:[%s17 + $0x70] sm:$0xf]
    %v2246 = vld [vmem:[%s17 + $0x74] sm:$0xf]
    %v2247 = vld [vmem:[%s17 + $0x78] sm:$0xf]
    %v2248 = vld [vmem:[%s17 + $0x7c] sm:$0xf]
    %v2249 = vld [vmem:[%s17 + $0x80] sm:$0xf]
    %v2250 = vld [vmem:[%s17 + $0x84] sm:$0xf]
    %v2251 = vld [vmem:[%s17 + $0x88] sm:$0xf]
    %v2252 = vld [vmem:[%s17 + $0x8c] sm:$0xf]
    %v2253 = vld [vmem:[%s17 + $0x90] sm:$0xf]
    %v2254 = vld [vmem:[%s17 + $0x94] sm:$0xf]
    %v2255 = vld [vmem:[%s17 + $0x98] sm:$0xf]
    %v2256 = vld [vmem:[%s17 + $0x9c] sm:$0xf]
    %v2257 = vld [vmem:[%s17 + $0xa0] sm:$0xf]
    %v2258 = vld [vmem:[%s17 + $0xa4] sm:$0xf]
    %v2259 = vld [vmem:[%s17 + $0xa8] sm:$0xf]
    %v2260 = vld [vmem:[%s17 + $0xac] sm:$0xf]
    %v2261 = vld [vmem:[%s17 + $0xb0] sm:$0xf]
    %v2262 = vld [vmem:[%s17 + $0xb4] sm:$0xf]
    %v2263 = vld [vmem:[%s17 + $0xb8] sm:$0xf]
    %v2264 = vld [vmem:[%s17 + $0xbc] sm:$0xf]
    %v2265 = vld [vmem:[%s17 + $0xc0] sm:$0xf]
    %v2266 = vld [vmem:[%s17 + $0xc4] sm:$0xf]
    %v2267 = vld [vmem:[%s17 + $0xc8] sm:$0xf]
    %v2268 = vld [vmem:[%s17 + $0xcc] sm:$0xf]
    %v2269 = vld [vmem:[%s17 + $0xd0] sm:$0xf]
    %v2270 = vld [vmem:[%s17 + $0xd4] sm:$0xf]
    %v2271 = vld [vmem:[%s17 + $0xd8] sm:$0xf]
    %v2272 = vld [vmem:[%s17 + $0xdc] sm:$0xf]
    %v2273 = vld [vmem:[%s17 + $0xe0] sm:$0xf]
    %v2274 = vld [vmem:[%s17 + $0xe4] sm:$0xf]
    %v2275 = vld [vmem:[%s17 + $0xe8] sm:$0xf]
    %v2276 = vld [vmem:[%s17 + $0xec] sm:$0xf]
    %v2277 = vld [vmem:[%s17 + $0xf0] sm:$0xf]
    %v2278 = vld [vmem:[%s17 + $0xf4] sm:$0xf]
    %v2279 = vld [vmem:[%s17 + $0xf8] sm:$0xf]
    %v2280 = vld [vmem:[%s17 + $0xfc] sm:$0xf]
    %v2281 = vld [vmem:[%s17 + $0x100] sm:$0xf]
    %v2282 = vld [vmem:[%s17 + $0x104] sm:$0xf]
    %v2283 = vld [vmem:[%s17 + $0x108] sm:$0xf]
    %v2284 = vld [vmem:[%s17 + $0x10c] sm:$0xf]
    %v2285 = vld [vmem:[%s17 + $0x110] sm:$0xf]
    %v2286 = vld [vmem:[%s17 + $0x114] sm:$0xf]
    %v2287 = vld [vmem:[%s17 + $0x118] sm:$0xf]
    %v2288 = vld [vmem:[%s17 + $0x11c] sm:$0xf]
    %v2289 = vld [vmem:[%s17 + $0x120] sm:$0xf]
    %v2290 = vld [vmem:[%s17 + $0x124] sm:$0xf]
    %v2291 = vld [vmem:[%s17 + $0x128] sm:$0xf]
    %v2292 = vld [vmem:[%s17 + $0x12c] sm:$0xf]
    %v2293 = vld [vmem:[%s17 + $0x130] sm:$0xf]
    %v2294 = vld [vmem:[%s17 + $0x134] sm:$0xf]
    %v2295 = vld [vmem:[%s17 + $0x138] sm:$0xf]
    %v2296 = vld [vmem:[%s17 + $0x13c] sm:$0xf]
    %v2297 = vld [vmem:[%s17 + $0x140] sm:$0xf]
    %v2298 = vld [vmem:[%s17 + $0x144] sm:$0xf]
    %v2299 = vld [vmem:[%s17 + $0x148] sm:$0xf]
    %v2300 = vld [vmem:[%s17 + $0x14c] sm:$0xf]
    %v2301 = vld [vmem:[%s17 + $0x150] sm:$0xf]
    %v2302 = vld [vmem:[%s17 + $0x154] sm:$0xf]
    %v2303 = vld [vmem:[%s17 + $0x158] sm:$0xf]
    %v2304 = vld [vmem:[%s17 + $0x15c] sm:$0xf]
    %v2305 = vld [vmem:[%s17 + $0x160] sm:$0xf]
    %v2306 = vld [vmem:[%s17 + $0x164] sm:$0xf]
    %v2307 = vld [vmem:[%s17 + $0x168] sm:$0xf]
    %v2308 = vld [vmem:[%s17 + $0x16c] sm:$0xf]
    %v2309 = vld [vmem:[%s17 + $0x170] sm:$0xf]
    %v2310 = vld [vmem:[%s17 + $0x174] sm:$0xf]
    %v2311 = vld [vmem:[%s17 + $0x178] sm:$0xf]
    %v2312 = vld [vmem:[%s17 + $0x17c] sm:$0xf]
    %v2313 = vld [vmem:[%s17 + $0x180] sm:$0xf]
    %v2314 = vld [vmem:[%s17 + $0x184] sm:$0xf]
    %v2315 = vld [vmem:[%s17 + $0x188] sm:$0xf]
    %v2316 = vld [vmem:[%s17 + $0x18c] sm:$0xf]
    %v2317 = vld [vmem:[%s17 + $0x190] sm:$0xf]
    %v2318 = vld [vmem:[%s17 + $0x194] sm:$0xf]
    %v2319 = vld [vmem:[%s17 + $0x198] sm:$0xf]
    %v2320 = vld [vmem:[%s17 + $0x19c] sm:$0xf]
    %v2321 = vld [vmem:[%s17 + $0x1a0] sm:$0xf]
    %v2322 = vld [vmem:[%s17 + $0x1a4] sm:$0xf]
    %v2323 = vld [vmem:[%s17 + $0x1a8] sm:$0xf]
    %v2324 = vld [vmem:[%s17 + $0x1ac] sm:$0xf]
    %v2325 = vld [vmem:[%s17 + $0x1b0] sm:$0xf]
    %v2326 = vld [vmem:[%s17 + $0x1b4] sm:$0xf]
    %v2327 = vld [vmem:[%s17 + $0x1b8] sm:$0xf]
    %v2328 = vld [vmem:[%s17 + $0x1bc] sm:$0xf]
    %v2329 = vld [vmem:[%s17 + $0x1c0] sm:$0xf]
    %v2330 = vld [vmem:[%s17 + $0x1c4] sm:$0xf]
    %v2331 = vld [vmem:[%s17 + $0x1c8] sm:$0xf]
    %v2332 = vld [vmem:[%s17 + $0x1cc] sm:$0xf]
    %v2333 = vld [vmem:[%s17 + $0x1d0] sm:$0xf]
    %v2334 = vld [vmem:[%s17 + $0x1d4] sm:$0xf]
    %v2335 = vld [vmem:[%s17 + $0x1d8] sm:$0xf]
    %v2336 = vld [vmem:[%s17 + $0x1dc] sm:$0xf]
    %v2337 = vld [vmem:[%s17 + $0x1e0] sm:$0xf]
    %v2338 = vld [vmem:[%s17 + $0x1e4] sm:$0xf]
    %v2339 = vld [vmem:[%s17 + $0x1e8] sm:$0xf]
    %v2340 = vld [vmem:[%s17 + $0x1ec] sm:$0xf]
    %v2341 = vld [vmem:[%s17 + $0x1f0] sm:$0xf]
    %v2342 = vld [vmem:[%s17 + $0x1f4] sm:$0xf]
    %v2343 = vld [vmem:[%s17 + $0x1f8] sm:$0xf]
    %v2344 = vld [vmem:[%s17 + $0x1fc] sm:$0xf]
    %v2345 = vld [vmem:[%s17 + $0x200] sm:$0xf]
    %v2346 = vld [vmem:[%s17 + $0x204] sm:$0xf]
    %v2347 = vld [vmem:[%s17 + $0x208] sm:$0xf]
    %v2348 = vld [vmem:[%s17 + $0x20c] sm:$0xf]
    %v2349 = vld [vmem:[%s17 + $0x210] sm:$0xf]
    %v2350 = vld [vmem:[%s17 + $0x214] sm:$0xf]
    %v2351 = vld [vmem:[%s17 + $0x218] sm:$0xf]
    %v2352 = vld [vmem:[%s17 + $0x21c] sm:$0xf]
    %v2353 = vld [vmem:[%s17 + $0x220] sm:$0xf]
    %v2354 = vld [vmem:[%s17 + $0x224] sm:$0xf]
    %v2355 = vld [vmem:[%s17 + $0x228] sm:$0xf]
    %v2356 = vld [vmem:[%s17 + $0x22c] sm:$0xf]
    %v2357 = vld [vmem:[%s17 + $0x230] sm:$0xf]
    %v2358 = vld [vmem:[%s17 + $0x234] sm:$0xf]
    %v2359 = vld [vmem:[%s17 + $0x238] sm:$0xf]
    %v2360 = vld [vmem:[%s17 + $0x23c] sm:$0xf]
    %v2361 = vld [vmem:[%s17 + $0x240] sm:$0xf]
    %v2362 = vld [vmem:[%s17 + $0x244] sm:$0xf]
    %v2363 = vld [vmem:[%s17 + $0x248] sm:$0xf]
    %v2364 = vld [vmem:[%s17 + $0x24c] sm:$0xf]
    %v2365 = vld [vmem:[%s17 + $0x250] sm:$0xf]
    %v2366 = vld [vmem:[%s17 + $0x254] sm:$0xf]
    %v2367 = vld [vmem:[%s17 + $0x258] sm:$0xf]
    %v2368 = vld [vmem:[%s17 + $0x25c] sm:$0xf]
    %v2369 = vld [vmem:[%s17 + $0x260] sm:$0xf]
    %v2370 = vld [vmem:[%s17 + $0x264] sm:$0xf]
    %v2371 = vld [vmem:[%s17 + $0x268] sm:$0xf]
    %v2372 = vld [vmem:[%s17 + $0x26c] sm:$0xf]
    %v2373 = vld [vmem:[%s17 + $0x270] sm:$0xf]
    %v2374 = vld [vmem:[%s17 + $0x274] sm:$0xf]
    %v2375 = vld [vmem:[%s17 + $0x278] sm:$0xf]
    %v2376 = vld [vmem:[%s17 + $0x27c] sm:$0xf]
    %v2377 = vld [vmem:[%s17 + $0x280] sm:$0xf]
    %v2378 = vld [vmem:[%s17 + $0x284] sm:$0xf]
    %v2379 = vld [vmem:[%s17 + $0x288] sm:$0xf]
    %v2380 = vld [vmem:[%s17 + $0x28c] sm:$0xf]
    %v2381 = vld [vmem:[%s17 + $0x290] sm:$0xf]
    %v2382 = vld [vmem:[%s17 + $0x294] sm:$0xf]
    %v2383 = vld [vmem:[%s17 + $0x298] sm:$0xf]
    %v2384 = vld [vmem:[%s17 + $0x29c] sm:$0xf]
    %v2385 = vld [vmem:[%s17 + $0x2a0] sm:$0xf]
    %v2386 = vld [vmem:[%s17 + $0x2a4] sm:$0xf]
    %v2387 = vld [vmem:[%s17 + $0x2a8] sm:$0xf]
    %v2388 = vld [vmem:[%s17 + $0x2ac] sm:$0xf]
    %v2389 = vld [vmem:[%s17 + $0x2b0] sm:$0xf]
    %v2390 = vld [vmem:[%s17 + $0x2b4] sm:$0xf]
    %v2391 = vld [vmem:[%s17 + $0x2b8] sm:$0xf]
    %v2392 = vld [vmem:[%s17 + $0x2bc] sm:$0xf]
    %v2393 = vld [vmem:[%s17 + $0x2c0] sm:$0xf]
    %v2394 = vld [vmem:[%s17 + $0x2c4] sm:$0xf]
    %v2395 = vld [vmem:[%s17 + $0x2c8] sm:$0xf]
    %v2396 = vld [vmem:[%s17 + $0x2cc] sm:$0xf]
    %v2397 = vld [vmem:[%s17 + $0x2d0] sm:$0xf]
    %v2398 = vld [vmem:[%s17 + $0x2d4] sm:$0xf]
    %v2399 = vld [vmem:[%s17 + $0x2d8] sm:$0xf]
    %v2400 = vld [vmem:[%s17 + $0x2dc] sm:$0xf]
    %v2401 = vld [vmem:[%s17 + $0x2e0] sm:$0xf]
    %v2402 = vld [vmem:[%s17 + $0x2e4] sm:$0xf]
    %v2403 = vld [vmem:[%s17 + $0x2e8] sm:$0xf]
    %v2404 = vld [vmem:[%s17 + $0x2ec] sm:$0xf]
    %v2405 = vld [vmem:[%s17 + $0x2f0] sm:$0xf]
    %v2406 = vld [vmem:[%s17 + $0x2f4] sm:$0xf]
    %v2407 = vld [vmem:[%s17 + $0x2f8] sm:$0xf]
    %v2408 = vld [vmem:[%s17 + $0x2fc] sm:$0xf]
    %v2409 = vld [vmem:[%s17 + $0x300] sm:$0xf]
    %v2410 = vld [vmem:[%s17 + $0x304] sm:$0xf]
    %v2411 = vld [vmem:[%s17 + $0x308] sm:$0xf]
    %v2412 = vld [vmem:[%s17 + $0x30c] sm:$0xf]
    %v2413 = vld [vmem:[%s17 + $0x310] sm:$0xf]
    %v2414 = vld [vmem:[%s17 + $0x314] sm:$0xf]
    %v2415 = vld [vmem:[%s17 + $0x318] sm:$0xf]
    %v2416 = vld [vmem:[%s17 + $0x31c] sm:$0xf]
    %v2417 = vld [vmem:[%s17 + $0x320] sm:$0xf]
    %v2418 = vld [vmem:[%s17 + $0x324] sm:$0xf]
    %v2419 = vld [vmem:[%s17 + $0x328] sm:$0xf]
    %v2420 = vld [vmem:[%s17 + $0x32c] sm:$0xf]
    %v2421 = vld [vmem:[%s17 + $0x330] sm:$0xf]
    %v2422 = vld [vmem:[%s17 + $0x334] sm:$0xf]
    %v2423 = vld [vmem:[%s17 + $0x338] sm:$0xf]
    %v2424 = vld [vmem:[%s17 + $0x33c] sm:$0xf]
    %v2425 = vld [vmem:[%s17 + $0x340] sm:$0xf]
    %v2426 = vld [vmem:[%s17 + $0x344] sm:$0xf]
    %v2427 = vld [vmem:[%s17 + $0x348] sm:$0xf]
    %v2428 = vld [vmem:[%s17 + $0x34c] sm:$0xf]
    %v2429 = vld [vmem:[%s17 + $0x350] sm:$0xf]
    %v2430 = vld [vmem:[%s17 + $0x354] sm:$0xf]
    %v2431 = vld [vmem:[%s17 + $0x358] sm:$0xf]
    %v2432 = vld [vmem:[%s17 + $0x35c] sm:$0xf]
    %v2433 = vld [vmem:[%s17 + $0x360] sm:$0xf]
    %v2434 = vld [vmem:[%s17 + $0x364] sm:$0xf]
    %v2435 = vld [vmem:[%s17 + $0x368] sm:$0xf]
    %v2436 = vld [vmem:[%s17 + $0x36c] sm:$0xf]
    %v2437 = vld [vmem:[%s17 + $0x370] sm:$0xf]
    %v2438 = vld [vmem:[%s17 + $0x374] sm:$0xf]
    %v2439 = vld [vmem:[%s17 + $0x378] sm:$0xf]
    %v2440 = vld [vmem:[%s17 + $0x37c] sm:$0xf]
    %v2441 = vld [vmem:[%s17 + $0x380] sm:$0xf]
    %v2442 = vld [vmem:[%s17 + $0x384] sm:$0xf]
    %v2443 = vld [vmem:[%s17 + $0x388] sm:$0xf]
    %v2444 = vld [vmem:[%s17 + $0x38c] sm:$0xf]
    %v2445 = vld [vmem:[%s17 + $0x390] sm:$0xf]
    %v2446 = vld [vmem:[%s17 + $0x394] sm:$0xf]
    %v2447 = vld [vmem:[%s17 + $0x398] sm:$0xf]
    %v2448 = vld [vmem:[%s17 + $0x39c] sm:$0xf]
    %v2449 = vld [vmem:[%s17 + $0x3a0] sm:$0xf]
    %v2450 = vld [vmem:[%s17 + $0x3a4] sm:$0xf]
    %v2451 = vld [vmem:[%s17 + $0x3a8] sm:$0xf]
    %v2452 = vld [vmem:[%s17 + $0x3ac] sm:$0xf]
    %v2453 = vld [vmem:[%s17 + $0x3b0] sm:$0xf]
    %v2454 = vld [vmem:[%s17 + $0x3b4] sm:$0xf]
    %v2455 = vld [vmem:[%s17 + $0x3b8] sm:$0xf]
    %v2456 = vld [vmem:[%s17 + $0x3bc] sm:$0xf]
    %v2457 = vld [vmem:[%s17 + $0x3c0] sm:$0xf]
    %v2458 = vld [vmem:[%s17 + $0x3c4] sm:$0xf]
    %v2459 = vld [vmem:[%s17 + $0x3c8] sm:$0xf]
    %v2460 = vld [vmem:[%s17 + $0x3cc] sm:$0xf]
    %v2461 = vld [vmem:[%s17 + $0x3d0] sm:$0xf]
    %v2462 = vld [vmem:[%s17 + $0x3d4] sm:$0xf]
    %v2463 = vld [vmem:[%s17 + $0x3d8] sm:$0xf]
    %v2464 = vld [vmem:[%s17 + $0x3dc] sm:$0xf]
    %v2465 = vld [vmem:[%s17 + $0x3e0] sm:$0xf]
    %v2466 = vld [vmem:[%s17 + $0x3e4] sm:$0xf]
    %v2467 = vld [vmem:[%s17 + $0x3e8] sm:$0xf]
    %v2468 = vld [vmem:[%s17 + $0x3ec] sm:$0xf]
    %v2469 = vld [vmem:[%s17 + $0x3f0] sm:$0xf]
    %v2470 = vld [vmem:[%s17 + $0x3f4] sm:$0xf]
    %v2471 = vld [vmem:[%s17 + $0x3f8] sm:$0xf]
    %v2472 = vld [vmem:[%s17 + $0x3fc] sm:$0xf]
    %v2474 = vperm.slane %v117, 0
    %v2732 = vunpack.c.l.b16 %v2217
    %v2733 = vunpack.c.l.b16 %v2218
    %v2734 = vunpack.c.l.b16 %v2219
    %v2735 = vunpack.c.l.b16 %v2220
    %v2736 = vunpack.c.l.b16 %v2221
    %v2737 = vunpack.c.l.b16 %v2222
    %v2738 = vunpack.c.l.b16 %v2223
    %v2739 = vunpack.c.l.b16 %v2224
    %v2740 = vunpack.c.l.b16 %v2225
    %v2741 = vunpack.c.l.b16 %v2226
    %v2742 = vunpack.c.l.b16 %v2227
    %v2743 = vunpack.c.l.b16 %v2228
    %v2744 = vunpack.c.l.b16 %v2229
    %v2745 = vunpack.c.l.b16 %v2230
    %v2746 = vunpack.c.l.b16 %v2231
    %v2747 = vunpack.c.l.b16 %v2232
    %v2748 = vunpack.c.l.b16 %v2233
    %v2749 = vunpack.c.l.b16 %v2234
    %v2750 = vunpack.c.l.b16 %v2235
    %v2751 = vunpack.c.l.b16 %v2236
    %v2752 = vunpack.c.l.b16 %v2237
    %v2753 = vunpack.c.l.b16 %v2238
    %v2754 = vunpack.c.l.b16 %v2239
    %v2755 = vunpack.c.l.b16 %v2240
    %v2756 = vunpack.c.l.b16 %v2241
    %v2757 = vunpack.c.l.b16 %v2242
    %v2758 = vunpack.c.l.b16 %v2243
    %v2759 = vunpack.c.l.b16 %v2244
    %v2760 = vunpack.c.l.b16 %v2245
    %v2761 = vunpack.c.l.b16 %v2246
    %v2762 = vunpack.c.l.b16 %v2247
    %v2763 = vunpack.c.l.b16 %v2248
    %v2764 = vunpack.c.l.b16 %v2249
    %v2765 = vunpack.c.l.b16 %v2250
    %v2766 = vunpack.c.l.b16 %v2251
    %v2767 = vunpack.c.l.b16 %v2252
    %v2768 = vunpack.c.l.b16 %v2253
    %v2769 = vunpack.c.l.b16 %v2254
    %v2770 = vunpack.c.l.b16 %v2255
    %v2771 = vunpack.c.l.b16 %v2256
    %v2772 = vunpack.c.l.b16 %v2257
    %v2773 = vunpack.c.l.b16 %v2258
    %v2774 = vunpack.c.l.b16 %v2259
    %v2775 = vunpack.c.l.b16 %v2260
    %v2776 = vunpack.c.l.b16 %v2261
    %v2777 = vunpack.c.l.b16 %v2262
    %v2778 = vunpack.c.l.b16 %v2263
    %v2779 = vunpack.c.l.b16 %v2264
    %v2780 = vunpack.c.l.b16 %v2265
    %v2781 = vunpack.c.l.b16 %v2266
    %v2782 = vunpack.c.l.b16 %v2267
    %v2783 = vunpack.c.l.b16 %v2268
    %v2784 = vunpack.c.l.b16 %v2269
    %v2785 = vunpack.c.l.b16 %v2270
    %v2786 = vunpack.c.l.b16 %v2271
    %v2787 = vunpack.c.l.b16 %v2272
    %v2788 = vunpack.c.l.b16 %v2273
    %v2789 = vunpack.c.l.b16 %v2274
    %v2790 = vunpack.c.l.b16 %v2275
    %v2791 = vunpack.c.l.b16 %v2276
    %v2792 = vunpack.c.l.b16 %v2277
    %v2793 = vunpack.c.l.b16 %v2278
    %v2794 = vunpack.c.l.b16 %v2279
    %v2795 = vunpack.c.l.b16 %v2280
    %v2796 = vunpack.c.l.b16 %v2281
    %v2797 = vunpack.c.l.b16 %v2282
    %v2798 = vunpack.c.l.b16 %v2283
    %v2799 = vunpack.c.l.b16 %v2284
    %v2800 = vunpack.c.l.b16 %v2285
    %v2801 = vunpack.c.l.b16 %v2286
    %v2802 = vunpack.c.l.b16 %v2287
    %v2803 = vunpack.c.l.b16 %v2288
    %v2804 = vunpack.c.l.b16 %v2289
    %v2805 = vunpack.c.l.b16 %v2290
    %v2806 = vunpack.c.l.b16 %v2291
    %v2807 = vunpack.c.l.b16 %v2292
    %v2808 = vunpack.c.l.b16 %v2293
    %v2809 = vunpack.c.l.b16 %v2294
    %v2810 = vunpack.c.l.b16 %v2295
    %v2811 = vunpack.c.l.b16 %v2296
    %v2812 = vunpack.c.l.b16 %v2297
    %v2813 = vunpack.c.l.b16 %v2298
    %v2814 = vunpack.c.l.b16 %v2299
    %v2815 = vunpack.c.l.b16 %v2300
    %v2816 = vunpack.c.l.b16 %v2301
    %v2817 = vunpack.c.l.b16 %v2302
    %v2818 = vunpack.c.l.b16 %v2303
    %v2819 = vunpack.c.l.b16 %v2304
    %v2820 = vunpack.c.l.b16 %v2305
    %v2821 = vunpack.c.l.b16 %v2306
    %v2822 = vunpack.c.l.b16 %v2307
    %v2823 = vunpack.c.l.b16 %v2308
    %v2824 = vunpack.c.l.b16 %v2309
    %v2825 = vunpack.c.l.b16 %v2310
    %v2826 = vunpack.c.l.b16 %v2311
    %v2827 = vunpack.c.l.b16 %v2312
    %v2828 = vunpack.c.l.b16 %v2313
    %v2829 = vunpack.c.l.b16 %v2314
    %v2830 = vunpack.c.l.b16 %v2315
    %v2831 = vunpack.c.l.b16 %v2316
    %v2832 = vunpack.c.l.b16 %v2317
    %v2833 = vunpack.c.l.b16 %v2318
    %v2834 = vunpack.c.l.b16 %v2319
    %v2835 = vunpack.c.l.b16 %v2320
    %v2836 = vunpack.c.l.b16 %v2321
    %v2837 = vunpack.c.l.b16 %v2322
    %v2838 = vunpack.c.l.b16 %v2323
    %v2839 = vunpack.c.l.b16 %v2324
    %v2840 = vunpack.c.l.b16 %v2325
    %v2841 = vunpack.c.l.b16 %v2326
    %v2842 = vunpack.c.l.b16 %v2327
    %v2843 = vunpack.c.l.b16 %v2328
    %v2844 = vunpack.c.l.b16 %v2329
    %v2845 = vunpack.c.l.b16 %v2330
    %v2846 = vunpack.c.l.b16 %v2331
    %v2847 = vunpack.c.l.b16 %v2332
    %v2848 = vunpack.c.l.b16 %v2333
    %v2849 = vunpack.c.l.b16 %v2334
    %v2850 = vunpack.c.l.b16 %v2335
    %v2851 = vunpack.c.l.b16 %v2336
    %v2852 = vunpack.c.l.b16 %v2337
    %v2853 = vunpack.c.l.b16 %v2338
    %v2854 = vunpack.c.l.b16 %v2339
    %v2855 = vunpack.c.l.b16 %v2340
    %v2856 = vunpack.c.l.b16 %v2341
    %v2857 = vunpack.c.l.b16 %v2342
    %v2858 = vunpack.c.l.b16 %v2343
    %v2859 = vunpack.c.l.b16 %v2344
    %v2860 = vunpack.c.l.b16 %v2345
    %v2861 = vunpack.c.l.b16 %v2346
    %v2862 = vunpack.c.l.b16 %v2347
    %v2863 = vunpack.c.l.b16 %v2348
    %v2864 = vunpack.c.l.b16 %v2349
    %v2865 = vunpack.c.l.b16 %v2350
    %v2866 = vunpack.c.l.b16 %v2351
    %v2867 = vunpack.c.l.b16 %v2352
    %v2868 = vunpack.c.l.b16 %v2353
    %v2869 = vunpack.c.l.b16 %v2354
    %v2870 = vunpack.c.l.b16 %v2355
    %v2871 = vunpack.c.l.b16 %v2356
    %v2872 = vunpack.c.l.b16 %v2357
    %v2873 = vunpack.c.l.b16 %v2358
    %v2874 = vunpack.c.l.b16 %v2359
    %v2875 = vunpack.c.l.b16 %v2360
    %v2876 = vunpack.c.l.b16 %v2361
    %v2877 = vunpack.c.l.b16 %v2362
    %v2878 = vunpack.c.l.b16 %v2363
    %v2879 = vunpack.c.l.b16 %v2364
    %v2880 = vunpack.c.l.b16 %v2365
    %v2881 = vunpack.c.l.b16 %v2366
    %v2882 = vunpack.c.l.b16 %v2367
    %v2883 = vunpack.c.l.b16 %v2368
    %v2884 = vunpack.c.l.b16 %v2369
    %v2885 = vunpack.c.l.b16 %v2370
    %v2886 = vunpack.c.l.b16 %v2371
    %v2887 = vunpack.c.l.b16 %v2372
    %v2888 = vunpack.c.l.b16 %v2373
    %v2889 = vunpack.c.l.b16 %v2374
    %v2890 = vunpack.c.l.b16 %v2375
    %v2891 = vunpack.c.l.b16 %v2376
    %v2892 = vunpack.c.l.b16 %v2377
    %v2893 = vunpack.c.l.b16 %v2378
    %v2894 = vunpack.c.l.b16 %v2379
    %v2895 = vunpack.c.l.b16 %v2380
    %v2896 = vunpack.c.l.b16 %v2381
    %v2897 = vunpack.c.l.b16 %v2382
    %v2898 = vunpack.c.l.b16 %v2383
    %v2899 = vunpack.c.l.b16 %v2384
    %v2900 = vunpack.c.l.b16 %v2385
    %v2901 = vunpack.c.l.b16 %v2386
    %v2902 = vunpack.c.l.b16 %v2387
    %v2903 = vunpack.c.l.b16 %v2388
    %v2904 = vunpack.c.l.b16 %v2389
    %v2905 = vunpack.c.l.b16 %v2390
    %v2906 = vunpack.c.l.b16 %v2391
    %v2907 = vunpack.c.l.b16 %v2392
    %v2908 = vunpack.c.l.b16 %v2393
    %v2909 = vunpack.c.l.b16 %v2394
    %v2910 = vunpack.c.l.b16 %v2395
    %v2911 = vunpack.c.l.b16 %v2396
    %v2912 = vunpack.c.l.b16 %v2397
    %v2913 = vunpack.c.l.b16 %v2398
    %v2914 = vunpack.c.l.b16 %v2399
    %v2915 = vunpack.c.l.b16 %v2400
    %v2916 = vunpack.c.l.b16 %v2401
    %v2917 = vunpack.c.l.b16 %v2402
    %v2918 = vunpack.c.l.b16 %v2403
    %v2919 = vunpack.c.l.b16 %v2404
    %v2920 = vunpack.c.l.b16 %v2405
    %v2921 = vunpack.c.l.b16 %v2406
    %v2922 = vunpack.c.l.b16 %v2407
    %v2923 = vunpack.c.l.b16 %v2408
    %v2924 = vunpack.c.l.b16 %v2409
    %v2925 = vunpack.c.l.b16 %v2410
    %v2926 = vunpack.c.l.b16 %v2411
    %v2927 = vunpack.c.l.b16 %v2412
    %v2928 = vunpack.c.l.b16 %v2413
    %v2929 = vunpack.c.l.b16 %v2414
    %v2930 = vunpack.c.l.b16 %v2415
    %v2931 = vunpack.c.l.b16 %v2416
    %v2932 = vunpack.c.l.b16 %v2417
    %v2933 = vunpack.c.l.b16 %v2418
    %v2934 = vunpack.c.l.b16 %v2419
    %v2935 = vunpack.c.l.b16 %v2420
    %v2936 = vunpack.c.l.b16 %v2421
    %v2937 = vunpack.c.l.b16 %v2422
    %v2938 = vunpack.c.l.b16 %v2423
    %v2939 = vunpack.c.l.b16 %v2424
    %v2940 = vunpack.c.l.b16 %v2425
    %v2941 = vunpack.c.l.b16 %v2426
    %v2942 = vunpack.c.l.b16 %v2427
    %v2943 = vunpack.c.l.b16 %v2428
    %v2944 = vunpack.c.l.b16 %v2429
    %v2945 = vunpack.c.l.b16 %v2430
    %v2946 = vunpack.c.l.b16 %v2431
    %v2947 = vunpack.c.l.b16 %v2432
    %v2948 = vunpack.c.l.b16 %v2433
    %v2949 = vunpack.c.l.b16 %v2434
    %v2950 = vunpack.c.l.b16 %v2435
    %v2951 = vunpack.c.l.b16 %v2436
    %v2952 = vunpack.c.l.b16 %v2437
    %v2953 = vunpack.c.l.b16 %v2438
    %v2954 = vunpack.c.l.b16 %v2439
    %v2955 = vunpack.c.l.b16 %v2440
    %v2956 = vunpack.c.l.b16 %v2441
    %v2957 = vunpack.c.l.b16 %v2442
    %v2958 = vunpack.c.l.b16 %v2443
    %v2959 = vunpack.c.l.b16 %v2444
    %v2960 = vunpack.c.l.b16 %v2445
    %v2961 = vunpack.c.l.b16 %v2446
    %v2962 = vunpack.c.l.b16 %v2447
    %v2963 = vunpack.c.l.b16 %v2448
    %v2964 = vunpack.c.l.b16 %v2449
    %v2965 = vunpack.c.l.b16 %v2450
    %v2966 = vunpack.c.l.b16 %v2451
    %v2967 = vunpack.c.l.b16 %v2452
    %v2968 = vunpack.c.l.b16 %v2453
    %v2969 = vunpack.c.l.b16 %v2454
    %v2970 = vunpack.c.l.b16 %v2455
    %v2971 = vunpack.c.l.b16 %v2456
    %v2972 = vunpack.c.l.b16 %v2457
    %v2973 = vunpack.c.l.b16 %v2458
    %v2974 = vunpack.c.l.b16 %v2459
    %v2975 = vunpack.c.l.b16 %v2460
    %v2976 = vunpack.c.l.b16 %v2461
    %v2977 = vunpack.c.l.b16 %v2462
    %v2978 = vunpack.c.l.b16 %v2463
    %v2979 = vunpack.c.l.b16 %v2464
    %v2980 = vunpack.c.l.b16 %v2465
    %v2981 = vunpack.c.l.b16 %v2466
    %v2982 = vunpack.c.l.b16 %v2467
    %v2983 = vunpack.c.l.b16 %v2468
    %v2984 = vunpack.c.l.b16 %v2469
    %v2985 = vunpack.c.l.b16 %v2470
    %v2986 = vunpack.c.l.b16 %v2471
    %v2987 = vunpack.c.l.b16 %v2472
    %v2988 = vpack.c.b16 %v2733, %v2732
    %v2989 = vpack.c.b16 %v2735, %v2734
    %v2990 = vpack.c.b16 %v2737, %v2736
    %v2991 = vpack.c.b16 %v2739, %v2738
    %v2992 = vpack.c.b16 %v2741, %v2740
    %v2993 = vpack.c.b16 %v2743, %v2742
    %v2994 = vpack.c.b16 %v2745, %v2744
    %v2995 = vpack.c.b16 %v2747, %v2746
    %v2996 = vpack.c.b16 %v2749, %v2748
    %v2997 = vpack.c.b16 %v2751, %v2750
    %v2998 = vpack.c.b16 %v2753, %v2752
    %v2999 = vpack.c.b16 %v2755, %v2754
    %v3000 = vpack.c.b16 %v2757, %v2756
    %v3001 = vpack.c.b16 %v2759, %v2758
    %v3002 = vpack.c.b16 %v2761, %v2760
    %v3003 = vpack.c.b16 %v2763, %v2762
    %v3004 = vpack.c.b16 %v2765, %v2764
    %v3005 = vpack.c.b16 %v2767, %v2766
    %v3006 = vpack.c.b16 %v2769, %v2768
    %v3007 = vpack.c.b16 %v2771, %v2770
    %v3008 = vpack.c.b16 %v2773, %v2772
    %v3009 = vpack.c.b16 %v2775, %v2774
    %v3010 = vpack.c.b16 %v2777, %v2776
    %v3011 = vpack.c.b16 %v2779, %v2778
    %v3012 = vpack.c.b16 %v2781, %v2780
    %v3013 = vpack.c.b16 %v2783, %v2782
    %v3014 = vpack.c.b16 %v2785, %v2784
    %v3015 = vpack.c.b16 %v2787, %v2786
    %v3016 = vpack.c.b16 %v2789, %v2788
    %v3017 = vpack.c.b16 %v2791, %v2790
    %v3018 = vpack.c.b16 %v2793, %v2792
    %v3019 = vpack.c.b16 %v2795, %v2794
    %v3020 = vpack.c.b16 %v2797, %v2796
    %v3021 = vpack.c.b16 %v2799, %v2798
    %v3022 = vpack.c.b16 %v2801, %v2800
    %v3023 = vpack.c.b16 %v2803, %v2802
    %v3024 = vpack.c.b16 %v2805, %v2804
    %v3025 = vpack.c.b16 %v2807, %v2806
    %v3026 = vpack.c.b16 %v2809, %v2808
    %v3027 = vpack.c.b16 %v2811, %v2810
    %v3028 = vpack.c.b16 %v2813, %v2812
    %v3029 = vpack.c.b16 %v2815, %v2814
    %v3030 = vpack.c.b16 %v2817, %v2816
    %v3031 = vpack.c.b16 %v2819, %v2818
    %v3032 = vpack.c.b16 %v2821, %v2820
    %v3033 = vpack.c.b16 %v2823, %v2822
    %v3034 = vpack.c.b16 %v2825, %v2824
    %v3035 = vpack.c.b16 %v2827, %v2826
    %v3036 = vpack.c.b16 %v2829, %v2828
    %v3037 = vpack.c.b16 %v2831, %v2830
    %v3038 = vpack.c.b16 %v2833, %v2832
    %v3039 = vpack.c.b16 %v2835, %v2834
    %v3040 = vpack.c.b16 %v2837, %v2836
    %v3041 = vpack.c.b16 %v2839, %v2838
    %v3042 = vpack.c.b16 %v2841, %v2840
    %v3043 = vpack.c.b16 %v2843, %v2842
    %v3044 = vpack.c.b16 %v2845, %v2844
    %v3045 = vpack.c.b16 %v2847, %v2846
    %v3046 = vpack.c.b16 %v2849, %v2848
    %v3047 = vpack.c.b16 %v2851, %v2850
    %v3048 = vpack.c.b16 %v2853, %v2852
    %v3049 = vpack.c.b16 %v2855, %v2854
    %v3050 = vpack.c.b16 %v2857, %v2856
    %v3051 = vpack.c.b16 %v2859, %v2858
    %v3052 = vpack.c.b16 %v2861, %v2860
    %v3053 = vpack.c.b16 %v2863, %v2862
    %v3054 = vpack.c.b16 %v2865, %v2864
    %v3055 = vpack.c.b16 %v2867, %v2866
    %v3056 = vpack.c.b16 %v2869, %v2868
    %v3057 = vpack.c.b16 %v2871, %v2870
    %v3058 = vpack.c.b16 %v2873, %v2872
    %v3059 = vpack.c.b16 %v2875, %v2874
    %v3060 = vpack.c.b16 %v2877, %v2876
    %v3061 = vpack.c.b16 %v2879, %v2878
    %v3062 = vpack.c.b16 %v2881, %v2880
    %v3063 = vpack.c.b16 %v2883, %v2882
    %v3064 = vpack.c.b16 %v2885, %v2884
    %v3065 = vpack.c.b16 %v2887, %v2886
    %v3066 = vpack.c.b16 %v2889, %v2888
    %v3067 = vpack.c.b16 %v2891, %v2890
    %v3068 = vpack.c.b16 %v2893, %v2892
    %v3069 = vpack.c.b16 %v2895, %v2894
    %v3070 = vpack.c.b16 %v2897, %v2896
    %v3071 = vpack.c.b16 %v2899, %v2898
    %v3072 = vpack.c.b16 %v2901, %v2900
    %v3073 = vpack.c.b16 %v2903, %v2902
    %v3074 = vpack.c.b16 %v2905, %v2904
    %v3075 = vpack.c.b16 %v2907, %v2906
    %v3076 = vpack.c.b16 %v2909, %v2908
    %v3077 = vpack.c.b16 %v2911, %v2910
    %v3078 = vpack.c.b16 %v2913, %v2912
    %v3079 = vpack.c.b16 %v2915, %v2914
    %v3080 = vpack.c.b16 %v2917, %v2916
    %v3081 = vpack.c.b16 %v2919, %v2918
    %v3082 = vpack.c.b16 %v2921, %v2920
    %v3083 = vpack.c.b16 %v2923, %v2922
    %v3084 = vpack.c.b16 %v2925, %v2924
    %v3085 = vpack.c.b16 %v2927, %v2926
    %v3086 = vpack.c.b16 %v2929, %v2928
    %v3087 = vpack.c.b16 %v2931, %v2930
    %v3088 = vpack.c.b16 %v2933, %v2932
    %v3089 = vpack.c.b16 %v2935, %v2934
    %v3090 = vpack.c.b16 %v2937, %v2936
    %v3091 = vpack.c.b16 %v2939, %v2938
    %v3092 = vpack.c.b16 %v2941, %v2940
    %v3093 = vpack.c.b16 %v2943, %v2942
    %v3094 = vpack.c.b16 %v2945, %v2944
    %v3095 = vpack.c.b16 %v2947, %v2946
    %v3096 = vpack.c.b16 %v2949, %v2948
    %v3097 = vpack.c.b16 %v2951, %v2950
    %v3098 = vpack.c.b16 %v2953, %v2952
    %v3099 = vpack.c.b16 %v2955, %v2954
    %v3100 = vpack.c.b16 %v2957, %v2956
    %v3101 = vpack.c.b16 %v2959, %v2958
    %v3102 = vpack.c.b16 %v2961, %v2960
    %v3103 = vpack.c.b16 %v2963, %v2962
    %v3104 = vpack.c.b16 %v2965, %v2964
    %v3105 = vpack.c.b16 %v2967, %v2966
    %v3106 = vpack.c.b16 %v2969, %v2968
    %v3107 = vpack.c.b16 %v2971, %v2970
    %v3108 = vpack.c.b16 %v2973, %v2972
    %v3109 = vpack.c.b16 %v2975, %v2974
    %v3110 = vpack.c.b16 %v2977, %v2976
    %v3111 = vpack.c.b16 %v2979, %v2978
    %v3112 = vpack.c.b16 %v2981, %v2980
    %v3113 = vpack.c.b16 %v2983, %v2982
    %v3114 = vpack.c.b16 %v2985, %v2984
    %v3115 = vpack.c.b16 %v2987, %v2986
    %3244 = vmatpush.bf16.msra.mxu0 %v2995
    %3245 = vmatpush.bf16.msra.mxu0 %v2994
    %3246 = vmatpush.bf16.msra.mxu0 %v2993
    %3247 = vmatpush.bf16.msra.mxu0 %v2992
    %3248 = vmatpush.bf16.msra.mxu0 %v2991
    %3249 = vmatpush.bf16.msra.mxu0 %v2990
    %3250 = vmatpush.bf16.msra.mxu0 %v2989
    %3251 = vmatpush.bf16.msra.mxu0 %v2988
    %3252 = vmatmul.bf16.gmra.mxu0 %v2185
    %v3253 = vpop.f32.mrf.mxu0
    %v3254 = vadd.f32 %v2474, %v3253
    %v3255 = vpop.f32.mrf.mxu0
    %v3256 = vadd.f32 %v2474, %v3255
    %3257 = vmatmul.bf16.gmra.mxu0 %v2201
    %v3258 = vpop.f32.mrf.mxu0
    %v3259 = vadd.f32 %v2474, %v3258
    %v3260 = vpop.f32.mrf.mxu0
    %v3261 = vadd.f32 %v2474, %v3260
    %3262 = vdwg.mxu0
    %3263 = vmatpush.bf16.msra.mxu0 %v3003
    %3264 = vmatpush.bf16.msra.mxu0 %v3002
    %3265 = vmatpush.bf16.msra.mxu0 %v3001
    %3266 = vmatpush.bf16.msra.mxu0 %v3000
    %3267 = vmatpush.bf16.msra.mxu0 %v2999
    %3268 = vmatpush.bf16.msra.mxu0 %v2998
    %3269 = vmatpush.bf16.msra.mxu0 %v2997
    %3270 = vmatpush.bf16.msra.mxu0 %v2996
    %3271 = vmatmul.bf16.gmra.mxu0 %v2186
    %v3272 = vpop.f32.mrf.mxu0
    %v3273 = vadd.f32 %v3254, %v3272
    %v3274 = vpop.f32.mrf.mxu0
    %v3275 = vadd.f32 %v3256, %v3274
    %3276 = vmatmul.bf16.gmra.mxu0 %v2202
    %v3277 = vpop.f32.mrf.mxu0
    %v3278 = vadd.f32 %v3259, %v3277
    %v3279 = vpop.f32.mrf.mxu0
    %v3280 = vadd.f32 %v3261, %v3279
    %3281 = vdwg.mxu0
    %3282 = vmatpush.bf16.msra.mxu0 %v3011
    %3283 = vmatpush.bf16.msra.mxu0 %v3010
    %3284 = vmatpush.bf16.msra.mxu0 %v3009
    %3285 = vmatpush.bf16.msra.mxu0 %v3008
    %3286 = vmatpush.bf16.msra.mxu0 %v3007
    %3287 = vmatpush.bf16.msra.mxu0 %v3006
    %3288 = vmatpush.bf16.msra.mxu0 %v3005
    %3289 = vmatpush.bf16.msra.mxu0 %v3004
    %3290 = vmatmul.bf16.gmra.mxu0 %v2187
    %v3291 = vpop.f32.mrf.mxu0
    %v3292 = vadd.f32 %v3273, %v3291
    %v3293 = vpop.f32.mrf.mxu0
    %v3294 = vadd.f32 %v3275, %v3293
    %3295 = vmatmul.bf16.gmra.mxu0 %v2203
    %v3296 = vpop.f32.mrf.mxu0
    %v3297 = vadd.f32 %v3278, %v3296
    %v3298 = vpop.f32.mrf.mxu0
    %v3299 = vadd.f32 %v3280, %v3298
    %3300 = vdwg.mxu0
    %3301 = vmatpush.bf16.msra.mxu0 %v3019
    %3302 = vmatpush.bf16.msra.mxu0 %v3018
    %3303 = vmatpush.bf16.msra.mxu0 %v3017
    %3304 = vmatpush.bf16.msra.mxu0 %v3016
    %3305 = vmatpush.bf16.msra.mxu0 %v3015
    %3306 = vmatpush.bf16.msra.mxu0 %v3014
    %3307 = vmatpush.bf16.msra.mxu0 %v3013
    %3308 = vmatpush.bf16.msra.mxu0 %v3012
    %3309 = vmatmul.bf16.gmra.mxu0 %v2188
    %v3310 = vpop.f32.mrf.mxu0
    %v3311 = vadd.f32 %v3292, %v3310
    %v3312 = vpop.f32.mrf.mxu0
    %v3313 = vadd.f32 %v3294, %v3312
    %3314 = vmatmul.bf16.gmra.mxu0 %v2204
    %v3315 = vpop.f32.mrf.mxu0
    %v3316 = vadd.f32 %v3297, %v3315
    %v3317 = vpop.f32.mrf.mxu0
    %v3318 = vadd.f32 %v3299, %v3317
    %3319 = vdwg.mxu0
    %3320 = vmatpush.bf16.msra.mxu0 %v3027
    %3321 = vmatpush.bf16.msra.mxu0 %v3026
    %3322 = vmatpush.bf16.msra.mxu0 %v3025
    %3323 = vmatpush.bf16.msra.mxu0 %v3024
    %3324 = vmatpush.bf16.msra.mxu0 %v3023
    %3325 = vmatpush.bf16.msra.mxu0 %v3022
    %3326 = vmatpush.bf16.msra.mxu0 %v3021
    %3327 = vmatpush.bf16.msra.mxu0 %v3020
    %3328 = vmatmul.bf16.gmra.mxu0 %v2189
    %v3329 = vpop.f32.mrf.mxu0
    %v3330 = vadd.f32 %v3311, %v3329
    %v3331 = vpop.f32.mrf.mxu0
    %v3332 = vadd.f32 %v3313, %v3331
    %3333 = vmatmul.bf16.gmra.mxu0 %v2205
    %v3334 = vpop.f32.mrf.mxu0
    %v3335 = vadd.f32 %v3316, %v3334
    %v3336 = vpop.f32.mrf.mxu0
    %v3337 = vadd.f32 %v3318, %v3336
    %3338 = vdwg.mxu0
    %3339 = vmatpush.bf16.msra.mxu0 %v3035
    %3340 = vmatpush.bf16.msra.mxu0 %v3034
    %3341 = vmatpush.bf16.msra.mxu0 %v3033
    %3342 = vmatpush.bf16.msra.mxu0 %v3032
    %3343 = vmatpush.bf16.msra.mxu0 %v3031
    %3344 = vmatpush.bf16.msra.mxu0 %v3030
    %3345 = vmatpush.bf16.msra.mxu0 %v3029
    %3346 = vmatpush.bf16.msra.mxu0 %v3028
    %3347 = vmatmul.bf16.gmra.mxu0 %v2190
    %v3348 = vpop.f32.mrf.mxu0
    %v3349 = vadd.f32 %v3330, %v3348
    %v3350 = vpop.f32.mrf.mxu0
    %v3351 = vadd.f32 %v3332, %v3350
    %3352 = vmatmul.bf16.gmra.mxu0 %v2206
    %v3353 = vpop.f32.mrf.mxu0
    %v3354 = vadd.f32 %v3335, %v3353
    %v3355 = vpop.f32.mrf.mxu0
    %v3356 = vadd.f32 %v3337, %v3355
    %3357 = vdwg.mxu0
    %3358 = vmatpush.bf16.msra.mxu0 %v3043
    %3359 = vmatpush.bf16.msra.mxu0 %v3042
    %3360 = vmatpush.bf16.msra.mxu0 %v3041
    %3361 = vmatpush.bf16.msra.mxu0 %v3040
    %3362 = vmatpush.bf16.msra.mxu0 %v3039
    %3363 = vmatpush.bf16.msra.mxu0 %v3038
    %3364 = vmatpush.bf16.msra.mxu0 %v3037
    %3365 = vmatpush.bf16.msra.mxu0 %v3036
    %3366 = vmatmul.bf16.gmra.mxu0 %v2191
    %v3367 = vpop.f32.mrf.mxu0
    %v3368 = vadd.f32 %v3349, %v3367
    %v3369 = vpop.f32.mrf.mxu0
    %v3370 = vadd.f32 %v3351, %v3369
    %3371 = vmatmul.bf16.gmra.mxu0 %v2207
    %v3372 = vpop.f32.mrf.mxu0
    %v3373 = vadd.f32 %v3354, %v3372
    %v3374 = vpop.f32.mrf.mxu0
    %v3375 = vadd.f32 %v3356, %v3374
    %3376 = vdwg.mxu0
    %3377 = vmatpush.bf16.msra.mxu0 %v3051
    %3378 = vmatpush.bf16.msra.mxu0 %v3050
    %3379 = vmatpush.bf16.msra.mxu0 %v3049
    %3380 = vmatpush.bf16.msra.mxu0 %v3048
    %3381 = vmatpush.bf16.msra.mxu0 %v3047
    %3382 = vmatpush.bf16.msra.mxu0 %v3046
    %3383 = vmatpush.bf16.msra.mxu0 %v3045
    %3384 = vmatpush.bf16.msra.mxu0 %v3044
    %3385 = vmatmul.bf16.gmra.mxu0 %v2192
    %v3386 = vpop.f32.mrf.mxu0
    %v3387 = vadd.f32 %v3368, %v3386
    %v3388 = vpop.f32.mrf.mxu0
    %v3389 = vadd.f32 %v3370, %v3388
    %3390 = vmatmul.bf16.gmra.mxu0 %v2208
    %v3391 = vpop.f32.mrf.mxu0
    %v3392 = vadd.f32 %v3373, %v3391
    %v3393 = vpop.f32.mrf.mxu0
    %v3394 = vadd.f32 %v3375, %v3393
    %3395 = vdwg.mxu0
    %3396 = vmatpush.bf16.msra.mxu0 %v3059
    %3397 = vmatpush.bf16.msra.mxu0 %v3058
    %3398 = vmatpush.bf16.msra.mxu0 %v3057
    %3399 = vmatpush.bf16.msra.mxu0 %v3056
    %3400 = vmatpush.bf16.msra.mxu0 %v3055
    %3401 = vmatpush.bf16.msra.mxu0 %v3054
    %3402 = vmatpush.bf16.msra.mxu0 %v3053
    %3403 = vmatpush.bf16.msra.mxu0 %v3052
    %3404 = vmatmul.bf16.gmra.mxu0 %v2193
    %v3405 = vpop.f32.mrf.mxu0
    %v3406 = vadd.f32 %v3387, %v3405
    %v3407 = vpop.f32.mrf.mxu0
    %v3408 = vadd.f32 %v3389, %v3407
    %3409 = vmatmul.bf16.gmra.mxu0 %v2209
    %v3410 = vpop.f32.mrf.mxu0
    %v3411 = vadd.f32 %v3392, %v3410
    %v3412 = vpop.f32.mrf.mxu0
    %v3413 = vadd.f32 %v3394, %v3412
    %3414 = vdwg.mxu0
    %3415 = vmatpush.bf16.msra.mxu0 %v3067
    %3416 = vmatpush.bf16.msra.mxu0 %v3066
    %3417 = vmatpush.bf16.msra.mxu0 %v3065
    %3418 = vmatpush.bf16.msra.mxu0 %v3064
    %3419 = vmatpush.bf16.msra.mxu0 %v3063
    %3420 = vmatpush.bf16.msra.mxu0 %v3062
    %3421 = vmatpush.bf16.msra.mxu0 %v3061
    %3422 = vmatpush.bf16.msra.mxu0 %v3060
    %3423 = vmatmul.bf16.gmra.mxu0 %v2194
    %v3424 = vpop.f32.mrf.mxu0
    %v3425 = vadd.f32 %v3406, %v3424
    %v3426 = vpop.f32.mrf.mxu0
    %v3427 = vadd.f32 %v3408, %v3426
    %3428 = vmatmul.bf16.gmra.mxu0 %v2210
    %v3429 = vpop.f32.mrf.mxu0
    %v3430 = vadd.f32 %v3411, %v3429
    %v3431 = vpop.f32.mrf.mxu0
    %v3432 = vadd.f32 %v3413, %v3431
    %3433 = vdwg.mxu0
    %3434 = vmatpush.bf16.msra.mxu0 %v3075
    %3435 = vmatpush.bf16.msra.mxu0 %v3074
    %3436 = vmatpush.bf16.msra.mxu0 %v3073
    %3437 = vmatpush.bf16.msra.mxu0 %v3072
    %3438 = vmatpush.bf16.msra.mxu0 %v3071
    %3439 = vmatpush.bf16.msra.mxu0 %v3070
    %3440 = vmatpush.bf16.msra.mxu0 %v3069
    %3441 = vmatpush.bf16.msra.mxu0 %v3068
    %3442 = vmatmul.bf16.gmra.mxu0 %v2195
    %v3443 = vpop.f32.mrf.mxu0
    %v3444 = vadd.f32 %v3425, %v3443
    %v3445 = vpop.f32.mrf.mxu0
    %v3446 = vadd.f32 %v3427, %v3445
    %3447 = vmatmul.bf16.gmra.mxu0 %v2211
    %v3448 = vpop.f32.mrf.mxu0
    %v3449 = vadd.f32 %v3430, %v3448
    %v3450 = vpop.f32.mrf.mxu0
    %v3451 = vadd.f32 %v3432, %v3450
    %3452 = vdwg.mxu0
    %3453 = vmatpush.bf16.msra.mxu0 %v3083
    %3454 = vmatpush.bf16.msra.mxu0 %v3082
    %3455 = vmatpush.bf16.msra.mxu0 %v3081
    %3456 = vmatpush.bf16.msra.mxu0 %v3080
    %3457 = vmatpush.bf16.msra.mxu0 %v3079
    %3458 = vmatpush.bf16.msra.mxu0 %v3078
    %3459 = vmatpush.bf16.msra.mxu0 %v3077
    %3460 = vmatpush.bf16.msra.mxu0 %v3076
    %3461 = vmatmul.bf16.gmra.mxu0 %v2196
    %v3462 = vpop.f32.mrf.mxu0
    %v3463 = vadd.f32 %v3444, %v3462
    %v3464 = vpop.f32.mrf.mxu0
    %v3465 = vadd.f32 %v3446, %v3464
    %3466 = vmatmul.bf16.gmra.mxu0 %v2212
    %v3467 = vpop.f32.mrf.mxu0
    %v3468 = vadd.f32 %v3449, %v3467
    %v3469 = vpop.f32.mrf.mxu0
    %v3470 = vadd.f32 %v3451, %v3469
    %3471 = vdwg.mxu0
    %3472 = vmatpush.bf16.msra.mxu0 %v3091
    %3473 = vmatpush.bf16.msra.mxu0 %v3090
    %3474 = vmatpush.bf16.msra.mxu0 %v3089
    %3475 = vmatpush.bf16.msra.mxu0 %v3088
    %3476 = vmatpush.bf16.msra.mxu0 %v3087
    %3477 = vmatpush.bf16.msra.mxu0 %v3086
    %3478 = vmatpush.bf16.msra.mxu0 %v3085
    %3479 = vmatpush.bf16.msra.mxu0 %v3084
    %3480 = vmatmul.bf16.gmra.mxu0 %v2197
    %v3481 = vpop.f32.mrf.mxu0
    %v3482 = vadd.f32 %v3463, %v3481
    %v3483 = vpop.f32.mrf.mxu0
    %v3484 = vadd.f32 %v3465, %v3483
    %3485 = vmatmul.bf16.gmra.mxu0 %v2213
    %v3486 = vpop.f32.mrf.mxu0
    %v3487 = vadd.f32 %v3468, %v3486
    %v3488 = vpop.f32.mrf.mxu0
    %v3489 = vadd.f32 %v3470, %v3488
    %3490 = vdwg.mxu0
    %3491 = vmatpush.bf16.msra.mxu0 %v3099
    %3492 = vmatpush.bf16.msra.mxu0 %v3098
    %3493 = vmatpush.bf16.msra.mxu0 %v3097
    %3494 = vmatpush.bf16.msra.mxu0 %v3096
    %3495 = vmatpush.bf16.msra.mxu0 %v3095
    %3496 = vmatpush.bf16.msra.mxu0 %v3094
    %3497 = vmatpush.bf16.msra.mxu0 %v3093
    %3498 = vmatpush.bf16.msra.mxu0 %v3092
    %3499 = vmatmul.bf16.gmra.mxu0 %v2198
    %v3500 = vpop.f32.mrf.mxu0
    %v3501 = vadd.f32 %v3482, %v3500
    %v3502 = vpop.f32.mrf.mxu0
    %v3503 = vadd.f32 %v3484, %v3502
    %3504 = vmatmul.bf16.gmra.mxu0 %v2214
    %v3505 = vpop.f32.mrf.mxu0
    %v3506 = vadd.f32 %v3487, %v3505
    %v3507 = vpop.f32.mrf.mxu0
    %v3508 = vadd.f32 %v3489, %v3507
    %3509 = vdwg.mxu0
    %3510 = vmatpush.bf16.msra.mxu0 %v3107
    %3511 = vmatpush.bf16.msra.mxu0 %v3106
    %3512 = vmatpush.bf16.msra.mxu0 %v3105
    %3513 = vmatpush.bf16.msra.mxu0 %v3104
    %3514 = vmatpush.bf16.msra.mxu0 %v3103
    %3515 = vmatpush.bf16.msra.mxu0 %v3102
    %3516 = vmatpush.bf16.msra.mxu0 %v3101
    %3517 = vmatpush.bf16.msra.mxu0 %v3100
    %3518 = vmatmul.bf16.gmra.mxu0 %v2199
    %v3519 = vpop.f32.mrf.mxu0
    %v3520 = vadd.f32 %v3501, %v3519
    %v3521 = vpop.f32.mrf.mxu0
    %v3522 = vadd.f32 %v3503, %v3521
    %3523 = vmatmul.bf16.gmra.mxu0 %v2215
    %v3524 = vpop.f32.mrf.mxu0
    %v3525 = vadd.f32 %v3506, %v3524
    %v3526 = vpop.f32.mrf.mxu0
    %v3527 = vadd.f32 %v3508, %v3526
    %3528 = vdwg.mxu0
    %3529 = vmatpush.bf16.msra.mxu0 %v3115
    %3530 = vmatpush.bf16.msra.mxu0 %v3114
    %3531 = vmatpush.bf16.msra.mxu0 %v3113
    %3532 = vmatpush.bf16.msra.mxu0 %v3112
    %3533 = vmatpush.bf16.msra.mxu0 %v3111
    %3534 = vmatpush.bf16.msra.mxu0 %v3110
    %3535 = vmatpush.bf16.msra.mxu0 %v3109
    %3536 = vmatpush.bf16.msra.mxu0 %v3108
    %3537 = vmatmul.bf16.gmra.mxu0 %v2200
    %v3538 = vpop.f32.mrf.mxu0
    %v3539 = vadd.f32 %v3520, %v3538
    %v3540 = vpop.f32.mrf.mxu0
    %v3541 = vadd.f32 %v3522, %v3540
    %3542 = vmatmul.bf16.gmra.mxu0 %v2216
    %v3543 = vpop.f32.mrf.mxu0
    %v3544 = vadd.f32 %v3525, %v3543
    %v3545 = vpop.f32.mrf.mxu0
    %v3546 = vadd.f32 %v3527, %v3545
    %3547 = vdwg.mxu0
    %v3548 = vadd.f32 %v1579, %v3539
    %v3549 = vadd.f32 %v1580, %v3541
    %v3550 = vadd.f32 %v1581, %v3544
    %v3551 = vadd.f32 %v1582, %v3546
    %v3552 = vsel %vm140, %v3548, 0.0
    %3553 = vadd.xlane.f32.xlu0 %v3552
    %v3554 = vpop.xlane.xlu0 %3553
    %v3555 = vsel %vm140, %v3549, 0.0
    %3556 = vadd.xlane.f32.xlu0 %v3555
    %v3557 = vpop.xlane.xlu0 %3556
    %v3558 = vsel %vm140, %v3550, 0.0
    %3559 = vadd.xlane.f32.xlu0 %v3558
    %v3560 = vpop.xlane.xlu0 %3559
    %v3561 = vsel %vm140, %v3551, 0.0
    %3562 = vadd.xlane.f32.xlu0 %v3561
    %v3563 = vpop.xlane.xlu0 %3562
    %v3564 = vmul.f32 %v3554, %v1484
    %v3565 = vmul.f32 %v3557, %v1484
    %v3566 = vmul.f32 %v3560, %v1484
    %v3567 = vmul.f32 %v3563, %v1484
    %v3568 = vmul.f32 %v3548, %v3548
    %v3569 = vmul.f32 %v3549, %v3549
    %v3570 = vmul.f32 %v3550, %v3550
    %v3571 = vmul.f32 %v3551, %v3551
    %v3572 = vsel %vm140, %v3568, 0.0
    %3573 = vadd.xlane.f32.xlu0 %v3572
    %v3574 = vpop.xlane.xlu0 %3573
    %v3575 = vsel %vm140, %v3569, 0.0
    %3576 = vadd.xlane.f32.xlu0 %v3575
    %v3577 = vpop.xlane.xlu0 %3576
    %v3578 = vsel %vm140, %v3570, 0.0
    %3579 = vadd.xlane.f32.xlu0 %v3578
    %v3580 = vpop.xlane.xlu0 %3579
    %v3581 = vsel %vm140, %v3571, 0.0
    %3582 = vadd.xlane.f32.xlu0 %v3581
    %v3583 = vpop.xlane.xlu0 %3582
    %v3584 = vmul.f32 %v3574, %v1484
    %v3585 = vmul.f32 %v3577, %v1484
    %v3586 = vmul.f32 %v3580, %v1484
    %v3587 = vmul.f32 %v3583, %v1484
    %v3588 = vmul.f32 %v3564, %v3564
    %v3589 = vmul.f32 %v3565, %v3565
    %v3590 = vmul.f32 %v3566, %v3566
    %v3591 = vmul.f32 %v3567, %v3567
    %v3592 = vsub.f32 %v3584, %v3588
    %v3593 = vsub.f32 %v3585, %v3589
    %v3594 = vsub.f32 %v3586, %v3590
    %v3595 = vsub.f32 %v3587, %v3591
    %v3596 = vadd.f32 %v3592, 1e-05
    %v3597 = vadd.f32 %v3593, 1e-05
    %v3598 = vadd.f32 %v3594, 1e-05
    %v3599 = vadd.f32 %v3595, 1e-05
    %v3600 = vrsqrt.pop %v3596
    %v3601 = vmul.f32 %v3600, %v3596
    %v3602 = vmul.f32 %v3601, %v3600
    %v3603 = vmul.f32 0.5, %v3602
    %v3604 = vsub.f32 1.5, %v3603
    %v3605 = vmul.f32 %v3600, %v3604
    %vm3606 = vweird.f32 %v3596
    %vm3607 = vweird.f32 %v3600
    %vm3608 = vmor %vm3606, %vm3607
    %v3609 = vsel %vm3608, %v3600, %v3605
    %v3610 = vrsqrt.pop %v3597
    %v3611 = vmul.f32 %v3610, %v3597
    %v3612 = vmul.f32 %v3611, %v3610
    %v3613 = vmul.f32 0.5, %v3612
    %v3614 = vsub.f32 1.5, %v3613
    %v3615 = vmul.f32 %v3610, %v3614
    %vm3616 = vweird.f32 %v3597
    %vm3617 = vweird.f32 %v3610
    %vm3618 = vmor %vm3616, %vm3617
    %v3619 = vsel %vm3618, %v3610, %v3615
    %v3620 = vrsqrt.pop %v3598
    %v3621 = vmul.f32 %v3620, %v3598
    %v3622 = vmul.f32 %v3621, %v3620
    %v3623 = vmul.f32 0.5, %v3622
    %v3624 = vsub.f32 1.5, %v3623
    %v3625 = vmul.f32 %v3620, %v3624
    %vm3626 = vweird.f32 %v3598
    %vm3627 = vweird.f32 %v3620
    %vm3628 = vmor %vm3626, %vm3627
    %v3629 = vsel %vm3628, %v3620, %v3625
    %v3630 = vrsqrt.pop %v3599
    %v3631 = vmul.f32 %v3630, %v3599
    %v3632 = vmul.f32 %v3631, %v3630
    %v3633 = vmul.f32 0.5, %v3632
    %v3634 = vsub.f32 1.5, %v3633
    %v3635 = vmul.f32 %v3630, %v3634
    %vm3636 = vweird.f32 %v3599
    %vm3637 = vweird.f32 %v3630
    %vm3638 = vmor %vm3636, %vm3637
    %v3639 = vsel %vm3638, %v3630, %v3635
    %v3640 = vsub.f32 %v3548, %v3564
    %v3641 = vsub.f32 %v3549, %v3565
    %v3642 = vsub.f32 %v3550, %v3566
    %v3643 = vsub.f32 %v3551, %v3567
    %v3644 = vmul.f32 %v3640, %v3609
    %v3645 = vmul.f32 %v3641, %v3619
    %v3646 = vmul.f32 %v3642, %v3629
    %v3647 = vmul.f32 %v3643, %v3639
    %v3649 = vperm.slane %v112, 0
    %v3651 = vmul.f32 %v3644, %v3649
    %v3652 = vmul.f32 %v3645, %v3649
    %v3653 = vmul.f32 %v3646, %v3649
    %v3654 = vmul.f32 %v3647, %v3649
    %v3656 = vperm.slane %v113, 0
    %v3658 = vadd.f32 %v3651, %v3656
    %v3659 = vadd.f32 %v3652, %v3656
    %v3660 = vadd.f32 %v3653, %v3656
    %v3661 = vadd.f32 %v3654, %v3656
    %s3662 = scalar_lea.vmem %s11, 1
    %v3663 = vld [vmem:[%s3662] sm:$0x1]
    %s3664 = scalar_lea.vmem %s12, 1
    %v3665 = vld [vmem:[%s3664] sm:$0x1]
    %s3666 = scalar_lea.vmem %s13, 1
    %v3667 = vld [vmem:[%s3666] sm:$0x1]
    %s3668 = scalar_lea.vmem %s14, 1
    %v3669 = vld [vmem:[%s3668] sm:$0x1]
    %s3670 = scalar_lea.vmem %s10, 1
    %v3671 = vld [vmem:[%s3670] sm:$0x1]
    %s3672 = scalar_lea.vmem %s16, 16
    %v3673 = vld [vmem:[%s3672] sm:$0xff]
    %v3674 = vld [vmem:[%s3672 + $0x8] sm:$0xff]
    %s3675 = scalar_lea.vmem %s18, 1
    %v3676 = vld [vmem:[%s3675] sm:$0x1]
    %v3677 = vpack.c.bf16 %v3659, %v3658
    %v3678 = vpack.c.bf16 %v3661, %v3660
    %s3679 = scalar_lea.vmem %s3, 64
    %v3680 = vld [vmem:[%s3679] sm:$0xf]
    %v3681 = vld [vmem:[%s3679 + $0x4] sm:$0xf]
    %v3682 = vld [vmem:[%s3679 + $0x8] sm:$0xf]
    %v3683 = vld [vmem:[%s3679 + $0xc] sm:$0xf]
    %s3684 = scalar_lea.vmem %s6, 4
    %v3685 = vld [vmem:[%s3684] sm:$0x1]
    %v3687 = vperm.slane %v3685, 0
    %v3693 = vunpack.c.l.b16 %v3680
    %v3694 = vunpack.c.l.b16 %v3681
    %v3695 = vunpack.c.l.b16 %v3682
    %v3696 = vunpack.c.l.b16 %v3683
    %v3697 = vpack.c.b16 %v3694, %v3693
    %v3698 = vpack.c.b16 %v3696, %v3695
    %v3702 = vsel %vm140, %v3677, 0
    %v3705 = vsel %vm140, %v3678, 0
    %3707 = vmatpush.bf16.msra.mxu0 0
    %3708 = vmatpush.bf16.msra.mxu0 0
    %3709 = vmatpush.bf16.msra.mxu0 0
    %3710 = vmatpush.bf16.msra.mxu0 0
    %3711 = vmatpush.bf16.msra.mxu0 0
    %3712 = vmatpush.bf16.msra.mxu0 0
    %3713 = vmatpush.bf16.msra.mxu0 %v3698
    %3714 = vmatpush.bf16.msra.mxu0 %v3697
    %3715 = vmatmul.bf16.gmra.mxu0 %v3702
    %v3716 = vpop.f32.mrf.mxu0
    %v3717 = vadd.f32 %v3687, %v3716
    %v3718 = vpop.f32.mrf.mxu0
    %v3719 = vadd.f32 %v3687, %v3718
    %3720 = vmatmul.bf16.gmra.mxu0 %v3705
    %v3721 = vpop.f32.mrf.mxu0
    %v3722 = vadd.f32 %v3687, %v3721
    %v3723 = vpop.f32.mrf.mxu0
    %v3724 = vadd.f32 %v3687, %v3723
    %3725 = vdwg.mxu0
    %s3726 = scalar_lea.vmem %s4, 64
    %v3727 = vld [vmem:[%s3726] sm:$0xf]
    %v3728 = vld [vmem:[%s3726 + $0x4] sm:$0xf]
    %v3729 = vld [vmem:[%s3726 + $0x8] sm:$0xf]
    %v3730 = vld [vmem:[%s3726 + $0xc] sm:$0xf]
    %s3731 = scalar_lea.vmem %s7, 4
    %v3732 = vld [vmem:[%s3731] sm:$0x1]
    %v3734 = vperm.slane %v3732, 0
    %v3740 = vunpack.c.l.b16 %v3727
    %v3741 = vunpack.c.l.b16 %v3728
    %v3742 = vunpack.c.l.b16 %v3729
    %v3743 = vunpack.c.l.b16 %v3730
    %v3744 = vpack.c.b16 %v3741, %v3740
    %v3745 = vpack.c.b16 %v3743, %v3742
    %3748 = vmatpush.bf16.msra.mxu0 0
    %3749 = vmatpush.bf16.msra.mxu0 0
    %3750 = vmatpush.bf16.msra.mxu0 0
    %3751 = vmatpush.bf16.msra.mxu0 0
    %3752 = vmatpush.bf16.msra.mxu0 0
    %3753 = vmatpush.bf16.msra.mxu0 0
    %3754 = vmatpush.bf16.msra.mxu0 %v3745
    %3755 = vmatpush.bf16.msra.mxu0 %v3744
    %3756 = vmatmul.bf16.gmra.mxu0 %v3702
    %v3757 = vpop.f32.mrf.mxu0
    %v3758 = vadd.f32 %v3734, %v3757
    %v3759 = vpop.f32.mrf.mxu0
    %v3760 = vadd.f32 %v3734, %v3759
    %3761 = vmatmul.bf16.gmra.mxu0 %v3705
    %v3762 = vpop.f32.mrf.mxu0
    %v3763 = vadd.f32 %v3734, %v3762
    %v3764 = vpop.f32.mrf.mxu0
    %v3765 = vadd.f32 %v3734, %v3764
    %3766 = vdwg.mxu0
    %s3767 = scalar_lea.vmem %s5, 64
    %v3768 = vld [vmem:[%s3767] sm:$0xf]
    %v3769 = vld [vmem:[%s3767 + $0x4] sm:$0xf]
    %v3770 = vld [vmem:[%s3767 + $0x8] sm:$0xf]
    %v3771 = vld [vmem:[%s3767 + $0xc] sm:$0xf]
    %s3772 = scalar_lea.vmem %s8, 4
    %v3773 = vld [vmem:[%s3772] sm:$0x1]
    %v3775 = vperm.slane %v3773, 0
    %v3781 = vunpack.c.l.b16 %v3768
    %v3782 = vunpack.c.l.b16 %v3769
    %v3783 = vunpack.c.l.b16 %v3770
    %v3784 = vunpack.c.l.b16 %v3771
    %v3785 = vpack.c.b16 %v3782, %v3781
    %v3786 = vpack.c.b16 %v3784, %v3783
    %3789 = vmatpush.bf16.msra.mxu0 0
    %3790 = vmatpush.bf16.msra.mxu0 0
    %3791 = vmatpush.bf16.msra.mxu0 0
    %3792 = vmatpush.bf16.msra.mxu0 0
    %3793 = vmatpush.bf16.msra.mxu0 0
    %3794 = vmatpush.bf16.msra.mxu0 0
    %3795 = vmatpush.bf16.msra.mxu0 %v3786
    %3796 = vmatpush.bf16.msra.mxu0 %v3785
    %3797 = vmatmul.bf16.gmra.mxu0 %v3702
    %v3798 = vpop.f32.mrf.mxu0
    %v3799 = vadd.f32 %v3775, %v3798
    %v3800 = vpop.f32.mrf.mxu0
    %v3801 = vadd.f32 %v3775, %v3800
    %3802 = vmatmul.bf16.gmra.mxu0 %v3705
    %v3803 = vpop.f32.mrf.mxu0
    %v3804 = vadd.f32 %v3775, %v3803
    %v3805 = vpop.f32.mrf.mxu0
    %v3806 = vadd.f32 %v3775, %v3805
    %3807 = vdwg.mxu0
    %v3809 = vsel %vm244, %v3717, 0
    %v3812 = vsel %vm244, %v3719, 0
    %v3815 = vsel %vm244, %v3758, 0
    %v3818 = vsel %vm244, %v3760, 0
    %3820 = vmatpush.xpose.msra.mxu0 0.0
    %3821 = vmatpush.xpose.msra.mxu0 0.0
    %3822 = vmatpush.xpose.msra.mxu0 0.0
    %3823 = vmatpush.xpose.msra.mxu0 0.0
    %3824 = vmatpush.xpose.msra.mxu0 0.0
    %3825 = vmatpush.xpose.msra.mxu0 0.0
    %3826 = vmatpush.xpose.msra.mxu0 0.0
    %3827 = vmatpush.xpose.msra.mxu0 0.0
    %3828 = vmatpush.xpose.msra.mxu0 0.0
    %3829 = vmatpush.xpose.msra.mxu0 0.0
    %3830 = vmatpush.xpose.msra.mxu0 0.0
    %3831 = vmatpush.xpose.msra.mxu0 0.0
    %3832 = vmatpush.xpose.msra.mxu0 0.0
    %3833 = vmatpush.xpose.msra.mxu0 0.0
    %3834 = vmatpush.xpose.msra.mxu0 %v3818
    %3835 = vmatpush.xpose.msra.mxu0 %v3815
    %3836 = vmatmul.f32.gmra.mxu0 %v3809
    %v3837 = vpop.f32.mrf.mxu0
    %v3838 = vadd.f32 0.0, %v3837
    %3839 = vmatmul.f32.gmra.mxu0 %v3812
    %v3840 = vpop.f32.mrf.mxu0
    %v3841 = vadd.f32 0.0, %v3840
    %3842 = vdwg.mxu0
    %v3844 = vsel %vm244, %v3722, 0
    %v3847 = vsel %vm244, %v3724, 0
    %v3850 = vsel %vm244, %v3763, 0
    %v3853 = vsel %vm244, %v3765, 0
    %3855 = vmatpush.xpose.msra.mxu0 0.0
    %3856 = vmatpush.xpose.msra.mxu0 0.0
    %3857 = vmatpush.xpose.msra.mxu0 0.0
    %3858 = vmatpush.xpose.msra.mxu0 0.0
    %3859 = vmatpush.xpose.msra.mxu0 0.0
    %3860 = vmatpush.xpose.msra.mxu0 0.0
    %3861 = vmatpush.xpose.msra.mxu0 0.0
    %3862 = vmatpush.xpose.msra.mxu0 0.0
    %3863 = vmatpush.xpose.msra.mxu0 0.0
    %3864 = vmatpush.xpose.msra.mxu0 0.0
    %3865 = vmatpush.xpose.msra.mxu0 0.0
    %3866 = vmatpush.xpose.msra.mxu0 0.0
    %3867 = vmatpush.xpose.msra.mxu0 0.0
    %3868 = vmatpush.xpose.msra.mxu0 0.0
    %3869 = vmatpush.xpose.msra.mxu0 %v3853
    %3870 = vmatpush.xpose.msra.mxu0 %v3850
    %3871 = vmatmul.f32.gmra.mxu0 %v3844
    %v3872 = vpop.f32.mrf.mxu0
    %v3873 = vadd.f32 0.0, %v3872
    %3874 = vmatmul.f32.gmra.mxu0 %v3847
    %v3875 = vpop.f32.mrf.mxu0
    %v3876 = vadd.f32 0.0, %v3875
    %3877 = vdwg.mxu0
    %v3878 = vmul.f32 %v3838, 0.35355338
    %v3879 = vmul.f32 %v3841, 0.35355338
    %v3880 = vmul.f32 %v3873, 0.35355338
    %v3881 = vmul.f32 %v3876, 0.35355338
    %v3882 = vsel %vm319, %v3878, -inf
    %3883 = vmax.xlane.f32.xlu0 %v3882
    %v3884 = vpop.xlane.xlu0 %3883
    %v3885 = vsel %vm319, %v3879, -inf
    %3886 = vmax.xlane.f32.xlu0 %v3885
    %v3887 = vpop.xlane.xlu0 %3886
    %v3888 = vsel %vm319, %v3880, -inf
    %3889 = vmax.xlane.f32.xlu0 %v3888
    %v3890 = vpop.xlane.xlu0 %3889
    %v3891 = vsel %vm319, %v3881, -inf
    %3892 = vmax.xlane.f32.xlu0 %v3891
    %v3893 = vpop.xlane.xlu0 %3892
    %v3894 = vsub.f32 %v3878, %v3884
    %v3895 = vsub.f32 %v3879, %v3887
    %v3896 = vsub.f32 %v3880, %v3890
    %v3897 = vsub.f32 %v3881, %v3893
    %v3898 = vmul.f32 %v3894, 1.442695
    %v3899 = vpow.pop %v3898
    %v3900 = vmul.f32 %v3895, 1.442695
    %v3901 = vpow.pop %v3900
    %v3902 = vmul.f32 %v3896, 1.442695
    %v3903 = vpow.pop %v3902
    %v3904 = vmul.f32 %v3897, 1.442695
    %v3905 = vpow.pop %v3904
    %v3906 = vsel %vm319, %v3899, 0.0
    %3907 = vadd.xlane.f32.xlu0 %v3906
    %v3908 = vpop.xlane.xlu0 %3907
    %v3909 = vsel %vm319, %v3901, 0.0
    %3910 = vadd.xlane.f32.xlu0 %v3909
    %v3911 = vpop.xlane.xlu0 %3910
    %v3912 = vsel %vm319, %v3903, 0.0
    %3913 = vadd.xlane.f32.xlu0 %v3912
    %v3914 = vpop.xlane.xlu0 %3913
    %v3915 = vsel %vm319, %v3905, 0.0
    %3916 = vadd.xlane.f32.xlu0 %v3915
    %v3917 = vpop.xlane.xlu0 %3916
    %v3918 = vrcp.pop %v3908
    %v3919 = vrcp.pop %v3911
    %v3920 = vrcp.pop %v3914
    %v3921 = vrcp.pop %v3917
    %v3922 = vmul.f32 %v3899, %v3918
    %v3923 = vmul.f32 %v3901, %v3919
    %v3924 = vmul.f32 %v3903, %v3920
    %v3925 = vmul.f32 %v3905, %v3921
    %v3927 = vsel %vm319, %v3922, 0
    %v3930 = vsel %vm319, %v3923, 0
    %3932 = vmatpush.msra.mxu0 0.0
    %3933 = vmatpush.msra.mxu0 0.0
    %3934 = vmatpush.msra.mxu0 0.0
    %3935 = vmatpush.msra.mxu0 0.0
    %3936 = vmatpush.msra.mxu0 0.0
    %3937 = vmatpush.msra.mxu0 0.0
    %3938 = vmatpush.msra.mxu0 0.0
    %3939 = vmatpush.msra.mxu0 0.0
    %3940 = vmatpush.msra.mxu0 0.0
    %3941 = vmatpush.msra.mxu0 0.0
    %3942 = vmatpush.msra.mxu0 0.0
    %3943 = vmatpush.msra.mxu0 0.0
    %3944 = vmatpush.msra.mxu0 0.0
    %3945 = vmatpush.msra.mxu0 0.0
    %3946 = vmatpush.msra.mxu0 %v3801
    %3947 = vmatpush.msra.mxu0 %v3799
    %3948 = vmatmul.f32.gmra.mxu0 %v3927
    %v3949 = vpop.f32.mrf.mxu0
    %v3950 = vadd.f32 0.0, %v3949
    %3951 = vmatmul.f32.gmra.mxu0 %v3930
    %v3952 = vpop.f32.mrf.mxu0
    %v3953 = vadd.f32 0.0, %v3952
    %3954 = vdwg.mxu0
    %v3956 = vsel %vm319, %v3924, 0
    %v3959 = vsel %vm319, %v3925, 0
    %3961 = vmatpush.msra.mxu0 0.0
    %3962 = vmatpush.msra.mxu0 0.0
    %3963 = vmatpush.msra.mxu0 0.0
    %3964 = vmatpush.msra.mxu0 0.0
    %3965 = vmatpush.msra.mxu0 0.0
    %3966 = vmatpush.msra.mxu0 0.0
    %3967 = vmatpush.msra.mxu0 0.0
    %3968 = vmatpush.msra.mxu0 0.0
    %3969 = vmatpush.msra.mxu0 0.0
    %3970 = vmatpush.msra.mxu0 0.0
    %3971 = vmatpush.msra.mxu0 0.0
    %3972 = vmatpush.msra.mxu0 0.0
    %3973 = vmatpush.msra.mxu0 0.0
    %3974 = vmatpush.msra.mxu0 0.0
    %3975 = vmatpush.msra.mxu0 %v3806
    %3976 = vmatpush.msra.mxu0 %v3804
    %3977 = vmatmul.f32.gmra.mxu0 %v3956
    %v3978 = vpop.f32.mrf.mxu0
    %v3979 = vadd.f32 0.0, %v3978
    %3980 = vmatmul.f32.gmra.mxu0 %v3959
    %v3981 = vpop.f32.mrf.mxu0
    %v3982 = vadd.f32 0.0, %v3981
    %3983 = vdwg.mxu0
    %v3984 = vpack.c.bf16 %v3953, %v3950
    %v3985 = vpack.c.bf16 %v3982, %v3979
    %s3986 = scalar_lea.vmem %s9, 16
    %v3987 = vld [vmem:[%s3986] sm:$0xf]
    %s3988 = scalar_lea.vmem %s3, 80
    %v3989 = vld [vmem:[%s3988] sm:$0xf]
    %v3990 = vld [vmem:[%s3988 + $0x4] sm:$0xf]
    %v3991 = vld [vmem:[%s3988 + $0x8] sm:$0xf]
    %v3992 = vld [vmem:[%s3988 + $0xc] sm:$0xf]
    %s3993 = scalar_lea.vmem %s6, 5
    %v3994 = vld [vmem:[%s3993] sm:$0x1]
    %v3996 = vperm.slane %v3994, 0
    %v4002 = vunpack.c.l.b16 %v3989
    %v4003 = vunpack.c.l.b16 %v3990
    %v4004 = vunpack.c.l.b16 %v3991
    %v4005 = vunpack.c.l.b16 %v3992
    %v4006 = vpack.c.b16 %v4003, %v4002
    %v4007 = vpack.c.b16 %v4005, %v4004
    %4010 = vmatpush.bf16.msra.mxu0 0
    %4011 = vmatpush.bf16.msra.mxu0 0
    %4012 = vmatpush.bf16.msra.mxu0 0
    %4013 = vmatpush.bf16.msra.mxu0 0
    %4014 = vmatpush.bf16.msra.mxu0 0
    %4015 = vmatpush.bf16.msra.mxu0 0
    %4016 = vmatpush.bf16.msra.mxu0 %v4007
    %4017 = vmatpush.bf16.msra.mxu0 %v4006
    %4018 = vmatmul.bf16.gmra.mxu0 %v3702
    %v4019 = vpop.f32.mrf.mxu0
    %v4020 = vadd.f32 %v3996, %v4019
    %v4021 = vpop.f32.mrf.mxu0
    %v4022 = vadd.f32 %v3996, %v4021
    %4023 = vmatmul.bf16.gmra.mxu0 %v3705
    %v4024 = vpop.f32.mrf.mxu0
    %v4025 = vadd.f32 %v3996, %v4024
    %v4026 = vpop.f32.mrf.mxu0
    %v4027 = vadd.f32 %v3996, %v4026
    %4028 = vdwg.mxu0
    %s4029 = scalar_lea.vmem %s4, 80
    %v4030 = vld [vmem:[%s4029] sm:$0xf]
    %v4031 = vld [vmem:[%s4029 + $0x4] sm:$0xf]
    %v4032 = vld [vmem:[%s4029 + $0x8] sm:$0xf]
    %v4033 = vld [vmem:[%s4029 + $0xc] sm:$0xf]
    %s4034 = scalar_lea.vmem %s7, 5
    %v4035 = vld [vmem:[%s4034] sm:$0x1]
    %v4037 = vperm.slane %v4035, 0
    %v4043 = vunpack.c.l.b16 %v4030
    %v4044 = vunpack.c.l.b16 %v4031
    %v4045 = vunpack.c.l.b16 %v4032
    %v4046 = vunpack.c.l.b16 %v4033
    %v4047 = vpack.c.b16 %v4044, %v4043
    %v4048 = vpack.c.b16 %v4046, %v4045
    %4051 = vmatpush.bf16.msra.mxu0 0
    %4052 = vmatpush.bf16.msra.mxu0 0
    %4053 = vmatpush.bf16.msra.mxu0 0
    %4054 = vmatpush.bf16.msra.mxu0 0
    %4055 = vmatpush.bf16.msra.mxu0 0
    %4056 = vmatpush.bf16.msra.mxu0 0
    %4057 = vmatpush.bf16.msra.mxu0 %v4048
    %4058 = vmatpush.bf16.msra.mxu0 %v4047
    %4059 = vmatmul.bf16.gmra.mxu0 %v3702
    %v4060 = vpop.f32.mrf.mxu0
    %v4061 = vadd.f32 %v4037, %v4060
    %v4062 = vpop.f32.mrf.mxu0
    %v4063 = vadd.f32 %v4037, %v4062
    %4064 = vmatmul.bf16.gmra.mxu0 %v3705
    %v4065 = vpop.f32.mrf.mxu0
    %v4066 = vadd.f32 %v4037, %v4065
    %v4067 = vpop.f32.mrf.mxu0
    %v4068 = vadd.f32 %v4037, %v4067
    %4069 = vdwg.mxu0
    %s4070 = scalar_lea.vmem %s5, 80
    %v4071 = vld [vmem:[%s4070] sm:$0xf]
    %v4072 = vld [vmem:[%s4070 + $0x4] sm:$0xf]
    %v4073 = vld [vmem:[%s4070 + $0x8] sm:$0xf]
    %v4074 = vld [vmem:[%s4070 + $0xc] sm:$0xf]
    %s4075 = scalar_lea.vmem %s8, 5
    %v4076 = vld [vmem:[%s4075] sm:$0x1]
    %v4078 = vperm.slane %v4076, 0
    %v4084 = vunpack.c.l.b16 %v4071
    %v4085 = vunpack.c.l.b16 %v4072
    %v4086 = vunpack.c.l.b16 %v4073
    %v4087 = vunpack.c.l.b16 %v4074
    %v4088 = vpack.c.b16 %v4085, %v4084
    %v4089 = vpack.c.b16 %v4087, %v4086
    %4092 = vmatpush.bf16.msra.mxu0 0
    %4093 = vmatpush.bf16.msra.mxu0 0
    %4094 = vmatpush.bf16.msra.mxu0 0
    %4095 = vmatpush.bf16.msra.mxu0 0
    %4096 = vmatpush.bf16.msra.mxu0 0
    %4097 = vmatpush.bf16.msra.mxu0 0
    %4098 = vmatpush.bf16.msra.mxu0 %v4089
    %4099 = vmatpush.bf16.msra.mxu0 %v4088
    %4100 = vmatmul.bf16.gmra.mxu0 %v3702
    %v4101 = vpop.f32.mrf.mxu0
    %v4102 = vadd.f32 %v4078, %v4101
    %v4103 = vpop.f32.mrf.mxu0
    %v4104 = vadd.f32 %v4078, %v4103
    %4105 = vmatmul.bf16.gmra.mxu0 %v3705
    %v4106 = vpop.f32.mrf.mxu0
    %v4107 = vadd.f32 %v4078, %v4106
    %v4108 = vpop.f32.mrf.mxu0
    %v4109 = vadd.f32 %v4078, %v4108
    %4110 = vdwg.mxu0
    %v4112 = vsel %vm244, %v4020, 0
    %v4115 = vsel %vm244, %v4022, 0
    %v4118 = vsel %vm244, %v4061, 0
    %v4121 = vsel %vm244, %v4063, 0
    %4123 = vmatpush.xpose.msra.mxu0 0.0
    %4124 = vmatpush.xpose.msra.mxu0 0.0
    %4125 = vmatpush.xpose.msra.mxu0 0.0
    %4126 = vmatpush.xpose.msra.mxu0 0.0
    %4127 = vmatpush.xpose.msra.mxu0 0.0
    %4128 = vmatpush.xpose.msra.mxu0 0.0
    %4129 = vmatpush.xpose.msra.mxu0 0.0
    %4130 = vmatpush.xpose.msra.mxu0 0.0
    %4131 = vmatpush.xpose.msra.mxu0 0.0
    %4132 = vmatpush.xpose.msra.mxu0 0.0
    %4133 = vmatpush.xpose.msra.mxu0 0.0
    %4134 = vmatpush.xpose.msra.mxu0 0.0
    %4135 = vmatpush.xpose.msra.mxu0 0.0
    %4136 = vmatpush.xpose.msra.mxu0 0.0
    %4137 = vmatpush.xpose.msra.mxu0 %v4121
    %4138 = vmatpush.xpose.msra.mxu0 %v4118
    %4139 = vmatmul.f32.gmra.mxu0 %v4112
    %v4140 = vpop.f32.mrf.mxu0
    %v4141 = vadd.f32 0.0, %v4140
    %4142 = vmatmul.f32.gmra.mxu0 %v4115
    %v4143 = vpop.f32.mrf.mxu0
    %v4144 = vadd.f32 0.0, %v4143
    %4145 = vdwg.mxu0
    %v4147 = vsel %vm244, %v4025, 0
    %v4150 = vsel %vm244, %v4027, 0
    %v4153 = vsel %vm244, %v4066, 0
    %v4156 = vsel %vm244, %v4068, 0
    %4158 = vmatpush.xpose.msra.mxu0 0.0
    %4159 = vmatpush.xpose.msra.mxu0 0.0
    %4160 = vmatpush.xpose.msra.mxu0 0.0
    %4161 = vmatpush.xpose.msra.mxu0 0.0
    %4162 = vmatpush.xpose.msra.mxu0 0.0
    %4163 = vmatpush.xpose.msra.mxu0 0.0
    %4164 = vmatpush.xpose.msra.mxu0 0.0
    %4165 = vmatpush.xpose.msra.mxu0 0.0
    %4166 = vmatpush.xpose.msra.mxu0 0.0
    %4167 = vmatpush.xpose.msra.mxu0 0.0
    %4168 = vmatpush.xpose.msra.mxu0 0.0
    %4169 = vmatpush.xpose.msra.mxu0 0.0
    %4170 = vmatpush.xpose.msra.mxu0 0.0
    %4171 = vmatpush.xpose.msra.mxu0 0.0
    %4172 = vmatpush.xpose.msra.mxu0 %v4156
    %4173 = vmatpush.xpose.msra.mxu0 %v4153
    %4174 = vmatmul.f32.gmra.mxu0 %v4147
    %v4175 = vpop.f32.mrf.mxu0
    %v4176 = vadd.f32 0.0, %v4175
    %4177 = vmatmul.f32.gmra.mxu0 %v4150
    %v4178 = vpop.f32.mrf.mxu0
    %v4179 = vadd.f32 0.0, %v4178
    %4180 = vdwg.mxu0
    %v4181 = vmul.f32 %v4141, 0.35355338
    %v4182 = vmul.f32 %v4144, 0.35355338
    %v4183 = vmul.f32 %v4176, 0.35355338
    %v4184 = vmul.f32 %v4179, 0.35355338
    %v4185 = vsel %vm319, %v4181, -inf
    %4186 = vmax.xlane.f32.xlu0 %v4185
    %v4187 = vpop.xlane.xlu0 %4186
    %v4188 = vsel %vm319, %v4182, -inf
    %4189 = vmax.xlane.f32.xlu0 %v4188
    %v4190 = vpop.xlane.xlu0 %4189
    %v4191 = vsel %vm319, %v4183, -inf
    %4192 = vmax.xlane.f32.xlu0 %v4191
    %v4193 = vpop.xlane.xlu0 %4192
    %v4194 = vsel %vm319, %v4184, -inf
    %4195 = vmax.xlane.f32.xlu0 %v4194
    %v4196 = vpop.xlane.xlu0 %4195
    %v4197 = vsub.f32 %v4181, %v4187
    %v4198 = vsub.f32 %v4182, %v4190
    %v4199 = vsub.f32 %v4183, %v4193
    %v4200 = vsub.f32 %v4184, %v4196
    %v4201 = vmul.f32 %v4197, 1.442695
    %v4202 = vpow.pop %v4201
    %v4203 = vmul.f32 %v4198, 1.442695
    %v4204 = vpow.pop %v4203
    %v4205 = vmul.f32 %v4199, 1.442695
    %v4206 = vpow.pop %v4205
    %v4207 = vmul.f32 %v4200, 1.442695
    %v4208 = vpow.pop %v4207
    %v4209 = vsel %vm319, %v4202, 0.0
    %4210 = vadd.xlane.f32.xlu0 %v4209
    %v4211 = vpop.xlane.xlu0 %4210
    %v4212 = vsel %vm319, %v4204, 0.0
    %4213 = vadd.xlane.f32.xlu0 %v4212
    %v4214 = vpop.xlane.xlu0 %4213
    %v4215 = vsel %vm319, %v4206, 0.0
    %4216 = vadd.xlane.f32.xlu0 %v4215
    %v4217 = vpop.xlane.xlu0 %4216
    %v4218 = vsel %vm319, %v4208, 0.0
    %4219 = vadd.xlane.f32.xlu0 %v4218
    %v4220 = vpop.xlane.xlu0 %4219
    %v4221 = vrcp.pop %v4211
    %v4222 = vrcp.pop %v4214
    %v4223 = vrcp.pop %v4217
    %v4224 = vrcp.pop %v4220
    %v4225 = vmul.f32 %v4202, %v4221
    %v4226 = vmul.f32 %v4204, %v4222
    %v4227 = vmul.f32 %v4206, %v4223
    %v4228 = vmul.f32 %v4208, %v4224
    %v4230 = vsel %vm319, %v4225, 0
    %v4233 = vsel %vm319, %v4226, 0
    %4235 = vmatpush.msra.mxu0 0.0
    %4236 = vmatpush.msra.mxu0 0.0
    %4237 = vmatpush.msra.mxu0 0.0
    %4238 = vmatpush.msra.mxu0 0.0
    %4239 = vmatpush.msra.mxu0 0.0
    %4240 = vmatpush.msra.mxu0 0.0
    %4241 = vmatpush.msra.mxu0 0.0
    %4242 = vmatpush.msra.mxu0 0.0
    %4243 = vmatpush.msra.mxu0 0.0
    %4244 = vmatpush.msra.mxu0 0.0
    %4245 = vmatpush.msra.mxu0 0.0
    %4246 = vmatpush.msra.mxu0 0.0
    %4247 = vmatpush.msra.mxu0 0.0
    %4248 = vmatpush.msra.mxu0 0.0
    %4249 = vmatpush.msra.mxu0 %v4104
    %4250 = vmatpush.msra.mxu0 %v4102
    %4251 = vmatmul.f32.gmra.mxu0 %v4230
    %v4252 = vpop.f32.mrf.mxu0
    %v4253 = vadd.f32 0.0, %v4252
    %4254 = vmatmul.f32.gmra.mxu0 %v4233
    %v4255 = vpop.f32.mrf.mxu0
    %v4256 = vadd.f32 0.0, %v4255
    %4257 = vdwg.mxu0
    %v4259 = vsel %vm319, %v4227, 0
    %v4262 = vsel %vm319, %v4228, 0
    %4264 = vmatpush.msra.mxu0 0.0
    %4265 = vmatpush.msra.mxu0 0.0
    %4266 = vmatpush.msra.mxu0 0.0
    %4267 = vmatpush.msra.mxu0 0.0
    %4268 = vmatpush.msra.mxu0 0.0
    %4269 = vmatpush.msra.mxu0 0.0
    %4270 = vmatpush.msra.mxu0 0.0
    %4271 = vmatpush.msra.mxu0 0.0
    %4272 = vmatpush.msra.mxu0 0.0
    %4273 = vmatpush.msra.mxu0 0.0
    %4274 = vmatpush.msra.mxu0 0.0
    %4275 = vmatpush.msra.mxu0 0.0
    %4276 = vmatpush.msra.mxu0 0.0
    %4277 = vmatpush.msra.mxu0 0.0
    %4278 = vmatpush.msra.mxu0 %v4109
    %4279 = vmatpush.msra.mxu0 %v4107
    %4280 = vmatmul.f32.gmra.mxu0 %v4259
    %v4281 = vpop.f32.mrf.mxu0
    %v4282 = vadd.f32 0.0, %v4281
    %4283 = vmatmul.f32.gmra.mxu0 %v4262
    %v4284 = vpop.f32.mrf.mxu0
    %v4285 = vadd.f32 0.0, %v4284
    %4286 = vdwg.mxu0
    %v4287 = vpack.c.bf16 %v4256, %v4253
    %v4288 = vpack.c.bf16 %v4285, %v4282
    %s4289 = scalar_lea.vmem %s9, 20
    %v4290 = vld [vmem:[%s4289] sm:$0xf]
    %v4292 = vsel %vm244, %v4287, 0
    %v4295 = vsel %vm244, %v4288, 0
    %v4298 = vsel %vm734, %v4290, 0
    %4300 = vmatpush.bf16.msra.mxu0 0
    %4301 = vmatpush.bf16.msra.mxu0 0
    %4302 = vmatpush.bf16.msra.mxu0 0
    %4303 = vmatpush.bf16.msra.mxu0 0
    %4304 = vmatpush.bf16.msra.mxu0 0
    %4305 = vmatpush.bf16.msra.mxu0 0
    %4306 = vmatpush.bf16.msra.mxu0 0
    %4307 = vmatpush.bf16.msra.mxu0 %v4298
    %4308 = vmatmul.bf16.gmra.mxu0 %v4292
    %v4309 = vpop.f32.mrf.mxu0
    %v4310 = vadd.f32 0.0, %v4309
    %v4311 = vpop.f32.mrf.mxu0
    %v4312 = vadd.f32 0.0, %v4311
    %4313 = vmatmul.bf16.gmra.mxu0 %v4295
    %v4314 = vpop.f32.mrf.mxu0
    %v4315 = vadd.f32 0.0, %v4314
    %v4316 = vpop.f32.mrf.mxu0
    %v4317 = vadd.f32 0.0, %v4316
    %4318 = vdwg.mxu0
    %v4320 = vsel %vm244, %v3984, 0
    %v4323 = vsel %vm244, %v3985, 0
    %v4326 = vsel %vm734, %v3987, 0
    %4328 = vmatpush.bf16.msra.mxu0 0
    %4329 = vmatpush.bf16.msra.mxu0 0
    %4330 = vmatpush.bf16.msra.mxu0 0
    %4331 = vmatpush.bf16.msra.mxu0 0
    %4332 = vmatpush.bf16.msra.mxu0 0
    %4333 = vmatpush.bf16.msra.mxu0 0
    %4334 = vmatpush.bf16.msra.mxu0 0
    %4335 = vmatpush.bf16.msra.mxu0 %v4326
    %4336 = vmatmul.bf16.gmra.mxu0 %v4320
    %v4337 = vpop.f32.mrf.mxu0
    %v4338 = vadd.f32 %v4310, %v4337
    %v4339 = vpop.f32.mrf.mxu0
    %v4340 = vadd.f32 %v4312, %v4339
    %4341 = vmatmul.bf16.gmra.mxu0 %v4323
    %v4342 = vpop.f32.mrf.mxu0
    %v4343 = vadd.f32 %v4315, %v4342
    %v4344 = vpop.f32.mrf.mxu0
    %v4345 = vadd.f32 %v4317, %v4344
    %4346 = vdwg.mxu0
    %s4347 = scalar_lea.vmem %s3, 96
    %v4348 = vld [vmem:[%s4347] sm:$0xf]
    %v4349 = vld [vmem:[%s4347 + $0x4] sm:$0xf]
    %v4350 = vld [vmem:[%s4347 + $0x8] sm:$0xf]
    %v4351 = vld [vmem:[%s4347 + $0xc] sm:$0xf]
    %s4352 = scalar_lea.vmem %s6, 6
    %v4353 = vld [vmem:[%s4352] sm:$0x1]
    %v4355 = vperm.slane %v4353, 0
    %v4361 = vunpack.c.l.b16 %v4348
    %v4362 = vunpack.c.l.b16 %v4349
    %v4363 = vunpack.c.l.b16 %v4350
    %v4364 = vunpack.c.l.b16 %v4351
    %v4365 = vpack.c.b16 %v4362, %v4361
    %v4366 = vpack.c.b16 %v4364, %v4363
    %4369 = vmatpush.bf16.msra.mxu0 0
    %4370 = vmatpush.bf16.msra.mxu0 0
    %4371 = vmatpush.bf16.msra.mxu0 0
    %4372 = vmatpush.bf16.msra.mxu0 0
    %4373 = vmatpush.bf16.msra.mxu0 0
    %4374 = vmatpush.bf16.msra.mxu0 0
    %4375 = vmatpush.bf16.msra.mxu0 %v4366
    %4376 = vmatpush.bf16.msra.mxu0 %v4365
    %4377 = vmatmul.bf16.gmra.mxu0 %v3702
    %v4378 = vpop.f32.mrf.mxu0
    %v4379 = vadd.f32 %v4355, %v4378
    %v4380 = vpop.f32.mrf.mxu0
    %v4381 = vadd.f32 %v4355, %v4380
    %4382 = vmatmul.bf16.gmra.mxu0 %v3705
    %v4383 = vpop.f32.mrf.mxu0
    %v4384 = vadd.f32 %v4355, %v4383
    %v4385 = vpop.f32.mrf.mxu0
    %v4386 = vadd.f32 %v4355, %v4385
    %4387 = vdwg.mxu0
    %s4388 = scalar_lea.vmem %s4, 96
    %v4389 = vld [vmem:[%s4388] sm:$0xf]
    %v4390 = vld [vmem:[%s4388 + $0x4] sm:$0xf]
    %v4391 = vld [vmem:[%s4388 + $0x8] sm:$0xf]
    %v4392 = vld [vmem:[%s4388 + $0xc] sm:$0xf]
    %s4393 = scalar_lea.vmem %s7, 6
    %v4394 = vld [vmem:[%s4393] sm:$0x1]
    %v4396 = vperm.slane %v4394, 0
    %v4402 = vunpack.c.l.b16 %v4389
    %v4403 = vunpack.c.l.b16 %v4390
    %v4404 = vunpack.c.l.b16 %v4391
    %v4405 = vunpack.c.l.b16 %v4392
    %v4406 = vpack.c.b16 %v4403, %v4402
    %v4407 = vpack.c.b16 %v4405, %v4404
    %4410 = vmatpush.bf16.msra.mxu0 0
    %4411 = vmatpush.bf16.msra.mxu0 0
    %4412 = vmatpush.bf16.msra.mxu0 0
    %4413 = vmatpush.bf16.msra.mxu0 0
    %4414 = vmatpush.bf16.msra.mxu0 0
    %4415 = vmatpush.bf16.msra.mxu0 0
    %4416 = vmatpush.bf16.msra.mxu0 %v4407
    %4417 = vmatpush.bf16.msra.mxu0 %v4406
    %4418 = vmatmul.bf16.gmra.mxu0 %v3702
    %v4419 = vpop.f32.mrf.mxu0
    %v4420 = vadd.f32 %v4396, %v4419
    %v4421 = vpop.f32.mrf.mxu0
    %v4422 = vadd.f32 %v4396, %v4421
    %4423 = vmatmul.bf16.gmra.mxu0 %v3705
    %v4424 = vpop.f32.mrf.mxu0
    %v4425 = vadd.f32 %v4396, %v4424
    %v4426 = vpop.f32.mrf.mxu0
    %v4427 = vadd.f32 %v4396, %v4426
    %4428 = vdwg.mxu0
    %s4429 = scalar_lea.vmem %s5, 96
    %v4430 = vld [vmem:[%s4429] sm:$0xf]
    %v4431 = vld [vmem:[%s4429 + $0x4] sm:$0xf]
    %v4432 = vld [vmem:[%s4429 + $0x8] sm:$0xf]
    %v4433 = vld [vmem:[%s4429 + $0xc] sm:$0xf]
    %s4434 = scalar_lea.vmem %s8, 6
    %v4435 = vld [vmem:[%s4434] sm:$0x1]
    %v4437 = vperm.slane %v4435, 0
    %v4443 = vunpack.c.l.b16 %v4430
    %v4444 = vunpack.c.l.b16 %v4431
    %v4445 = vunpack.c.l.b16 %v4432
    %v4446 = vunpack.c.l.b16 %v4433
    %v4447 = vpack.c.b16 %v4444, %v4443
    %v4448 = vpack.c.b16 %v4446, %v4445
    %4451 = vmatpush.bf16.msra.mxu0 0
    %4452 = vmatpush.bf16.msra.mxu0 0
    %4453 = vmatpush.bf16.msra.mxu0 0
    %4454 = vmatpush.bf16.msra.mxu0 0
    %4455 = vmatpush.bf16.msra.mxu0 0
    %4456 = vmatpush.bf16.msra.mxu0 0
    %4457 = vmatpush.bf16.msra.mxu0 %v4448
    %4458 = vmatpush.bf16.msra.mxu0 %v4447
    %4459 = vmatmul.bf16.gmra.mxu0 %v3702
    %v4460 = vpop.f32.mrf.mxu0
    %v4461 = vadd.f32 %v4437, %v4460
    %v4462 = vpop.f32.mrf.mxu0
    %v4463 = vadd.f32 %v4437, %v4462
    %4464 = vmatmul.bf16.gmra.mxu0 %v3705
    %v4465 = vpop.f32.mrf.mxu0
    %v4466 = vadd.f32 %v4437, %v4465
    %v4467 = vpop.f32.mrf.mxu0
    %v4468 = vadd.f32 %v4437, %v4467
    %4469 = vdwg.mxu0
    %v4471 = vsel %vm244, %v4379, 0
    %v4474 = vsel %vm244, %v4381, 0
    %v4477 = vsel %vm244, %v4420, 0
    %v4480 = vsel %vm244, %v4422, 0
    %4482 = vmatpush.xpose.msra.mxu0 0.0
    %4483 = vmatpush.xpose.msra.mxu0 0.0
    %4484 = vmatpush.xpose.msra.mxu0 0.0
    %4485 = vmatpush.xpose.msra.mxu0 0.0
    %4486 = vmatpush.xpose.msra.mxu0 0.0
    %4487 = vmatpush.xpose.msra.mxu0 0.0
    %4488 = vmatpush.xpose.msra.mxu0 0.0
    %4489 = vmatpush.xpose.msra.mxu0 0.0
    %4490 = vmatpush.xpose.msra.mxu0 0.0
    %4491 = vmatpush.xpose.msra.mxu0 0.0
    %4492 = vmatpush.xpose.msra.mxu0 0.0
    %4493 = vmatpush.xpose.msra.mxu0 0.0
    %4494 = vmatpush.xpose.msra.mxu0 0.0
    %4495 = vmatpush.xpose.msra.mxu0 0.0
    %4496 = vmatpush.xpose.msra.mxu0 %v4480
    %4497 = vmatpush.xpose.msra.mxu0 %v4477
    %4498 = vmatmul.f32.gmra.mxu0 %v4471
    %v4499 = vpop.f32.mrf.mxu0
    %v4500 = vadd.f32 0.0, %v4499
    %4501 = vmatmul.f32.gmra.mxu0 %v4474
    %v4502 = vpop.f32.mrf.mxu0
    %v4503 = vadd.f32 0.0, %v4502
    %4504 = vdwg.mxu0
    %v4506 = vsel %vm244, %v4384, 0
    %v4509 = vsel %vm244, %v4386, 0
    %v4512 = vsel %vm244, %v4425, 0
    %v4515 = vsel %vm244, %v4427, 0
    %4517 = vmatpush.xpose.msra.mxu0 0.0
    %4518 = vmatpush.xpose.msra.mxu0 0.0
    %4519 = vmatpush.xpose.msra.mxu0 0.0
    %4520 = vmatpush.xpose.msra.mxu0 0.0
    %4521 = vmatpush.xpose.msra.mxu0 0.0
    %4522 = vmatpush.xpose.msra.mxu0 0.0
    %4523 = vmatpush.xpose.msra.mxu0 0.0
    %4524 = vmatpush.xpose.msra.mxu0 0.0
    %4525 = vmatpush.xpose.msra.mxu0 0.0
    %4526 = vmatpush.xpose.msra.mxu0 0.0
    %4527 = vmatpush.xpose.msra.mxu0 0.0
    %4528 = vmatpush.xpose.msra.mxu0 0.0
    %4529 = vmatpush.xpose.msra.mxu0 0.0
    %4530 = vmatpush.xpose.msra.mxu0 0.0
    %4531 = vmatpush.xpose.msra.mxu0 %v4515
    %4532 = vmatpush.xpose.msra.mxu0 %v4512
    %4533 = vmatmul.f32.gmra.mxu0 %v4506
    %v4534 = vpop.f32.mrf.mxu0
    %v4535 = vadd.f32 0.0, %v4534
    %4536 = vmatmul.f32.gmra.mxu0 %v4509
    %v4537 = vpop.f32.mrf.mxu0
    %v4538 = vadd.f32 0.0, %v4537
    %4539 = vdwg.mxu0
    %v4540 = vmul.f32 %v4500, 0.35355338
    %v4541 = vmul.f32 %v4503, 0.35355338
    %v4542 = vmul.f32 %v4535, 0.35355338
    %v4543 = vmul.f32 %v4538, 0.35355338
    %v4544 = vsel %vm319, %v4540, -inf
    %4545 = vmax.xlane.f32.xlu0 %v4544
    %v4546 = vpop.xlane.xlu0 %4545
    %v4547 = vsel %vm319, %v4541, -inf
    %4548 = vmax.xlane.f32.xlu0 %v4547
    %v4549 = vpop.xlane.xlu0 %4548
    %v4550 = vsel %vm319, %v4542, -inf
    %4551 = vmax.xlane.f32.xlu0 %v4550
    %v4552 = vpop.xlane.xlu0 %4551
    %v4553 = vsel %vm319, %v4543, -inf
    %4554 = vmax.xlane.f32.xlu0 %v4553
    %v4555 = vpop.xlane.xlu0 %4554
    %v4556 = vsub.f32 %v4540, %v4546
    %v4557 = vsub.f32 %v4541, %v4549
    %v4558 = vsub.f32 %v4542, %v4552
    %v4559 = vsub.f32 %v4543, %v4555
    %v4560 = vmul.f32 %v4556, 1.442695
    %v4561 = vpow.pop %v4560
    %v4562 = vmul.f32 %v4557, 1.442695
    %v4563 = vpow.pop %v4562
    %v4564 = vmul.f32 %v4558, 1.442695
    %v4565 = vpow.pop %v4564
    %v4566 = vmul.f32 %v4559, 1.442695
    %v4567 = vpow.pop %v4566
    %v4568 = vsel %vm319, %v4561, 0.0
    %4569 = vadd.xlane.f32.xlu0 %v4568
    %v4570 = vpop.xlane.xlu0 %4569
    %v4571 = vsel %vm319, %v4563, 0.0
    %4572 = vadd.xlane.f32.xlu0 %v4571
    %v4573 = vpop.xlane.xlu0 %4572
    %v4574 = vsel %vm319, %v4565, 0.0
    %4575 = vadd.xlane.f32.xlu0 %v4574
    %v4576 = vpop.xlane.xlu0 %4575
    %v4577 = vsel %vm319, %v4567, 0.0
    %4578 = vadd.xlane.f32.xlu0 %v4577
    %v4579 = vpop.xlane.xlu0 %4578
    %v4580 = vrcp.pop %v4570
    %v4581 = vrcp.pop %v4573
    %v4582 = vrcp.pop %v4576
    %v4583 = vrcp.pop %v4579
    %v4584 = vmul.f32 %v4561, %v4580
    %v4585 = vmul.f32 %v4563, %v4581
    %v4586 = vmul.f32 %v4565, %v4582
    %v4587 = vmul.f32 %v4567, %v4583
    %v4589 = vsel %vm319, %v4584, 0
    %v4592 = vsel %vm319, %v4585, 0
    %4594 = vmatpush.msra.mxu0 0.0
    %4595 = vmatpush.msra.mxu0 0.0
    %4596 = vmatpush.msra.mxu0 0.0
    %4597 = vmatpush.msra.mxu0 0.0
    %4598 = vmatpush.msra.mxu0 0.0
    %4599 = vmatpush.msra.mxu0 0.0
    %4600 = vmatpush.msra.mxu0 0.0
    %4601 = vmatpush.msra.mxu0 0.0
    %4602 = vmatpush.msra.mxu0 0.0
    %4603 = vmatpush.msra.mxu0 0.0
    %4604 = vmatpush.msra.mxu0 0.0
    %4605 = vmatpush.msra.mxu0 0.0
    %4606 = vmatpush.msra.mxu0 0.0
    %4607 = vmatpush.msra.mxu0 0.0
    %4608 = vmatpush.msra.mxu0 %v4463
    %4609 = vmatpush.msra.mxu0 %v4461
    %4610 = vmatmul.f32.gmra.mxu0 %v4589
    %v4611 = vpop.f32.mrf.mxu0
    %v4612 = vadd.f32 0.0, %v4611
    %4613 = vmatmul.f32.gmra.mxu0 %v4592
    %v4614 = vpop.f32.mrf.mxu0
    %v4615 = vadd.f32 0.0, %v4614
    %4616 = vdwg.mxu0
    %v4618 = vsel %vm319, %v4586, 0
    %v4621 = vsel %vm319, %v4587, 0
    %4623 = vmatpush.msra.mxu0 0.0
    %4624 = vmatpush.msra.mxu0 0.0
    %4625 = vmatpush.msra.mxu0 0.0
    %4626 = vmatpush.msra.mxu0 0.0
    %4627 = vmatpush.msra.mxu0 0.0
    %4628 = vmatpush.msra.mxu0 0.0
    %4629 = vmatpush.msra.mxu0 0.0
    %4630 = vmatpush.msra.mxu0 0.0
    %4631 = vmatpush.msra.mxu0 0.0
    %4632 = vmatpush.msra.mxu0 0.0
    %4633 = vmatpush.msra.mxu0 0.0
    %4634 = vmatpush.msra.mxu0 0.0
    %4635 = vmatpush.msra.mxu0 0.0
    %4636 = vmatpush.msra.mxu0 0.0
    %4637 = vmatpush.msra.mxu0 %v4468
    %4638 = vmatpush.msra.mxu0 %v4466
    %4639 = vmatmul.f32.gmra.mxu0 %v4618
    %v4640 = vpop.f32.mrf.mxu0
    %v4641 = vadd.f32 0.0, %v4640
    %4642 = vmatmul.f32.gmra.mxu0 %v4621
    %v4643 = vpop.f32.mrf.mxu0
    %v4644 = vadd.f32 0.0, %v4643
    %4645 = vdwg.mxu0
    %v4646 = vpack.c.bf16 %v4615, %v4612
    %v4647 = vpack.c.bf16 %v4644, %v4641
    %s4648 = scalar_lea.vmem %s9, 24
    %v4649 = vld [vmem:[%s4648] sm:$0xf]
    %v4651 = vsel %vm244, %v4646, 0
    %v4654 = vsel %vm244, %v4647, 0
    %v4657 = vsel %vm734, %v4649, 0
    %4659 = vmatpush.bf16.msra.mxu0 0
    %4660 = vmatpush.bf16.msra.mxu0 0
    %4661 = vmatpush.bf16.msra.mxu0 0
    %4662 = vmatpush.bf16.msra.mxu0 0
    %4663 = vmatpush.bf16.msra.mxu0 0
    %4664 = vmatpush.bf16.msra.mxu0 0
    %4665 = vmatpush.bf16.msra.mxu0 0
    %4666 = vmatpush.bf16.msra.mxu0 %v4657
    %4667 = vmatmul.bf16.gmra.mxu0 %v4651
    %v4668 = vpop.f32.mrf.mxu0
    %v4669 = vadd.f32 0.0, %v4668
    %v4670 = vpop.f32.mrf.mxu0
    %v4671 = vadd.f32 0.0, %v4670
    %4672 = vmatmul.bf16.gmra.mxu0 %v4654
    %v4673 = vpop.f32.mrf.mxu0
    %v4674 = vadd.f32 0.0, %v4673
    %v4675 = vpop.f32.mrf.mxu0
    %v4676 = vadd.f32 0.0, %v4675
    %4677 = vdwg.mxu0
    %v4678 = vadd.f32 %v4338, %v4669
    %v4679 = vadd.f32 %v4340, %v4671
    %v4680 = vadd.f32 %v4343, %v4674
    %v4681 = vadd.f32 %v4345, %v4676
    %s4682 = scalar_lea.vmem %s3, 112
    %v4683 = vld [vmem:[%s4682] sm:$0xf]
    %v4684 = vld [vmem:[%s4682 + $0x4] sm:$0xf]
    %v4685 = vld [vmem:[%s4682 + $0x8] sm:$0xf]
    %v4686 = vld [vmem:[%s4682 + $0xc] sm:$0xf]
    %s4687 = scalar_lea.vmem %s6, 7
    %v4688 = vld [vmem:[%s4687] sm:$0x1]
    %v4690 = vperm.slane %v4688, 0
    %v4696 = vunpack.c.l.b16 %v4683
    %v4697 = vunpack.c.l.b16 %v4684
    %v4698 = vunpack.c.l.b16 %v4685
    %v4699 = vunpack.c.l.b16 %v4686
    %v4700 = vpack.c.b16 %v4697, %v4696
    %v4701 = vpack.c.b16 %v4699, %v4698
    %4704 = vmatpush.bf16.msra.mxu0 0
    %4705 = vmatpush.bf16.msra.mxu0 0
    %4706 = vmatpush.bf16.msra.mxu0 0
    %4707 = vmatpush.bf16.msra.mxu0 0
    %4708 = vmatpush.bf16.msra.mxu0 0
    %4709 = vmatpush.bf16.msra.mxu0 0
    %4710 = vmatpush.bf16.msra.mxu0 %v4701
    %4711 = vmatpush.bf16.msra.mxu0 %v4700
    %4712 = vmatmul.bf16.gmra.mxu0 %v3702
    %v4713 = vpop.f32.mrf.mxu0
    %v4714 = vadd.f32 %v4690, %v4713
    %v4715 = vpop.f32.mrf.mxu0
    %v4716 = vadd.f32 %v4690, %v4715
    %4717 = vmatmul.bf16.gmra.mxu0 %v3705
    %v4718 = vpop.f32.mrf.mxu0
    %v4719 = vadd.f32 %v4690, %v4718
    %v4720 = vpop.f32.mrf.mxu0
    %v4721 = vadd.f32 %v4690, %v4720
    %4722 = vdwg.mxu0
    %s4723 = scalar_lea.vmem %s4, 112
    %v4724 = vld [vmem:[%s4723] sm:$0xf]
    %v4725 = vld [vmem:[%s4723 + $0x4] sm:$0xf]
    %v4726 = vld [vmem:[%s4723 + $0x8] sm:$0xf]
    %v4727 = vld [vmem:[%s4723 + $0xc] sm:$0xf]
    %s4728 = scalar_lea.vmem %s7, 7
    %v4729 = vld [vmem:[%s4728] sm:$0x1]
    %v4731 = vperm.slane %v4729, 0
    %v4737 = vunpack.c.l.b16 %v4724
    %v4738 = vunpack.c.l.b16 %v4725
    %v4739 = vunpack.c.l.b16 %v4726
    %v4740 = vunpack.c.l.b16 %v4727
    %v4741 = vpack.c.b16 %v4738, %v4737
    %v4742 = vpack.c.b16 %v4740, %v4739
    %4745 = vmatpush.bf16.msra.mxu0 0
    %4746 = vmatpush.bf16.msra.mxu0 0
    %4747 = vmatpush.bf16.msra.mxu0 0
    %4748 = vmatpush.bf16.msra.mxu0 0
    %4749 = vmatpush.bf16.msra.mxu0 0
    %4750 = vmatpush.bf16.msra.mxu0 0
    %4751 = vmatpush.bf16.msra.mxu0 %v4742
    %4752 = vmatpush.bf16.msra.mxu0 %v4741
    %4753 = vmatmul.bf16.gmra.mxu0 %v3702
    %v4754 = vpop.f32.mrf.mxu0
    %v4755 = vadd.f32 %v4731, %v4754
    %v4756 = vpop.f32.mrf.mxu0
    %v4757 = vadd.f32 %v4731, %v4756
    %4758 = vmatmul.bf16.gmra.mxu0 %v3705
    %v4759 = vpop.f32.mrf.mxu0
    %v4760 = vadd.f32 %v4731, %v4759
    %v4761 = vpop.f32.mrf.mxu0
    %v4762 = vadd.f32 %v4731, %v4761
    %4763 = vdwg.mxu0
    %s4764 = scalar_lea.vmem %s5, 112
    %v4765 = vld [vmem:[%s4764] sm:$0xf]
    %v4766 = vld [vmem:[%s4764 + $0x4] sm:$0xf]
    %v4767 = vld [vmem:[%s4764 + $0x8] sm:$0xf]
    %v4768 = vld [vmem:[%s4764 + $0xc] sm:$0xf]
    %s4769 = scalar_lea.vmem %s8, 7
    %v4770 = vld [vmem:[%s4769] sm:$0x1]
    %v4772 = vperm.slane %v4770, 0
    %v4778 = vunpack.c.l.b16 %v4765
    %v4779 = vunpack.c.l.b16 %v4766
    %v4780 = vunpack.c.l.b16 %v4767
    %v4781 = vunpack.c.l.b16 %v4768
    %v4782 = vpack.c.b16 %v4779, %v4778
    %v4783 = vpack.c.b16 %v4781, %v4780
    %4786 = vmatpush.bf16.msra.mxu0 0
    %4787 = vmatpush.bf16.msra.mxu0 0
    %4788 = vmatpush.bf16.msra.mxu0 0
    %4789 = vmatpush.bf16.msra.mxu0 0
    %4790 = vmatpush.bf16.msra.mxu0 0
    %4791 = vmatpush.bf16.msra.mxu0 0
    %4792 = vmatpush.bf16.msra.mxu0 %v4783
    %4793 = vmatpush.bf16.msra.mxu0 %v4782
    %4794 = vmatmul.bf16.gmra.mxu0 %v3702
    %v4795 = vpop.f32.mrf.mxu0
    %v4796 = vadd.f32 %v4772, %v4795
    %v4797 = vpop.f32.mrf.mxu0
    %v4798 = vadd.f32 %v4772, %v4797
    %4799 = vmatmul.bf16.gmra.mxu0 %v3705
    %v4800 = vpop.f32.mrf.mxu0
    %v4801 = vadd.f32 %v4772, %v4800
    %v4802 = vpop.f32.mrf.mxu0
    %v4803 = vadd.f32 %v4772, %v4802
    %4804 = vdwg.mxu0
    %v4806 = vsel %vm244, %v4714, 0
    %v4809 = vsel %vm244, %v4716, 0
    %v4812 = vsel %vm244, %v4755, 0
    %v4815 = vsel %vm244, %v4757, 0
    %4817 = vmatpush.xpose.msra.mxu0 0.0
    %4818 = vmatpush.xpose.msra.mxu0 0.0
    %4819 = vmatpush.xpose.msra.mxu0 0.0
    %4820 = vmatpush.xpose.msra.mxu0 0.0
    %4821 = vmatpush.xpose.msra.mxu0 0.0
    %4822 = vmatpush.xpose.msra.mxu0 0.0
    %4823 = vmatpush.xpose.msra.mxu0 0.0
    %4824 = vmatpush.xpose.msra.mxu0 0.0
    %4825 = vmatpush.xpose.msra.mxu0 0.0
    %4826 = vmatpush.xpose.msra.mxu0 0.0
    %4827 = vmatpush.xpose.msra.mxu0 0.0
    %4828 = vmatpush.xpose.msra.mxu0 0.0
    %4829 = vmatpush.xpose.msra.mxu0 0.0
    %4830 = vmatpush.xpose.msra.mxu0 0.0
    %4831 = vmatpush.xpose.msra.mxu0 %v4815
    %4832 = vmatpush.xpose.msra.mxu0 %v4812
    %4833 = vmatmul.f32.gmra.mxu0 %v4806
    %v4834 = vpop.f32.mrf.mxu0
    %v4835 = vadd.f32 0.0, %v4834
    %4836 = vmatmul.f32.gmra.mxu0 %v4809
    %v4837 = vpop.f32.mrf.mxu0
    %v4838 = vadd.f32 0.0, %v4837
    %4839 = vdwg.mxu0
    %v4841 = vsel %vm244, %v4719, 0
    %v4844 = vsel %vm244, %v4721, 0
    %v4847 = vsel %vm244, %v4760, 0
    %v4850 = vsel %vm244, %v4762, 0
    %4852 = vmatpush.xpose.msra.mxu0 0.0
    %4853 = vmatpush.xpose.msra.mxu0 0.0
    %4854 = vmatpush.xpose.msra.mxu0 0.0
    %4855 = vmatpush.xpose.msra.mxu0 0.0
    %4856 = vmatpush.xpose.msra.mxu0 0.0
    %4857 = vmatpush.xpose.msra.mxu0 0.0
    %4858 = vmatpush.xpose.msra.mxu0 0.0
    %4859 = vmatpush.xpose.msra.mxu0 0.0
    %4860 = vmatpush.xpose.msra.mxu0 0.0
    %4861 = vmatpush.xpose.msra.mxu0 0.0
    %4862 = vmatpush.xpose.msra.mxu0 0.0
    %4863 = vmatpush.xpose.msra.mxu0 0.0
    %4864 = vmatpush.xpose.msra.mxu0 0.0
    %4865 = vmatpush.xpose.msra.mxu0 0.0
    %4866 = vmatpush.xpose.msra.mxu0 %v4850
    %4867 = vmatpush.xpose.msra.mxu0 %v4847
    %4868 = vmatmul.f32.gmra.mxu0 %v4841
    %v4869 = vpop.f32.mrf.mxu0
    %v4870 = vadd.f32 0.0, %v4869
    %4871 = vmatmul.f32.gmra.mxu0 %v4844
    %v4872 = vpop.f32.mrf.mxu0
    %v4873 = vadd.f32 0.0, %v4872
    %4874 = vdwg.mxu0
    %v4875 = vmul.f32 %v4835, 0.35355338
    %v4876 = vmul.f32 %v4838, 0.35355338
    %v4877 = vmul.f32 %v4870, 0.35355338
    %v4878 = vmul.f32 %v4873, 0.35355338
    %v4879 = vsel %vm319, %v4875, -inf
    %4880 = vmax.xlane.f32.xlu0 %v4879
    %v4881 = vpop.xlane.xlu0 %4880
    %v4882 = vsel %vm319, %v4876, -inf
    %4883 = vmax.xlane.f32.xlu0 %v4882
    %v4884 = vpop.xlane.xlu0 %4883
    %v4885 = vsel %vm319, %v4877, -inf
    %4886 = vmax.xlane.f32.xlu0 %v4885
    %v4887 = vpop.xlane.xlu0 %4886
    %v4888 = vsel %vm319, %v4878, -inf
    %4889 = vmax.xlane.f32.xlu0 %v4888
    %v4890 = vpop.xlane.xlu0 %4889
    %v4891 = vsub.f32 %v4875, %v4881
    %v4892 = vsub.f32 %v4876, %v4884
    %v4893 = vsub.f32 %v4877, %v4887
    %v4894 = vsub.f32 %v4878, %v4890
    %v4895 = vmul.f32 %v4891, 1.442695
    %v4896 = vpow.pop %v4895
    %v4897 = vmul.f32 %v4892, 1.442695
    %v4898 = vpow.pop %v4897
    %v4899 = vmul.f32 %v4893, 1.442695
    %v4900 = vpow.pop %v4899
    %v4901 = vmul.f32 %v4894, 1.442695
    %v4902 = vpow.pop %v4901
    %v4903 = vsel %vm319, %v4896, 0.0
    %4904 = vadd.xlane.f32.xlu0 %v4903
    %v4905 = vpop.xlane.xlu0 %4904
    %v4906 = vsel %vm319, %v4898, 0.0
    %4907 = vadd.xlane.f32.xlu0 %v4906
    %v4908 = vpop.xlane.xlu0 %4907
    %v4909 = vsel %vm319, %v4900, 0.0
    %4910 = vadd.xlane.f32.xlu0 %v4909
    %v4911 = vpop.xlane.xlu0 %4910
    %v4912 = vsel %vm319, %v4902, 0.0
    %4913 = vadd.xlane.f32.xlu0 %v4912
    %v4914 = vpop.xlane.xlu0 %4913
    %v4915 = vrcp.pop %v4905
    %v4916 = vrcp.pop %v4908
    %v4917 = vrcp.pop %v4911
    %v4918 = vrcp.pop %v4914
    %v4919 = vmul.f32 %v4896, %v4915
    %v4920 = vmul.f32 %v4898, %v4916
    %v4921 = vmul.f32 %v4900, %v4917
    %v4922 = vmul.f32 %v4902, %v4918
    %v4924 = vsel %vm319, %v4919, 0
    %v4927 = vsel %vm319, %v4920, 0
    %4929 = vmatpush.msra.mxu0 0.0
    %4930 = vmatpush.msra.mxu0 0.0
    %4931 = vmatpush.msra.mxu0 0.0
    %4932 = vmatpush.msra.mxu0 0.0
    %4933 = vmatpush.msra.mxu0 0.0
    %4934 = vmatpush.msra.mxu0 0.0
    %4935 = vmatpush.msra.mxu0 0.0
    %4936 = vmatpush.msra.mxu0 0.0
    %4937 = vmatpush.msra.mxu0 0.0
    %4938 = vmatpush.msra.mxu0 0.0
    %4939 = vmatpush.msra.mxu0 0.0
    %4940 = vmatpush.msra.mxu0 0.0
    %4941 = vmatpush.msra.mxu0 0.0
    %4942 = vmatpush.msra.mxu0 0.0
    %4943 = vmatpush.msra.mxu0 %v4798
    %4944 = vmatpush.msra.mxu0 %v4796
    %4945 = vmatmul.f32.gmra.mxu0 %v4924
    %v4946 = vpop.f32.mrf.mxu0
    %v4947 = vadd.f32 0.0, %v4946
    %4948 = vmatmul.f32.gmra.mxu0 %v4927
    %v4949 = vpop.f32.mrf.mxu0
    %v4950 = vadd.f32 0.0, %v4949
    %4951 = vdwg.mxu0
    %v4953 = vsel %vm319, %v4921, 0
    %v4956 = vsel %vm319, %v4922, 0
    %4958 = vmatpush.msra.mxu0 0.0
    %4959 = vmatpush.msra.mxu0 0.0
    %4960 = vmatpush.msra.mxu0 0.0
    %4961 = vmatpush.msra.mxu0 0.0
    %4962 = vmatpush.msra.mxu0 0.0
    %4963 = vmatpush.msra.mxu0 0.0
    %4964 = vmatpush.msra.mxu0 0.0
    %4965 = vmatpush.msra.mxu0 0.0
    %4966 = vmatpush.msra.mxu0 0.0
    %4967 = vmatpush.msra.mxu0 0.0
    %4968 = vmatpush.msra.mxu0 0.0
    %4969 = vmatpush.msra.mxu0 0.0
    %4970 = vmatpush.msra.mxu0 0.0
    %4971 = vmatpush.msra.mxu0 0.0
    %4972 = vmatpush.msra.mxu0 %v4803
    %4973 = vmatpush.msra.mxu0 %v4801
    %4974 = vmatmul.f32.gmra.mxu0 %v4953
    %v4975 = vpop.f32.mrf.mxu0
    %v4976 = vadd.f32 0.0, %v4975
    %4977 = vmatmul.f32.gmra.mxu0 %v4956
    %v4978 = vpop.f32.mrf.mxu0
    %v4979 = vadd.f32 0.0, %v4978
    %4980 = vdwg.mxu0
    %v4981 = vpack.c.bf16 %v4950, %v4947
    %v4982 = vpack.c.bf16 %v4979, %v4976
    %s4983 = scalar_lea.vmem %s9, 28
    %v4984 = vld [vmem:[%s4983] sm:$0xf]
    %v4986 = vsel %vm244, %v4981, 0
    %v4989 = vsel %vm244, %v4982, 0
    %v4992 = vsel %vm734, %v4984, 0
    %4994 = vmatpush.bf16.msra.mxu0 0
    %4995 = vmatpush.bf16.msra.mxu0 0
    %4996 = vmatpush.bf16.msra.mxu0 0
    %4997 = vmatpush.bf16.msra.mxu0 0
    %4998 = vmatpush.bf16.msra.mxu0 0
    %4999 = vmatpush.bf16.msra.mxu0 0
    %5000 = vmatpush.bf16.msra.mxu0 0
    %5001 = vmatpush.bf16.msra.mxu0 %v4992
    %5002 = vmatmul.bf16.gmra.mxu0 %v4986
    %v5003 = vpop.f32.mrf.mxu0
    %v5004 = vadd.f32 0.0, %v5003
    %v5005 = vpop.f32.mrf.mxu0
    %v5006 = vadd.f32 0.0, %v5005
    %5007 = vmatmul.bf16.gmra.mxu0 %v4989
    %v5008 = vpop.f32.mrf.mxu0
    %v5009 = vadd.f32 0.0, %v5008
    %v5010 = vpop.f32.mrf.mxu0
    %v5011 = vadd.f32 0.0, %v5010
    %5012 = vdwg.mxu0
    %v5013 = vadd.f32 %v4678, %v5004
    %v5014 = vadd.f32 %v4679, %v5006
    %v5015 = vadd.f32 %v4680, %v5009
    %v5016 = vadd.f32 %v4681, %v5011
    %v5017 = vadd.f32 %v3658, %v5013
    %v5018 = vadd.f32 %v3659, %v5014
    %v5019 = vadd.f32 %v3660, %v5015
    %v5020 = vadd.f32 %v3661, %v5016
    %v5022 = vperm.slane %v3671, 0
    %v5024 = vadd.f32 %v5017, %v5022
    %v5025 = vadd.f32 %v5018, %v5022
    %v5026 = vadd.f32 %v5019, %v5022
    %v5027 = vadd.f32 %v5020, %v5022
    %v5028 = vsel %vm140, %v5024, 0.0
    %5029 = vadd.xlane.f32.xlu0 %v5028
    %v5030 = vpop.xlane.xlu0 %5029
    %v5031 = vsel %vm140, %v5025, 0.0
    %5032 = vadd.xlane.f32.xlu0 %v5031
    %v5033 = vpop.xlane.xlu0 %5032
    %v5034 = vsel %vm140, %v5026, 0.0
    %5035 = vadd.xlane.f32.xlu0 %v5034
    %v5036 = vpop.xlane.xlu0 %5035
    %v5037 = vsel %vm140, %v5027, 0.0
    %5038 = vadd.xlane.f32.xlu0 %v5037
    %v5039 = vpop.xlane.xlu0 %5038
    %v5040 = vmul.f32 %v5030, %v1484
    %v5041 = vmul.f32 %v5033, %v1484
    %v5042 = vmul.f32 %v5036, %v1484
    %v5043 = vmul.f32 %v5039, %v1484
    %v5044 = vmul.f32 %v5024, %v5024
    %v5045 = vmul.f32 %v5025, %v5025
    %v5046 = vmul.f32 %v5026, %v5026
    %v5047 = vmul.f32 %v5027, %v5027
    %v5048 = vsel %vm140, %v5044, 0.0
    %5049 = vadd.xlane.f32.xlu0 %v5048
    %v5050 = vpop.xlane.xlu0 %5049
    %v5051 = vsel %vm140, %v5045, 0.0
    %5052 = vadd.xlane.f32.xlu0 %v5051
    %v5053 = vpop.xlane.xlu0 %5052
    %v5054 = vsel %vm140, %v5046, 0.0
    %5055 = vadd.xlane.f32.xlu0 %v5054
    %v5056 = vpop.xlane.xlu0 %5055
    %v5057 = vsel %vm140, %v5047, 0.0
    %5058 = vadd.xlane.f32.xlu0 %v5057
    %v5059 = vpop.xlane.xlu0 %5058
    %v5060 = vmul.f32 %v5050, %v1484
    %v5061 = vmul.f32 %v5053, %v1484
    %v5062 = vmul.f32 %v5056, %v1484
    %v5063 = vmul.f32 %v5059, %v1484
    %v5064 = vmul.f32 %v5040, %v5040
    %v5065 = vmul.f32 %v5041, %v5041
    %v5066 = vmul.f32 %v5042, %v5042
    %v5067 = vmul.f32 %v5043, %v5043
    %v5068 = vsub.f32 %v5060, %v5064
    %v5069 = vsub.f32 %v5061, %v5065
    %v5070 = vsub.f32 %v5062, %v5066
    %v5071 = vsub.f32 %v5063, %v5067
    %v5072 = vadd.f32 %v5068, 1e-05
    %v5073 = vadd.f32 %v5069, 1e-05
    %v5074 = vadd.f32 %v5070, 1e-05
    %v5075 = vadd.f32 %v5071, 1e-05
    %v5076 = vrsqrt.pop %v5072
    %v5077 = vmul.f32 %v5076, %v5072
    %v5078 = vmul.f32 %v5077, %v5076
    %v5079 = vmul.f32 0.5, %v5078
    %v5080 = vsub.f32 1.5, %v5079
    %v5081 = vmul.f32 %v5076, %v5080
    %vm5082 = vweird.f32 %v5072
    %vm5083 = vweird.f32 %v5076
    %vm5084 = vmor %vm5082, %vm5083
    %v5085 = vsel %vm5084, %v5076, %v5081
    %v5086 = vrsqrt.pop %v5073
    %v5087 = vmul.f32 %v5086, %v5073
    %v5088 = vmul.f32 %v5087, %v5086
    %v5089 = vmul.f32 0.5, %v5088
    %v5090 = vsub.f32 1.5, %v5089
    %v5091 = vmul.f32 %v5086, %v5090
    %vm5092 = vweird.f32 %v5073
    %vm5093 = vweird.f32 %v5086
    %vm5094 = vmor %vm5092, %vm5093
    %v5095 = vsel %vm5094, %v5086, %v5091
    %v5096 = vrsqrt.pop %v5074
    %v5097 = vmul.f32 %v5096, %v5074
    %v5098 = vmul.f32 %v5097, %v5096
    %v5099 = vmul.f32 0.5, %v5098
    %v5100 = vsub.f32 1.5, %v5099
    %v5101 = vmul.f32 %v5096, %v5100
    %vm5102 = vweird.f32 %v5074
    %vm5103 = vweird.f32 %v5096
    %vm5104 = vmor %vm5102, %vm5103
    %v5105 = vsel %vm5104, %v5096, %v5101
    %v5106 = vrsqrt.pop %v5075
    %v5107 = vmul.f32 %v5106, %v5075
    %v5108 = vmul.f32 %v5107, %v5106
    %v5109 = vmul.f32 0.5, %v5108
    %v5110 = vsub.f32 1.5, %v5109
    %v5111 = vmul.f32 %v5106, %v5110
    %vm5112 = vweird.f32 %v5075
    %vm5113 = vweird.f32 %v5106
    %vm5114 = vmor %vm5112, %vm5113
    %v5115 = vsel %vm5114, %v5106, %v5111
    %v5116 = vsub.f32 %v5024, %v5040
    %v5117 = vsub.f32 %v5025, %v5041
    %v5118 = vsub.f32 %v5026, %v5042
    %v5119 = vsub.f32 %v5027, %v5043
    %v5120 = vmul.f32 %v5116, %v5085
    %v5121 = vmul.f32 %v5117, %v5095
    %v5122 = vmul.f32 %v5118, %v5105
    %v5123 = vmul.f32 %v5119, %v5115
    %v5125 = vperm.slane %v3663, 0
    %v5127 = vmul.f32 %v5120, %v5125
    %v5128 = vmul.f32 %v5121, %v5125
    %v5129 = vmul.f32 %v5122, %v5125
    %v5130 = vmul.f32 %v5123, %v5125
    %v5132 = vperm.slane %v3665, 0
    %v5134 = vadd.f32 %v5127, %v5132
    %v5135 = vadd.f32 %v5128, %v5132
    %v5136 = vadd.f32 %v5129, %v5132
    %v5137 = vadd.f32 %v5130, %v5132
    %v5138 = vpack.c.bf16 %v5135, %v5134
    %v5139 = vpack.c.bf16 %v5137, %v5136
    %s5140 = scalar_lea.vmem %s15, 256
    %v5141 = vld [vmem:[%s5140] sm:$0xff]
    %v5142 = vld [vmem:[%s5140 + $0x8] sm:$0xff]
    %v5143 = vld [vmem:[%s5140 + $0x10] sm:$0xff]
    %v5144 = vld [vmem:[%s5140 + $0x18] sm:$0xff]
    %v5145 = vld [vmem:[%s5140 + $0x20] sm:$0xff]
    %v5146 = vld [vmem:[%s5140 + $0x28] sm:$0xff]
    %v5147 = vld [vmem:[%s5140 + $0x30] sm:$0xff]
    %v5148 = vld [vmem:[%s5140 + $0x38] sm:$0xff]
    %v5149 = vld [vmem:[%s5140 + $0x40] sm:$0xff]
    %v5150 = vld [vmem:[%s5140 + $0x48] sm:$0xff]
    %v5151 = vld [vmem:[%s5140 + $0x50] sm:$0xff]
    %v5152 = vld [vmem:[%s5140 + $0x58] sm:$0xff]
    %v5153 = vld [vmem:[%s5140 + $0x60] sm:$0xff]
    %v5154 = vld [vmem:[%s5140 + $0x68] sm:$0xff]
    %v5155 = vld [vmem:[%s5140 + $0x70] sm:$0xff]
    %v5156 = vld [vmem:[%s5140 + $0x78] sm:$0xff]
    %v5157 = vld [vmem:[%s5140 + $0x80] sm:$0xff]
    %v5158 = vld [vmem:[%s5140 + $0x88] sm:$0xff]
    %v5159 = vld [vmem:[%s5140 + $0x90] sm:$0xff]
    %v5160 = vld [vmem:[%s5140 + $0x98] sm:$0xff]
    %v5161 = vld [vmem:[%s5140 + $0xa0] sm:$0xff]
    %v5162 = vld [vmem:[%s5140 + $0xa8] sm:$0xff]
    %v5163 = vld [vmem:[%s5140 + $0xb0] sm:$0xff]
    %v5164 = vld [vmem:[%s5140 + $0xb8] sm:$0xff]
    %v5165 = vld [vmem:[%s5140 + $0xc0] sm:$0xff]
    %v5166 = vld [vmem:[%s5140 + $0xc8] sm:$0xff]
    %v5167 = vld [vmem:[%s5140 + $0xd0] sm:$0xff]
    %v5168 = vld [vmem:[%s5140 + $0xd8] sm:$0xff]
    %v5169 = vld [vmem:[%s5140 + $0xe0] sm:$0xff]
    %v5170 = vld [vmem:[%s5140 + $0xe8] sm:$0xff]
    %v5171 = vld [vmem:[%s5140 + $0xf0] sm:$0xff]
    %v5172 = vld [vmem:[%s5140 + $0xf8] sm:$0xff]
    %v5175 = vperm.slane %v3673, 0
    %v5176 = vperm.slane %v3673, 1
    %v5177 = vperm.slane %v3673, 2
    %v5178 = vperm.slane %v3673, 3
    %v5179 = vperm.slane %v3673, 4
    %v5180 = vperm.slane %v3673, 5
    %v5181 = vperm.slane %v3673, 6
    %v5182 = vperm.slane %v3673, 7
    %v5183 = vperm.slane %v3674, 0
    %v5184 = vperm.slane %v3674, 1
    %v5185 = vperm.slane %v3674, 2
    %v5186 = vperm.slane %v3674, 3
    %v5187 = vperm.slane %v3674, 4
    %v5188 = vperm.slane %v3674, 5
    %v5189 = vperm.slane %v3674, 6
    %v5190 = vperm.slane %v3674, 7
    %v5239 = vunpack.c.l.b16 %v5141
    %v5240 = vunpack.c.h.b16 %v5141
    %v5241 = vunpack.c.l.b16 %v5142
    %v5242 = vunpack.c.h.b16 %v5142
    %v5243 = vunpack.c.l.b16 %v5143
    %v5244 = vunpack.c.h.b16 %v5143
    %v5245 = vunpack.c.l.b16 %v5144
    %v5246 = vunpack.c.h.b16 %v5144
    %v5247 = vunpack.c.l.b16 %v5145
    %v5248 = vunpack.c.h.b16 %v5145
    %v5249 = vunpack.c.l.b16 %v5146
    %v5250 = vunpack.c.h.b16 %v5146
    %v5251 = vunpack.c.l.b16 %v5147
    %v5252 = vunpack.c.h.b16 %v5147
    %v5253 = vunpack.c.l.b16 %v5148
    %v5254 = vunpack.c.h.b16 %v5148
    %v5255 = vunpack.c.l.b16 %v5149
    %v5256 = vunpack.c.h.b16 %v5149
    %v5257 = vunpack.c.l.b16 %v5150
    %v5258 = vunpack.c.h.b16 %v5150
    %v5259 = vunpack.c.l.b16 %v5151
    %v5260 = vunpack.c.h.b16 %v5151
    %v5261 = vunpack.c.l.b16 %v5152
    %v5262 = vunpack.c.h.b16 %v5152
    %v5263 = vunpack.c.l.b16 %v5153
    %v5264 = vunpack.c.h.b16 %v5153
    %v5265 = vunpack.c.l.b16 %v5154
    %v5266 = vunpack.c.h.b16 %v5154
    %v5267 = vunpack.c.l.b16 %v5155
    %v5268 = vunpack.c.h.b16 %v5155
    %v5269 = vunpack.c.l.b16 %v5156
    %v5270 = vunpack.c.h.b16 %v5156
    %v5271 = vunpack.c.l.b16 %v5157
    %v5272 = vunpack.c.h.b16 %v5157
    %v5273 = vunpack.c.l.b16 %v5158
    %v5274 = vunpack.c.h.b16 %v5158
    %v5275 = vunpack.c.l.b16 %v5159
    %v5276 = vunpack.c.h.b16 %v5159
    %v5277 = vunpack.c.l.b16 %v5160
    %v5278 = vunpack.c.h.b16 %v5160
    %v5279 = vunpack.c.l.b16 %v5161
    %v5280 = vunpack.c.h.b16 %v5161
    %v5281 = vunpack.c.l.b16 %v5162
    %v5282 = vunpack.c.h.b16 %v5162
    %v5283 = vunpack.c.l.b16 %v5163
    %v5284 = vunpack.c.h.b16 %v5163
    %v5285 = vunpack.c.l.b16 %v5164
    %v5286 = vunpack.c.h.b16 %v5164
    %v5287 = vunpack.c.l.b16 %v5165
    %v5288 = vunpack.c.h.b16 %v5165
    %v5289 = vunpack.c.l.b16 %v5166
    %v5290 = vunpack.c.h.b16 %v5166
    %v5291 = vunpack.c.l.b16 %v5167
    %v5292 = vunpack.c.h.b16 %v5167
    %v5293 = vunpack.c.l.b16 %v5168
    %v5294 = vunpack.c.h.b16 %v5168
    %v5295 = vunpack.c.l.b16 %v5169
    %v5296 = vunpack.c.h.b16 %v5169
    %v5297 = vunpack.c.l.b16 %v5170
    %v5298 = vunpack.c.h.b16 %v5170
    %v5299 = vunpack.c.l.b16 %v5171
    %v5300 = vunpack.c.h.b16 %v5171
    %v5301 = vunpack.c.l.b16 %v5172
    %v5302 = vunpack.c.h.b16 %v5172
    %v5303 = vpack.c.b16 %v5255, %v5239
    %v5304 = vpack.c.b16 %v5256, %v5240
    %v5305 = vpack.c.b16 %v5257, %v5241
    %v5306 = vpack.c.b16 %v5258, %v5242
    %v5307 = vpack.c.b16 %v5259, %v5243
    %v5308 = vpack.c.b16 %v5260, %v5244
    %v5309 = vpack.c.b16 %v5261, %v5245
    %v5310 = vpack.c.b16 %v5262, %v5246
    %v5311 = vpack.c.b16 %v5263, %v5247
    %v5312 = vpack.c.b16 %v5264, %v5248
    %v5313 = vpack.c.b16 %v5265, %v5249
    %v5314 = vpack.c.b16 %v5266, %v5250
    %v5315 = vpack.c.b16 %v5267, %v5251
    %v5316 = vpack.c.b16 %v5268, %v5252
    %v5317 = vpack.c.b16 %v5269, %v5253
    %v5318 = vpack.c.b16 %v5270, %v5254
    %v5319 = vpack.c.b16 %v5287, %v5271
    %v5320 = vpack.c.b16 %v5288, %v5272
    %v5321 = vpack.c.b16 %v5289, %v5273
    %v5322 = vpack.c.b16 %v5290, %v5274
    %v5323 = vpack.c.b16 %v5291, %v5275
    %v5324 = vpack.c.b16 %v5292, %v5276
    %v5325 = vpack.c.b16 %v5293, %v5277
    %v5326 = vpack.c.b16 %v5294, %v5278
    %v5327 = vpack.c.b16 %v5295, %v5279
    %v5328 = vpack.c.b16 %v5296, %v5280
    %v5329 = vpack.c.b16 %v5297, %v5281
    %v5330 = vpack.c.b16 %v5298, %v5282
    %v5331 = vpack.c.b16 %v5299, %v5283
    %v5332 = vpack.c.b16 %v5300, %v5284
    %v5333 = vpack.c.b16 %v5301, %v5285
    %v5334 = vpack.c.b16 %v5302, %v5286
    %v5368 = vsel %vm140, %v5138, 0
    %v5371 = vsel %vm140, %v5139, 0
    %5373 = vmatpush.bf16.msra.mxu0 0
    %5374 = vmatpush.bf16.msra.mxu0 0
    %5375 = vmatpush.bf16.msra.mxu0 0
    %5376 = vmatpush.bf16.msra.mxu0 0
    %5377 = vmatpush.bf16.msra.mxu0 0
    %5378 = vmatpush.bf16.msra.mxu0 0
    %5379 = vmatpush.bf16.msra.mxu0 %v5319
    %5380 = vmatpush.bf16.msra.mxu0 %v5303
    %5381 = vmatmul.bf16.gmra.mxu0 %v5368
    %v5382 = vpop.f32.mrf.mxu0
    %v5383 = vadd.f32 %v5175, %v5382
    %v5384 = vpop.f32.mrf.mxu0
    %v5385 = vadd.f32 %v5175, %v5384
    %5386 = vmatmul.bf16.gmra.mxu0 %v5371
    %v5387 = vpop.f32.mrf.mxu0
    %v5388 = vadd.f32 %v5175, %v5387
    %v5389 = vpop.f32.mrf.mxu0
    %v5390 = vadd.f32 %v5175, %v5389
    %5391 = vdwg.mxu0
    %5392 = vmatpush.bf16.msra.mxu0 0
    %5393 = vmatpush.bf16.msra.mxu0 0
    %5394 = vmatpush.bf16.msra.mxu0 0
    %5395 = vmatpush.bf16.msra.mxu0 0
    %5396 = vmatpush.bf16.msra.mxu0 0
    %5397 = vmatpush.bf16.msra.mxu0 0
    %5398 = vmatpush.bf16.msra.mxu0 %v5320
    %5399 = vmatpush.bf16.msra.mxu0 %v5304
    %5400 = vmatmul.bf16.gmra.mxu0 %v5368
    %v5401 = vpop.f32.mrf.mxu0
    %v5402 = vadd.f32 %v5176, %v5401
    %v5403 = vpop.f32.mrf.mxu0
    %v5404 = vadd.f32 %v5176, %v5403
    %5405 = vmatmul.bf16.gmra.mxu0 %v5371
    %v5406 = vpop.f32.mrf.mxu0
    %v5407 = vadd.f32 %v5176, %v5406
    %v5408 = vpop.f32.mrf.mxu0
    %v5409 = vadd.f32 %v5176, %v5408
    %5410 = vdwg.mxu0
    %5411 = vmatpush.bf16.msra.mxu0 0
    %5412 = vmatpush.bf16.msra.mxu0 0
    %5413 = vmatpush.bf16.msra.mxu0 0
    %5414 = vmatpush.bf16.msra.mxu0 0
    %5415 = vmatpush.bf16.msra.mxu0 0
    %5416 = vmatpush.bf16.msra.mxu0 0
    %5417 = vmatpush.bf16.msra.mxu0 %v5321
    %5418 = vmatpush.bf16.msra.mxu0 %v5305
    %5419 = vmatmul.bf16.gmra.mxu0 %v5368
    %v5420 = vpop.f32.mrf.mxu0
    %v5421 = vadd.f32 %v5177, %v5420
    %v5422 = vpop.f32.mrf.mxu0
    %v5423 = vadd.f32 %v5177, %v5422
    %5424 = vmatmul.bf16.gmra.mxu0 %v5371
    %v5425 = vpop.f32.mrf.mxu0
    %v5426 = vadd.f32 %v5177, %v5425
    %v5427 = vpop.f32.mrf.mxu0
    %v5428 = vadd.f32 %v5177, %v5427
    %5429 = vdwg.mxu0
    %5430 = vmatpush.bf16.msra.mxu0 0
    %5431 = vmatpush.bf16.msra.mxu0 0
    %5432 = vmatpush.bf16.msra.mxu0 0
    %5433 = vmatpush.bf16.msra.mxu0 0
    %5434 = vmatpush.bf16.msra.mxu0 0
    %5435 = vmatpush.bf16.msra.mxu0 0
    %5436 = vmatpush.bf16.msra.mxu0 %v5322
    %5437 = vmatpush.bf16.msra.mxu0 %v5306
    %5438 = vmatmul.bf16.gmra.mxu0 %v5368
    %v5439 = vpop.f32.mrf.mxu0
    %v5440 = vadd.f32 %v5178, %v5439
    %v5441 = vpop.f32.mrf.mxu0
    %v5442 = vadd.f32 %v5178, %v5441
    %5443 = vmatmul.bf16.gmra.mxu0 %v5371
    %v5444 = vpop.f32.mrf.mxu0
    %v5445 = vadd.f32 %v5178, %v5444
    %v5446 = vpop.f32.mrf.mxu0
    %v5447 = vadd.f32 %v5178, %v5446
    %5448 = vdwg.mxu0
    %5449 = vmatpush.bf16.msra.mxu0 0
    %5450 = vmatpush.bf16.msra.mxu0 0
    %5451 = vmatpush.bf16.msra.mxu0 0
    %5452 = vmatpush.bf16.msra.mxu0 0
    %5453 = vmatpush.bf16.msra.mxu0 0
    %5454 = vmatpush.bf16.msra.mxu0 0
    %5455 = vmatpush.bf16.msra.mxu0 %v5323
    %5456 = vmatpush.bf16.msra.mxu0 %v5307
    %5457 = vmatmul.bf16.gmra.mxu0 %v5368
    %v5458 = vpop.f32.mrf.mxu0
    %v5459 = vadd.f32 %v5179, %v5458
    %v5460 = vpop.f32.mrf.mxu0
    %v5461 = vadd.f32 %v5179, %v5460
    %5462 = vmatmul.bf16.gmra.mxu0 %v5371
    %v5463 = vpop.f32.mrf.mxu0
    %v5464 = vadd.f32 %v5179, %v5463
    %v5465 = vpop.f32.mrf.mxu0
    %v5466 = vadd.f32 %v5179, %v5465
    %5467 = vdwg.mxu0
    %5468 = vmatpush.bf16.msra.mxu0 0
    %5469 = vmatpush.bf16.msra.mxu0 0
    %5470 = vmatpush.bf16.msra.mxu0 0
    %5471 = vmatpush.bf16.msra.mxu0 0
    %5472 = vmatpush.bf16.msra.mxu0 0
    %5473 = vmatpush.bf16.msra.mxu0 0
    %5474 = vmatpush.bf16.msra.mxu0 %v5324
    %5475 = vmatpush.bf16.msra.mxu0 %v5308
    %5476 = vmatmul.bf16.gmra.mxu0 %v5368
    %v5477 = vpop.f32.mrf.mxu0
    %v5478 = vadd.f32 %v5180, %v5477
    %v5479 = vpop.f32.mrf.mxu0
    %v5480 = vadd.f32 %v5180, %v5479
    %5481 = vmatmul.bf16.gmra.mxu0 %v5371
    %v5482 = vpop.f32.mrf.mxu0
    %v5483 = vadd.f32 %v5180, %v5482
    %v5484 = vpop.f32.mrf.mxu0
    %v5485 = vadd.f32 %v5180, %v5484
    %5486 = vdwg.mxu0
    %5487 = vmatpush.bf16.msra.mxu0 0
    %5488 = vmatpush.bf16.msra.mxu0 0
    %5489 = vmatpush.bf16.msra.mxu0 0
    %5490 = vmatpush.bf16.msra.mxu0 0
    %5491 = vmatpush.bf16.msra.mxu0 0
    %5492 = vmatpush.bf16.msra.mxu0 0
    %5493 = vmatpush.bf16.msra.mxu0 %v5325
    %5494 = vmatpush.bf16.msra.mxu0 %v5309
    %5495 = vmatmul.bf16.gmra.mxu0 %v5368
    %v5496 = vpop.f32.mrf.mxu0
    %v5497 = vadd.f32 %v5181, %v5496
    %v5498 = vpop.f32.mrf.mxu0
    %v5499 = vadd.f32 %v5181, %v5498
    %5500 = vmatmul.bf16.gmra.mxu0 %v5371
    %v5501 = vpop.f32.mrf.mxu0
    %v5502 = vadd.f32 %v5181, %v5501
    %v5503 = vpop.f32.mrf.mxu0
    %v5504 = vadd.f32 %v5181, %v5503
    %5505 = vdwg.mxu0
    %5506 = vmatpush.bf16.msra.mxu0 0
    %5507 = vmatpush.bf16.msra.mxu0 0
    %5508 = vmatpush.bf16.msra.mxu0 0
    %5509 = vmatpush.bf16.msra.mxu0 0
    %5510 = vmatpush.bf16.msra.mxu0 0
    %5511 = vmatpush.bf16.msra.mxu0 0
    %5512 = vmatpush.bf16.msra.mxu0 %v5326
    %5513 = vmatpush.bf16.msra.mxu0 %v5310
    %5514 = vmatmul.bf16.gmra.mxu0 %v5368
    %v5515 = vpop.f32.mrf.mxu0
    %v5516 = vadd.f32 %v5182, %v5515
    %v5517 = vpop.f32.mrf.mxu0
    %v5518 = vadd.f32 %v5182, %v5517
    %5519 = vmatmul.bf16.gmra.mxu0 %v5371
    %v5520 = vpop.f32.mrf.mxu0
    %v5521 = vadd.f32 %v5182, %v5520
    %v5522 = vpop.f32.mrf.mxu0
    %v5523 = vadd.f32 %v5182, %v5522
    %5524 = vdwg.mxu0
    %5525 = vmatpush.bf16.msra.mxu0 0
    %5526 = vmatpush.bf16.msra.mxu0 0
    %5527 = vmatpush.bf16.msra.mxu0 0
    %5528 = vmatpush.bf16.msra.mxu0 0
    %5529 = vmatpush.bf16.msra.mxu0 0
    %5530 = vmatpush.bf16.msra.mxu0 0
    %5531 = vmatpush.bf16.msra.mxu0 %v5327
    %5532 = vmatpush.bf16.msra.mxu0 %v5311
    %5533 = vmatmul.bf16.gmra.mxu0 %v5368
    %v5534 = vpop.f32.mrf.mxu0
    %v5535 = vadd.f32 %v5183, %v5534
    %v5536 = vpop.f32.mrf.mxu0
    %v5537 = vadd.f32 %v5183, %v5536
    %5538 = vmatmul.bf16.gmra.mxu0 %v5371
    %v5539 = vpop.f32.mrf.mxu0
    %v5540 = vadd.f32 %v5183, %v5539
    %v5541 = vpop.f32.mrf.mxu0
    %v5542 = vadd.f32 %v5183, %v5541
    %5543 = vdwg.mxu0
    %5544 = vmatpush.bf16.msra.mxu0 0
    %5545 = vmatpush.bf16.msra.mxu0 0
    %5546 = vmatpush.bf16.msra.mxu0 0
    %5547 = vmatpush.bf16.msra.mxu0 0
    %5548 = vmatpush.bf16.msra.mxu0 0
    %5549 = vmatpush.bf16.msra.mxu0 0
    %5550 = vmatpush.bf16.msra.mxu0 %v5328
    %5551 = vmatpush.bf16.msra.mxu0 %v5312
    %5552 = vmatmul.bf16.gmra.mxu0 %v5368
    %v5553 = vpop.f32.mrf.mxu0
    %v5554 = vadd.f32 %v5184, %v5553
    %v5555 = vpop.f32.mrf.mxu0
    %v5556 = vadd.f32 %v5184, %v5555
    %5557 = vmatmul.bf16.gmra.mxu0 %v5371
    %v5558 = vpop.f32.mrf.mxu0
    %v5559 = vadd.f32 %v5184, %v5558
    %v5560 = vpop.f32.mrf.mxu0
    %v5561 = vadd.f32 %v5184, %v5560
    %5562 = vdwg.mxu0
    %5563 = vmatpush.bf16.msra.mxu0 0
    %5564 = vmatpush.bf16.msra.mxu0 0
    %5565 = vmatpush.bf16.msra.mxu0 0
    %5566 = vmatpush.bf16.msra.mxu0 0
    %5567 = vmatpush.bf16.msra.mxu0 0
    %5568 = vmatpush.bf16.msra.mxu0 0
    %5569 = vmatpush.bf16.msra.mxu0 %v5329
    %5570 = vmatpush.bf16.msra.mxu0 %v5313
    %5571 = vmatmul.bf16.gmra.mxu0 %v5368
    %v5572 = vpop.f32.mrf.mxu0
    %v5573 = vadd.f32 %v5185, %v5572
    %v5574 = vpop.f32.mrf.mxu0
    %v5575 = vadd.f32 %v5185, %v5574
    %5576 = vmatmul.bf16.gmra.mxu0 %v5371
    %v5577 = vpop.f32.mrf.mxu0
    %v5578 = vadd.f32 %v5185, %v5577
    %v5579 = vpop.f32.mrf.mxu0
    %v5580 = vadd.f32 %v5185, %v5579
    %5581 = vdwg.mxu0
    %5582 = vmatpush.bf16.msra.mxu0 0
    %5583 = vmatpush.bf16.msra.mxu0 0
    %5584 = vmatpush.bf16.msra.mxu0 0
    %5585 = vmatpush.bf16.msra.mxu0 0
    %5586 = vmatpush.bf16.msra.mxu0 0
    %5587 = vmatpush.bf16.msra.mxu0 0
    %5588 = vmatpush.bf16.msra.mxu0 %v5330
    %5589 = vmatpush.bf16.msra.mxu0 %v5314
    %5590 = vmatmul.bf16.gmra.mxu0 %v5368
    %v5591 = vpop.f32.mrf.mxu0
    %v5592 = vadd.f32 %v5186, %v5591
    %v5593 = vpop.f32.mrf.mxu0
    %v5594 = vadd.f32 %v5186, %v5593
    %5595 = vmatmul.bf16.gmra.mxu0 %v5371
    %v5596 = vpop.f32.mrf.mxu0
    %v5597 = vadd.f32 %v5186, %v5596
    %v5598 = vpop.f32.mrf.mxu0
    %v5599 = vadd.f32 %v5186, %v5598
    %5600 = vdwg.mxu0
    %5601 = vmatpush.bf16.msra.mxu0 0
    %5602 = vmatpush.bf16.msra.mxu0 0
    %5603 = vmatpush.bf16.msra.mxu0 0
    %5604 = vmatpush.bf16.msra.mxu0 0
    %5605 = vmatpush.bf16.msra.mxu0 0
    %5606 = vmatpush.bf16.msra.mxu0 0
    %5607 = vmatpush.bf16.msra.mxu0 %v5331
    %5608 = vmatpush.bf16.msra.mxu0 %v5315
    %5609 = vmatmul.bf16.gmra.mxu0 %v5368
    %v5610 = vpop.f32.mrf.mxu0
    %v5611 = vadd.f32 %v5187, %v5610
    %v5612 = vpop.f32.mrf.mxu0
    %v5613 = vadd.f32 %v5187, %v5612
    %5614 = vmatmul.bf16.gmra.mxu0 %v5371
    %v5615 = vpop.f32.mrf.mxu0
    %v5616 = vadd.f32 %v5187, %v5615
    %v5617 = vpop.f32.mrf.mxu0
    %v5618 = vadd.f32 %v5187, %v5617
    %5619 = vdwg.mxu0
    %5620 = vmatpush.bf16.msra.mxu0 0
    %5621 = vmatpush.bf16.msra.mxu0 0
    %5622 = vmatpush.bf16.msra.mxu0 0
    %5623 = vmatpush.bf16.msra.mxu0 0
    %5624 = vmatpush.bf16.msra.mxu0 0
    %5625 = vmatpush.bf16.msra.mxu0 0
    %5626 = vmatpush.bf16.msra.mxu0 %v5332
    %5627 = vmatpush.bf16.msra.mxu0 %v5316
    %5628 = vmatmul.bf16.gmra.mxu0 %v5368
    %v5629 = vpop.f32.mrf.mxu0
    %v5630 = vadd.f32 %v5188, %v5629
    %v5631 = vpop.f32.mrf.mxu0
    %v5632 = vadd.f32 %v5188, %v5631
    %5633 = vmatmul.bf16.gmra.mxu0 %v5371
    %v5634 = vpop.f32.mrf.mxu0
    %v5635 = vadd.f32 %v5188, %v5634
    %v5636 = vpop.f32.mrf.mxu0
    %v5637 = vadd.f32 %v5188, %v5636
    %5638 = vdwg.mxu0
    %5639 = vmatpush.bf16.msra.mxu0 0
    %5640 = vmatpush.bf16.msra.mxu0 0
    %5641 = vmatpush.bf16.msra.mxu0 0
    %5642 = vmatpush.bf16.msra.mxu0 0
    %5643 = vmatpush.bf16.msra.mxu0 0
    %5644 = vmatpush.bf16.msra.mxu0 0
    %5645 = vmatpush.bf16.msra.mxu0 %v5333
    %5646 = vmatpush.bf16.msra.mxu0 %v5317
    %5647 = vmatmul.bf16.gmra.mxu0 %v5368
    %v5648 = vpop.f32.mrf.mxu0
    %v5649 = vadd.f32 %v5189, %v5648
    %v5650 = vpop.f32.mrf.mxu0
    %v5651 = vadd.f32 %v5189, %v5650
    %5652 = vmatmul.bf16.gmra.mxu0 %v5371
    %v5653 = vpop.f32.mrf.mxu0
    %v5654 = vadd.f32 %v5189, %v5653
    %v5655 = vpop.f32.mrf.mxu0
    %v5656 = vadd.f32 %v5189, %v5655
    %5657 = vdwg.mxu0
    %5658 = vmatpush.bf16.msra.mxu0 0
    %5659 = vmatpush.bf16.msra.mxu0 0
    %5660 = vmatpush.bf16.msra.mxu0 0
    %5661 = vmatpush.bf16.msra.mxu0 0
    %5662 = vmatpush.bf16.msra.mxu0 0
    %5663 = vmatpush.bf16.msra.mxu0 0
    %5664 = vmatpush.bf16.msra.mxu0 %v5334
    %5665 = vmatpush.bf16.msra.mxu0 %v5318
    %5666 = vmatmul.bf16.gmra.mxu0 %v5368
    %v5667 = vpop.f32.mrf.mxu0
    %v5668 = vadd.f32 %v5190, %v5667
    %v5669 = vpop.f32.mrf.mxu0
    %v5670 = vadd.f32 %v5190, %v5669
    %5671 = vmatmul.bf16.gmra.mxu0 %v5371
    %v5672 = vpop.f32.mrf.mxu0
    %v5673 = vadd.f32 %v5190, %v5672
    %v5674 = vpop.f32.mrf.mxu0
    %v5675 = vadd.f32 %v5190, %v5674
    %5676 = vdwg.mxu0
    %v5677 = vmax.f32 %v5383, 0.0
    %v5678 = vmax.f32 %v5402, 0.0
    %v5679 = vmax.f32 %v5421, 0.0
    %v5680 = vmax.f32 %v5440, 0.0
    %v5681 = vmax.f32 %v5459, 0.0
    %v5682 = vmax.f32 %v5478, 0.0
    %v5683 = vmax.f32 %v5497, 0.0
    %v5684 = vmax.f32 %v5516, 0.0
    %v5685 = vmax.f32 %v5535, 0.0
    %v5686 = vmax.f32 %v5554, 0.0
    %v5687 = vmax.f32 %v5573, 0.0
    %v5688 = vmax.f32 %v5592, 0.0
    %v5689 = vmax.f32 %v5611, 0.0
    %v5690 = vmax.f32 %v5630, 0.0
    %v5691 = vmax.f32 %v5649, 0.0
    %v5692 = vmax.f32 %v5668, 0.0
    %v5693 = vmax.f32 %v5385, 0.0
    %v5694 = vmax.f32 %v5404, 0.0
    %v5695 = vmax.f32 %v5423, 0.0
    %v5696 = vmax.f32 %v5442, 0.0
    %v5697 = vmax.f32 %v5461, 0.0
    %v5698 = vmax.f32 %v5480, 0.0
    %v5699 = vmax.f32 %v5499, 0.0
    %v5700 = vmax.f32 %v5518, 0.0
    %v5701 = vmax.f32 %v5537, 0.0
    %v5702 = vmax.f32 %v5556, 0.0
    %v5703 = vmax.f32 %v5575, 0.0
    %v5704 = vmax.f32 %v5594, 0.0
    %v5705 = vmax.f32 %v5613, 0.0
    %v5706 = vmax.f32 %v5632, 0.0
    %v5707 = vmax.f32 %v5651, 0.0
    %v5708 = vmax.f32 %v5670, 0.0
    %v5709 = vmax.f32 %v5388, 0.0
    %v5710 = vmax.f32 %v5407, 0.0
    %v5711 = vmax.f32 %v5426, 0.0
    %v5712 = vmax.f32 %v5445, 0.0
    %v5713 = vmax.f32 %v5464, 0.0
    %v5714 = vmax.f32 %v5483, 0.0
    %v5715 = vmax.f32 %v5502, 0.0
    %v5716 = vmax.f32 %v5521, 0.0
    %v5717 = vmax.f32 %v5540, 0.0
    %v5718 = vmax.f32 %v5559, 0.0
    %v5719 = vmax.f32 %v5578, 0.0
    %v5720 = vmax.f32 %v5597, 0.0
    %v5721 = vmax.f32 %v5616, 0.0
    %v5722 = vmax.f32 %v5635, 0.0
    %v5723 = vmax.f32 %v5654, 0.0
    %v5724 = vmax.f32 %v5673, 0.0
    %v5725 = vmax.f32 %v5390, 0.0
    %v5726 = vmax.f32 %v5409, 0.0
    %v5727 = vmax.f32 %v5428, 0.0
    %v5728 = vmax.f32 %v5447, 0.0
    %v5729 = vmax.f32 %v5466, 0.0
    %v5730 = vmax.f32 %v5485, 0.0
    %v5731 = vmax.f32 %v5504, 0.0
    %v5732 = vmax.f32 %v5523, 0.0
    %v5733 = vmax.f32 %v5542, 0.0
    %v5734 = vmax.f32 %v5561, 0.0
    %v5735 = vmax.f32 %v5580, 0.0
    %v5736 = vmax.f32 %v5599, 0.0
    %v5737 = vmax.f32 %v5618, 0.0
    %v5738 = vmax.f32 %v5637, 0.0
    %v5739 = vmax.f32 %v5656, 0.0
    %v5740 = vmax.f32 %v5675, 0.0
    %v5741 = vpack.c.bf16 %v5693, %v5677
    %v5742 = vpack.c.bf16 %v5694, %v5678
    %v5743 = vpack.c.bf16 %v5695, %v5679
    %v5744 = vpack.c.bf16 %v5696, %v5680
    %v5745 = vpack.c.bf16 %v5697, %v5681
    %v5746 = vpack.c.bf16 %v5698, %v5682
    %v5747 = vpack.c.bf16 %v5699, %v5683
    %v5748 = vpack.c.bf16 %v5700, %v5684
    %v5749 = vpack.c.bf16 %v5701, %v5685
    %v5750 = vpack.c.bf16 %v5702, %v5686
    %v5751 = vpack.c.bf16 %v5703, %v5687
    %v5752 = vpack.c.bf16 %v5704, %v5688
    %v5753 = vpack.c.bf16 %v5705, %v5689
    %v5754 = vpack.c.bf16 %v5706, %v5690
    %v5755 = vpack.c.bf16 %v5707, %v5691
    %v5756 = vpack.c.bf16 %v5708, %v5692
    %v5757 = vpack.c.bf16 %v5725, %v5709
    %v5758 = vpack.c.bf16 %v5726, %v5710
    %v5759 = vpack.c.bf16 %v5727, %v5711
    %v5760 = vpack.c.bf16 %v5728, %v5712
    %v5761 = vpack.c.bf16 %v5729, %v5713
    %v5762 = vpack.c.bf16 %v5730, %v5714
    %v5763 = vpack.c.bf16 %v5731, %v5715
    %v5764 = vpack.c.bf16 %v5732, %v5716
    %v5765 = vpack.c.bf16 %v5733, %v5717
    %v5766 = vpack.c.bf16 %v5734, %v5718
    %v5767 = vpack.c.bf16 %v5735, %v5719
    %v5768 = vpack.c.bf16 %v5736, %v5720
    %v5769 = vpack.c.bf16 %v5737, %v5721
    %v5770 = vpack.c.bf16 %v5738, %v5722
    %v5771 = vpack.c.bf16 %v5739, %v5723
    %v5772 = vpack.c.bf16 %v5740, %v5724
    %s5773 = scalar_lea.vmem %s17, 1024
    %v5774 = vld [vmem:[%s5773] sm:$0xf]
    %v5775 = vld [vmem:[%s5773 + $0x4] sm:$0xf]
    %v5776 = vld [vmem:[%s5773 + $0x8] sm:$0xf]
    %v5777 = vld [vmem:[%s5773 + $0xc] sm:$0xf]
    %v5778 = vld [vmem:[%s5773 + $0x10] sm:$0xf]
    %v5779 = vld [vmem:[%s5773 + $0x14] sm:$0xf]
    %v5780 = vld [vmem:[%s5773 + $0x18] sm:$0xf]
    %v5781 = vld [vmem:[%s5773 + $0x1c] sm:$0xf]
    %v5782 = vld [vmem:[%s5773 + $0x20] sm:$0xf]
    %v5783 = vld [vmem:[%s5773 + $0x24] sm:$0xf]
    %v5784 = vld [vmem:[%s5773 + $0x28] sm:$0xf]
    %v5785 = vld [vmem:[%s5773 + $0x2c] sm:$0xf]
    %v5786 = vld [vmem:[%s5773 + $0x30] sm:$0xf]
    %v5787 = vld [vmem:[%s5773 + $0x34] sm:$0xf]
    %v5788 = vld [vmem:[%s5773 + $0x38] sm:$0xf]
    %v5789 = vld [vmem:[%s5773 + $0x3c] sm:$0xf]
    %v5790 = vld [vmem:[%s5773 + $0x40] sm:$0xf]
    %v5791 = vld [vmem:[%s5773 + $0x44] sm:$0xf]
    %v5792 = vld [vmem:[%s5773 + $0x48] sm:$0xf]
    %v5793 = vld [vmem:[%s5773 + $0x4c] sm:$0xf]
    %v5794 = vld [vmem:[%s5773 + $0x50] sm:$0xf]
    %v5795 = vld [vmem:[%s5773 + $0x54] sm:$0xf]
    %v5796 = vld [vmem:[%s5773 + $0x58] sm:$0xf]
    %v5797 = vld [vmem:[%s5773 + $0x5c] sm:$0xf]
    %v5798 = vld [vmem:[%s5773 + $0x60] sm:$0xf]
    %v5799 = vld [vmem:[%s5773 + $0x64] sm:$0xf]
    %v5800 = vld [vmem:[%s5773 + $0x68] sm:$0xf]
    %v5801 = vld [vmem:[%s5773 + $0x6c] sm:$0xf]
    %v5802 = vld [vmem:[%s5773 + $0x70] sm:$0xf]
    %v5803 = vld [vmem:[%s5773 + $0x74] sm:$0xf]
    %v5804 = vld [vmem:[%s5773 + $0x78] sm:$0xf]
    %v5805 = vld [vmem:[%s5773 + $0x7c] sm:$0xf]
    %v5806 = vld [vmem:[%s5773 + $0x80] sm:$0xf]
    %v5807 = vld [vmem:[%s5773 + $0x84] sm:$0xf]
    %v5808 = vld [vmem:[%s5773 + $0x88] sm:$0xf]
    %v5809 = vld [vmem:[%s5773 + $0x8c] sm:$0xf]
    %v5810 = vld [vmem:[%s5773 + $0x90] sm:$0xf]
    %v5811 = vld [vmem:[%s5773 + $0x94] sm:$0xf]
    %v5812 = vld [vmem:[%s5773 + $0x98] sm:$0xf]
    %v5813 = vld [vmem:[%s5773 + $0x9c] sm:$0xf]
    %v5814 = vld [vmem:[%s5773 + $0xa0] sm:$0xf]
    %v5815 = vld [vmem:[%s5773 + $0xa4] sm:$0xf]
    %v5816 = vld [vmem:[%s5773 + $0xa8] sm:$0xf]
    %v5817 = vld [vmem:[%s5773 + $0xac] sm:$0xf]
    %v5818 = vld [vmem:[%s5773 + $0xb0] sm:$0xf]
    %v5819 = vld [vmem:[%s5773 + $0xb4] sm:$0xf]
    %v5820 = vld [vmem:[%s5773 + $0xb8] sm:$0xf]
    %v5821 = vld [vmem:[%s5773 + $0xbc] sm:$0xf]
    %v5822 = vld [vmem:[%s5773 + $0xc0] sm:$0xf]
    %v5823 = vld [vmem:[%s5773 + $0xc4] sm:$0xf]
    %v5824 = vld [vmem:[%s5773 + $0xc8] sm:$0xf]
    %v5825 = vld [vmem:[%s5773 + $0xcc] sm:$0xf]
    %v5826 = vld [vmem:[%s5773 + $0xd0] sm:$0xf]
    %v5827 = vld [vmem:[%s5773 + $0xd4] sm:$0xf]
    %v5828 = vld [vmem:[%s5773 + $0xd8] sm:$0xf]
    %v5829 = vld [vmem:[%s5773 + $0xdc] sm:$0xf]
    %v5830 = vld [vmem:[%s5773 + $0xe0] sm:$0xf]
    %v5831 = vld [vmem:[%s5773 + $0xe4] sm:$0xf]
    %v5832 = vld [vmem:[%s5773 + $0xe8] sm:$0xf]
    %v5833 = vld [vmem:[%s5773 + $0xec] sm:$0xf]
    %v5834 = vld [vmem:[%s5773 + $0xf0] sm:$0xf]
    %v5835 = vld [vmem:[%s5773 + $0xf4] sm:$0xf]
    %v5836 = vld [vmem:[%s5773 + $0xf8] sm:$0xf]
    %v5837 = vld [vmem:[%s5773 + $0xfc] sm:$0xf]
    %v5838 = vld [vmem:[%s5773 + $0x100] sm:$0xf]
    %v5839 = vld [vmem:[%s5773 + $0x104] sm:$0xf]
    %v5840 = vld [vmem:[%s5773 + $0x108] sm:$0xf]
    %v5841 = vld [vmem:[%s5773 + $0x10c] sm:$0xf]
    %v5842 = vld [vmem:[%s5773 + $0x110] sm:$0xf]
    %v5843 = vld [vmem:[%s5773 + $0x114] sm:$0xf]
    %v5844 = vld [vmem:[%s5773 + $0x118] sm:$0xf]
    %v5845 = vld [vmem:[%s5773 + $0x11c] sm:$0xf]
    %v5846 = vld [vmem:[%s5773 + $0x120] sm:$0xf]
    %v5847 = vld [vmem:[%s5773 + $0x124] sm:$0xf]
    %v5848 = vld [vmem:[%s5773 + $0x128] sm:$0xf]
    %v5849 = vld [vmem:[%s5773 + $0x12c] sm:$0xf]
    %v5850 = vld [vmem:[%s5773 + $0x130] sm:$0xf]
    %v5851 = vld [vmem:[%s5773 + $0x134] sm:$0xf]
    %v5852 = vld [vmem:[%s5773 + $0x138] sm:$0xf]
    %v5853 = vld [vmem:[%s5773 + $0x13c] sm:$0xf]
    %v5854 = vld [vmem:[%s5773 + $0x140] sm:$0xf]
    %v5855 = vld [vmem:[%s5773 + $0x144] sm:$0xf]
    %v5856 = vld [vmem:[%s5773 + $0x148] sm:$0xf]
    %v5857 = vld [vmem:[%s5773 + $0x14c] sm:$0xf]
    %v5858 = vld [vmem:[%s5773 + $0x150] sm:$0xf]
    %v5859 = vld [vmem:[%s5773 + $0x154] sm:$0xf]
    %v5860 = vld [vmem:[%s5773 + $0x158] sm:$0xf]
    %v5861 = vld [vmem:[%s5773 + $0x15c] sm:$0xf]
    %v5862 = vld [vmem:[%s5773 + $0x160] sm:$0xf]
    %v5863 = vld [vmem:[%s5773 + $0x164] sm:$0xf]
    %v5864 = vld [vmem:[%s5773 + $0x168] sm:$0xf]
    %v5865 = vld [vmem:[%s5773 + $0x16c] sm:$0xf]
    %v5866 = vld [vmem:[%s5773 + $0x170] sm:$0xf]
    %v5867 = vld [vmem:[%s5773 + $0x174] sm:$0xf]
    %v5868 = vld [vmem:[%s5773 + $0x178] sm:$0xf]
    %v5869 = vld [vmem:[%s5773 + $0x17c] sm:$0xf]
    %v5870 = vld [vmem:[%s5773 + $0x180] sm:$0xf]
    %v5871 = vld [vmem:[%s5773 + $0x184] sm:$0xf]
    %v5872 = vld [vmem:[%s5773 + $0x188] sm:$0xf]
    %v5873 = vld [vmem:[%s5773 + $0x18c] sm:$0xf]
    %v5874 = vld [vmem:[%s5773 + $0x190] sm:$0xf]
    %v5875 = vld [vmem:[%s5773 + $0x194] sm:$0xf]
    %v5876 = vld [vmem:[%s5773 + $0x198] sm:$0xf]
    %v5877 = vld [vmem:[%s5773 + $0x19c] sm:$0xf]
    %v5878 = vld [vmem:[%s5773 + $0x1a0] sm:$0xf]
    %v5879 = vld [vmem:[%s5773 + $0x1a4] sm:$0xf]
    %v5880 = vld [vmem:[%s5773 + $0x1a8] sm:$0xf]
    %v5881 = vld [vmem:[%s5773 + $0x1ac] sm:$0xf]
    %v5882 = vld [vmem:[%s5773 + $0x1b0] sm:$0xf]
    %v5883 = vld [vmem:[%s5773 + $0x1b4] sm:$0xf]
    %v5884 = vld [vmem:[%s5773 + $0x1b8] sm:$0xf]
    %v5885 = vld [vmem:[%s5773 + $0x1bc] sm:$0xf]
    %v5886 = vld [vmem:[%s5773 + $0x1c0] sm:$0xf]
    %v5887 = vld [vmem:[%s5773 + $0x1c4] sm:$0xf]
    %v5888 = vld [vmem:[%s5773 + $0x1c8] sm:$0xf]
    %v5889 = vld [vmem:[%s5773 + $0x1cc] sm:$0xf]
    %v5890 = vld [vmem:[%s5773 + $0x1d0] sm:$0xf]
    %v5891 = vld [vmem:[%s5773 + $0x1d4] sm:$0xf]
    %v5892 = vld [vmem:[%s5773 + $0x1d8] sm:$0xf]
    %v5893 = vld [vmem:[%s5773 + $0x1dc] sm:$0xf]
    %v5894 = vld [vmem:[%s5773 + $0x1e0] sm:$0xf]
    %v5895 = vld [vmem:[%s5773 + $0x1e4] sm:$0xf]
    %v5896 = vld [vmem:[%s5773 + $0x1e8] sm:$0xf]
    %v5897 = vld [vmem:[%s5773 + $0x1ec] sm:$0xf]
    %v5898 = vld [vmem:[%s5773 + $0x1f0] sm:$0xf]
    %v5899 = vld [vmem:[%s5773 + $0x1f4] sm:$0xf]
    %v5900 = vld [vmem:[%s5773 + $0x1f8] sm:$0xf]
    %v5901 = vld [vmem:[%s5773 + $0x1fc] sm:$0xf]
    %v5902 = vld [vmem:[%s5773 + $0x200] sm:$0xf]
    %v5903 = vld [vmem:[%s5773 + $0x204] sm:$0xf]
    %v5904 = vld [vmem:[%s5773 + $0x208] sm:$0xf]
    %v5905 = vld [vmem:[%s5773 + $0x20c] sm:$0xf]
    %v5906 = vld [vmem:[%s5773 + $0x210] sm:$0xf]
    %v5907 = vld [vmem:[%s5773 + $0x214] sm:$0xf]
    %v5908 = vld [vmem:[%s5773 + $0x218] sm:$0xf]
    %v5909 = vld [vmem:[%s5773 + $0x21c] sm:$0xf]
    %v5910 = vld [vmem:[%s5773 + $0x220] sm:$0xf]
    %v5911 = vld [vmem:[%s5773 + $0x224] sm:$0xf]
    %v5912 = vld [vmem:[%s5773 + $0x228] sm:$0xf]
    %v5913 = vld [vmem:[%s5773 + $0x22c] sm:$0xf]
    %v5914 = vld [vmem:[%s5773 + $0x230] sm:$0xf]
    %v5915 = vld [vmem:[%s5773 + $0x234] sm:$0xf]
    %v5916 = vld [vmem:[%s5773 + $0x238] sm:$0xf]
    %v5917 = vld [vmem:[%s5773 + $0x23c] sm:$0xf]
    %v5918 = vld [vmem:[%s5773 + $0x240] sm:$0xf]
    %v5919 = vld [vmem:[%s5773 + $0x244] sm:$0xf]
    %v5920 = vld [vmem:[%s5773 + $0x248] sm:$0xf]
    %v5921 = vld [vmem:[%s5773 + $0x24c] sm:$0xf]
    %v5922 = vld [vmem:[%s5773 + $0x250] sm:$0xf]
    %v5923 = vld [vmem:[%s5773 + $0x254] sm:$0xf]
    %v5924 = vld [vmem:[%s5773 + $0x258] sm:$0xf]
    %v5925 = vld [vmem:[%s5773 + $0x25c] sm:$0xf]
    %v5926 = vld [vmem:[%s5773 + $0x260] sm:$0xf]
    %v5927 = vld [vmem:[%s5773 + $0x264] sm:$0xf]
    %v5928 = vld [vmem:[%s5773 + $0x268] sm:$0xf]
    %v5929 = vld [vmem:[%s5773 + $0x26c] sm:$0xf]
    %v5930 = vld [vmem:[%s5773 + $0x270] sm:$0xf]
    %v5931 = vld [vmem:[%s5773 + $0x274] sm:$0xf]
    %v5932 = vld [vmem:[%s5773 + $0x278] sm:$0xf]
    %v5933 = vld [vmem:[%s5773 + $0x27c] sm:$0xf]
    %v5934 = vld [vmem:[%s5773 + $0x280] sm:$0xf]
    %v5935 = vld [vmem:[%s5773 + $0x284] sm:$0xf]
    %v5936 = vld [vmem:[%s5773 + $0x288] sm:$0xf]
    %v5937 = vld [vmem:[%s5773 + $0x28c] sm:$0xf]
    %v5938 = vld [vmem:[%s5773 + $0x290] sm:$0xf]
    %v5939 = vld [vmem:[%s5773 + $0x294] sm:$0xf]
    %v5940 = vld [vmem:[%s5773 + $0x298] sm:$0xf]
    %v5941 = vld [vmem:[%s5773 + $0x29c] sm:$0xf]
    %v5942 = vld [vmem:[%s5773 + $0x2a0] sm:$0xf]
    %v5943 = vld [vmem:[%s5773 + $0x2a4] sm:$0xf]
    %v5944 = vld [vmem:[%s5773 + $0x2a8] sm:$0xf]
    %v5945 = vld [vmem:[%s5773 + $0x2ac] sm:$0xf]
    %v5946 = vld [vmem:[%s5773 + $0x2b0] sm:$0xf]
    %v5947 = vld [vmem:[%s5773 + $0x2b4] sm:$0xf]
    %v5948 = vld [vmem:[%s5773 + $0x2b8] sm:$0xf]
    %v5949 = vld [vmem:[%s5773 + $0x2bc] sm:$0xf]
    %v5950 = vld [vmem:[%s5773 + $0x2c0] sm:$0xf]
    %v5951 = vld [vmem:[%s5773 + $0x2c4] sm:$0xf]
    %v5952 = vld [vmem:[%s5773 + $0x2c8] sm:$0xf]
    %v5953 = vld [vmem:[%s5773 + $0x2cc] sm:$0xf]
    %v5954 = vld [vmem:[%s5773 + $0x2d0] sm:$0xf]
    %v5955 = vld [vmem:[%s5773 + $0x2d4] sm:$0xf]
    %v5956 = vld [vmem:[%s5773 + $0x2d8] sm:$0xf]
    %v5957 = vld [vmem:[%s5773 + $0x2dc] sm:$0xf]
    %v5958 = vld [vmem:[%s5773 + $0x2e0] sm:$0xf]
    %v5959 = vld [vmem:[%s5773 + $0x2e4] sm:$0xf]
    %v5960 = vld [vmem:[%s5773 + $0x2e8] sm:$0xf]
    %v5961 = vld [vmem:[%s5773 + $0x2ec] sm:$0xf]
    %v5962 = vld [vmem:[%s5773 + $0x2f0] sm:$0xf]
    %v5963 = vld [vmem:[%s5773 + $0x2f4] sm:$0xf]
    %v5964 = vld [vmem:[%s5773 + $0x2f8] sm:$0xf]
    %v5965 = vld [vmem:[%s5773 + $0x2fc] sm:$0xf]
    %v5966 = vld [vmem:[%s5773 + $0x300] sm:$0xf]
    %v5967 = vld [vmem:[%s5773 + $0x304] sm:$0xf]
    %v5968 = vld [vmem:[%s5773 + $0x308] sm:$0xf]
    %v5969 = vld [vmem:[%s5773 + $0x30c] sm:$0xf]
    %v5970 = vld [vmem:[%s5773 + $0x310] sm:$0xf]
    %v5971 = vld [vmem:[%s5773 + $0x314] sm:$0xf]
    %v5972 = vld [vmem:[%s5773 + $0x318] sm:$0xf]
    %v5973 = vld [vmem:[%s5773 + $0x31c] sm:$0xf]
    %v5974 = vld [vmem:[%s5773 + $0x320] sm:$0xf]
    %v5975 = vld [vmem:[%s5773 + $0x324] sm:$0xf]
    %v5976 = vld [vmem:[%s5773 + $0x328] sm:$0xf]
    %v5977 = vld [vmem:[%s5773 + $0x32c] sm:$0xf]
    %v5978 = vld [vmem:[%s5773 + $0x330] sm:$0xf]
    %v5979 = vld [vmem:[%s5773 + $0x334] sm:$0xf]
    %v5980 = vld [vmem:[%s5773 + $0x338] sm:$0xf]
    %v5981 = vld [vmem:[%s5773 + $0x33c] sm:$0xf]
    %v5982 = vld [vmem:[%s5773 + $0x340] sm:$0xf]
    %v5983 = vld [vmem:[%s5773 + $0x344] sm:$0xf]
    %v5984 = vld [vmem:[%s5773 + $0x348] sm:$0xf]
    %v5985 = vld [vmem:[%s5773 + $0x34c] sm:$0xf]
    %v5986 = vld [vmem:[%s5773 + $0x350] sm:$0xf]
    %v5987 = vld [vmem:[%s5773 + $0x354] sm:$0xf]
    %v5988 = vld [vmem:[%s5773 + $0x358] sm:$0xf]
    %v5989 = vld [vmem:[%s5773 + $0x35c] sm:$0xf]
    %v5990 = vld [vmem:[%s5773 + $0x360] sm:$0xf]
    %v5991 = vld [vmem:[%s5773 + $0x364] sm:$0xf]
    %v5992 = vld [vmem:[%s5773 + $0x368] sm:$0xf]
    %v5993 = vld [vmem:[%s5773 + $0x36c] sm:$0xf]
    %v5994 = vld [vmem:[%s5773 + $0x370] sm:$0xf]
    %v5995 = vld [vmem:[%s5773 + $0x374] sm:$0xf]
    %v5996 = vld [vmem:[%s5773 + $0x378] sm:$0xf]
    %v5997 = vld [vmem:[%s5773 + $0x37c] sm:$0xf]
    %v5998 = vld [vmem:[%s5773 + $0x380] sm:$0xf]
    %v5999 = vld [vmem:[%s5773 + $0x384] sm:$0xf]
    %v6000 = vld [vmem:[%s5773 + $0x388] sm:$0xf]
    %v6001 = vld [vmem:[%s5773 + $0x38c] sm:$0xf]
    %v6002 = vld [vmem:[%s5773 + $0x390] sm:$0xf]
    %v6003 = vld [vmem:[%s5773 + $0x394] sm:$0xf]
    %v6004 = vld [vmem:[%s5773 + $0x398] sm:$0xf]
    %v6005 = vld [vmem:[%s5773 + $0x39c] sm:$0xf]
    %v6006 = vld [vmem:[%s5773 + $0x3a0] sm:$0xf]
    %v6007 = vld [vmem:[%s5773 + $0x3a4] sm:$0xf]
    %v6008 = vld [vmem:[%s5773 + $0x3a8] sm:$0xf]
    %v6009 = vld [vmem:[%s5773 + $0x3ac] sm:$0xf]
    %v6010 = vld [vmem:[%s5773 + $0x3b0] sm:$0xf]
    %v6011 = vld [vmem:[%s5773 + $0x3b4] sm:$0xf]
    %v6012 = vld [vmem:[%s5773 + $0x3b8] sm:$0xf]
    %v6013 = vld [vmem:[%s5773 + $0x3bc] sm:$0xf]
    %v6014 = vld [vmem:[%s5773 + $0x3c0] sm:$0xf]
    %v6015 = vld [vmem:[%s5773 + $0x3c4] sm:$0xf]
    %v6016 = vld [vmem:[%s5773 + $0x3c8] sm:$0xf]
    %v6017 = vld [vmem:[%s5773 + $0x3cc] sm:$0xf]
    %v6018 = vld [vmem:[%s5773 + $0x3d0] sm:$0xf]
    %v6019 = vld [vmem:[%s5773 + $0x3d4] sm:$0xf]
    %v6020 = vld [vmem:[%s5773 + $0x3d8] sm:$0xf]
    %v6021 = vld [vmem:[%s5773 + $0x3dc] sm:$0xf]
    %v6022 = vld [vmem:[%s5773 + $0x3e0] sm:$0xf]
    %v6023 = vld [vmem:[%s5773 + $0x3e4] sm:$0xf]
    %v6024 = vld [vmem:[%s5773 + $0x3e8] sm:$0xf]
    %v6025 = vld [vmem:[%s5773 + $0x3ec] sm:$0xf]
    %v6026 = vld [vmem:[%s5773 + $0x3f0] sm:$0xf]
    %v6027 = vld [vmem:[%s5773 + $0x3f4] sm:$0xf]
    %v6028 = vld [vmem:[%s5773 + $0x3f8] sm:$0xf]
    %v6029 = vld [vmem:[%s5773 + $0x3fc] sm:$0xf]
    %v6031 = vperm.slane %v3676, 0
    %v6289 = vunpack.c.l.b16 %v5774
    %v6290 = vunpack.c.l.b16 %v5775
    %v6291 = vunpack.c.l.b16 %v5776
    %v6292 = vunpack.c.l.b16 %v5777
    %v6293 = vunpack.c.l.b16 %v5778
    %v6294 = vunpack.c.l.b16 %v5779
    %v6295 = vunpack.c.l.b16 %v5780
    %v6296 = vunpack.c.l.b16 %v5781
    %v6297 = vunpack.c.l.b16 %v5782
    %v6298 = vunpack.c.l.b16 %v5783
    %v6299 = vunpack.c.l.b16 %v5784
    %v6300 = vunpack.c.l.b16 %v5785
    %v6301 = vunpack.c.l.b16 %v5786
    %v6302 = vunpack.c.l.b16 %v5787
    %v6303 = vunpack.c.l.b16 %v5788
    %v6304 = vunpack.c.l.b16 %v5789
    %v6305 = vunpack.c.l.b16 %v5790
    %v6306 = vunpack.c.l.b16 %v5791
    %v6307 = vunpack.c.l.b16 %v5792
    %v6308 = vunpack.c.l.b16 %v5793
    %v6309 = vunpack.c.l.b16 %v5794
    %v6310 = vunpack.c.l.b16 %v5795
    %v6311 = vunpack.c.l.b16 %v5796
    %v6312 = vunpack.c.l.b16 %v5797
    %v6313 = vunpack.c.l.b16 %v5798
    %v6314 = vunpack.c.l.b16 %v5799
    %v6315 = vunpack.c.l.b16 %v5800
    %v6316 = vunpack.c.l.b16 %v5801
    %v6317 = vunpack.c.l.b16 %v5802
    %v6318 = vunpack.c.l.b16 %v5803
    %v6319 = vunpack.c.l.b16 %v5804
    %v6320 = vunpack.c.l.b16 %v5805
    %v6321 = vunpack.c.l.b16 %v5806
    %v6322 = vunpack.c.l.b16 %v5807
    %v6323 = vunpack.c.l.b16 %v5808
    %v6324 = vunpack.c.l.b16 %v5809
    %v6325 = vunpack.c.l.b16 %v5810
    %v6326 = vunpack.c.l.b16 %v5811
    %v6327 = vunpack.c.l.b16 %v5812
    %v6328 = vunpack.c.l.b16 %v5813
    %v6329 = vunpack.c.l.b16 %v5814
    %v6330 = vunpack.c.l.b16 %v5815
    %v6331 = vunpack.c.l.b16 %v5816
    %v6332 = vunpack.c.l.b16 %v5817
    %v6333 = vunpack.c.l.b16 %v5818
    %v6334 = vunpack.c.l.b16 %v5819
    %v6335 = vunpack.c.l.b16 %v5820
    %v6336 = vunpack.c.l.b16 %v5821
    %v6337 = vunpack.c.l.b16 %v5822
    %v6338 = vunpack.c.l.b16 %v5823
    %v6339 = vunpack.c.l.b16 %v5824
    %v6340 = vunpack.c.l.b16 %v5825
    %v6341 = vunpack.c.l.b16 %v5826
    %v6342 = vunpack.c.l.b16 %v5827
    %v6343 = vunpack.c.l.b16 %v5828
    %v6344 = vunpack.c.l.b16 %v5829
    %v6345 = vunpack.c.l.b16 %v5830
    %v6346 = vunpack.c.l.b16 %v5831
    %v6347 = vunpack.c.l.b16 %v5832
    %v6348 = vunpack.c.l.b16 %v5833
    %v6349 = vunpack.c.l.b16 %v5834
    %v6350 = vunpack.c.l.b16 %v5835
    %v6351 = vunpack.c.l.b16 %v5836
    %v6352 = vunpack.c.l.b16 %v5837
    %v6353 = vunpack.c.l.b16 %v5838
    %v6354 = vunpack.c.l.b16 %v5839
    %v6355 = vunpack.c.l.b16 %v5840
    %v6356 = vunpack.c.l.b16 %v5841
    %v6357 = vunpack.c.l.b16 %v5842
    %v6358 = vunpack.c.l.b16 %v5843
    %v6359 = vunpack.c.l.b16 %v5844
    %v6360 = vunpack.c.l.b16 %v5845
    %v6361 = vunpack.c.l.b16 %v5846
    %v6362 = vunpack.c.l.b16 %v5847
    %v6363 = vunpack.c.l.b16 %v5848
    %v6364 = vunpack.c.l.b16 %v5849
    %v6365 = vunpack.c.l.b16 %v5850
    %v6366 = vunpack.c.l.b16 %v5851
    %v6367 = vunpack.c.l.b16 %v5852
    %v6368 = vunpack.c.l.b16 %v5853
    %v6369 = vunpack.c.l.b16 %v5854
    %v6370 = vunpack.c.l.b16 %v5855
    %v6371 = vunpack.c.l.b16 %v5856
    %v6372 = vunpack.c.l.b16 %v5857
    %v6373 = vunpack.c.l.b16 %v5858
    %v6374 = vunpack.c.l.b16 %v5859
    %v6375 = vunpack.c.l.b16 %v5860
    %v6376 = vunpack.c.l.b16 %v5861
    %v6377 = vunpack.c.l.b16 %v5862
    %v6378 = vunpack.c.l.b16 %v5863
    %v6379 = vunpack.c.l.b16 %v5864
    %v6380 = vunpack.c.l.b16 %v5865
    %v6381 = vunpack.c.l.b16 %v5866
    %v6382 = vunpack.c.l.b16 %v5867
    %v6383 = vunpack.c.l.b16 %v5868
    %v6384 = vunpack.c.l.b16 %v5869
    %v6385 = vunpack.c.l.b16 %v5870
    %v6386 = vunpack.c.l.b16 %v5871
    %v6387 = vunpack.c.l.b16 %v5872
    %v6388 = vunpack.c.l.b16 %v5873
    %v6389 = vunpack.c.l.b16 %v5874
    %v6390 = vunpack.c.l.b16 %v5875
    %v6391 = vunpack.c.l.b16 %v5876
    %v6392 = vunpack.c.l.b16 %v5877
    %v6393 = vunpack.c.l.b16 %v5878
    %v6394 = vunpack.c.l.b16 %v5879
    %v6395 = vunpack.c.l.b16 %v5880
    %v6396 = vunpack.c.l.b16 %v5881
    %v6397 = vunpack.c.l.b16 %v5882
    %v6398 = vunpack.c.l.b16 %v5883
    %v6399 = vunpack.c.l.b16 %v5884
    %v6400 = vunpack.c.l.b16 %v5885
    %v6401 = vunpack.c.l.b16 %v5886
    %v6402 = vunpack.c.l.b16 %v5887
    %v6403 = vunpack.c.l.b16 %v5888
    %v6404 = vunpack.c.l.b16 %v5889
    %v6405 = vunpack.c.l.b16 %v5890
    %v6406 = vunpack.c.l.b16 %v5891
    %v6407 = vunpack.c.l.b16 %v5892
    %v6408 = vunpack.c.l.b16 %v5893
    %v6409 = vunpack.c.l.b16 %v5894
    %v6410 = vunpack.c.l.b16 %v5895
    %v6411 = vunpack.c.l.b16 %v5896
    %v6412 = vunpack.c.l.b16 %v5897
    %v6413 = vunpack.c.l.b16 %v5898
    %v6414 = vunpack.c.l.b16 %v5899
    %v6415 = vunpack.c.l.b16 %v5900
    %v6416 = vunpack.c.l.b16 %v5901
    %v6417 = vunpack.c.l.b16 %v5902
    %v6418 = vunpack.c.l.b16 %v5903
    %v6419 = vunpack.c.l.b16 %v5904
    %v6420 = vunpack.c.l.b16 %v5905
    %v6421 = vunpack.c.l.b16 %v5906
    %v6422 = vunpack.c.l.b16 %v5907
    %v6423 = vunpack.c.l.b16 %v5908
    %v6424 = vunpack.c.l.b16 %v5909
    %v6425 = vunpack.c.l.b16 %v5910
    %v6426 = vunpack.c.l.b16 %v5911
    %v6427 = vunpack.c.l.b16 %v5912
    %v6428 = vunpack.c.l.b16 %v5913
    %v6429 = vunpack.c.l.b16 %v5914
    %v6430 = vunpack.c.l.b16 %v5915
    %v6431 = vunpack.c.l.b16 %v5916
    %v6432 = vunpack.c.l.b16 %v5917
    %v6433 = vunpack.c.l.b16 %v5918
    %v6434 = vunpack.c.l.b16 %v5919
    %v6435 = vunpack.c.l.b16 %v5920
    %v6436 = vunpack.c.l.b16 %v5921
    %v6437 = vunpack.c.l.b16 %v5922
    %v6438 = vunpack.c.l.b16 %v5923
    %v6439 = vunpack.c.l.b16 %v5924
    %v6440 = vunpack.c.l.b16 %v5925
    %v6441 = vunpack.c.l.b16 %v5926
    %v6442 = vunpack.c.l.b16 %v5927
    %v6443 = vunpack.c.l.b16 %v5928
    %v6444 = vunpack.c.l.b16 %v5929
    %v6445 = vunpack.c.l.b16 %v5930
    %v6446 = vunpack.c.l.b16 %v5931
    %v6447 = vunpack.c.l.b16 %v5932
    %v6448 = vunpack.c.l.b16 %v5933
    %v6449 = vunpack.c.l.b16 %v5934
    %v6450 = vunpack.c.l.b16 %v5935
    %v6451 = vunpack.c.l.b16 %v5936
    %v6452 = vunpack.c.l.b16 %v5937
    %v6453 = vunpack.c.l.b16 %v5938
    %v6454 = vunpack.c.l.b16 %v5939
    %v6455 = vunpack.c.l.b16 %v5940
    %v6456 = vunpack.c.l.b16 %v5941
    %v6457 = vunpack.c.l.b16 %v5942
    %v6458 = vunpack.c.l.b16 %v5943
    %v6459 = vunpack.c.l.b16 %v5944
    %v6460 = vunpack.c.l.b16 %v5945
    %v6461 = vunpack.c.l.b16 %v5946
    %v6462 = vunpack.c.l.b16 %v5947
    %v6463 = vunpack.c.l.b16 %v5948
    %v6464 = vunpack.c.l.b16 %v5949
    %v6465 = vunpack.c.l.b16 %v5950
    %v6466 = vunpack.c.l.b16 %v5951
    %v6467 = vunpack.c.l.b16 %v5952
    %v6468 = vunpack.c.l.b16 %v5953
    %v6469 = vunpack.c.l.b16 %v5954
    %v6470 = vunpack.c.l.b16 %v5955
    %v6471 = vunpack.c.l.b16 %v5956
    %v6472 = vunpack.c.l.b16 %v5957
    %v6473 = vunpack.c.l.b16 %v5958
    %v6474 = vunpack.c.l.b16 %v5959
    %v6475 = vunpack.c.l.b16 %v5960
    %v6476 = vunpack.c.l.b16 %v5961
    %v6477 = vunpack.c.l.b16 %v5962
    %v6478 = vunpack.c.l.b16 %v5963
    %v6479 = vunpack.c.l.b16 %v5964
    %v6480 = vunpack.c.l.b16 %v5965
    %v6481 = vunpack.c.l.b16 %v5966
    %v6482 = vunpack.c.l.b16 %v5967
    %v6483 = vunpack.c.l.b16 %v5968
    %v6484 = vunpack.c.l.b16 %v5969
    %v6485 = vunpack.c.l.b16 %v5970
    %v6486 = vunpack.c.l.b16 %v5971
    %v6487 = vunpack.c.l.b16 %v5972
    %v6488 = vunpack.c.l.b16 %v5973
    %v6489 = vunpack.c.l.b16 %v5974
    %v6490 = vunpack.c.l.b16 %v5975
    %v6491 = vunpack.c.l.b16 %v5976
    %v6492 = vunpack.c.l.b16 %v5977
    %v6493 = vunpack.c.l.b16 %v5978
    %v6494 = vunpack.c.l.b16 %v5979
    %v6495 = vunpack.c.l.b16 %v5980
    %v6496 = vunpack.c.l.b16 %v5981
    %v6497 = vunpack.c.l.b16 %v5982
    %v6498 = vunpack.c.l.b16 %v5983
    %v6499 = vunpack.c.l.b16 %v5984
    %v6500 = vunpack.c.l.b16 %v5985
    %v6501 = vunpack.c.l.b16 %v5986
    %v6502 = vunpack.c.l.b16 %v5987
    %v6503 = vunpack.c.l.b16 %v5988
    %v6504 = vunpack.c.l.b16 %v5989
    %v6505 = vunpack.c.l.b16 %v5990
    %v6506 = vunpack.c.l.b16 %v5991
    %v6507 = vunpack.c.l.b16 %v5992
    %v6508 = vunpack.c.l.b16 %v5993
    %v6509 = vunpack.c.l.b16 %v5994
    %v6510 = vunpack.c.l.b16 %v5995
    %v6511 = vunpack.c.l.b16 %v5996
    %v6512 = vunpack.c.l.b16 %v5997
    %v6513 = vunpack.c.l.b16 %v5998
    %v6514 = vunpack.c.l.b16 %v5999
    %v6515 = vunpack.c.l.b16 %v6000
    %v6516 = vunpack.c.l.b16 %v6001
    %v6517 = vunpack.c.l.b16 %v6002
    %v6518 = vunpack.c.l.b16 %v6003
    %v6519 = vunpack.c.l.b16 %v6004
    %v6520 = vunpack.c.l.b16 %v6005
    %v6521 = vunpack.c.l.b16 %v6006
    %v6522 = vunpack.c.l.b16 %v6007
    %v6523 = vunpack.c.l.b16 %v6008
    %v6524 = vunpack.c.l.b16 %v6009
    %v6525 = vunpack.c.l.b16 %v6010
    %v6526 = vunpack.c.l.b16 %v6011
    %v6527 = vunpack.c.l.b16 %v6012
    %v6528 = vunpack.c.l.b16 %v6013
    %v6529 = vunpack.c.l.b16 %v6014
    %v6530 = vunpack.c.l.b16 %v6015
    %v6531 = vunpack.c.l.b16 %v6016
    %v6532 = vunpack.c.l.b16 %v6017
    %v6533 = vunpack.c.l.b16 %v6018
    %v6534 = vunpack.c.l.b16 %v6019
    %v6535 = vunpack.c.l.b16 %v6020
    %v6536 = vunpack.c.l.b16 %v6021
    %v6537 = vunpack.c.l.b16 %v6022
    %v6538 = vunpack.c.l.b16 %v6023
    %v6539 = vunpack.c.l.b16 %v6024
    %v6540 = vunpack.c.l.b16 %v6025
    %v6541 = vunpack.c.l.b16 %v6026
    %v6542 = vunpack.c.l.b16 %v6027
    %v6543 = vunpack.c.l.b16 %v6028
    %v6544 = vunpack.c.l.b16 %v6029
    %v6545 = vpack.c.b16 %v6290, %v6289
    %v6546 = vpack.c.b16 %v6292, %v6291
    %v6547 = vpack.c.b16 %v6294, %v6293
    %v6548 = vpack.c.b16 %v6296, %v6295
    %v6549 = vpack.c.b16 %v6298, %v6297
    %v6550 = vpack.c.b16 %v6300, %v6299
    %v6551 = vpack.c.b16 %v6302, %v6301
    %v6552 = vpack.c.b16 %v6304, %v6303
    %v6553 = vpack.c.b16 %v6306, %v6305
    %v6554 = vpack.c.b16 %v6308, %v6307
    %v6555 = vpack.c.b16 %v6310, %v6309
    %v6556 = vpack.c.b16 %v6312, %v6311
    %v6557 = vpack.c.b16 %v6314, %v6313
    %v6558 = vpack.c.b16 %v6316, %v6315
    %v6559 = vpack.c.b16 %v6318, %v6317
    %v6560 = vpack.c.b16 %v6320, %v6319
    %v6561 = vpack.c.b16 %v6322, %v6321
    %v6562 = vpack.c.b16 %v6324, %v6323
    %v6563 = vpack.c.b16 %v6326, %v6325
    %v6564 = vpack.c.b16 %v6328, %v6327
    %v6565 = vpack.c.b16 %v6330, %v6329
    %v6566 = vpack.c.b16 %v6332, %v6331
    %v6567 = vpack.c.b16 %v6334, %v6333
    %v6568 = vpack.c.b16 %v6336, %v6335
    %v6569 = vpack.c.b16 %v6338, %v6337
    %v6570 = vpack.c.b16 %v6340, %v6339
    %v6571 = vpack.c.b16 %v6342, %v6341
    %v6572 = vpack.c.b16 %v6344, %v6343
    %v6573 = vpack.c.b16 %v6346, %v6345
    %v6574 = vpack.c.b16 %v6348, %v6347
    %v6575 = vpack.c.b16 %v6350, %v6349
    %v6576 = vpack.c.b16 %v6352, %v6351
    %v6577 = vpack.c.b16 %v6354, %v6353
    %v6578 = vpack.c.b16 %v6356, %v6355
    %v6579 = vpack.c.b16 %v6358, %v6357
    %v6580 = vpack.c.b16 %v6360, %v6359
    %v6581 = vpack.c.b16 %v6362, %v6361
    %v6582 = vpack.c.b16 %v6364, %v6363
    %v6583 = vpack.c.b16 %v6366, %v6365
    %v6584 = vpack.c.b16 %v6368, %v6367
    %v6585 = vpack.c.b16 %v6370, %v6369
    %v6586 = vpack.c.b16 %v6372, %v6371
    %v6587 = vpack.c.b16 %v6374, %v6373
    %v6588 = vpack.c.b16 %v6376, %v6375
    %v6589 = vpack.c.b16 %v6378, %v6377
    %v6590 = vpack.c.b16 %v6380, %v6379
    %v6591 = vpack.c.b16 %v6382, %v6381
    %v6592 = vpack.c.b16 %v6384, %v6383
    %v6593 = vpack.c.b16 %v6386, %v6385
    %v6594 = vpack.c.b16 %v6388, %v6387
    %v6595 = vpack.c.b16 %v6390, %v6389
    %v6596 = vpack.c.b16 %v6392, %v6391
    %v6597 = vpack.c.b16 %v6394, %v6393
    %v6598 = vpack.c.b16 %v6396, %v6395
    %v6599 = vpack.c.b16 %v6398, %v6397
    %v6600 = vpack.c.b16 %v6400, %v6399
    %v6601 = vpack.c.b16 %v6402, %v6401
    %v6602 = vpack.c.b16 %v6404, %v6403
    %v6603 = vpack.c.b16 %v6406, %v6405
    %v6604 = vpack.c.b16 %v6408, %v6407
    %v6605 = vpack.c.b16 %v6410, %v6409
    %v6606 = vpack.c.b16 %v6412, %v6411
    %v6607 = vpack.c.b16 %v6414, %v6413
    %v6608 = vpack.c.b16 %v6416, %v6415
    %v6609 = vpack.c.b16 %v6418, %v6417
    %v6610 = vpack.c.b16 %v6420, %v6419
    %v6611 = vpack.c.b16 %v6422, %v6421
    %v6612 = vpack.c.b16 %v6424, %v6423
    %v6613 = vpack.c.b16 %v6426, %v6425
    %v6614 = vpack.c.b16 %v6428, %v6427
    %v6615 = vpack.c.b16 %v6430, %v6429
    %v6616 = vpack.c.b16 %v6432, %v6431
    %v6617 = vpack.c.b16 %v6434, %v6433
    %v6618 = vpack.c.b16 %v6436, %v6435
    %v6619 = vpack.c.b16 %v6438, %v6437
    %v6620 = vpack.c.b16 %v6440, %v6439
    %v6621 = vpack.c.b16 %v6442, %v6441
    %v6622 = vpack.c.b16 %v6444, %v6443
    %v6623 = vpack.c.b16 %v6446, %v6445
    %v6624 = vpack.c.b16 %v6448, %v6447
    %v6625 = vpack.c.b16 %v6450, %v6449
    %v6626 = vpack.c.b16 %v6452, %v6451
    %v6627 = vpack.c.b16 %v6454, %v6453
    %v6628 = vpack.c.b16 %v6456, %v6455
    %v6629 = vpack.c.b16 %v6458, %v6457
    %v6630 = vpack.c.b16 %v6460, %v6459
    %v6631 = vpack.c.b16 %v6462, %v6461
    %v6632 = vpack.c.b16 %v6464, %v6463
    %v6633 = vpack.c.b16 %v6466, %v6465
    %v6634 = vpack.c.b16 %v6468, %v6467
    %v6635 = vpack.c.b16 %v6470, %v6469
    %v6636 = vpack.c.b16 %v6472, %v6471
    %v6637 = vpack.c.b16 %v6474, %v6473
    %v6638 = vpack.c.b16 %v6476, %v6475
    %v6639 = vpack.c.b16 %v6478, %v6477
    %v6640 = vpack.c.b16 %v6480, %v6479
    %v6641 = vpack.c.b16 %v6482, %v6481
    %v6642 = vpack.c.b16 %v6484, %v6483
    %v6643 = vpack.c.b16 %v6486, %v6485
    %v6644 = vpack.c.b16 %v6488, %v6487
    %v6645 = vpack.c.b16 %v6490, %v6489
    %v6646 = vpack.c.b16 %v6492, %v6491
    %v6647 = vpack.c.b16 %v6494, %v6493
    %v6648 = vpack.c.b16 %v6496, %v6495
    %v6649 = vpack.c.b16 %v6498, %v6497
    %v6650 = vpack.c.b16 %v6500, %v6499
    %v6651 = vpack.c.b16 %v6502, %v6501
    %v6652 = vpack.c.b16 %v6504, %v6503
    %v6653 = vpack.c.b16 %v6506, %v6505
    %v6654 = vpack.c.b16 %v6508, %v6507
    %v6655 = vpack.c.b16 %v6510, %v6509
    %v6656 = vpack.c.b16 %v6512, %v6511
    %v6657 = vpack.c.b16 %v6514, %v6513
    %v6658 = vpack.c.b16 %v6516, %v6515
    %v6659 = vpack.c.b16 %v6518, %v6517
    %v6660 = vpack.c.b16 %v6520, %v6519
    %v6661 = vpack.c.b16 %v6522, %v6521
    %v6662 = vpack.c.b16 %v6524, %v6523
    %v6663 = vpack.c.b16 %v6526, %v6525
    %v6664 = vpack.c.b16 %v6528, %v6527
    %v6665 = vpack.c.b16 %v6530, %v6529
    %v6666 = vpack.c.b16 %v6532, %v6531
    %v6667 = vpack.c.b16 %v6534, %v6533
    %v6668 = vpack.c.b16 %v6536, %v6535
    %v6669 = vpack.c.b16 %v6538, %v6537
    %v6670 = vpack.c.b16 %v6540, %v6539
    %v6671 = vpack.c.b16 %v6542, %v6541
    %v6672 = vpack.c.b16 %v6544, %v6543
    %6801 = vmatpush.bf16.msra.mxu0 %v6552
    %6802 = vmatpush.bf16.msra.mxu0 %v6551
    %6803 = vmatpush.bf16.msra.mxu0 %v6550
    %6804 = vmatpush.bf16.msra.mxu0 %v6549
    %6805 = vmatpush.bf16.msra.mxu0 %v6548
    %6806 = vmatpush.bf16.msra.mxu0 %v6547
    %6807 = vmatpush.bf16.msra.mxu0 %v6546
    %6808 = vmatpush.bf16.msra.mxu0 %v6545
    %6809 = vmatmul.bf16.gmra.mxu0 %v5741
    %v6810 = vpop.f32.mrf.mxu0
    %v6811 = vadd.f32 %v6031, %v6810
    %v6812 = vpop.f32.mrf.mxu0
    %v6813 = vadd.f32 %v6031, %v6812
    %6814 = vmatmul.bf16.gmra.mxu0 %v5757
    %v6815 = vpop.f32.mrf.mxu0
    %v6816 = vadd.f32 %v6031, %v6815
    %v6817 = vpop.f32.mrf.mxu0
    %v6818 = vadd.f32 %v6031, %v6817
    %6819 = vdwg.mxu0
    %6820 = vmatpush.bf16.msra.mxu0 %v6560
    %6821 = vmatpush.bf16.msra.mxu0 %v6559
    %6822 = vmatpush.bf16.msra.mxu0 %v6558
    %6823 = vmatpush.bf16.msra.mxu0 %v6557
    %6824 = vmatpush.bf16.msra.mxu0 %v6556
    %6825 = vmatpush.bf16.msra.mxu0 %v6555
    %6826 = vmatpush.bf16.msra.mxu0 %v6554
    %6827 = vmatpush.bf16.msra.mxu0 %v6553
    %6828 = vmatmul.bf16.gmra.mxu0 %v5742
    %v6829 = vpop.f32.mrf.mxu0
    %v6830 = vadd.f32 %v6811, %v6829
    %v6831 = vpop.f32.mrf.mxu0
    %v6832 = vadd.f32 %v6813, %v6831
    %6833 = vmatmul.bf16.gmra.mxu0 %v5758
    %v6834 = vpop.f32.mrf.mxu0
    %v6835 = vadd.f32 %v6816, %v6834
    %v6836 = vpop.f32.mrf.mxu0
    %v6837 = vadd.f32 %v6818, %v6836
    %6838 = vdwg.mxu0
    %6839 = vmatpush.bf16.msra.mxu0 %v6568
    %6840 = vmatpush.bf16.msra.mxu0 %v6567
    %6841 = vmatpush.bf16.msra.mxu0 %v6566
    %6842 = vmatpush.bf16.msra.mxu0 %v6565
    %6843 = vmatpush.bf16.msra.mxu0 %v6564
    %6844 = vmatpush.bf16.msra.mxu0 %v6563
    %6845 = vmatpush.bf16.msra.mxu0 %v6562
    %6846 = vmatpush.bf16.msra.mxu0 %v6561
    %6847 = vmatmul.bf16.gmra.mxu0 %v5743
    %v6848 = vpop.f32.mrf.mxu0
    %v6849 = vadd.f32 %v6830, %v6848
    %v6850 = vpop.f32.mrf.mxu0
    %v6851 = vadd.f32 %v6832, %v6850
    %6852 = vmatmul.bf16.gmra.mxu0 %v5759
    %v6853 = vpop.f32.mrf.mxu0
    %v6854 = vadd.f32 %v6835, %v6853
    %v6855 = vpop.f32.mrf.mxu0
    %v6856 = vadd.f32 %v6837, %v6855
    %6857 = vdwg.mxu0
    %6858 = vmatpush.bf16.msra.mxu0 %v6576
    %6859 = vmatpush.bf16.msra.mxu0 %v6575
    %6860 = vmatpush.bf16.msra.mxu0 %v6574
    %6861 = vmatpush.bf16.msra.mxu0 %v6573
    %6862 = vmatpush.bf16.msra.mxu0 %v6572
    %6863 = vmatpush.bf16.msra.mxu0 %v6571
    %6864 = vmatpush.bf16.msra.mxu0 %v6570
    %6865 = vmatpush.bf16.msra.mxu0 %v6569
    %6866 = vmatmul.bf16.gmra.mxu0 %v5744
    %v6867 = vpop.f32.mrf.mxu0
    %v6868 = vadd.f32 %v6849, %v6867
    %v6869 = vpop.f32.mrf.mxu0
    %v6870 = vadd.f32 %v6851, %v6869
    %6871 = vmatmul.bf16.gmra.mxu0 %v5760
    %v6872 = vpop.f32.mrf.mxu0
    %v6873 = vadd.f32 %v6854, %v6872
    %v6874 = vpop.f32.mrf.mxu0
    %v6875 = vadd.f32 %v6856, %v6874
    %6876 = vdwg.mxu0
    %6877 = vmatpush.bf16.msra.mxu0 %v6584
    %6878 = vmatpush.bf16.msra.mxu0 %v6583
    %6879 = vmatpush.bf16.msra.mxu0 %v6582
    %6880 = vmatpush.bf16.msra.mxu0 %v6581
    %6881 = vmatpush.bf16.msra.mxu0 %v6580
    %6882 = vmatpush.bf16.msra.mxu0 %v6579
    %6883 = vmatpush.bf16.msra.mxu0 %v6578
    %6884 = vmatpush.bf16.msra.mxu0 %v6577
    %6885 = vmatmul.bf16.gmra.mxu0 %v5745
    %v6886 = vpop.f32.mrf.mxu0
    %v6887 = vadd.f32 %v6868, %v6886
    %v6888 = vpop.f32.mrf.mxu0
    %v6889 = vadd.f32 %v6870, %v6888
    %6890 = vmatmul.bf16.gmra.mxu0 %v5761
    %v6891 = vpop.f32.mrf.mxu0
    %v6892 = vadd.f32 %v6873, %v6891
    %v6893 = vpop.f32.mrf.mxu0
    %v6894 = vadd.f32 %v6875, %v6893
    %6895 = vdwg.mxu0
    %6896 = vmatpush.bf16.msra.mxu0 %v6592
    %6897 = vmatpush.bf16.msra.mxu0 %v6591
    %6898 = vmatpush.bf16.msra.mxu0 %v6590
    %6899 = vmatpush.bf16.msra.mxu0 %v6589
    %6900 = vmatpush.bf16.msra.mxu0 %v6588
    %6901 = vmatpush.bf16.msra.mxu0 %v6587
    %6902 = vmatpush.bf16.msra.mxu0 %v6586
    %6903 = vmatpush.bf16.msra.mxu0 %v6585
    %6904 = vmatmul.bf16.gmra.mxu0 %v5746
    %v6905 = vpop.f32.mrf.mxu0
    %v6906 = vadd.f32 %v6887, %v6905
    %v6907 = vpop.f32.mrf.mxu0
    %v6908 = vadd.f32 %v6889, %v6907
    %6909 = vmatmul.bf16.gmra.mxu0 %v5762
    %v6910 = vpop.f32.mrf.mxu0
    %v6911 = vadd.f32 %v6892, %v6910
    %v6912 = vpop.f32.mrf.mxu0
    %v6913 = vadd.f32 %v6894, %v6912
    %6914 = vdwg.mxu0
    %6915 = vmatpush.bf16.msra.mxu0 %v6600
    %6916 = vmatpush.bf16.msra.mxu0 %v6599
    %6917 = vmatpush.bf16.msra.mxu0 %v6598
    %6918 = vmatpush.bf16.msra.mxu0 %v6597
    %6919 = vmatpush.bf16.msra.mxu0 %v6596
    %6920 = vmatpush.bf16.msra.mxu0 %v6595
    %6921 = vmatpush.bf16.msra.mxu0 %v6594
    %6922 = vmatpush.bf16.msra.mxu0 %v6593
    %6923 = vmatmul.bf16.gmra.mxu0 %v5747
    %v6924 = vpop.f32.mrf.mxu0
    %v6925 = vadd.f32 %v6906, %v6924
    %v6926 = vpop.f32.mrf.mxu0
    %v6927 = vadd.f32 %v6908, %v6926
    %6928 = vmatmul.bf16.gmra.mxu0 %v5763
    %v6929 = vpop.f32.mrf.mxu0
    %v6930 = vadd.f32 %v6911, %v6929
    %v6931 = vpop.f32.mrf.mxu0
    %v6932 = vadd.f32 %v6913, %v6931
    %6933 = vdwg.mxu0
    %6934 = vmatpush.bf16.msra.mxu0 %v6608
    %6935 = vmatpush.bf16.msra.mxu0 %v6607
    %6936 = vmatpush.bf16.msra.mxu0 %v6606
    %6937 = vmatpush.bf16.msra.mxu0 %v6605
    %6938 = vmatpush.bf16.msra.mxu0 %v6604
    %6939 = vmatpush.bf16.msra.mxu0 %v6603
    %6940 = vmatpush.bf16.msra.mxu0 %v6602
    %6941 = vmatpush.bf16.msra.mxu0 %v6601
    %6942 = vmatmul.bf16.gmra.mxu0 %v5748
    %v6943 = vpop.f32.mrf.mxu0
    %v6944 = vadd.f32 %v6925, %v6943
    %v6945 = vpop.f32.mrf.mxu0
    %v6946 = vadd.f32 %v6927, %v6945
    %6947 = vmatmul.bf16.gmra.mxu0 %v5764
    %v6948 = vpop.f32.mrf.mxu0
    %v6949 = vadd.f32 %v6930, %v6948
    %v6950 = vpop.f32.mrf.mxu0
    %v6951 = vadd.f32 %v6932, %v6950
    %6952 = vdwg.mxu0
    %6953 = vmatpush.bf16.msra.mxu0 %v6616
    %6954 = vmatpush.bf16.msra.mxu0 %v6615
    %6955 = vmatpush.bf16.msra.mxu0 %v6614
    %6956 = vmatpush.bf16.msra.mxu0 %v6613
    %6957 = vmatpush.bf16.msra.mxu0 %v6612
    %6958 = vmatpush.bf16.msra.mxu0 %v6611
    %6959 = vmatpush.bf16.msra.mxu0 %v6610
    %6960 = vmatpush.bf16.msra.mxu0 %v6609
    %6961 = vmatmul.bf16.gmra.mxu0 %v5749
    %v6962 = vpop.f32.mrf.mxu0
    %v6963 = vadd.f32 %v6944, %v6962
    %v6964 = vpop.f32.mrf.mxu0
    %v6965 = vadd.f32 %v6946, %v6964
    %6966 = vmatmul.bf16.gmra.mxu0 %v5765
    %v6967 = vpop.f32.mrf.mxu0
    %v6968 = vadd.f32 %v6949, %v6967
    %v6969 = vpop.f32.mrf.mxu0
    %v6970 = vadd.f32 %v6951, %v6969
    %6971 = vdwg.mxu0
    %6972 = vmatpush.bf16.msra.mxu0 %v6624
    %6973 = vmatpush.bf16.msra.mxu0 %v6623
    %6974 = vmatpush.bf16.msra.mxu0 %v6622
    %6975 = vmatpush.bf16.msra.mxu0 %v6621
    %6976 = vmatpush.bf16.msra.mxu0 %v6620
    %6977 = vmatpush.bf16.msra.mxu0 %v6619
    %6978 = vmatpush.bf16.msra.mxu0 %v6618
    %6979 = vmatpush.bf16.msra.mxu0 %v6617
    %6980 = vmatmul.bf16.gmra.mxu0 %v5750
    %v6981 = vpop.f32.mrf.mxu0
    %v6982 = vadd.f32 %v6963, %v6981
    %v6983 = vpop.f32.mrf.mxu0
    %v6984 = vadd.f32 %v6965, %v6983
    %6985 = vmatmul.bf16.gmra.mxu0 %v5766
    %v6986 = vpop.f32.mrf.mxu0
    %v6987 = vadd.f32 %v6968, %v6986
    %v6988 = vpop.f32.mrf.mxu0
    %v6989 = vadd.f32 %v6970, %v6988
    %6990 = vdwg.mxu0
    %6991 = vmatpush.bf16.msra.mxu0 %v6632
    %6992 = vmatpush.bf16.msra.mxu0 %v6631
    %6993 = vmatpush.bf16.msra.mxu0 %v6630
    %6994 = vmatpush.bf16.msra.mxu0 %v6629
    %6995 = vmatpush.bf16.msra.mxu0 %v6628
    %6996 = vmatpush.bf16.msra.mxu0 %v6627
    %6997 = vmatpush.bf16.msra.mxu0 %v6626
    %6998 = vmatpush.bf16.msra.mxu0 %v6625
    %6999 = vmatmul.bf16.gmra.mxu0 %v5751
    %v7000 = vpop.f32.mrf.mxu0
    %v7001 = vadd.f32 %v6982, %v7000
    %v7002 = vpop.f32.mrf.mxu0
    %v7003 = vadd.f32 %v6984, %v7002
    %7004 = vmatmul.bf16.gmra.mxu0 %v5767
    %v7005 = vpop.f32.mrf.mxu0
    %v7006 = vadd.f32 %v6987, %v7005
    %v7007 = vpop.f32.mrf.mxu0
    %v7008 = vadd.f32 %v6989, %v7007
    %7009 = vdwg.mxu0
    %7010 = vmatpush.bf16.msra.mxu0 %v6640
    %7011 = vmatpush.bf16.msra.mxu0 %v6639
    %7012 = vmatpush.bf16.msra.mxu0 %v6638
    %7013 = vmatpush.bf16.msra.mxu0 %v6637
    %7014 = vmatpush.bf16.msra.mxu0 %v6636
    %7015 = vmatpush.bf16.msra.mxu0 %v6635
    %7016 = vmatpush.bf16.msra.mxu0 %v6634
    %7017 = vmatpush.bf16.msra.mxu0 %v6633
    %7018 = vmatmul.bf16.gmra.mxu0 %v5752
    %v7019 = vpop.f32.mrf.mxu0
    %v7020 = vadd.f32 %v7001, %v7019
    %v7021 = vpop.f32.mrf.mxu0
    %v7022 = vadd.f32 %v7003, %v7021
    %7023 = vmatmul.bf16.gmra.mxu0 %v5768
    %v7024 = vpop.f32.mrf.mxu0
    %v7025 = vadd.f32 %v7006, %v7024
    %v7026 = vpop.f32.mrf.mxu0
    %v7027 = vadd.f32 %v7008, %v7026
    %7028 = vdwg.mxu0
    %7029 = vmatpush.bf16.msra.mxu0 %v6648
    %7030 = vmatpush.bf16.msra.mxu0 %v6647
    %7031 = vmatpush.bf16.msra.mxu0 %v6646
    %7032 = vmatpush.bf16.msra.mxu0 %v6645
    %7033 = vmatpush.bf16.msra.mxu0 %v6644
    %7034 = vmatpush.bf16.msra.mxu0 %v6643
    %7035 = vmatpush.bf16.msra.mxu0 %v6642
    %7036 = vmatpush.bf16.msra.mxu0 %v6641
    %7037 = vmatmul.bf16.gmra.mxu0 %v5753
    %v7038 = vpop.f32.mrf.mxu0
    %v7039 = vadd.f32 %v7020, %v7038
    %v7040 = vpop.f32.mrf.mxu0
    %v7041 = vadd.f32 %v7022, %v7040
    %7042 = vmatmul.bf16.gmra.mxu0 %v5769
    %v7043 = vpop.f32.mrf.mxu0
    %v7044 = vadd.f32 %v7025, %v7043
    %v7045 = vpop.f32.mrf.mxu0
    %v7046 = vadd.f32 %v7027, %v7045
    %7047 = vdwg.mxu0
    %7048 = vmatpush.bf16.msra.mxu0 %v6656
    %7049 = vmatpush.bf16.msra.mxu0 %v6655
    %7050 = vmatpush.bf16.msra.mxu0 %v6654
    %7051 = vmatpush.bf16.msra.mxu0 %v6653
    %7052 = vmatpush.bf16.msra.mxu0 %v6652
    %7053 = vmatpush.bf16.msra.mxu0 %v6651
    %7054 = vmatpush.bf16.msra.mxu0 %v6650
    %7055 = vmatpush.bf16.msra.mxu0 %v6649
    %7056 = vmatmul.bf16.gmra.mxu0 %v5754
    %v7057 = vpop.f32.mrf.mxu0
    %v7058 = vadd.f32 %v7039, %v7057
    %v7059 = vpop.f32.mrf.mxu0
    %v7060 = vadd.f32 %v7041, %v7059
    %7061 = vmatmul.bf16.gmra.mxu0 %v5770
    %v7062 = vpop.f32.mrf.mxu0
    %v7063 = vadd.f32 %v7044, %v7062
    %v7064 = vpop.f32.mrf.mxu0
    %v7065 = vadd.f32 %v7046, %v7064
    %7066 = vdwg.mxu0
    %7067 = vmatpush.bf16.msra.mxu0 %v6664
    %7068 = vmatpush.bf16.msra.mxu0 %v6663
    %7069 = vmatpush.bf16.msra.mxu0 %v6662
    %7070 = vmatpush.bf16.msra.mxu0 %v6661
    %7071 = vmatpush.bf16.msra.mxu0 %v6660
    %7072 = vmatpush.bf16.msra.mxu0 %v6659
    %7073 = vmatpush.bf16.msra.mxu0 %v6658
    %7074 = vmatpush.bf16.msra.mxu0 %v6657
    %7075 = vmatmul.bf16.gmra.mxu0 %v5755
    %v7076 = vpop.f32.mrf.mxu0
    %v7077 = vadd.f32 %v7058, %v7076
    %v7078 = vpop.f32.mrf.mxu0
    %v7079 = vadd.f32 %v7060, %v7078
    %7080 = vmatmul.bf16.gmra.mxu0 %v5771
    %v7081 = vpop.f32.mrf.mxu0
    %v7082 = vadd.f32 %v7063, %v7081
    %v7083 = vpop.f32.mrf.mxu0
    %v7084 = vadd.f32 %v7065, %v7083
    %7085 = vdwg.mxu0
    %7086 = vmatpush.bf16.msra.mxu0 %v6672
    %7087 = vmatpush.bf16.msra.mxu0 %v6671
    %7088 = vmatpush.bf16.msra.mxu0 %v6670
    %7089 = vmatpush.bf16.msra.mxu0 %v6669
    %7090 = vmatpush.bf16.msra.mxu0 %v6668
    %7091 = vmatpush.bf16.msra.mxu0 %v6667
    %7092 = vmatpush.bf16.msra.mxu0 %v6666
    %7093 = vmatpush.bf16.msra.mxu0 %v6665
    %7094 = vmatmul.bf16.gmra.mxu0 %v5756
    %v7095 = vpop.f32.mrf.mxu0
    %v7096 = vadd.f32 %v7077, %v7095
    %v7097 = vpop.f32.mrf.mxu0
    %v7098 = vadd.f32 %v7079, %v7097
    %7099 = vmatmul.bf16.gmra.mxu0 %v5772
    %v7100 = vpop.f32.mrf.mxu0
    %v7101 = vadd.f32 %v7082, %v7100
    %v7102 = vpop.f32.mrf.mxu0
    %v7103 = vadd.f32 %v7084, %v7102
    %7104 = vdwg.mxu0
    %v7105 = vadd.f32 %v5134, %v7096
    %v7106 = vadd.f32 %v5135, %v7098
    %v7107 = vadd.f32 %v5136, %v7101
    %v7108 = vadd.f32 %v5137, %v7103
    %v7109 = vsel %vm140, %v7105, 0.0
    %7110 = vadd.xlane.f32.xlu0 %v7109
    %v7111 = vpop.xlane.xlu0 %7110
    %v7112 = vsel %vm140, %v7106, 0.0
    %7113 = vadd.xlane.f32.xlu0 %v7112
    %v7114 = vpop.xlane.xlu0 %7113
    %v7115 = vsel %vm140, %v7107, 0.0
    %7116 = vadd.xlane.f32.xlu0 %v7115
    %v7117 = vpop.xlane.xlu0 %7116
    %v7118 = vsel %vm140, %v7108, 0.0
    %7119 = vadd.xlane.f32.xlu0 %v7118
    %v7120 = vpop.xlane.xlu0 %7119
    %v7121 = vmul.f32 %v7111, %v1484
    %v7122 = vmul.f32 %v7114, %v1484
    %v7123 = vmul.f32 %v7117, %v1484
    %v7124 = vmul.f32 %v7120, %v1484
    %v7125 = vmul.f32 %v7105, %v7105
    %v7126 = vmul.f32 %v7106, %v7106
    %v7127 = vmul.f32 %v7107, %v7107
    %v7128 = vmul.f32 %v7108, %v7108
    %v7129 = vsel %vm140, %v7125, 0.0
    %7130 = vadd.xlane.f32.xlu0 %v7129
    %v7131 = vpop.xlane.xlu0 %7130
    %v7132 = vsel %vm140, %v7126, 0.0
    %7133 = vadd.xlane.f32.xlu0 %v7132
    %v7134 = vpop.xlane.xlu0 %7133
    %v7135 = vsel %vm140, %v7127, 0.0
    %7136 = vadd.xlane.f32.xlu0 %v7135
    %v7137 = vpop.xlane.xlu0 %7136
    %v7138 = vsel %vm140, %v7128, 0.0
    %7139 = vadd.xlane.f32.xlu0 %v7138
    %v7140 = vpop.xlane.xlu0 %7139
    %v7141 = vmul.f32 %v7131, %v1484
    %v7142 = vmul.f32 %v7134, %v1484
    %v7143 = vmul.f32 %v7137, %v1484
    %v7144 = vmul.f32 %v7140, %v1484
    %v7145 = vmul.f32 %v7121, %v7121
    %v7146 = vmul.f32 %v7122, %v7122
    %v7147 = vmul.f32 %v7123, %v7123
    %v7148 = vmul.f32 %v7124, %v7124
    %v7149 = vsub.f32 %v7141, %v7145
    %v7150 = vsub.f32 %v7142, %v7146
    %v7151 = vsub.f32 %v7143, %v7147
    %v7152 = vsub.f32 %v7144, %v7148
    %v7153 = vadd.f32 %v7149, 1e-05
    %v7154 = vadd.f32 %v7150, 1e-05
    %v7155 = vadd.f32 %v7151, 1e-05
    %v7156 = vadd.f32 %v7152, 1e-05
    %v7157 = vrsqrt.pop %v7153
    %v7158 = vmul.f32 %v7157, %v7153
    %v7159 = vmul.f32 %v7158, %v7157
    %v7160 = vmul.f32 0.5, %v7159
    %v7161 = vsub.f32 1.5, %v7160
    %v7162 = vmul.f32 %v7157, %v7161
    %vm7163 = vweird.f32 %v7153
    %vm7164 = vweird.f32 %v7157
    %vm7165 = vmor %vm7163, %vm7164
    %v7166 = vsel %vm7165, %v7157, %v7162
    %v7167 = vrsqrt.pop %v7154
    %v7168 = vmul.f32 %v7167, %v7154
    %v7169 = vmul.f32 %v7168, %v7167
    %v7170 = vmul.f32 0.5, %v7169
    %v7171 = vsub.f32 1.5, %v7170
    %v7172 = vmul.f32 %v7167, %v7171
    %vm7173 = vweird.f32 %v7154
    %vm7174 = vweird.f32 %v7167
    %vm7175 = vmor %vm7173, %vm7174
    %v7176 = vsel %vm7175, %v7167, %v7172
    %v7177 = vrsqrt.pop %v7155
    %v7178 = vmul.f32 %v7177, %v7155
    %v7179 = vmul.f32 %v7178, %v7177
    %v7180 = vmul.f32 0.5, %v7179
    %v7181 = vsub.f32 1.5, %v7180
    %v7182 = vmul.f32 %v7177, %v7181
    %vm7183 = vweird.f32 %v7155
    %vm7184 = vweird.f32 %v7177
    %vm7185 = vmor %vm7183, %vm7184
    %v7186 = vsel %vm7185, %v7177, %v7182
    %v7187 = vrsqrt.pop %v7156
    %v7188 = vmul.f32 %v7187, %v7156
    %v7189 = vmul.f32 %v7188, %v7187
    %v7190 = vmul.f32 0.5, %v7189
    %v7191 = vsub.f32 1.5, %v7190
    %v7192 = vmul.f32 %v7187, %v7191
    %vm7193 = vweird.f32 %v7156
    %vm7194 = vweird.f32 %v7187
    %vm7195 = vmor %vm7193, %vm7194
    %v7196 = vsel %vm7195, %v7187, %v7192
    %v7197 = vsub.f32 %v7105, %v7121
    %v7198 = vsub.f32 %v7106, %v7122
    %v7199 = vsub.f32 %v7107, %v7123
    %v7200 = vsub.f32 %v7108, %v7124
    %v7201 = vmul.f32 %v7197, %v7166
    %v7202 = vmul.f32 %v7198, %v7176
    %v7203 = vmul.f32 %v7199, %v7186
    %v7204 = vmul.f32 %v7200, %v7196
    %v7206 = vperm.slane %v3667, 0
    %v7208 = vmul.f32 %v7201, %v7206
    %v7209 = vmul.f32 %v7202, %v7206
    %v7210 = vmul.f32 %v7203, %v7206
    %v7211 = vmul.f32 %v7204, %v7206
    %v7213 = vperm.slane %v3669, 0
    %v7215 = vadd.f32 %v7208, %v7213
    %v7216 = vadd.f32 %v7209, %v7213
    %v7217 = vadd.f32 %v7210, %v7213
    %v7218 = vadd.f32 %v7211, %v7213
    %v7219 = vsel %vm140, %v7215, 0.0
    %v7220 = vsel %vm140, %v7216, 0.0
    %v7221 = vadd.f32 %v7219, %v7220
    %v7222 = vrot.slane %v7221, 4
    %v7223 = vadd.f32 %v7221, %v7222
    %v7224 = vrot.slane %v7223, 2
    %v7225 = vadd.f32 %v7223, %v7224
    %v7226 = vrot.slane %v7225, 1
    %v7227 = vadd.f32 %v7225, %v7226
    %v7228 = vsel %vm140, %v7217, 0.0
    %v7229 = vsel %vm140, %v7218, 0.0
    %v7230 = vadd.f32 %v7228, %v7229
    %v7231 = vrot.slane %v7230, 4
    %v7232 = vadd.f32 %v7230, %v7231
    %v7233 = vrot.slane %v7232, 2
    %v7234 = vadd.f32 %v7232, %v7233
    %v7235 = vrot.slane %v7234, 1
    %v7236 = vadd.f32 %v7234, %v7235
    %v7237 = vrcp.pop 16.0
    %v7238 = vmul.f32 16.0, %v7237
    %v7239 = vsub.f32 1.0, %v7238
    %v7240 = vmul.f32 %v7237, %v7239
    %v7241 = vadd.f32 %v7237, %v7240
    %vm7242 = vweird.f32 %v7237
    %v7243 = vsel %vm7242, %v7237, %v7241
    %v7244 = vmul.f32 %v7227, %v7243
    %v7245 = vmul.f32 %v7236, %v7243
    %v7246 = vpack.c.bf16 %v7244, %v7244
    %v7247 = vpack.c.bf16 %v7245, %v7245
    %v7248 = vld [vmem:[%s19] sm:$0xf]
    %v7249 = vld [vmem:[%s19 + $0x4] sm:$0xf]
    %v7250 = vld [vmem:[%s19 + $0x8] sm:$0xf]
    %v7251 = vld [vmem:[%s19 + $0xc] sm:$0xf]
    %v7252 = vld [vmem:[%s20] sm:$0x1]
    %v7254 = vperm.slane %v7252, 0
    %v7258 = vunpack.c.l.b16 %v7246
    %v7259 = vunpack.c.l.b16 %v7247
    %vm7260 = vcmask 1041409
    %v7261 = vsel %vm7260, %v7259, %v7258
    %v7262 = vpack.c.b16 %v7261, %v7261
    %v7267 = vunpack.c.l.b16 %v7248
    %v7268 = vunpack.c.l.b16 %v7249
    %v7269 = vunpack.c.l.b16 %v7250
    %v7270 = vunpack.c.l.b16 %v7251
    %v7271 = vpack.c.b16 %v7268, %v7267
    %v7272 = vpack.c.b16 %v7270, %v7269
    %v7276 = vsel %vm140, %v7262, 0
    %7278 = vmatpush.bf16.msra.mxu0 0
    %7279 = vmatpush.bf16.msra.mxu0 0
    %7280 = vmatpush.bf16.msra.mxu0 0
    %7281 = vmatpush.bf16.msra.mxu0 0
    %7282 = vmatpush.bf16.msra.mxu0 0
    %7283 = vmatpush.bf16.msra.mxu0 0
    %7284 = vmatpush.bf16.msra.mxu0 %v7272
    %7285 = vmatpush.bf16.msra.mxu0 %v7271
    %7286 = vmatmul.bf16.gmra.mxu0 %v7276
    %v7287 = vpop.f32.mrf.mxu0
    %v7288 = vadd.f32 %v7254, %v7287
    %v7289 = vpop.f32.mrf.mxu0
    %7290 = vdwg.mxu0
    %vm7291 = vcmask 9216
    %7292 = vst.msk [vmem:[#allocation2] sm:$0x3] %vm7291, %v7288
    // Predicated region
    $region86: #{tpu_custom_call.1} parent=1 // pred_check
      _
    $region87: #{tpu_custom_call.1} parent=1 // pred_check_branch
      %7294 = sbr.rel (0) target = $region89
    $region88: #{tpu_custom_call.1} parent=1 // pred_region
      %7296 = vsyncadd [#allocation3], 0
      %s7298 = sshll.u32 [#allocation2], 4
      %s7299 = int_to_ptr.vmem [resolvable:$true] %s7298
      %s7300 = sshll.u32 %s21, 4
      %s7301 = int_to_ptr.hbm [resolvable:$true] %s7300
      %7303 = dma.vmem_to_hbm [thread:$0]  %s7299, 32, %s7301, [#allocation3]
    $region89: #{tpu_custom_call.1} parent=1 // pred_fallthru
      _
    // Predicated region
    $region90: #{tpu_custom_call.1} parent=1 // pred_check
      _
    $region91: #{tpu_custom_call.1} parent=1 // pred_check_branch
      %7305 = sbr.rel (0) target = $region93
    $region92: #{tpu_custom_call.1} parent=1 // pred_region
      %7307 = dma.done [#allocation3], 32
    $region93: #{tpu_custom_call.1} parent=1 // pred_fallthru
      _
    %7308 = vsyncpa [#allocation3], 1

</llo_original>
